<compile_context>
chip_gen: v7x
topology: tpu7x:2x2x1
jax: 0.10.0
libtpu: 0.0.40
codegen_flags: <defaults>
</compile_context>

<pallas_src>
import jax
import jax.numpy as jnp
from jax import lax
from jax.experimental import pallas as pl
from jax.experimental.pallas import tpu as pltpu

# ----------------------------- configuration -------------------------------
DATA_CHANNELS = 4
FILTERS = [[8, 8], [8, 8], [8, 8]]   # one list per scale
SCALES = 3
INPUT_VAL = True
OUTPUT_VAL = True
# pad_method = 'zeros' (nn.Conv2d default) -> zero padding, matched in-kernel.


# ------------------- bilinear interp (PyTorch align_corners=False) ----------
def _interp_matrix(out_size, in_size):
    """(out_size, in_size) dense interpolation matrix matching
    F.interpolate(mode='bilinear', align_corners=False, antialias=False)."""
    scale = in_size / out_size
    o = jnp.arange(out_size, dtype=jnp.float32)
    src = jnp.maximum((o + 0.5) * scale - 0.5, 0.0)
    i0 = jnp.clip(jnp.floor(src).astype(jnp.int32), 0, in_size - 1)
    i1 = jnp.clip(i0 + 1, 0, in_size - 1)
    w1 = src - i0.astype(jnp.float32)
    w0 = 1.0 - w1
    return (w0[:, None] * jax.nn.one_hot(i0, in_size, dtype=jnp.float32)
            + w1[:, None] * jax.nn.one_hot(i1, in_size, dtype=jnp.float32))


def _flat_resize_matrix(in_res, out_res):
    """(H_in*W_in, H_out*W_out) matrix M so that  y_flat = x_flat @ M
    bilinearly resizes a row-major flattened (C, H_in*W_in) image."""
    a_h = _interp_matrix(out_res[0], in_res[0])
    a_w = _interp_matrix(out_res[1], in_res[1])
    return jnp.kron(a_h, a_w).T


def _round_up(v, m):
    return ((v + m - 1) // m) * m


# ----------------------- fused full-forward Pallas kernel -------------------
def flexinet_forward(x, params):
    """x: (B, DATA_CHANNELS, H, W) f32 -> (B, 1, H, W) f32, one pallas_call."""
    B, C0, H, W = x.shape
    all_blocks = list(params["blocks"]) + [params["final"]]
    n_blocks = len(all_blocks)

    # scale (resolution level) each conv block runs at:
    # encoder 0..S-1, then bottleneck+decoder S-1..0, then final at 0
    block_scale = (list(range(SCALES))
                   + [SCALES - 1 - i for i in range(SCALES)]
                   + [0])
    chains = []
    for bp in all_blocks:
        chains.append([bp[0][0].shape[1]] + [w.shape[0] for (w, _) in bp])

    res = [(int(H / 2 ** s), int(W / 2 ** s)) for s in range(SCALES)]
    hw = [h_ * w_ for (h_, w_) in res]
    padl = [_round_up(res[s][1] + 1, 128) for s in range(SCALES)]   # left halo
    padded_w = [padl[s] + hw[s] + res[s][1] + 1 for s in range(SCALES)]

    max_c = [1] * SCALES
    max_cin = [1] * SCALES
    for b in range(n_blocks):
        s = block_scale[b]
        max_c[s] = max(max_c[s], max(chains[b]))
        max_cin[s] = max(max_cin[s], max(chains[b][:-1]))

    # distinct (src_scale, dst_scale) bilinear resizes used by the schedule
    pairs = []

    def _need(src, dst):
        if src != dst and (src, dst) not in pairs:
            pairs.append((src, dst))

    for i in range(1, SCALES):
        if INPUT_VAL:
            _need(0, i)
        _need(i - 1, i)
    cur = SCALES - 1
    for i in range(SCALES):
        k = SCALES - 1 - i
        _need(cur, k)
        cur = k
        if OUTPUT_VAL:
            _need(k, 0)

    # ----------------- flatten kernel inputs & build BlockSpecs -------------
    args = [x.reshape(B, C0, hw[0])]                 # free, contiguous reshape
    in_specs = [pl.BlockSpec((1, C0, hw[0]), lambda bi: (bi, 0, 0))]
    conv_pos = []                                    # conv_pos[b][l] = (w_idx, b_idx)
    idx = 1
    for bp in all_blocks:
        pos_b = []
        for (w, b_) in bp:
            cout, cin = w.shape[0], w.shape[1]
            # (Cout,Cin,3,3) -> (Cout, 9*Cin), column index (dy*3+dx)*Cin + ci
            w_mat = jnp.transpose(w, (0, 2, 3, 1)).reshape(cout, 9 * cin)
            args.append(w_mat)
            in_specs.append(pl.BlockSpec((cout, 9 * cin), lambda bi: (0, 0)))
            args.append(b_.reshape(cout, 1))
            in_specs.append(pl.BlockSpec((cout, 1), lambda bi: (0, 0)))
            pos_b.append((idx, idx + 1))
            idx += 2
        conv_pos.append(pos_b)
    resize_pos = {}
    for (s, d) in pairs:
        m = _flat_resize_matrix(res[s], res[d])
        args.append(m)
        in_specs.append(pl.BlockSpec((hw[s], hw[d]), lambda bi: (0, 0)))
        resize_pos[(s, d)] = idx
        idx += 1
    n_inputs = idx

    # per-scale VMEM scratch: flat zero-padded activations + im2col patches
    scratch = []
    pad_sid, im_sid = [], []
    for s in range(SCALES):
        pad_sid.append(len(scratch))
        scratch.append(pltpu.VMEM((max_c[s], padded_w[s]), jnp.float32))
        im_sid.append(len(scratch))
        scratch.append(pltpu.VMEM((9 * max_cin[s], hw[s]), jnp.float32))

    # -------------------------------- kernel --------------------------------
    def kernel(*refs):
        x_ref = refs[0]
        out_ref = refs[n_inputs]
        sc = refs[n_inputs + 1:]
        pad_refs = [sc[pad_sid[s]] for s in range(SCALES)]
        im_refs = [sc[im_sid[s]] for s in range(SCALES)]

        # horizontal-wrap masks, computed once per scale (hoisted)
        edge_masks = []
        for s in range(SCALES):
            col = lax.broadcasted_iota(jnp.int32, (1, hw[s]), 1) % res[s][1]
            edge_masks.append((col == 0, col == res[s][1] - 1))

        def resize(v, src, dst):
            if src == dst:
                return v
            m_ref = refs[resize_pos[(src, dst)]]
            return jnp.dot(v, m_ref[...], preferred_element_type=jnp.float32)

        def conv_block(pieces, b):
            """_ConvscaleFlexible: Conv -> (ReLU -> Conv)*, all in VMEM."""
            s = block_scale[b]
            Ws, HWs, pw = res[s][1], hw[s], padl[s]
            pad_ref, im_ref = pad_refs[s], im_refs[s]
            left_edge, right_edge = edge_masks[s]
            chain = chains[b]

            # zero halos (and any stale interior), then load the block input;
            # writing pieces at different sublane offsets = channel concat
            pad_ref[...] = jnp.zeros_like(pad_ref)
            ofs = 0
            for v in pieces:
                c = v.shape[0]
                pad_ref[ofs:ofs + c, pw:pw + HWs] = v
                ofs += c
            assert ofs == chain[0]

            out = None
            for l in range(len(chain) - 1):
                cin, cout = chain[l], chain[l + 1]
                wi, bi = conv_pos[b][l]
                # im2col: 9 shifted copies stacked on sublanes -> (9*cin, HW)
                for dy in range(3):
                    for dx in range(3):
                        sh = (dy - 1) * Ws + (dx - 1)
                        v = pad_ref[0:cin, pw + sh:pw + sh + HWs]
                        if dx == 0:
                            v = jnp.where(left_edge, 0.0, v)
                        elif dx == 2:
                            v = jnp.where(right_edge, 0.0, v)
                        im_ref[(dy * 3 + dx) * cin:(dy * 3 + dx + 1) * cin, :] = v
                # one fat-K MXU matmul per conv layer + lane-broadcast bias
                out = jnp.dot(refs[wi][...], im_ref[0:9 * cin, :],
                              preferred_element_type=jnp.float32) + refs[bi][...]
                if l < len(chain) - 2:
                    out = jnp.maximum(out, 0.0)            # fused ReLU
                    pad_ref[0:cout, pw:pw + HWs] = out     # stays in VMEM
            return out

        x0 = x_ref[0]                                      # (C0, H*W)

        # encoder (downscaling) path
        acts = []
        x_out = None
        for i in range(SCALES):
            if i == 0:
                x_out = conv_block([x0], 0)
            elif INPUT_VAL:
                x_out = conv_block([resize(x0, 0, i), resize(x_out, i - 1, i)], i)
            else:
                x_out = conv_block([resize(x_out, i - 1, i)], i)
            acts.append(x_out)

        # decoder (upscaling) path
        cur = SCALES - 1
        x_layers = []
        for i in range(SCALES):
            k = SCALES - 1 - i
            if i == 0:
                pieces = [resize(x_out, cur, k)]
            else:
                pieces = [acts[k], resize(x_out, cur, k)]
            x_out = conv_block(pieces, SCALES + i)
            cur = k
            if OUTPUT_VAL:
                # F.interpolate(x_out[:, 0:1], (H, W)): resize all channels
                # (avoids an M=1 matmul) then take channel 0.
                x_layers.append(resize(x_out, k, 0)[0:1, :])

        y = conv_block([x_out], n_blocks - 1)              # final 1-channel block
        if OUTPUT_VAL:
            # torch overwrites x_layers_out[:, -1] with the final output and
            # then adds only indices 0..scales-2
            for i in range(SCALES - 1):
                y = y + x_layers[i]
        out_ref[0] = y

    # ------------------------------ cost hint --------------------------------
    flops = 0
    for b in range(n_blocks):
        s = block_scale[b]
        for l in range(len(chains[b]) - 1):
            flops += 2 * B * hw[s] * 9 * chains[b][l] * chains[b][l + 1]
    for (s, d) in pairs:
        flops += 2 * B * 8 * hw[s] * hw[d]                 # resize matmuls (approx)
    bytes_accessed = 4 * (B * C0 * hw[0] + B * hw[0]
                          + sum(int(a.size) for a in args[1:]))

    out = pl.pallas_call(
        kernel,
        out_shape=jax.ShapeDtypeStruct((B, 1, hw[0]), jnp.float32),
        grid_spec=pltpu.PrefetchScalarGridSpec(
            num_scalar_prefetch=0,
            grid=(B,),
            in_specs=in_specs,
            out_specs=pl.BlockSpec((1, 1, hw[0]), lambda bi: (bi, 0, 0)),
            scratch_shapes=scratch,
        ),
        compiler_params=pltpu.CompilerParams(dimension_semantics=("parallel",)),
        cost_estimate=pl.CostEstimate(flops=flops, transcendentals=0,
                                      bytes_accessed=bytes_accessed),
    )(*args)
    return out.reshape(B, 1, H, W)


# ------------------------- parameter initialization -------------------------
def _init_conv(key, cin, cout):
    kw, kb = jax.random.split(key)
    bound = 1.0 / jnp.sqrt(jnp.float32(cin * 9))
    w = jax.random.uniform(kw, (cout, cin, 3, 3), jnp.float32, -bound, bound)
    b = jax.random.uniform(kb, (cout,), jnp.float32, -bound, bound)
    return (w, b)


def _init_block(key, cin, filt):
    """_ConvscaleFlexible: Conv(cin->f0), ReLU, Conv(f0->f1), ..."""
    chain = [cin] + list(filt)
    keys = jax.random.split(key, len(filt))
    return [_init_conv(keys[j], chain[j], chain[j + 1]) for j in range(len(filt))]


def init_flexinet(key):
    block_in, block_filt = [], []
    # encoder
    block_in.append(DATA_CHANNELS)
    block_filt.append(FILTERS[0])
    for i in range(SCALES - 1):
        concat_input = FILTERS[i][-1]
        cin = DATA_CHANNELS + concat_input if INPUT_VAL else concat_input
        block_in.append(cin)
        block_filt.append(FILTERS[i + 1])
    # bottleneck
    block_in.append(FILTERS[-1][-1])
    block_filt.append(FILTERS[-1])
    # decoder
    for i in range(SCALES - 2, -1, -1):
        block_in.append(FILTERS[i][-1] + FILTERS[i + 1][-1])
        block_filt.append(FILTERS[i])
    keys = jax.random.split(key, len(block_in) + 1)
    blocks = [_init_block(keys[j], block_in[j], block_filt[j])
              for j in range(len(block_in))]
    final = _init_block(keys[-1], FILTERS[0][-1], [1])
    return {"blocks": blocks, "final": final}


# -------------------- pure-JAX reference (verification only) ----------------
def _bilinear_resize_ref(x, oh, ow):
    B, C, H, W = x.shape
    if (H, W) == (oh, ow):
        return x
    a_h = _interp_matrix(oh, H)
    a_w = _interp_matrix(ow, W)
    y = jnp.einsum('oh,bchw->bcow', a_h, x, precision=lax.Precision.HIGHEST)
    return jnp.einsum('pw,bcow->bcop', a_w, y, precision=lax.Precision.HIGHEST)


def _block_ref(x, block_params):
    for l, (w, b) in enumerate(block_params):
        if l > 0:
            x = jax.nn.relu(x)
        x = lax.conv_general_dilated(
            x, w, window_strides=(1, 1), padding=((1, 1), (1, 1)),
            dimension_numbers=('NCHW', 'OIHW', 'NCHW'),
            precision=lax.Precision.HIGHEST) + b[None, :, None, None]
    return x


def flexinet_forward_ref(x, params):
    B, C, H, W = x.shape
    output_list = []
    x_out = None
    for i in range(SCALES):
        sh, sw = int(H / 2 ** i), int(W / 2 ** i)
        if i == 0:
            x_out = _block_ref(x, params["blocks"][0])
        elif INPUT_VAL:
            inp = jnp.concatenate([_bilinear_resize_ref(x, sh, sw),
                                   _bilinear_resize_ref(x_out, sh, sw)], axis=1)
            x_out = _block_ref(inp, params["blocks"][i])
        else:
            x_out = _block_ref(_bilinear_resize_ref(x_out, sh, sw),
                               params["blocks"][i])
        output_list.append(x_out)
    k = SCALES
    x_layers = []
    for i in range(SCALES):
        k -= 1
        sh, sw = int(H / 2 ** k), int(W / 2 ** k)
        if i == 0:
            inp = _bilinear_resize_ref(x_out, sh, sw)
        else:
            inp = jnp.concatenate([_bilinear_resize_ref(output_list[k], sh, sw),
                                   _bilinear_resize_ref(x_out, sh, sw)], axis=1)
        x_out = _block_ref(inp, params["blocks"][SCALES + i])
        if OUTPUT_VAL:
            x_layers.append(_bilinear_resize_ref(x_out[:, 0:1], H, W))
    x_out = _block_ref(x_out, params["final"])
    if OUTPUT_VAL:
        for i in range(SCALES - 1):
            x_out = x_out + x_layers[i]
    return x_out


# --------------------------------- main -------------------------------------
if __name__ == "__main__":
    key = jax.random.PRNGKey(0)
    kx, kp = jax.random.split(key)
    x = jax.random.normal(kx, (2, DATA_CHANNELS, 16, 16), dtype=jnp.float32)
    params = init_flexinet(kp)

    fwd = jax.jit(flexinet_forward)
    out = fwd(x, params)
    jax.block_until_ready(out)
    assert out.shape == (2, 1, 16, 16), out.shape
    assert out.dtype == jnp.float32

    ref = jax.jit(flexinet_forward_ref)(x, params)
    jax.block_until_ready(ref)
    max_err = float(jnp.max(jnp.abs(out - ref)))
    assert max_err < 2e-2, f"kernel/reference mismatch: max abs err {max_err}"
    print("KERNEL_OK")
</pallas_src>

<mosaic_0001>
module attributes {stable_mosaic.version = 11 : i64} {
  func.func @kernel(%arg0: i32, %arg1: memref<1x4x256xf32, #tpu.memory_space<vmem>>, %arg2: memref<8x36xf32, #tpu.memory_space<vmem>>, %arg3: memref<8x1xf32, #tpu.memory_space<vmem>>, %arg4: memref<8x72xf32, #tpu.memory_space<vmem>>, %arg5: memref<8x1xf32, #tpu.memory_space<vmem>>, %arg6: memref<8x108xf32, #tpu.memory_space<vmem>>, %arg7: memref<8x1xf32, #tpu.memory_space<vmem>>, %arg8: memref<8x72xf32, #tpu.memory_space<vmem>>, %arg9: memref<8x1xf32, #tpu.memory_space<vmem>>, %arg10: memref<8x108xf32, #tpu.memory_space<vmem>>, %arg11: memref<8x1xf32, #tpu.memory_space<vmem>>, %arg12: memref<8x72xf32, #tpu.memory_space<vmem>>, %arg13: memref<8x1xf32, #tpu.memory_space<vmem>>, %arg14: memref<8x72xf32, #tpu.memory_space<vmem>>, %arg15: memref<8x1xf32, #tpu.memory_space<vmem>>, %arg16: memref<8x72xf32, #tpu.memory_space<vmem>>, %arg17: memref<8x1xf32, #tpu.memory_space<vmem>>, %arg18: memref<8x144xf32, #tpu.memory_space<vmem>>, %arg19: memref<8x1xf32, #tpu.memory_space<vmem>>, %arg20: memref<8x72xf32, #tpu.memory_space<vmem>>, %arg21: memref<8x1xf32, #tpu.memory_space<vmem>>, %arg22: memref<8x144xf32, #tpu.memory_space<vmem>>, %arg23: memref<8x1xf32, #tpu.memory_space<vmem>>, %arg24: memref<8x72xf32, #tpu.memory_space<vmem>>, %arg25: memref<8x1xf32, #tpu.memory_space<vmem>>, %arg26: memref<1x72xf32, #tpu.memory_space<vmem>>, %arg27: memref<1x1xf32, #tpu.memory_space<vmem>>, %arg28: memref<256x64xf32, #tpu.memory_space<vmem>>, %arg29: memref<256x16xf32, #tpu.memory_space<vmem>>, %arg30: memref<64x16xf32, #tpu.memory_space<vmem>>, %arg31: memref<16x256xf32, #tpu.memory_space<vmem>>, %arg32: memref<16x64xf32, #tpu.memory_space<vmem>>, %arg33: memref<64x256xf32, #tpu.memory_space<vmem>>, %arg34: memref<1x1x256xf32, #tpu.memory_space<vmem>>, %arg35: memref<16x401xf32, #tpu.memory_space<vmem>>, %arg36: memref<144x256xf32, #tpu.memory_space<vmem>>, %arg37: memref<16x201xf32, #tpu.memory_space<vmem>>, %arg38: memref<144x64xf32, #tpu.memory_space<vmem>>, %arg39: memref<12x149xf32, #tpu.memory_space<vmem>>, %arg40: memref<108x16xf32, #tpu.memory_space<vmem>>) attributes {dimension_semantics = [#tpu.dimension_semantics<parallel>], iteration_bounds = array<i64: 2>, scalar_prefetch = 0 : i64, scratch_operands = 6 : i64, tpu.core_type = #tpu.core_type<tc>, window_params = [{transform_indices = @transform_0, window_bounds = array<i64: 1, 4, 256>}, {pipeline_mode = #tpu.pipeline_mode<synchronous>, transform_indices = @transform_1, window_bounds = array<i64: 8, 36>}, {pipeline_mode = #tpu.pipeline_mode<synchronous>, transform_indices = @transform_2, window_bounds = array<i64: 8, 1>}, {pipeline_mode = #tpu.pipeline_mode<synchronous>, transform_indices = @transform_3, window_bounds = array<i64: 8, 72>}, {pipeline_mode = #tpu.pipeline_mode<synchronous>, transform_indices = @transform_4, window_bounds = array<i64: 8, 1>}, {pipeline_mode = #tpu.pipeline_mode<synchronous>, transform_indices = @transform_5, window_bounds = array<i64: 8, 108>}, {pipeline_mode = #tpu.pipeline_mode<synchronous>, transform_indices = @transform_6, window_bounds = array<i64: 8, 1>}, {pipeline_mode = #tpu.pipeline_mode<synchronous>, transform_indices = @transform_7, window_bounds = array<i64: 8, 72>}, {pipeline_mode = #tpu.pipeline_mode<synchronous>, transform_indices = @transform_8, window_bounds = array<i64: 8, 1>}, {pipeline_mode = #tpu.pipeline_mode<synchronous>, transform_indices = @transform_9, window_bounds = array<i64: 8, 108>}, {pipeline_mode = #tpu.pipeline_mode<synchronous>, transform_indices = @transform_10, window_bounds = array<i64: 8, 1>}, {pipeline_mode = #tpu.pipeline_mode<synchronous>, transform_indices = @transform_11, window_bounds = array<i64: 8, 72>}, {pipeline_mode = #tpu.pipeline_mode<synchronous>, transform_indices = @transform_12, window_bounds = array<i64: 8, 1>}, {pipeline_mode = #tpu.pipeline_mode<synchronous>, transform_indices = @transform_13, window_bounds = array<i64: 8, 72>}, {pipeline_mode = #tpu.pipeline_mode<synchronous>, transform_indices = @transform_14, window_bounds = array<i64: 8, 1>}, {pipeline_mode = #tpu.pipeline_mode<synchronous>, transform_indices = @transform_15, window_bounds = array<i64: 8, 72>}, {pipeline_mode = #tpu.pipeline_mode<synchronous>, transform_indices = @transform_16, window_bounds = array<i64: 8, 1>}, {pipeline_mode = #tpu.pipeline_mode<synchronous>, transform_indices = @transform_17, window_bounds = array<i64: 8, 144>}, {pipeline_mode = #tpu.pipeline_mode<synchronous>, transform_indices = @transform_18, window_bounds = array<i64: 8, 1>}, {pipeline_mode = #tpu.pipeline_mode<synchronous>, transform_indices = @transform_19, window_bounds = array<i64: 8, 72>}, {pipeline_mode = #tpu.pipeline_mode<synchronous>, transform_indices = @transform_20, window_bounds = array<i64: 8, 1>}, {pipeline_mode = #tpu.pipeline_mode<synchronous>, transform_indices = @transform_21, window_bounds = array<i64: 8, 144>}, {pipeline_mode = #tpu.pipeline_mode<synchronous>, transform_indices = @transform_22, window_bounds = array<i64: 8, 1>}, {pipeline_mode = #tpu.pipeline_mode<synchronous>, transform_indices = @transform_23, window_bounds = array<i64: 8, 72>}, {pipeline_mode = #tpu.pipeline_mode<synchronous>, transform_indices = @transform_24, window_bounds = array<i64: 8, 1>}, {pipeline_mode = #tpu.pipeline_mode<synchronous>, transform_indices = @transform_25, window_bounds = array<i64: 1, 72>}, {pipeline_mode = #tpu.pipeline_mode<synchronous>, transform_indices = @transform_26, window_bounds = array<i64: 1, 1>}, {pipeline_mode = #tpu.pipeline_mode<synchronous>, transform_indices = @transform_27, window_bounds = array<i64: 256, 64>}, {pipeline_mode = #tpu.pipeline_mode<synchronous>, transform_indices = @transform_28, window_bounds = array<i64: 256, 16>}, {pipeline_mode = #tpu.pipeline_mode<synchronous>, transform_indices = @transform_29, window_bounds = array<i64: 64, 16>}, {pipeline_mode = #tpu.pipeline_mode<synchronous>, transform_indices = @transform_30, window_bounds = array<i64: 16, 256>}, {pipeline_mode = #tpu.pipeline_mode<synchronous>, transform_indices = @transform_31, window_bounds = array<i64: 16, 64>}, {pipeline_mode = #tpu.pipeline_mode<synchronous>, transform_indices = @transform_32, window_bounds = array<i64: 64, 256>}, {transform_indices = @transform_33, window_bounds = array<i64: 1, 1, 256>}]} {
    %0 = tpu.iota {dimensions = array<i32: 1>} : vector<1x256xi32>
    %c16_i32 = arith.constant 16 : i32
    %c0_i32 = arith.constant 0 : i32
    %1 = arith.cmpi eq, %c16_i32, %c0_i32 : i32
    %c1_i32 = arith.constant 1 : i32
    %2 = arith.select %1, %c1_i32, %c16_i32 : i32
    %3 = vector.broadcast %2 : i32 to vector<1x256xi32>
    %4 = arith.remsi %0, %3 : vector<1x256xi32>
    %c0_i32_0 = arith.constant 0 : i32
    %5 = vector.broadcast %c0_i32_0 : i32 to vector<1x256xi32>
    %6 = arith.cmpi ne, %4, %5 : vector<1x256xi32>
    %c0_i32_1 = arith.constant 0 : i32
    %7 = vector.broadcast %c0_i32_1 : i32 to vector<1x256xi32>
    %8 = arith.cmpi slt, %4, %7 : vector<1x256xi32>
    %c0_i32_2 = arith.constant 0 : i32
    %9 = arith.cmpi slt, %2, %c0_i32_2 : i32
    %10 = vector.broadcast %9 : i1 to vector<1x256xi1>
    %11 = vector.broadcast %10 : vector<1x256xi1> to vector<1x256xi1>
    %12 = arith.xori %8, %11 : vector<1x256xi1>
    %13 = arith.andi %12, %6 : vector<1x256xi1>
    %14 = vector.broadcast %2 : i32 to vector<1x256xi32>
    %15 = arith.addi %4, %14 : vector<1x256xi32>
    %16 = arith.select %13, %15, %4 : vector<1x256xi1>, vector<1x256xi32>
    %c0_i32_3 = arith.constant 0 : i32
    %17 = vector.broadcast %c0_i32_3 : i32 to vector<1x256xi32>
    %18 = arith.cmpi eq, %16, %17 : vector<1x256xi32>
    %c15_i32 = arith.constant 15 : i32
    %19 = vector.broadcast %c15_i32 : i32 to vector<1x256xi32>
    %20 = arith.cmpi eq, %16, %19 : vector<1x256xi32>
    %21 = tpu.iota {dimensions = array<i32: 1>} : vector<1x64xi32>
    %c8_i32 = arith.constant 8 : i32
    %c0_i32_4 = arith.constant 0 : i32
    %22 = arith.cmpi eq, %c8_i32, %c0_i32_4 : i32
    %c1_i32_5 = arith.constant 1 : i32
    %23 = arith.select %22, %c1_i32_5, %c8_i32 : i32
    %24 = vector.broadcast %23 : i32 to vector<1x64xi32>
    %25 = arith.remsi %21, %24 : vector<1x64xi32>
    %c0_i32_6 = arith.constant 0 : i32
    %26 = vector.broadcast %c0_i32_6 : i32 to vector<1x64xi32>
    %27 = arith.cmpi ne, %25, %26 : vector<1x64xi32>
    %c0_i32_7 = arith.constant 0 : i32
    %28 = vector.broadcast %c0_i32_7 : i32 to vector<1x64xi32>
    %29 = arith.cmpi slt, %25, %28 : vector<1x64xi32>
    %c0_i32_8 = arith.constant 0 : i32
    %30 = arith.cmpi slt, %23, %c0_i32_8 : i32
    %31 = vector.broadcast %30 : i1 to vector<1x64xi1>
    %32 = vector.broadcast %31 : vector<1x64xi1> to vector<1x64xi1>
    %33 = arith.xori %29, %32 : vector<1x64xi1>
    %34 = arith.andi %33, %27 : vector<1x64xi1>
    %35 = vector.broadcast %23 : i32 to vector<1x64xi32>
    %36 = arith.addi %25, %35 : vector<1x64xi32>
    %37 = arith.select %34, %36, %25 : vector<1x64xi1>, vector<1x64xi32>
    %c0_i32_9 = arith.constant 0 : i32
    %38 = vector.broadcast %c0_i32_9 : i32 to vector<1x64xi32>
    %39 = arith.cmpi eq, %37, %38 : vector<1x64xi32>
    %c7_i32 = arith.constant 7 : i32
    %40 = vector.broadcast %c7_i32 : i32 to vector<1x64xi32>
    %41 = arith.cmpi eq, %37, %40 : vector<1x64xi32>
    %42 = tpu.iota {dimensions = array<i32: 1>} : vector<1x16xi32>
    %c4_i32 = arith.constant 4 : i32
    %c0_i32_10 = arith.constant 0 : i32
    %43 = arith.cmpi eq, %c4_i32, %c0_i32_10 : i32
    %c1_i32_11 = arith.constant 1 : i32
    %44 = arith.select %43, %c1_i32_11, %c4_i32 : i32
    %45 = vector.broadcast %44 : i32 to vector<1x16xi32>
    %46 = arith.remsi %42, %45 : vector<1x16xi32>
    %c0_i32_12 = arith.constant 0 : i32
    %47 = vector.broadcast %c0_i32_12 : i32 to vector<1x16xi32>
    %48 = arith.cmpi ne, %46, %47 : vector<1x16xi32>
    %c0_i32_13 = arith.constant 0 : i32
    %49 = vector.broadcast %c0_i32_13 : i32 to vector<1x16xi32>
    %50 = arith.cmpi slt, %46, %49 : vector<1x16xi32>
    %c0_i32_14 = arith.constant 0 : i32
    %51 = arith.cmpi slt, %44, %c0_i32_14 : i32
    %52 = vector.broadcast %51 : i1 to vector<1x16xi1>
    %53 = vector.broadcast %52 : vector<1x16xi1> to vector<1x16xi1>
    %54 = arith.xori %50, %53 : vector<1x16xi1>
    %55 = arith.andi %54, %48 : vector<1x16xi1>
    %56 = vector.broadcast %44 : i32 to vector<1x16xi32>
    %57 = arith.addi %46, %56 : vector<1x16xi32>
    %58 = arith.select %55, %57, %46 : vector<1x16xi1>, vector<1x16xi32>
    %c0_i32_15 = arith.constant 0 : i32
    %59 = vector.broadcast %c0_i32_15 : i32 to vector<1x16xi32>
    %60 = arith.cmpi eq, %58, %59 : vector<1x16xi32>
    %c3_i32 = arith.constant 3 : i32
    %61 = vector.broadcast %c3_i32 : i32 to vector<1x16xi32>
    %62 = arith.cmpi eq, %58, %61 : vector<1x16xi32>
    %c0 = arith.constant 0 : index
    %c0_16 = arith.constant 0 : index
    %c0_17 = arith.constant 0 : index
    %63 = vector.load %arg1[%c0, %c0_16, %c0_17] : memref<1x4x256xf32, #tpu.memory_space<vmem>>, vector<1x4x256xf32>
    %64 = vector.shape_cast %63 : vector<1x4x256xf32> to vector<4x256xf32>
    %cst = arith.constant 0.000000e+00 : f32
    %65 = vector.broadcast %cst : f32 to vector<16x401xf32>
    %c0_18 = arith.constant 0 : index
    %c0_19 = arith.constant 0 : index
    %66 = vector.load %arg35[%c0_18, %c0_19] : memref<16x401xf32, #tpu.memory_space<vmem>>, vector<16x401xf32>
    tpu.vector_store %arg35[%c0_18, %c0_19], %65 {strides = array<i32>} : memref<16x401xf32, #tpu.memory_space<vmem>>, vector<16x401xf32>,
    %c0_20 = arith.constant 0 : index
    %c128 = arith.constant 128 : index
    %67 = vector.load %arg35[%c0_20, %c128] : memref<16x401xf32, #tpu.memory_space<vmem>>, vector<4x256xf32>
    tpu.vector_store %arg35[%c0_20, %c128], %64 {strides = array<i32>} : memref<16x401xf32, #tpu.memory_space<vmem>>, vector<4x256xf32>,
    %c0_21 = arith.constant 0 : index
    %c111 = arith.constant 111 : index
    %68 = vector.load %arg35[%c0_21, %c111] : memref<16x401xf32, #tpu.memory_space<vmem>>, vector<4x256xf32>
    %cst_22 = arith.constant 0.000000e+00 : f32
    %69 = vector.shape_cast %18 : vector<1x256xi1> to vector<1x256xi1>
    %70 = vector.broadcast %69 : vector<1x256xi1> to vector<4x256xi1>
    %71 = vector.broadcast %cst_22 : f32 to vector<4x256xf32>
    %72 = arith.select %70, %71, %68 : vector<4x256xi1>, vector<4x256xf32>
    %c0_23 = arith.constant 0 : index
    %c0_24 = arith.constant 0 : index
    %73 = vector.load %arg36[%c0_23, %c0_24] : memref<144x256xf32, #tpu.memory_space<vmem>>, vector<4x256xf32>
    tpu.vector_store %arg36[%c0_23, %c0_24], %72 {strides = array<i32>} : memref<144x256xf32, #tpu.memory_space<vmem>>, vector<4x256xf32>,
    %c0_25 = arith.constant 0 : index
    %c112 = arith.constant 112 : index
    %74 = vector.load %arg35[%c0_25, %c112] : memref<16x401xf32, #tpu.memory_space<vmem>>, vector<4x256xf32>
    %c4 = arith.constant 4 : index
    %c0_26 = arith.constant 0 : index
    %75 = vector.load %arg36[%c4, %c0_26] : memref<144x256xf32, #tpu.memory_space<vmem>>, vector<4x256xf32>
    tpu.vector_store %arg36[%c4, %c0_26], %74 {strides = array<i32>} : memref<144x256xf32, #tpu.memory_space<vmem>>, vector<4x256xf32>,
    %c0_27 = arith.constant 0 : index
    %c113 = arith.constant 113 : index
    %76 = vector.load %arg35[%c0_27, %c113] : memref<16x401xf32, #tpu.memory_space<vmem>>, vector<4x256xf32>
    %cst_28 = arith.constant 0.000000e+00 : f32
    %77 = vector.shape_cast %20 : vector<1x256xi1> to vector<1x256xi1>
    %78 = vector.broadcast %77 : vector<1x256xi1> to vector<4x256xi1>
    %79 = vector.broadcast %cst_28 : f32 to vector<4x256xf32>
    %80 = arith.select %78, %79, %76 : vector<4x256xi1>, vector<4x256xf32>
    %c8 = arith.constant 8 : index
    %c0_29 = arith.constant 0 : index
    %81 = vector.load %arg36[%c8, %c0_29] : memref<144x256xf32, #tpu.memory_space<vmem>>, vector<4x256xf32>
    tpu.vector_store %arg36[%c8, %c0_29], %80 {strides = array<i32>} : memref<144x256xf32, #tpu.memory_space<vmem>>, vector<4x256xf32>,
    %c0_30 = arith.constant 0 : index
    %c127 = arith.constant 127 : index
    %82 = vector.load %arg35[%c0_30, %c127] : memref<16x401xf32, #tpu.memory_space<vmem>>, vector<4x256xf32>
    %cst_31 = arith.constant 0.000000e+00 : f32
    %83 = vector.shape_cast %18 : vector<1x256xi1> to vector<1x256xi1>
    %84 = vector.broadcast %83 : vector<1x256xi1> to vector<4x256xi1>
    %85 = vector.broadcast %cst_31 : f32 to vector<4x256xf32>
    %86 = arith.select %84, %85, %82 : vector<4x256xi1>, vector<4x256xf32>
    %c12 = arith.constant 12 : index
    %c0_32 = arith.constant 0 : index
    %87 = vector.load %arg36[%c12, %c0_32] : memref<144x256xf32, #tpu.memory_space<vmem>>, vector<4x256xf32>
    tpu.vector_store %arg36[%c12, %c0_32], %86 {strides = array<i32>} : memref<144x256xf32, #tpu.memory_space<vmem>>, vector<4x256xf32>,
    %c0_33 = arith.constant 0 : index
    %c128_34 = arith.constant 128 : index
    %88 = vector.load %arg35[%c0_33, %c128_34] : memref<16x401xf32, #tpu.memory_space<vmem>>, vector<4x256xf32>
    %c16 = arith.constant 16 : index
    %c0_35 = arith.constant 0 : index
    %89 = vector.load %arg36[%c16, %c0_35] : memref<144x256xf32, #tpu.memory_space<vmem>>, vector<4x256xf32>
    tpu.vector_store %arg36[%c16, %c0_35], %88 {strides = array<i32>} : memref<144x256xf32, #tpu.memory_space<vmem>>, vector<4x256xf32>,
    %c0_36 = arith.constant 0 : index
    %c129 = arith.constant 129 : index
    %90 = vector.load %arg35[%c0_36, %c129] : memref<16x401xf32, #tpu.memory_space<vmem>>, vector<4x256xf32>
    %cst_37 = arith.constant 0.000000e+00 : f32
    %91 = vector.shape_cast %20 : vector<1x256xi1> to vector<1x256xi1>
    %92 = vector.broadcast %91 : vector<1x256xi1> to vector<4x256xi1>
    %93 = vector.broadcast %cst_37 : f32 to vector<4x256xf32>
    %94 = arith.select %92, %93, %90 : vector<4x256xi1>, vector<4x256xf32>
    %c20 = arith.constant 20 : index
    %c0_38 = arith.constant 0 : index
    %95 = vector.load %arg36[%c20, %c0_38] : memref<144x256xf32, #tpu.memory_space<vmem>>, vector<4x256xf32>
    tpu.vector_store %arg36[%c20, %c0_38], %94 {strides = array<i32>} : memref<144x256xf32, #tpu.memory_space<vmem>>, vector<4x256xf32>,
    %c0_39 = arith.constant 0 : index
    %c143 = arith.constant 143 : index
    %96 = vector.load %arg35[%c0_39, %c143] : memref<16x401xf32, #tpu.memory_space<vmem>>, vector<4x256xf32>
    %cst_40 = arith.constant 0.000000e+00 : f32
    %97 = vector.shape_cast %18 : vector<1x256xi1> to vector<1x256xi1>
    %98 = vector.broadcast %97 : vector<1x256xi1> to vector<4x256xi1>
    %99 = vector.broadcast %cst_40 : f32 to vector<4x256xf32>
    %100 = arith.select %98, %99, %96 : vector<4x256xi1>, vector<4x256xf32>
    %c24 = arith.constant 24 : index
    %c0_41 = arith.constant 0 : index
    %101 = vector.load %arg36[%c24, %c0_41] : memref<144x256xf32, #tpu.memory_space<vmem>>, vector<4x256xf32>
    tpu.vector_store %arg36[%c24, %c0_41], %100 {strides = array<i32>} : memref<144x256xf32, #tpu.memory_space<vmem>>, vector<4x256xf32>,
    %c0_42 = arith.constant 0 : index
    %c144 = arith.constant 144 : index
    %102 = vector.load %arg35[%c0_42, %c144] : memref<16x401xf32, #tpu.memory_space<vmem>>, vector<4x256xf32>
    %c28 = arith.constant 28 : index
    %c0_43 = arith.constant 0 : index
    %103 = vector.load %arg36[%c28, %c0_43] : memref<144x256xf32, #tpu.memory_space<vmem>>, vector<4x256xf32>
    tpu.vector_store %arg36[%c28, %c0_43], %102 {strides = array<i32>} : memref<144x256xf32, #tpu.memory_space<vmem>>, vector<4x256xf32>,
    %c0_44 = arith.constant 0 : index
    %c145 = arith.constant 145 : index
    %104 = vector.load %arg35[%c0_44, %c145] : memref<16x401xf32, #tpu.memory_space<vmem>>, vector<4x256xf32>
    %cst_45 = arith.constant 0.000000e+00 : f32
    %105 = vector.shape_cast %20 : vector<1x256xi1> to vector<1x256xi1>
    %106 = vector.broadcast %105 : vector<1x256xi1> to vector<4x256xi1>
    %107 = vector.broadcast %cst_45 : f32 to vector<4x256xf32>
    %108 = arith.select %106, %107, %104 : vector<4x256xi1>, vector<4x256xf32>
    %c32 = arith.constant 32 : index
    %c0_46 = arith.constant 0 : index
    %109 = vector.load %arg36[%c32, %c0_46] : memref<144x256xf32, #tpu.memory_space<vmem>>, vector<4x256xf32>
    tpu.vector_store %arg36[%c32, %c0_46], %108 {strides = array<i32>} : memref<144x256xf32, #tpu.memory_space<vmem>>, vector<4x256xf32>,
    %c0_47 = arith.constant 0 : index
    %c0_48 = arith.constant 0 : index
    %110 = vector.load %arg2[%c0_47, %c0_48] : memref<8x36xf32, #tpu.memory_space<vmem>>, vector<8x36xf32>
    %c0_49 = arith.constant 0 : index
    %c0_50 = arith.constant 0 : index
    %111 = vector.load %arg36[%c0_49, %c0_50] : memref<144x256xf32, #tpu.memory_space<vmem>>, vector<36x256xf32>
    %cst_51 = arith.constant dense<0.000000e+00> : vector<8x256xf32>
    %112 = tpu.matmul %110, %111, %cst_51 {dimension_numbers = #tpu.dot_dimension_numbers<[1], [0], [0], [1], [0, 0, 1, 1], [], []>} : vector<8x36xf32>, vector<36x256xf32>, vector<8x256xf32> -> vector<8x256xf32>
    %c0_52 = arith.constant 0 : index
    %c0_53 = arith.constant 0 : index
    %113 = vector.load %arg3[%c0_52, %c0_53] : memref<8x1xf32, #tpu.memory_space<vmem>>, vector<8x1xf32>
    %114 = vector.broadcast %113 : vector<8x1xf32> to vector<8x256xf32>
    %115 = arith.addf %112, %114 : vector<8x256xf32>
    %cst_54 = arith.constant 0.000000e+00 : f32
    %116 = vector.broadcast %cst_54 : f32 to vector<8x256xf32>
    %117 = arith.maximumf %115, %116 : vector<8x256xf32>
    %c0_55 = arith.constant 0 : index
    %c128_56 = arith.constant 128 : index
    %118 = vector.load %arg35[%c0_55, %c128_56] : memref<16x401xf32, #tpu.memory_space<vmem>>, vector<8x256xf32>
    tpu.vector_store %arg35[%c0_55, %c128_56], %117 {strides = array<i32>} : memref<16x401xf32, #tpu.memory_space<vmem>>, vector<8x256xf32>,
    %c0_57 = arith.constant 0 : index
    %c111_58 = arith.constant 111 : index
    %119 = vector.load %arg35[%c0_57, %c111_58] : memref<16x401xf32, #tpu.memory_space<vmem>>, vector<8x256xf32>
    %cst_59 = arith.constant 0.000000e+00 : f32
    %120 = vector.shape_cast %18 : vector<1x256xi1> to vector<1x256xi1>
    %121 = vector.broadcast %120 : vector<1x256xi1> to vector<8x256xi1>
    %122 = vector.broadcast %cst_59 : f32 to vector<8x256xf32>
    %123 = arith.select %121, %122, %119 : vector<8x256xi1>, vector<8x256xf32>
    %c0_60 = arith.constant 0 : index
    %c0_61 = arith.constant 0 : index
    %124 = vector.load %arg36[%c0_60, %c0_61] : memref<144x256xf32, #tpu.memory_space<vmem>>, vector<8x256xf32>
    tpu.vector_store %arg36[%c0_60, %c0_61], %123 {strides = array<i32>} : memref<144x256xf32, #tpu.memory_space<vmem>>, vector<8x256xf32>,
    %c0_62 = arith.constant 0 : index
    %c112_63 = arith.constant 112 : index
    %125 = vector.load %arg35[%c0_62, %c112_63] : memref<16x401xf32, #tpu.memory_space<vmem>>, vector<8x256xf32>
    %c8_64 = arith.constant 8 : index
    %c0_65 = arith.constant 0 : index
    %126 = vector.load %arg36[%c8_64, %c0_65] : memref<144x256xf32, #tpu.memory_space<vmem>>, vector<8x256xf32>
    tpu.vector_store %arg36[%c8_64, %c0_65], %125 {strides = array<i32>} : memref<144x256xf32, #tpu.memory_space<vmem>>, vector<8x256xf32>,
    %c0_66 = arith.constant 0 : index
    %c113_67 = arith.constant 113 : index
    %127 = vector.load %arg35[%c0_66, %c113_67] : memref<16x401xf32, #tpu.memory_space<vmem>>, vector<8x256xf32>
    %cst_68 = arith.constant 0.000000e+00 : f32
    %128 = vector.shape_cast %20 : vector<1x256xi1> to vector<1x256xi1>
    %129 = vector.broadcast %128 : vector<1x256xi1> to vector<8x256xi1>
    %130 = vector.broadcast %cst_68 : f32 to vector<8x256xf32>
    %131 = arith.select %129, %130, %127 : vector<8x256xi1>, vector<8x256xf32>
    %c16_69 = arith.constant 16 : index
    %c0_70 = arith.constant 0 : index
    %132 = vector.load %arg36[%c16_69, %c0_70] : memref<144x256xf32, #tpu.memory_space<vmem>>, vector<8x256xf32>
    tpu.vector_store %arg36[%c16_69, %c0_70], %131 {strides = array<i32>} : memref<144x256xf32, #tpu.memory_space<vmem>>, vector<8x256xf32>,
    %c0_71 = arith.constant 0 : index
    %c127_72 = arith.constant 127 : index
    %133 = vector.load %arg35[%c0_71, %c127_72] : memref<16x401xf32, #tpu.memory_space<vmem>>, vector<8x256xf32>
    %cst_73 = arith.constant 0.000000e+00 : f32
    %134 = vector.shape_cast %18 : vector<1x256xi1> to vector<1x256xi1>
    %135 = vector.broadcast %134 : vector<1x256xi1> to vector<8x256xi1>
    %136 = vector.broadcast %cst_73 : f32 to vector<8x256xf32>
    %137 = arith.select %135, %136, %133 : vector<8x256xi1>, vector<8x256xf32>
    %c24_74 = arith.constant 24 : index
    %c0_75 = arith.constant 0 : index
    %138 = vector.load %arg36[%c24_74, %c0_75] : memref<144x256xf32, #tpu.memory_space<vmem>>, vector<8x256xf32>
    tpu.vector_store %arg36[%c24_74, %c0_75], %137 {strides = array<i32>} : memref<144x256xf32, #tpu.memory_space<vmem>>, vector<8x256xf32>,
    %c0_76 = arith.constant 0 : index
    %c128_77 = arith.constant 128 : index
    %139 = vector.load %arg35[%c0_76, %c128_77] : memref<16x401xf32, #tpu.memory_space<vmem>>, vector<8x256xf32>
    %c32_78 = arith.constant 32 : index
    %c0_79 = arith.constant 0 : index
    %140 = vector.load %arg36[%c32_78, %c0_79] : memref<144x256xf32, #tpu.memory_space<vmem>>, vector<8x256xf32>
    tpu.vector_store %arg36[%c32_78, %c0_79], %139 {strides = array<i32>} : memref<144x256xf32, #tpu.memory_space<vmem>>, vector<8x256xf32>,
    %c0_80 = arith.constant 0 : index
    %c129_81 = arith.constant 129 : index
    %141 = vector.load %arg35[%c0_80, %c129_81] : memref<16x401xf32, #tpu.memory_space<vmem>>, vector<8x256xf32>
    %cst_82 = arith.constant 0.000000e+00 : f32
    %142 = vector.shape_cast %20 : vector<1x256xi1> to vector<1x256xi1>
    %143 = vector.broadcast %142 : vector<1x256xi1> to vector<8x256xi1>
    %144 = vector.broadcast %cst_82 : f32 to vector<8x256xf32>
    %145 = arith.select %143, %144, %141 : vector<8x256xi1>, vector<8x256xf32>
    %c40 = arith.constant 40 : index
    %c0_83 = arith.constant 0 : index
    %146 = vector.load %arg36[%c40, %c0_83] : memref<144x256xf32, #tpu.memory_space<vmem>>, vector<8x256xf32>
    tpu.vector_store %arg36[%c40, %c0_83], %145 {strides = array<i32>} : memref<144x256xf32, #tpu.memory_space<vmem>>, vector<8x256xf32>,
    %c0_84 = arith.constant 0 : index
    %c143_85 = arith.constant 143 : index
    %147 = vector.load %arg35[%c0_84, %c143_85] : memref<16x401xf32, #tpu.memory_space<vmem>>, vector<8x256xf32>
    %cst_86 = arith.constant 0.000000e+00 : f32
    %148 = vector.shape_cast %18 : vector<1x256xi1> to vector<1x256xi1>
    %149 = vector.broadcast %148 : vector<1x256xi1> to vector<8x256xi1>
    %150 = vector.broadcast %cst_86 : f32 to vector<8x256xf32>
    %151 = arith.select %149, %150, %147 : vector<8x256xi1>, vector<8x256xf32>
    %c48 = arith.constant 48 : index
    %c0_87 = arith.constant 0 : index
    %152 = vector.load %arg36[%c48, %c0_87] : memref<144x256xf32, #tpu.memory_space<vmem>>, vector<8x256xf32>
    tpu.vector_store %arg36[%c48, %c0_87], %151 {strides = array<i32>} : memref<144x256xf32, #tpu.memory_space<vmem>>, vector<8x256xf32>,
    %c0_88 = arith.constant 0 : index
    %c144_89 = arith.constant 144 : index
    %153 = vector.load %arg35[%c0_88, %c144_89] : memref<16x401xf32, #tpu.memory_space<vmem>>, vector<8x256xf32>
    %c56 = arith.constant 56 : index
    %c0_90 = arith.constant 0 : index
    %154 = vector.load %arg36[%c56, %c0_90] : memref<144x256xf32, #tpu.memory_space<vmem>>, vector<8x256xf32>
    tpu.vector_store %arg36[%c56, %c0_90], %153 {strides = array<i32>} : memref<144x256xf32, #tpu.memory_space<vmem>>, vector<8x256xf32>,
    %c0_91 = arith.constant 0 : index
    %c145_92 = arith.constant 145 : index
    %155 = vector.load %arg35[%c0_91, %c145_92] : memref<16x401xf32, #tpu.memory_space<vmem>>, vector<8x256xf32>
    %cst_93 = arith.constant 0.000000e+00 : f32
    %156 = vector.shape_cast %20 : vector<1x256xi1> to vector<1x256xi1>
    %157 = vector.broadcast %156 : vector<1x256xi1> to vector<8x256xi1>
    %158 = vector.broadcast %cst_93 : f32 to vector<8x256xf32>
    %159 = arith.select %157, %158, %155 : vector<8x256xi1>, vector<8x256xf32>
    %c64 = arith.constant 64 : index
    %c0_94 = arith.constant 0 : index
    %160 = vector.load %arg36[%c64, %c0_94] : memref<144x256xf32, #tpu.memory_space<vmem>>, vector<8x256xf32>
    tpu.vector_store %arg36[%c64, %c0_94], %159 {strides = array<i32>} : memref<144x256xf32, #tpu.memory_space<vmem>>, vector<8x256xf32>,
    %c0_95 = arith.constant 0 : index
    %c0_96 = arith.constant 0 : index
    %161 = vector.load %arg4[%c0_95, %c0_96] : memref<8x72xf32, #tpu.memory_space<vmem>>, vector<8x72xf32>
    %c0_97 = arith.constant 0 : index
    %c0_98 = arith.constant 0 : index
    %162 = vector.load %arg36[%c0_97, %c0_98] : memref<144x256xf32, #tpu.memory_space<vmem>>, vector<72x256xf32>
    %cst_99 = arith.constant dense<0.000000e+00> : vector<8x256xf32>
    %163 = tpu.matmul %161, %162, %cst_99 {dimension_numbers = #tpu.dot_dimension_numbers<[1], [0], [0], [1], [0, 0, 1, 1], [], []>} : vector<8x72xf32>, vector<72x256xf32>, vector<8x256xf32> -> vector<8x256xf32>
    %c0_100 = arith.constant 0 : index
    %c0_101 = arith.constant 0 : index
    %164 = vector.load %arg5[%c0_100, %c0_101] : memref<8x1xf32, #tpu.memory_space<vmem>>, vector<8x1xf32>
    %165 = vector.broadcast %164 : vector<8x1xf32> to vector<8x256xf32>
    %166 = arith.addf %163, %165 : vector<8x256xf32>
    %c0_102 = arith.constant 0 : index
    %c0_103 = arith.constant 0 : index
    %167 = vector.load %arg28[%c0_102, %c0_103] : memref<256x64xf32, #tpu.memory_space<vmem>>, vector<256x64xf32>
    %cst_104 = arith.constant dense<0.000000e+00> : vector<4x64xf32>
    %168 = tpu.matmul %64, %167, %cst_104 {dimension_numbers = #tpu.dot_dimension_numbers<[1], [0], [0], [1], [0, 0, 1, 1], [], []>} : vector<4x256xf32>, vector<256x64xf32>, vector<4x64xf32> -> vector<4x64xf32>
    %c0_105 = arith.constant 0 : index
    %c0_106 = arith.constant 0 : index
    %169 = vector.load %arg28[%c0_105, %c0_106] : memref<256x64xf32, #tpu.memory_space<vmem>>, vector<256x64xf32>
    %cst_107 = arith.constant dense<0.000000e+00> : vector<8x64xf32>
    %170 = tpu.matmul %166, %169, %cst_107 {dimension_numbers = #tpu.dot_dimension_numbers<[1], [0], [0], [1], [0, 0, 1, 1], [], []>} : vector<8x256xf32>, vector<256x64xf32>, vector<8x64xf32> -> vector<8x64xf32>
    %cst_108 = arith.constant 0.000000e+00 : f32
    %171 = vector.broadcast %cst_108 : f32 to vector<16x201xf32>
    %c0_109 = arith.constant 0 : index
    %c0_110 = arith.constant 0 : index
    %172 = vector.load %arg37[%c0_109, %c0_110] : memref<16x201xf32, #tpu.memory_space<vmem>>, vector<16x201xf32>
    tpu.vector_store %arg37[%c0_109, %c0_110], %171 {strides = array<i32>} : memref<16x201xf32, #tpu.memory_space<vmem>>, vector<16x201xf32>,
    %c0_111 = arith.constant 0 : index
    %c128_112 = arith.constant 128 : index
    %173 = vector.load %arg37[%c0_111, %c128_112] : memref<16x201xf32, #tpu.memory_space<vmem>>, vector<4x64xf32>
    tpu.vector_store %arg37[%c0_111, %c128_112], %168 {strides = array<i32>} : memref<16x201xf32, #tpu.memory_space<vmem>>, vector<4x64xf32>,
    %c4_113 = arith.constant 4 : index
    %c128_114 = arith.constant 128 : index
    %174 = vector.load %arg37[%c4_113, %c128_114] : memref<16x201xf32, #tpu.memory_space<vmem>>, vector<8x64xf32>
    tpu.vector_store %arg37[%c4_113, %c128_114], %170 {strides = array<i32>} : memref<16x201xf32, #tpu.memory_space<vmem>>, vector<8x64xf32>,
    %c0_115 = arith.constant 0 : index
    %c119 = arith.constant 119 : index
    %175 = vector.load %arg37[%c0_115, %c119] : memref<16x201xf32, #tpu.memory_space<vmem>>, vector<12x64xf32>
    %cst_116 = arith.constant 0.000000e+00 : f32
    %176 = vector.shape_cast %39 : vector<1x64xi1> to vector<1x64xi1>
    %177 = vector.broadcast %176 : vector<1x64xi1> to vector<12x64xi1>
    %178 = vector.broadcast %cst_116 : f32 to vector<12x64xf32>
    %179 = arith.select %177, %178, %175 : vector<12x64xi1>, vector<12x64xf32>
    %c0_117 = arith.constant 0 : index
    %c0_118 = arith.constant 0 : index
    %180 = vector.load %arg38[%c0_117, %c0_118] : memref<144x64xf32, #tpu.memory_space<vmem>>, vector<12x64xf32>
    tpu.vector_store %arg38[%c0_117, %c0_118], %179 {strides = array<i32>} : memref<144x64xf32, #tpu.memory_space<vmem>>, vector<12x64xf32>,
    %c0_119 = arith.constant 0 : index
    %c120 = arith.constant 120 : index
    %181 = vector.load %arg37[%c0_119, %c120] : memref<16x201xf32, #tpu.memory_space<vmem>>, vector<12x64xf32>
    %c12_120 = arith.constant 12 : index
    %c0_121 = arith.constant 0 : index
    %182 = vector.load %arg38[%c12_120, %c0_121] : memref<144x64xf32, #tpu.memory_space<vmem>>, vector<12x64xf32>
    tpu.vector_store %arg38[%c12_120, %c0_121], %181 {strides = array<i32>} : memref<144x64xf32, #tpu.memory_space<vmem>>, vector<12x64xf32>,
    %c0_122 = arith.constant 0 : index
    %c121 = arith.constant 121 : index
    %183 = vector.load %arg37[%c0_122, %c121] : memref<16x201xf32, #tpu.memory_space<vmem>>, vector<12x64xf32>
    %cst_123 = arith.constant 0.000000e+00 : f32
    %184 = vector.shape_cast %41 : vector<1x64xi1> to vector<1x64xi1>
    %185 = vector.broadcast %184 : vector<1x64xi1> to vector<12x64xi1>
    %186 = vector.broadcast %cst_123 : f32 to vector<12x64xf32>
    %187 = arith.select %185, %186, %183 : vector<12x64xi1>, vector<12x64xf32>
    %c24_124 = arith.constant 24 : index
    %c0_125 = arith.constant 0 : index
    %188 = vector.load %arg38[%c24_124, %c0_125] : memref<144x64xf32, #tpu.memory_space<vmem>>, vector<12x64xf32>
    tpu.vector_store %arg38[%c24_124, %c0_125], %187 {strides = array<i32>} : memref<144x64xf32, #tpu.memory_space<vmem>>, vector<12x64xf32>,
    %c0_126 = arith.constant 0 : index
    %c127_127 = arith.constant 127 : index
    %189 = vector.load %arg37[%c0_126, %c127_127] : memref<16x201xf32, #tpu.memory_space<vmem>>, vector<12x64xf32>
    %cst_128 = arith.constant 0.000000e+00 : f32
    %190 = vector.shape_cast %39 : vector<1x64xi1> to vector<1x64xi1>
    %191 = vector.broadcast %190 : vector<1x64xi1> to vector<12x64xi1>
    %192 = vector.broadcast %cst_128 : f32 to vector<12x64xf32>
    %193 = arith.select %191, %192, %189 : vector<12x64xi1>, vector<12x64xf32>
    %c36 = arith.constant 36 : index
    %c0_129 = arith.constant 0 : index
    %194 = vector.load %arg38[%c36, %c0_129] : memref<144x64xf32, #tpu.memory_space<vmem>>, vector<12x64xf32>
    tpu.vector_store %arg38[%c36, %c0_129], %193 {strides = array<i32>} : memref<144x64xf32, #tpu.memory_space<vmem>>, vector<12x64xf32>,
    %c0_130 = arith.constant 0 : index
    %c128_131 = arith.constant 128 : index
    %195 = vector.load %arg37[%c0_130, %c128_131] : memref<16x201xf32, #tpu.memory_space<vmem>>, vector<12x64xf32>
    %c48_132 = arith.constant 48 : index
    %c0_133 = arith.constant 0 : index
    %196 = vector.load %arg38[%c48_132, %c0_133] : memref<144x64xf32, #tpu.memory_space<vmem>>, vector<12x64xf32>
    tpu.vector_store %arg38[%c48_132, %c0_133], %195 {strides = array<i32>} : memref<144x64xf32, #tpu.memory_space<vmem>>, vector<12x64xf32>,
    %c0_134 = arith.constant 0 : index
    %c129_135 = arith.constant 129 : index
    %197 = vector.load %arg37[%c0_134, %c129_135] : memref<16x201xf32, #tpu.memory_space<vmem>>, vector<12x64xf32>
    %cst_136 = arith.constant 0.000000e+00 : f32
    %198 = vector.shape_cast %41 : vector<1x64xi1> to vector<1x64xi1>
    %199 = vector.broadcast %198 : vector<1x64xi1> to vector<12x64xi1>
    %200 = vector.broadcast %cst_136 : f32 to vector<12x64xf32>
    %201 = arith.select %199, %200, %197 : vector<12x64xi1>, vector<12x64xf32>
    %c60 = arith.constant 60 : index
    %c0_137 = arith.constant 0 : index
    %202 = vector.load %arg38[%c60, %c0_137] : memref<144x64xf32, #tpu.memory_space<vmem>>, vector<12x64xf32>
    tpu.vector_store %arg38[%c60, %c0_137], %201 {strides = array<i32>} : memref<144x64xf32, #tpu.memory_space<vmem>>, vector<12x64xf32>,
    %c0_138 = arith.constant 0 : index
    %c135 = arith.constant 135 : index
    %203 = vector.load %arg37[%c0_138, %c135] : memref<16x201xf32, #tpu.memory_space<vmem>>, vector<12x64xf32>
    %cst_139 = arith.constant 0.000000e+00 : f32
    %204 = vector.shape_cast %39 : vector<1x64xi1> to vector<1x64xi1>
    %205 = vector.broadcast %204 : vector<1x64xi1> to vector<12x64xi1>
    %206 = vector.broadcast %cst_139 : f32 to vector<12x64xf32>
    %207 = arith.select %205, %206, %203 : vector<12x64xi1>, vector<12x64xf32>
    %c72 = arith.constant 72 : index
    %c0_140 = arith.constant 0 : index
    %208 = vector.load %arg38[%c72, %c0_140] : memref<144x64xf32, #tpu.memory_space<vmem>>, vector<12x64xf32>
    tpu.vector_store %arg38[%c72, %c0_140], %207 {strides = array<i32>} : memref<144x64xf32, #tpu.memory_space<vmem>>, vector<12x64xf32>,
    %c0_141 = arith.constant 0 : index
    %c136 = arith.constant 136 : index
    %209 = vector.load %arg37[%c0_141, %c136] : memref<16x201xf32, #tpu.memory_space<vmem>>, vector<12x64xf32>
    %c84 = arith.constant 84 : index
    %c0_142 = arith.constant 0 : index
    %210 = vector.load %arg38[%c84, %c0_142] : memref<144x64xf32, #tpu.memory_space<vmem>>, vector<12x64xf32>
    tpu.vector_store %arg38[%c84, %c0_142], %209 {strides = array<i32>} : memref<144x64xf32, #tpu.memory_space<vmem>>, vector<12x64xf32>,
    %c0_143 = arith.constant 0 : index
    %c137 = arith.constant 137 : index
    %211 = vector.load %arg37[%c0_143, %c137] : memref<16x201xf32, #tpu.memory_space<vmem>>, vector<12x64xf32>
    %cst_144 = arith.constant 0.000000e+00 : f32
    %212 = vector.shape_cast %41 : vector<1x64xi1> to vector<1x64xi1>
    %213 = vector.broadcast %212 : vector<1x64xi1> to vector<12x64xi1>
    %214 = vector.broadcast %cst_144 : f32 to vector<12x64xf32>
    %215 = arith.select %213, %214, %211 : vector<12x64xi1>, vector<12x64xf32>
    %c96 = arith.constant 96 : index
    %c0_145 = arith.constant 0 : index
    %216 = vector.load %arg38[%c96, %c0_145] : memref<144x64xf32, #tpu.memory_space<vmem>>, vector<12x64xf32>
    tpu.vector_store %arg38[%c96, %c0_145], %215 {strides = array<i32>} : memref<144x64xf32, #tpu.memory_space<vmem>>, vector<12x64xf32>,
    %c0_146 = arith.constant 0 : index
    %c0_147 = arith.constant 0 : index
    %217 = vector.load %arg6[%c0_146, %c0_147] : memref<8x108xf32, #tpu.memory_space<vmem>>, vector<8x108xf32>
    %c0_148 = arith.constant 0 : index
    %c0_149 = arith.constant 0 : index
    %218 = vector.load %arg38[%c0_148, %c0_149] : memref<144x64xf32, #tpu.memory_space<vmem>>, vector<108x64xf32>
    %cst_150 = arith.constant dense<0.000000e+00> : vector<8x64xf32>
    %219 = tpu.matmul %217, %218, %cst_150 {dimension_numbers = #tpu.dot_dimension_numbers<[1], [0], [0], [1], [0, 0, 1, 1], [], []>} : vector<8x108xf32>, vector<108x64xf32>, vector<8x64xf32> -> vector<8x64xf32>
    %c0_151 = arith.constant 0 : index
    %c0_152 = arith.constant 0 : index
    %220 = vector.load %arg7[%c0_151, %c0_152] : memref<8x1xf32, #tpu.memory_space<vmem>>, vector<8x1xf32>
    %221 = vector.broadcast %220 : vector<8x1xf32> to vector<8x64xf32>
    %222 = arith.addf %219, %221 : vector<8x64xf32>
    %cst_153 = arith.constant 0.000000e+00 : f32
    %223 = vector.broadcast %cst_153 : f32 to vector<8x64xf32>
    %224 = arith.maximumf %222, %223 : vector<8x64xf32>
    %c0_154 = arith.constant 0 : index
    %c128_155 = arith.constant 128 : index
    %225 = vector.load %arg37[%c0_154, %c128_155] : memref<16x201xf32, #tpu.memory_space<vmem>>, vector<8x64xf32>
    tpu.vector_store %arg37[%c0_154, %c128_155], %224 {strides = array<i32>} : memref<16x201xf32, #tpu.memory_space<vmem>>, vector<8x64xf32>,
    %c0_156 = arith.constant 0 : index
    %c119_157 = arith.constant 119 : index
    %226 = vector.load %arg37[%c0_156, %c119_157] : memref<16x201xf32, #tpu.memory_space<vmem>>, vector<8x64xf32>
    %cst_158 = arith.constant 0.000000e+00 : f32
    %227 = vector.shape_cast %39 : vector<1x64xi1> to vector<1x64xi1>
    %228 = vector.broadcast %227 : vector<1x64xi1> to vector<8x64xi1>
    %229 = vector.broadcast %cst_158 : f32 to vector<8x64xf32>
    %230 = arith.select %228, %229, %226 : vector<8x64xi1>, vector<8x64xf32>
    %c0_159 = arith.constant 0 : index
    %c0_160 = arith.constant 0 : index
    %231 = vector.load %arg38[%c0_159, %c0_160] : memref<144x64xf32, #tpu.memory_space<vmem>>, vector<8x64xf32>
    tpu.vector_store %arg38[%c0_159, %c0_160], %230 {strides = array<i32>} : memref<144x64xf32, #tpu.memory_space<vmem>>, vector<8x64xf32>,
    %c0_161 = arith.constant 0 : index
    %c120_162 = arith.constant 120 : index
    %232 = vector.load %arg37[%c0_161, %c120_162] : memref<16x201xf32, #tpu.memory_space<vmem>>, vector<8x64xf32>
    %c8_163 = arith.constant 8 : index
    %c0_164 = arith.constant 0 : index
    %233 = vector.load %arg38[%c8_163, %c0_164] : memref<144x64xf32, #tpu.memory_space<vmem>>, vector<8x64xf32>
    tpu.vector_store %arg38[%c8_163, %c0_164], %232 {strides = array<i32>} : memref<144x64xf32, #tpu.memory_space<vmem>>, vector<8x64xf32>,
    %c0_165 = arith.constant 0 : index
    %c121_166 = arith.constant 121 : index
    %234 = vector.load %arg37[%c0_165, %c121_166] : memref<16x201xf32, #tpu.memory_space<vmem>>, vector<8x64xf32>
    %cst_167 = arith.constant 0.000000e+00 : f32
    %235 = vector.shape_cast %41 : vector<1x64xi1> to vector<1x64xi1>
    %236 = vector.broadcast %235 : vector<1x64xi1> to vector<8x64xi1>
    %237 = vector.broadcast %cst_167 : f32 to vector<8x64xf32>
    %238 = arith.select %236, %237, %234 : vector<8x64xi1>, vector<8x64xf32>
    %c16_168 = arith.constant 16 : index
    %c0_169 = arith.constant 0 : index
    %239 = vector.load %arg38[%c16_168, %c0_169] : memref<144x64xf32, #tpu.memory_space<vmem>>, vector<8x64xf32>
    tpu.vector_store %arg38[%c16_168, %c0_169], %238 {strides = array<i32>} : memref<144x64xf32, #tpu.memory_space<vmem>>, vector<8x64xf32>,
    %c0_170 = arith.constant 0 : index
    %c127_171 = arith.constant 127 : index
    %240 = vector.load %arg37[%c0_170, %c127_171] : memref<16x201xf32, #tpu.memory_space<vmem>>, vector<8x64xf32>
    %cst_172 = arith.constant 0.000000e+00 : f32
    %241 = vector.shape_cast %39 : vector<1x64xi1> to vector<1x64xi1>
    %242 = vector.broadcast %241 : vector<1x64xi1> to vector<8x64xi1>
    %243 = vector.broadcast %cst_172 : f32 to vector<8x64xf32>
    %244 = arith.select %242, %243, %240 : vector<8x64xi1>, vector<8x64xf32>
    %c24_173 = arith.constant 24 : index
    %c0_174 = arith.constant 0 : index
    %245 = vector.load %arg38[%c24_173, %c0_174] : memref<144x64xf32, #tpu.memory_space<vmem>>, vector<8x64xf32>
    tpu.vector_store %arg38[%c24_173, %c0_174], %244 {strides = array<i32>} : memref<144x64xf32, #tpu.memory_space<vmem>>, vector<8x64xf32>,
    %c0_175 = arith.constant 0 : index
    %c128_176 = arith.constant 128 : index
    %246 = vector.load %arg37[%c0_175, %c128_176] : memref<16x201xf32, #tpu.memory_space<vmem>>, vector<8x64xf32>
    %c32_177 = arith.constant 32 : index
    %c0_178 = arith.constant 0 : index
    %247 = vector.load %arg38[%c32_177, %c0_178] : memref<144x64xf32, #tpu.memory_space<vmem>>, vector<8x64xf32>
    tpu.vector_store %arg38[%c32_177, %c0_178], %246 {strides = array<i32>} : memref<144x64xf32, #tpu.memory_space<vmem>>, vector<8x64xf32>,
    %c0_179 = arith.constant 0 : index
    %c129_180 = arith.constant 129 : index
    %248 = vector.load %arg37[%c0_179, %c129_180] : memref<16x201xf32, #tpu.memory_space<vmem>>, vector<8x64xf32>
    %cst_181 = arith.constant 0.000000e+00 : f32
    %249 = vector.shape_cast %41 : vector<1x64xi1> to vector<1x64xi1>
    %250 = vector.broadcast %249 : vector<1x64xi1> to vector<8x64xi1>
    %251 = vector.broadcast %cst_181 : f32 to vector<8x64xf32>
    %252 = arith.select %250, %251, %248 : vector<8x64xi1>, vector<8x64xf32>
    %c40_182 = arith.constant 40 : index
    %c0_183 = arith.constant 0 : index
    %253 = vector.load %arg38[%c40_182, %c0_183] : memref<144x64xf32, #tpu.memory_space<vmem>>, vector<8x64xf32>
    tpu.vector_store %arg38[%c40_182, %c0_183], %252 {strides = array<i32>} : memref<144x64xf32, #tpu.memory_space<vmem>>, vector<8x64xf32>,
    %c0_184 = arith.constant 0 : index
    %c135_185 = arith.constant 135 : index
    %254 = vector.load %arg37[%c0_184, %c135_185] : memref<16x201xf32, #tpu.memory_space<vmem>>, vector<8x64xf32>
    %cst_186 = arith.constant 0.000000e+00 : f32
    %255 = vector.shape_cast %39 : vector<1x64xi1> to vector<1x64xi1>
    %256 = vector.broadcast %255 : vector<1x64xi1> to vector<8x64xi1>
    %257 = vector.broadcast %cst_186 : f32 to vector<8x64xf32>
    %258 = arith.select %256, %257, %254 : vector<8x64xi1>, vector<8x64xf32>
    %c48_187 = arith.constant 48 : index
    %c0_188 = arith.constant 0 : index
    %259 = vector.load %arg38[%c48_187, %c0_188] : memref<144x64xf32, #tpu.memory_space<vmem>>, vector<8x64xf32>
    tpu.vector_store %arg38[%c48_187, %c0_188], %258 {strides = array<i32>} : memref<144x64xf32, #tpu.memory_space<vmem>>, vector<8x64xf32>,
    %c0_189 = arith.constant 0 : index
    %c136_190 = arith.constant 136 : index
    %260 = vector.load %arg37[%c0_189, %c136_190] : memref<16x201xf32, #tpu.memory_space<vmem>>, vector<8x64xf32>
    %c56_191 = arith.constant 56 : index
    %c0_192 = arith.constant 0 : index
    %261 = vector.load %arg38[%c56_191, %c0_192] : memref<144x64xf32, #tpu.memory_space<vmem>>, vector<8x64xf32>
    tpu.vector_store %arg38[%c56_191, %c0_192], %260 {strides = array<i32>} : memref<144x64xf32, #tpu.memory_space<vmem>>, vector<8x64xf32>,
    %c0_193 = arith.constant 0 : index
    %c137_194 = arith.constant 137 : index
    %262 = vector.load %arg37[%c0_193, %c137_194] : memref<16x201xf32, #tpu.memory_space<vmem>>, vector<8x64xf32>
    %cst_195 = arith.constant 0.000000e+00 : f32
    %263 = vector.shape_cast %41 : vector<1x64xi1> to vector<1x64xi1>
    %264 = vector.broadcast %263 : vector<1x64xi1> to vector<8x64xi1>
    %265 = vector.broadcast %cst_195 : f32 to vector<8x64xf32>
    %266 = arith.select %264, %265, %262 : vector<8x64xi1>, vector<8x64xf32>
    %c64_196 = arith.constant 64 : index
    %c0_197 = arith.constant 0 : index
    %267 = vector.load %arg38[%c64_196, %c0_197] : memref<144x64xf32, #tpu.memory_space<vmem>>, vector<8x64xf32>
    tpu.vector_store %arg38[%c64_196, %c0_197], %266 {strides = array<i32>} : memref<144x64xf32, #tpu.memory_space<vmem>>, vector<8x64xf32>,
    %c0_198 = arith.constant 0 : index
    %c0_199 = arith.constant 0 : index
    %268 = vector.load %arg8[%c0_198, %c0_199] : memref<8x72xf32, #tpu.memory_space<vmem>>, vector<8x72xf32>
    %c0_200 = arith.constant 0 : index
    %c0_201 = arith.constant 0 : index
    %269 = vector.load %arg38[%c0_200, %c0_201] : memref<144x64xf32, #tpu.memory_space<vmem>>, vector<72x64xf32>
    %cst_202 = arith.constant dense<0.000000e+00> : vector<8x64xf32>
    %270 = tpu.matmul %268, %269, %cst_202 {dimension_numbers = #tpu.dot_dimension_numbers<[1], [0], [0], [1], [0, 0, 1, 1], [], []>} : vector<8x72xf32>, vector<72x64xf32>, vector<8x64xf32> -> vector<8x64xf32>
    %c0_203 = arith.constant 0 : index
    %c0_204 = arith.constant 0 : index
    %271 = vector.load %arg9[%c0_203, %c0_204] : memref<8x1xf32, #tpu.memory_space<vmem>>, vector<8x1xf32>
    %272 = vector.broadcast %271 : vector<8x1xf32> to vector<8x64xf32>
    %273 = arith.addf %270, %272 : vector<8x64xf32>
    %c0_205 = arith.constant 0 : index
    %c0_206 = arith.constant 0 : index
    %274 = vector.load %arg29[%c0_205, %c0_206] : memref<256x16xf32, #tpu.memory_space<vmem>>, vector<256x16xf32>
    %cst_207 = arith.constant dense<0.000000e+00> : vector<4x16xf32>
    %275 = tpu.matmul %64, %274, %cst_207 {dimension_numbers = #tpu.dot_dimension_numbers<[1], [0], [0], [1], [0, 0, 1, 1], [], []>} : vector<4x256xf32>, vector<256x16xf32>, vector<4x16xf32> -> vector<4x16xf32>
    %c0_208 = arith.constant 0 : index
    %c0_209 = arith.constant 0 : index
    %276 = vector.load %arg30[%c0_208, %c0_209] : memref<64x16xf32, #tpu.memory_space<vmem>>, vector<64x16xf32>
    %cst_210 = arith.constant dense<0.000000e+00> : vector<8x16xf32>
    %277 = tpu.matmul %273, %276, %cst_210 {dimension_numbers = #tpu.dot_dimension_numbers<[1], [0], [0], [1], [0, 0, 1, 1], [], []>} : vector<8x64xf32>, vector<64x16xf32>, vector<8x16xf32> -> vector<8x16xf32>
    %cst_211 = arith.constant 0.000000e+00 : f32
    %278 = vector.broadcast %cst_211 : f32 to vector<12x149xf32>
    %c0_212 = arith.constant 0 : index
    %c0_213 = arith.constant 0 : index
    %279 = vector.load %arg39[%c0_212, %c0_213] : memref<12x149xf32, #tpu.memory_space<vmem>>, vector<12x149xf32>
    tpu.vector_store %arg39[%c0_212, %c0_213], %278 {strides = array<i32>} : memref<12x149xf32, #tpu.memory_space<vmem>>, vector<12x149xf32>,
    %c0_214 = arith.constant 0 : index
    %c128_215 = arith.constant 128 : index
    %280 = vector.load %arg39[%c0_214, %c128_215] : memref<12x149xf32, #tpu.memory_space<vmem>>, vector<4x16xf32>
    tpu.vector_store %arg39[%c0_214, %c128_215], %275 {strides = array<i32>} : memref<12x149xf32, #tpu.memory_space<vmem>>, vector<4x16xf32>,
    %c4_216 = arith.constant 4 : index
    %c128_217 = arith.constant 128 : index
    %281 = vector.load %arg39[%c4_216, %c128_217] : memref<12x149xf32, #tpu.memory_space<vmem>>, vector<8x16xf32>
    tpu.vector_store %arg39[%c4_216, %c128_217], %277 {strides = array<i32>} : memref<12x149xf32, #tpu.memory_space<vmem>>, vector<8x16xf32>,
    %c0_218 = arith.constant 0 : index
    %c123 = arith.constant 123 : index
    %282 = vector.load %arg39[%c0_218, %c123] : memref<12x149xf32, #tpu.memory_space<vmem>>, vector<12x16xf32>
    %cst_219 = arith.constant 0.000000e+00 : f32
    %283 = vector.shape_cast %60 : vector<1x16xi1> to vector<1x16xi1>
    %284 = vector.broadcast %283 : vector<1x16xi1> to vector<12x16xi1>
    %285 = vector.broadcast %cst_219 : f32 to vector<12x16xf32>
    %286 = arith.select %284, %285, %282 : vector<12x16xi1>, vector<12x16xf32>
    %c0_220 = arith.constant 0 : index
    %c0_221 = arith.constant 0 : index
    %287 = vector.load %arg40[%c0_220, %c0_221] : memref<108x16xf32, #tpu.memory_space<vmem>>, vector<12x16xf32>
    tpu.vector_store %arg40[%c0_220, %c0_221], %286 {strides = array<i32>} : memref<108x16xf32, #tpu.memory_space<vmem>>, vector<12x16xf32>,
    %c0_222 = arith.constant 0 : index
    %c124 = arith.constant 124 : index
    %288 = vector.load %arg39[%c0_222, %c124] : memref<12x149xf32, #tpu.memory_space<vmem>>, vector<12x16xf32>
    %c12_223 = arith.constant 12 : index
    %c0_224 = arith.constant 0 : index
    %289 = vector.load %arg40[%c12_223, %c0_224] : memref<108x16xf32, #tpu.memory_space<vmem>>, vector<12x16xf32>
    tpu.vector_store %arg40[%c12_223, %c0_224], %288 {strides = array<i32>} : memref<108x16xf32, #tpu.memory_space<vmem>>, vector<12x16xf32>,
    %c0_225 = arith.constant 0 : index
    %c125 = arith.constant 125 : index
    %290 = vector.load %arg39[%c0_225, %c125] : memref<12x149xf32, #tpu.memory_space<vmem>>, vector<12x16xf32>
    %cst_226 = arith.constant 0.000000e+00 : f32
    %291 = vector.shape_cast %62 : vector<1x16xi1> to vector<1x16xi1>
    %292 = vector.broadcast %291 : vector<1x16xi1> to vector<12x16xi1>
    %293 = vector.broadcast %cst_226 : f32 to vector<12x16xf32>
    %294 = arith.select %292, %293, %290 : vector<12x16xi1>, vector<12x16xf32>
    %c24_227 = arith.constant 24 : index
    %c0_228 = arith.constant 0 : index
    %295 = vector.load %arg40[%c24_227, %c0_228] : memref<108x16xf32, #tpu.memory_space<vmem>>, vector<12x16xf32>
    tpu.vector_store %arg40[%c24_227, %c0_228], %294 {strides = array<i32>} : memref<108x16xf32, #tpu.memory_space<vmem>>, vector<12x16xf32>,
    %c0_229 = arith.constant 0 : index
    %c127_230 = arith.constant 127 : index
    %296 = vector.load %arg39[%c0_229, %c127_230] : memref<12x149xf32, #tpu.memory_space<vmem>>, vector<12x16xf32>
    %cst_231 = arith.constant 0.000000e+00 : f32
    %297 = vector.shape_cast %60 : vector<1x16xi1> to vector<1x16xi1>
    %298 = vector.broadcast %297 : vector<1x16xi1> to vector<12x16xi1>
    %299 = vector.broadcast %cst_231 : f32 to vector<12x16xf32>
    %300 = arith.select %298, %299, %296 : vector<12x16xi1>, vector<12x16xf32>
    %c36_232 = arith.constant 36 : index
    %c0_233 = arith.constant 0 : index
    %301 = vector.load %arg40[%c36_232, %c0_233] : memref<108x16xf32, #tpu.memory_space<vmem>>, vector<12x16xf32>
    tpu.vector_store %arg40[%c36_232, %c0_233], %300 {strides = array<i32>} : memref<108x16xf32, #tpu.memory_space<vmem>>, vector<12x16xf32>,
    %c0_234 = arith.constant 0 : index
    %c128_235 = arith.constant 128 : index
    %302 = vector.load %arg39[%c0_234, %c128_235] : memref<12x149xf32, #tpu.memory_space<vmem>>, vector<12x16xf32>
    %c48_236 = arith.constant 48 : index
    %c0_237 = arith.constant 0 : index
    %303 = vector.load %arg40[%c48_236, %c0_237] : memref<108x16xf32, #tpu.memory_space<vmem>>, vector<12x16xf32>
    tpu.vector_store %arg40[%c48_236, %c0_237], %302 {strides = array<i32>} : memref<108x16xf32, #tpu.memory_space<vmem>>, vector<12x16xf32>,
    %c0_238 = arith.constant 0 : index
    %c129_239 = arith.constant 129 : index
    %304 = vector.load %arg39[%c0_238, %c129_239] : memref<12x149xf32, #tpu.memory_space<vmem>>, vector<12x16xf32>
    %cst_240 = arith.constant 0.000000e+00 : f32
    %305 = vector.shape_cast %62 : vector<1x16xi1> to vector<1x16xi1>
    %306 = vector.broadcast %305 : vector<1x16xi1> to vector<12x16xi1>
    %307 = vector.broadcast %cst_240 : f32 to vector<12x16xf32>
    %308 = arith.select %306, %307, %304 : vector<12x16xi1>, vector<12x16xf32>
    %c60_241 = arith.constant 60 : index
    %c0_242 = arith.constant 0 : index
    %309 = vector.load %arg40[%c60_241, %c0_242] : memref<108x16xf32, #tpu.memory_space<vmem>>, vector<12x16xf32>
    tpu.vector_store %arg40[%c60_241, %c0_242], %308 {strides = array<i32>} : memref<108x16xf32, #tpu.memory_space<vmem>>, vector<12x16xf32>,
    %c0_243 = arith.constant 0 : index
    %c131 = arith.constant 131 : index
    %310 = vector.load %arg39[%c0_243, %c131] : memref<12x149xf32, #tpu.memory_space<vmem>>, vector<12x16xf32>
    %cst_244 = arith.constant 0.000000e+00 : f32
    %311 = vector.shape_cast %60 : vector<1x16xi1> to vector<1x16xi1>
    %312 = vector.broadcast %311 : vector<1x16xi1> to vector<12x16xi1>
    %313 = vector.broadcast %cst_244 : f32 to vector<12x16xf32>
    %314 = arith.select %312, %313, %310 : vector<12x16xi1>, vector<12x16xf32>
    %c72_245 = arith.constant 72 : index
    %c0_246 = arith.constant 0 : index
    %315 = vector.load %arg40[%c72_245, %c0_246] : memref<108x16xf32, #tpu.memory_space<vmem>>, vector<12x16xf32>
    tpu.vector_store %arg40[%c72_245, %c0_246], %314 {strides = array<i32>} : memref<108x16xf32, #tpu.memory_space<vmem>>, vector<12x16xf32>,
    %c0_247 = arith.constant 0 : index
    %c132 = arith.constant 132 : index
    %316 = vector.load %arg39[%c0_247, %c132] : memref<12x149xf32, #tpu.memory_space<vmem>>, vector<12x16xf32>
    %c84_248 = arith.constant 84 : index
    %c0_249 = arith.constant 0 : index
    %317 = vector.load %arg40[%c84_248, %c0_249] : memref<108x16xf32, #tpu.memory_space<vmem>>, vector<12x16xf32>
    tpu.vector_store %arg40[%c84_248, %c0_249], %316 {strides = array<i32>} : memref<108x16xf32, #tpu.memory_space<vmem>>, vector<12x16xf32>,
    %c0_250 = arith.constant 0 : index
    %c133 = arith.constant 133 : index
    %318 = vector.load %arg39[%c0_250, %c133] : memref<12x149xf32, #tpu.memory_space<vmem>>, vector<12x16xf32>
    %cst_251 = arith.constant 0.000000e+00 : f32
    %319 = vector.shape_cast %62 : vector<1x16xi1> to vector<1x16xi1>
    %320 = vector.broadcast %319 : vector<1x16xi1> to vector<12x16xi1>
    %321 = vector.broadcast %cst_251 : f32 to vector<12x16xf32>
    %322 = arith.select %320, %321, %318 : vector<12x16xi1>, vector<12x16xf32>
    %c96_252 = arith.constant 96 : index
    %c0_253 = arith.constant 0 : index
    %323 = vector.load %arg40[%c96_252, %c0_253] : memref<108x16xf32, #tpu.memory_space<vmem>>, vector<12x16xf32>
    tpu.vector_store %arg40[%c96_252, %c0_253], %322 {strides = array<i32>} : memref<108x16xf32, #tpu.memory_space<vmem>>, vector<12x16xf32>,
    %c0_254 = arith.constant 0 : index
    %c0_255 = arith.constant 0 : index
    %324 = vector.load %arg10[%c0_254, %c0_255] : memref<8x108xf32, #tpu.memory_space<vmem>>, vector<8x108xf32>
    %c0_256 = arith.constant 0 : index
    %c0_257 = arith.constant 0 : index
    %325 = vector.load %arg40[%c0_256, %c0_257] : memref<108x16xf32, #tpu.memory_space<vmem>>, vector<108x16xf32>
    %cst_258 = arith.constant dense<0.000000e+00> : vector<8x16xf32>
    %326 = tpu.matmul %324, %325, %cst_258 {dimension_numbers = #tpu.dot_dimension_numbers<[1], [0], [0], [1], [0, 0, 1, 1], [], []>} : vector<8x108xf32>, vector<108x16xf32>, vector<8x16xf32> -> vector<8x16xf32>
    %c0_259 = arith.constant 0 : index
    %c0_260 = arith.constant 0 : index
    %327 = vector.load %arg11[%c0_259, %c0_260] : memref<8x1xf32, #tpu.memory_space<vmem>>, vector<8x1xf32>
    %328 = vector.broadcast %327 : vector<8x1xf32> to vector<8x16xf32>
    %329 = arith.addf %326, %328 : vector<8x16xf32>
    %cst_261 = arith.constant 0.000000e+00 : f32
    %330 = vector.broadcast %cst_261 : f32 to vector<8x16xf32>
    %331 = arith.maximumf %329, %330 : vector<8x16xf32>
    %c0_262 = arith.constant 0 : index
    %c128_263 = arith.constant 128 : index
    %332 = vector.load %arg39[%c0_262, %c128_263] : memref<12x149xf32, #tpu.memory_space<vmem>>, vector<8x16xf32>
    tpu.vector_store %arg39[%c0_262, %c128_263], %331 {strides = array<i32>} : memref<12x149xf32, #tpu.memory_space<vmem>>, vector<8x16xf32>,
    %c0_264 = arith.constant 0 : index
    %c123_265 = arith.constant 123 : index
    %333 = vector.load %arg39[%c0_264, %c123_265] : memref<12x149xf32, #tpu.memory_space<vmem>>, vector<8x16xf32>
    %cst_266 = arith.constant 0.000000e+00 : f32
    %334 = vector.shape_cast %60 : vector<1x16xi1> to vector<1x16xi1>
    %335 = vector.broadcast %334 : vector<1x16xi1> to vector<8x16xi1>
    %336 = vector.broadcast %cst_266 : f32 to vector<8x16xf32>
    %337 = arith.select %335, %336, %333 : vector<8x16xi1>, vector<8x16xf32>
    %c0_267 = arith.constant 0 : index
    %c0_268 = arith.constant 0 : index
    %338 = vector.load %arg40[%c0_267, %c0_268] : memref<108x16xf32, #tpu.memory_space<vmem>>, vector<8x16xf32>
    tpu.vector_store %arg40[%c0_267, %c0_268], %337 {strides = array<i32>} : memref<108x16xf32, #tpu.memory_space<vmem>>, vector<8x16xf32>,
    %c0_269 = arith.constant 0 : index
    %c124_270 = arith.constant 124 : index
    %339 = vector.load %arg39[%c0_269, %c124_270] : memref<12x149xf32, #tpu.memory_space<vmem>>, vector<8x16xf32>
    %c8_271 = arith.constant 8 : index
    %c0_272 = arith.constant 0 : index
    %340 = vector.load %arg40[%c8_271, %c0_272] : memref<108x16xf32, #tpu.memory_space<vmem>>, vector<8x16xf32>
    tpu.vector_store %arg40[%c8_271, %c0_272], %339 {strides = array<i32>} : memref<108x16xf32, #tpu.memory_space<vmem>>, vector<8x16xf32>,
    %c0_273 = arith.constant 0 : index
    %c125_274 = arith.constant 125 : index
    %341 = vector.load %arg39[%c0_273, %c125_274] : memref<12x149xf32, #tpu.memory_space<vmem>>, vector<8x16xf32>
    %cst_275 = arith.constant 0.000000e+00 : f32
    %342 = vector.shape_cast %62 : vector<1x16xi1> to vector<1x16xi1>
    %343 = vector.broadcast %342 : vector<1x16xi1> to vector<8x16xi1>
    %344 = vector.broadcast %cst_275 : f32 to vector<8x16xf32>
    %345 = arith.select %343, %344, %341 : vector<8x16xi1>, vector<8x16xf32>
    %c16_276 = arith.constant 16 : index
    %c0_277 = arith.constant 0 : index
    %346 = vector.load %arg40[%c16_276, %c0_277] : memref<108x16xf32, #tpu.memory_space<vmem>>, vector<8x16xf32>
    tpu.vector_store %arg40[%c16_276, %c0_277], %345 {strides = array<i32>} : memref<108x16xf32, #tpu.memory_space<vmem>>, vector<8x16xf32>,
    %c0_278 = arith.constant 0 : index
    %c127_279 = arith.constant 127 : index
    %347 = vector.load %arg39[%c0_278, %c127_279] : memref<12x149xf32, #tpu.memory_space<vmem>>, vector<8x16xf32>
    %cst_280 = arith.constant 0.000000e+00 : f32
    %348 = vector.shape_cast %60 : vector<1x16xi1> to vector<1x16xi1>
    %349 = vector.broadcast %348 : vector<1x16xi1> to vector<8x16xi1>
    %350 = vector.broadcast %cst_280 : f32 to vector<8x16xf32>
    %351 = arith.select %349, %350, %347 : vector<8x16xi1>, vector<8x16xf32>
    %c24_281 = arith.constant 24 : index
    %c0_282 = arith.constant 0 : index
    %352 = vector.load %arg40[%c24_281, %c0_282] : memref<108x16xf32, #tpu.memory_space<vmem>>, vector<8x16xf32>
    tpu.vector_store %arg40[%c24_281, %c0_282], %351 {strides = array<i32>} : memref<108x16xf32, #tpu.memory_space<vmem>>, vector<8x16xf32>,
    %c0_283 = arith.constant 0 : index
    %c128_284 = arith.constant 128 : index
    %353 = vector.load %arg39[%c0_283, %c128_284] : memref<12x149xf32, #tpu.memory_space<vmem>>, vector<8x16xf32>
    %c32_285 = arith.constant 32 : index
    %c0_286 = arith.constant 0 : index
    %354 = vector.load %arg40[%c32_285, %c0_286] : memref<108x16xf32, #tpu.memory_space<vmem>>, vector<8x16xf32>
    tpu.vector_store %arg40[%c32_285, %c0_286], %353 {strides = array<i32>} : memref<108x16xf32, #tpu.memory_space<vmem>>, vector<8x16xf32>,
    %c0_287 = arith.constant 0 : index
    %c129_288 = arith.constant 129 : index
    %355 = vector.load %arg39[%c0_287, %c129_288] : memref<12x149xf32, #tpu.memory_space<vmem>>, vector<8x16xf32>
    %cst_289 = arith.constant 0.000000e+00 : f32
    %356 = vector.shape_cast %62 : vector<1x16xi1> to vector<1x16xi1>
    %357 = vector.broadcast %356 : vector<1x16xi1> to vector<8x16xi1>
    %358 = vector.broadcast %cst_289 : f32 to vector<8x16xf32>
    %359 = arith.select %357, %358, %355 : vector<8x16xi1>, vector<8x16xf32>
    %c40_290 = arith.constant 40 : index
    %c0_291 = arith.constant 0 : index
    %360 = vector.load %arg40[%c40_290, %c0_291] : memref<108x16xf32, #tpu.memory_space<vmem>>, vector<8x16xf32>
    tpu.vector_store %arg40[%c40_290, %c0_291], %359 {strides = array<i32>} : memref<108x16xf32, #tpu.memory_space<vmem>>, vector<8x16xf32>,
    %c0_292 = arith.constant 0 : index
    %c131_293 = arith.constant 131 : index
    %361 = vector.load %arg39[%c0_292, %c131_293] : memref<12x149xf32, #tpu.memory_space<vmem>>, vector<8x16xf32>
    %cst_294 = arith.constant 0.000000e+00 : f32
    %362 = vector.shape_cast %60 : vector<1x16xi1> to vector<1x16xi1>
    %363 = vector.broadcast %362 : vector<1x16xi1> to vector<8x16xi1>
    %364 = vector.broadcast %cst_294 : f32 to vector<8x16xf32>
    %365 = arith.select %363, %364, %361 : vector<8x16xi1>, vector<8x16xf32>
    %c48_295 = arith.constant 48 : index
    %c0_296 = arith.constant 0 : index
    %366 = vector.load %arg40[%c48_295, %c0_296] : memref<108x16xf32, #tpu.memory_space<vmem>>, vector<8x16xf32>
    tpu.vector_store %arg40[%c48_295, %c0_296], %365 {strides = array<i32>} : memref<108x16xf32, #tpu.memory_space<vmem>>, vector<8x16xf32>,
    %c0_297 = arith.constant 0 : index
    %c132_298 = arith.constant 132 : index
    %367 = vector.load %arg39[%c0_297, %c132_298] : memref<12x149xf32, #tpu.memory_space<vmem>>, vector<8x16xf32>
    %c56_299 = arith.constant 56 : index
    %c0_300 = arith.constant 0 : index
    %368 = vector.load %arg40[%c56_299, %c0_300] : memref<108x16xf32, #tpu.memory_space<vmem>>, vector<8x16xf32>
    tpu.vector_store %arg40[%c56_299, %c0_300], %367 {strides = array<i32>} : memref<108x16xf32, #tpu.memory_space<vmem>>, vector<8x16xf32>,
    %c0_301 = arith.constant 0 : index
    %c133_302 = arith.constant 133 : index
    %369 = vector.load %arg39[%c0_301, %c133_302] : memref<12x149xf32, #tpu.memory_space<vmem>>, vector<8x16xf32>
    %cst_303 = arith.constant 0.000000e+00 : f32
    %370 = vector.shape_cast %62 : vector<1x16xi1> to vector<1x16xi1>
    %371 = vector.broadcast %370 : vector<1x16xi1> to vector<8x16xi1>
    %372 = vector.broadcast %cst_303 : f32 to vector<8x16xf32>
    %373 = arith.select %371, %372, %369 : vector<8x16xi1>, vector<8x16xf32>
    %c64_304 = arith.constant 64 : index
    %c0_305 = arith.constant 0 : index
    %374 = vector.load %arg40[%c64_304, %c0_305] : memref<108x16xf32, #tpu.memory_space<vmem>>, vector<8x16xf32>
    tpu.vector_store %arg40[%c64_304, %c0_305], %373 {strides = array<i32>} : memref<108x16xf32, #tpu.memory_space<vmem>>, vector<8x16xf32>,
    %c0_306 = arith.constant 0 : index
    %c0_307 = arith.constant 0 : index
    %375 = vector.load %arg12[%c0_306, %c0_307] : memref<8x72xf32, #tpu.memory_space<vmem>>, vector<8x72xf32>
    %c0_308 = arith.constant 0 : index
    %c0_309 = arith.constant 0 : index
    %376 = vector.load %arg40[%c0_308, %c0_309] : memref<108x16xf32, #tpu.memory_space<vmem>>, vector<72x16xf32>
    %cst_310 = arith.constant dense<0.000000e+00> : vector<8x16xf32>
    %377 = tpu.matmul %375, %376, %cst_310 {dimension_numbers = #tpu.dot_dimension_numbers<[1], [0], [0], [1], [0, 0, 1, 1], [], []>} : vector<8x72xf32>, vector<72x16xf32>, vector<8x16xf32> -> vector<8x16xf32>
    %c0_311 = arith.constant 0 : index
    %c0_312 = arith.constant 0 : index
    %378 = vector.load %arg13[%c0_311, %c0_312] : memref<8x1xf32, #tpu.memory_space<vmem>>, vector<8x1xf32>
    %379 = vector.broadcast %378 : vector<8x1xf32> to vector<8x16xf32>
    %380 = arith.addf %377, %379 : vector<8x16xf32>
    %cst_313 = arith.constant 0.000000e+00 : f32
    %381 = vector.broadcast %cst_313 : f32 to vector<12x149xf32>
    %c0_314 = arith.constant 0 : index
    %c0_315 = arith.constant 0 : index
    %382 = vector.load %arg39[%c0_314, %c0_315] : memref<12x149xf32, #tpu.memory_space<vmem>>, vector<12x149xf32>
    tpu.vector_store %arg39[%c0_314, %c0_315], %381 {strides = array<i32>} : memref<12x149xf32, #tpu.memory_space<vmem>>, vector<12x149xf32>,
    %c0_316 = arith.constant 0 : index
    %c128_317 = arith.constant 128 : index
    %383 = vector.load %arg39[%c0_316, %c128_317] : memref<12x149xf32, #tpu.memory_space<vmem>>, vector<8x16xf32>
    tpu.vector_store %arg39[%c0_316, %c128_317], %380 {strides = array<i32>} : memref<12x149xf32, #tpu.memory_space<vmem>>, vector<8x16xf32>,
    %c0_318 = arith.constant 0 : index
    %c123_319 = arith.constant 123 : index
    %384 = vector.load %arg39[%c0_318, %c123_319] : memref<12x149xf32, #tpu.memory_space<vmem>>, vector<8x16xf32>
    %cst_320 = arith.constant 0.000000e+00 : f32
    %385 = vector.shape_cast %60 : vector<1x16xi1> to vector<1x16xi1>
    %386 = vector.broadcast %385 : vector<1x16xi1> to vector<8x16xi1>
    %387 = vector.broadcast %cst_320 : f32 to vector<8x16xf32>
    %388 = arith.select %386, %387, %384 : vector<8x16xi1>, vector<8x16xf32>
    %c0_321 = arith.constant 0 : index
    %c0_322 = arith.constant 0 : index
    %389 = vector.load %arg40[%c0_321, %c0_322] : memref<108x16xf32, #tpu.memory_space<vmem>>, vector<8x16xf32>
    tpu.vector_store %arg40[%c0_321, %c0_322], %388 {strides = array<i32>} : memref<108x16xf32, #tpu.memory_space<vmem>>, vector<8x16xf32>,
    %c0_323 = arith.constant 0 : index
    %c124_324 = arith.constant 124 : index
    %390 = vector.load %arg39[%c0_323, %c124_324] : memref<12x149xf32, #tpu.memory_space<vmem>>, vector<8x16xf32>
    %c8_325 = arith.constant 8 : index
    %c0_326 = arith.constant 0 : index
    %391 = vector.load %arg40[%c8_325, %c0_326] : memref<108x16xf32, #tpu.memory_space<vmem>>, vector<8x16xf32>
    tpu.vector_store %arg40[%c8_325, %c0_326], %390 {strides = array<i32>} : memref<108x16xf32, #tpu.memory_space<vmem>>, vector<8x16xf32>,
    %c0_327 = arith.constant 0 : index
    %c125_328 = arith.constant 125 : index
    %392 = vector.load %arg39[%c0_327, %c125_328] : memref<12x149xf32, #tpu.memory_space<vmem>>, vector<8x16xf32>
    %cst_329 = arith.constant 0.000000e+00 : f32
    %393 = vector.shape_cast %62 : vector<1x16xi1> to vector<1x16xi1>
    %394 = vector.broadcast %393 : vector<1x16xi1> to vector<8x16xi1>
    %395 = vector.broadcast %cst_329 : f32 to vector<8x16xf32>
    %396 = arith.select %394, %395, %392 : vector<8x16xi1>, vector<8x16xf32>
    %c16_330 = arith.constant 16 : index
    %c0_331 = arith.constant 0 : index
    %397 = vector.load %arg40[%c16_330, %c0_331] : memref<108x16xf32, #tpu.memory_space<vmem>>, vector<8x16xf32>
    tpu.vector_store %arg40[%c16_330, %c0_331], %396 {strides = array<i32>} : memref<108x16xf32, #tpu.memory_space<vmem>>, vector<8x16xf32>,
    %c0_332 = arith.constant 0 : index
    %c127_333 = arith.constant 127 : index
    %398 = vector.load %arg39[%c0_332, %c127_333] : memref<12x149xf32, #tpu.memory_space<vmem>>, vector<8x16xf32>
    %cst_334 = arith.constant 0.000000e+00 : f32
    %399 = vector.shape_cast %60 : vector<1x16xi1> to vector<1x16xi1>
    %400 = vector.broadcast %399 : vector<1x16xi1> to vector<8x16xi1>
    %401 = vector.broadcast %cst_334 : f32 to vector<8x16xf32>
    %402 = arith.select %400, %401, %398 : vector<8x16xi1>, vector<8x16xf32>
    %c24_335 = arith.constant 24 : index
    %c0_336 = arith.constant 0 : index
    %403 = vector.load %arg40[%c24_335, %c0_336] : memref<108x16xf32, #tpu.memory_space<vmem>>, vector<8x16xf32>
    tpu.vector_store %arg40[%c24_335, %c0_336], %402 {strides = array<i32>} : memref<108x16xf32, #tpu.memory_space<vmem>>, vector<8x16xf32>,
    %c0_337 = arith.constant 0 : index
    %c128_338 = arith.constant 128 : index
    %404 = vector.load %arg39[%c0_337, %c128_338] : memref<12x149xf32, #tpu.memory_space<vmem>>, vector<8x16xf32>
    %c32_339 = arith.constant 32 : index
    %c0_340 = arith.constant 0 : index
    %405 = vector.load %arg40[%c32_339, %c0_340] : memref<108x16xf32, #tpu.memory_space<vmem>>, vector<8x16xf32>
    tpu.vector_store %arg40[%c32_339, %c0_340], %404 {strides = array<i32>} : memref<108x16xf32, #tpu.memory_space<vmem>>, vector<8x16xf32>,
    %c0_341 = arith.constant 0 : index
    %c129_342 = arith.constant 129 : index
    %406 = vector.load %arg39[%c0_341, %c129_342] : memref<12x149xf32, #tpu.memory_space<vmem>>, vector<8x16xf32>
    %cst_343 = arith.constant 0.000000e+00 : f32
    %407 = vector.shape_cast %62 : vector<1x16xi1> to vector<1x16xi1>
    %408 = vector.broadcast %407 : vector<1x16xi1> to vector<8x16xi1>
    %409 = vector.broadcast %cst_343 : f32 to vector<8x16xf32>
    %410 = arith.select %408, %409, %406 : vector<8x16xi1>, vector<8x16xf32>
    %c40_344 = arith.constant 40 : index
    %c0_345 = arith.constant 0 : index
    %411 = vector.load %arg40[%c40_344, %c0_345] : memref<108x16xf32, #tpu.memory_space<vmem>>, vector<8x16xf32>
    tpu.vector_store %arg40[%c40_344, %c0_345], %410 {strides = array<i32>} : memref<108x16xf32, #tpu.memory_space<vmem>>, vector<8x16xf32>,
    %c0_346 = arith.constant 0 : index
    %c131_347 = arith.constant 131 : index
    %412 = vector.load %arg39[%c0_346, %c131_347] : memref<12x149xf32, #tpu.memory_space<vmem>>, vector<8x16xf32>
    %cst_348 = arith.constant 0.000000e+00 : f32
    %413 = vector.shape_cast %60 : vector<1x16xi1> to vector<1x16xi1>
    %414 = vector.broadcast %413 : vector<1x16xi1> to vector<8x16xi1>
    %415 = vector.broadcast %cst_348 : f32 to vector<8x16xf32>
    %416 = arith.select %414, %415, %412 : vector<8x16xi1>, vector<8x16xf32>
    %c48_349 = arith.constant 48 : index
    %c0_350 = arith.constant 0 : index
    %417 = vector.load %arg40[%c48_349, %c0_350] : memref<108x16xf32, #tpu.memory_space<vmem>>, vector<8x16xf32>
    tpu.vector_store %arg40[%c48_349, %c0_350], %416 {strides = array<i32>} : memref<108x16xf32, #tpu.memory_space<vmem>>, vector<8x16xf32>,
    %c0_351 = arith.constant 0 : index
    %c132_352 = arith.constant 132 : index
    %418 = vector.load %arg39[%c0_351, %c132_352] : memref<12x149xf32, #tpu.memory_space<vmem>>, vector<8x16xf32>
    %c56_353 = arith.constant 56 : index
    %c0_354 = arith.constant 0 : index
    %419 = vector.load %arg40[%c56_353, %c0_354] : memref<108x16xf32, #tpu.memory_space<vmem>>, vector<8x16xf32>
    tpu.vector_store %arg40[%c56_353, %c0_354], %418 {strides = array<i32>} : memref<108x16xf32, #tpu.memory_space<vmem>>, vector<8x16xf32>,
    %c0_355 = arith.constant 0 : index
    %c133_356 = arith.constant 133 : index
    %420 = vector.load %arg39[%c0_355, %c133_356] : memref<12x149xf32, #tpu.memory_space<vmem>>, vector<8x16xf32>
    %cst_357 = arith.constant 0.000000e+00 : f32
    %421 = vector.shape_cast %62 : vector<1x16xi1> to vector<1x16xi1>
    %422 = vector.broadcast %421 : vector<1x16xi1> to vector<8x16xi1>
    %423 = vector.broadcast %cst_357 : f32 to vector<8x16xf32>
    %424 = arith.select %422, %423, %420 : vector<8x16xi1>, vector<8x16xf32>
    %c64_358 = arith.constant 64 : index
    %c0_359 = arith.constant 0 : index
    %425 = vector.load %arg40[%c64_358, %c0_359] : memref<108x16xf32, #tpu.memory_space<vmem>>, vector<8x16xf32>
    tpu.vector_store %arg40[%c64_358, %c0_359], %424 {strides = array<i32>} : memref<108x16xf32, #tpu.memory_space<vmem>>, vector<8x16xf32>,
    %c0_360 = arith.constant 0 : index
    %c0_361 = arith.constant 0 : index
    %426 = vector.load %arg14[%c0_360, %c0_361] : memref<8x72xf32, #tpu.memory_space<vmem>>, vector<8x72xf32>
    %c0_362 = arith.constant 0 : index
    %c0_363 = arith.constant 0 : index
    %427 = vector.load %arg40[%c0_362, %c0_363] : memref<108x16xf32, #tpu.memory_space<vmem>>, vector<72x16xf32>
    %cst_364 = arith.constant dense<0.000000e+00> : vector<8x16xf32>
    %428 = tpu.matmul %426, %427, %cst_364 {dimension_numbers = #tpu.dot_dimension_numbers<[1], [0], [0], [1], [0, 0, 1, 1], [], []>} : vector<8x72xf32>, vector<72x16xf32>, vector<8x16xf32> -> vector<8x16xf32>
    %c0_365 = arith.constant 0 : index
    %c0_366 = arith.constant 0 : index
    %429 = vector.load %arg15[%c0_365, %c0_366] : memref<8x1xf32, #tpu.memory_space<vmem>>, vector<8x1xf32>
    %430 = vector.broadcast %429 : vector<8x1xf32> to vector<8x16xf32>
    %431 = arith.addf %428, %430 : vector<8x16xf32>
    %cst_367 = arith.constant 0.000000e+00 : f32
    %432 = vector.broadcast %cst_367 : f32 to vector<8x16xf32>
    %433 = arith.maximumf %431, %432 : vector<8x16xf32>
    %c0_368 = arith.constant 0 : index
    %c128_369 = arith.constant 128 : index
    %434 = vector.load %arg39[%c0_368, %c128_369] : memref<12x149xf32, #tpu.memory_space<vmem>>, vector<8x16xf32>
    tpu.vector_store %arg39[%c0_368, %c128_369], %433 {strides = array<i32>} : memref<12x149xf32, #tpu.memory_space<vmem>>, vector<8x16xf32>,
    %c0_370 = arith.constant 0 : index
    %c123_371 = arith.constant 123 : index
    %435 = vector.load %arg39[%c0_370, %c123_371] : memref<12x149xf32, #tpu.memory_space<vmem>>, vector<8x16xf32>
    %cst_372 = arith.constant 0.000000e+00 : f32
    %436 = vector.shape_cast %60 : vector<1x16xi1> to vector<1x16xi1>
    %437 = vector.broadcast %436 : vector<1x16xi1> to vector<8x16xi1>
    %438 = vector.broadcast %cst_372 : f32 to vector<8x16xf32>
    %439 = arith.select %437, %438, %435 : vector<8x16xi1>, vector<8x16xf32>
    %c0_373 = arith.constant 0 : index
    %c0_374 = arith.constant 0 : index
    %440 = vector.load %arg40[%c0_373, %c0_374] : memref<108x16xf32, #tpu.memory_space<vmem>>, vector<8x16xf32>
    tpu.vector_store %arg40[%c0_373, %c0_374], %439 {strides = array<i32>} : memref<108x16xf32, #tpu.memory_space<vmem>>, vector<8x16xf32>,
    %c0_375 = arith.constant 0 : index
    %c124_376 = arith.constant 124 : index
    %441 = vector.load %arg39[%c0_375, %c124_376] : memref<12x149xf32, #tpu.memory_space<vmem>>, vector<8x16xf32>
    %c8_377 = arith.constant 8 : index
    %c0_378 = arith.constant 0 : index
    %442 = vector.load %arg40[%c8_377, %c0_378] : memref<108x16xf32, #tpu.memory_space<vmem>>, vector<8x16xf32>
    tpu.vector_store %arg40[%c8_377, %c0_378], %441 {strides = array<i32>} : memref<108x16xf32, #tpu.memory_space<vmem>>, vector<8x16xf32>,
    %c0_379 = arith.constant 0 : index
    %c125_380 = arith.constant 125 : index
    %443 = vector.load %arg39[%c0_379, %c125_380] : memref<12x149xf32, #tpu.memory_space<vmem>>, vector<8x16xf32>
    %cst_381 = arith.constant 0.000000e+00 : f32
    %444 = vector.shape_cast %62 : vector<1x16xi1> to vector<1x16xi1>
    %445 = vector.broadcast %444 : vector<1x16xi1> to vector<8x16xi1>
    %446 = vector.broadcast %cst_381 : f32 to vector<8x16xf32>
    %447 = arith.select %445, %446, %443 : vector<8x16xi1>, vector<8x16xf32>
    %c16_382 = arith.constant 16 : index
    %c0_383 = arith.constant 0 : index
    %448 = vector.load %arg40[%c16_382, %c0_383] : memref<108x16xf32, #tpu.memory_space<vmem>>, vector<8x16xf32>
    tpu.vector_store %arg40[%c16_382, %c0_383], %447 {strides = array<i32>} : memref<108x16xf32, #tpu.memory_space<vmem>>, vector<8x16xf32>,
    %c0_384 = arith.constant 0 : index
    %c127_385 = arith.constant 127 : index
    %449 = vector.load %arg39[%c0_384, %c127_385] : memref<12x149xf32, #tpu.memory_space<vmem>>, vector<8x16xf32>
    %cst_386 = arith.constant 0.000000e+00 : f32
    %450 = vector.shape_cast %60 : vector<1x16xi1> to vector<1x16xi1>
    %451 = vector.broadcast %450 : vector<1x16xi1> to vector<8x16xi1>
    %452 = vector.broadcast %cst_386 : f32 to vector<8x16xf32>
    %453 = arith.select %451, %452, %449 : vector<8x16xi1>, vector<8x16xf32>
    %c24_387 = arith.constant 24 : index
    %c0_388 = arith.constant 0 : index
    %454 = vector.load %arg40[%c24_387, %c0_388] : memref<108x16xf32, #tpu.memory_space<vmem>>, vector<8x16xf32>
    tpu.vector_store %arg40[%c24_387, %c0_388], %453 {strides = array<i32>} : memref<108x16xf32, #tpu.memory_space<vmem>>, vector<8x16xf32>,
    %c0_389 = arith.constant 0 : index
    %c128_390 = arith.constant 128 : index
    %455 = vector.load %arg39[%c0_389, %c128_390] : memref<12x149xf32, #tpu.memory_space<vmem>>, vector<8x16xf32>
    %c32_391 = arith.constant 32 : index
    %c0_392 = arith.constant 0 : index
    %456 = vector.load %arg40[%c32_391, %c0_392] : memref<108x16xf32, #tpu.memory_space<vmem>>, vector<8x16xf32>
    tpu.vector_store %arg40[%c32_391, %c0_392], %455 {strides = array<i32>} : memref<108x16xf32, #tpu.memory_space<vmem>>, vector<8x16xf32>,
    %c0_393 = arith.constant 0 : index
    %c129_394 = arith.constant 129 : index
    %457 = vector.load %arg39[%c0_393, %c129_394] : memref<12x149xf32, #tpu.memory_space<vmem>>, vector<8x16xf32>
    %cst_395 = arith.constant 0.000000e+00 : f32
    %458 = vector.shape_cast %62 : vector<1x16xi1> to vector<1x16xi1>
    %459 = vector.broadcast %458 : vector<1x16xi1> to vector<8x16xi1>
    %460 = vector.broadcast %cst_395 : f32 to vector<8x16xf32>
    %461 = arith.select %459, %460, %457 : vector<8x16xi1>, vector<8x16xf32>
    %c40_396 = arith.constant 40 : index
    %c0_397 = arith.constant 0 : index
    %462 = vector.load %arg40[%c40_396, %c0_397] : memref<108x16xf32, #tpu.memory_space<vmem>>, vector<8x16xf32>
    tpu.vector_store %arg40[%c40_396, %c0_397], %461 {strides = array<i32>} : memref<108x16xf32, #tpu.memory_space<vmem>>, vector<8x16xf32>,
    %c0_398 = arith.constant 0 : index
    %c131_399 = arith.constant 131 : index
    %463 = vector.load %arg39[%c0_398, %c131_399] : memref<12x149xf32, #tpu.memory_space<vmem>>, vector<8x16xf32>
    %cst_400 = arith.constant 0.000000e+00 : f32
    %464 = vector.shape_cast %60 : vector<1x16xi1> to vector<1x16xi1>
    %465 = vector.broadcast %464 : vector<1x16xi1> to vector<8x16xi1>
    %466 = vector.broadcast %cst_400 : f32 to vector<8x16xf32>
    %467 = arith.select %465, %466, %463 : vector<8x16xi1>, vector<8x16xf32>
    %c48_401 = arith.constant 48 : index
    %c0_402 = arith.constant 0 : index
    %468 = vector.load %arg40[%c48_401, %c0_402] : memref<108x16xf32, #tpu.memory_space<vmem>>, vector<8x16xf32>
    tpu.vector_store %arg40[%c48_401, %c0_402], %467 {strides = array<i32>} : memref<108x16xf32, #tpu.memory_space<vmem>>, vector<8x16xf32>,
    %c0_403 = arith.constant 0 : index
    %c132_404 = arith.constant 132 : index
    %469 = vector.load %arg39[%c0_403, %c132_404] : memref<12x149xf32, #tpu.memory_space<vmem>>, vector<8x16xf32>
    %c56_405 = arith.constant 56 : index
    %c0_406 = arith.constant 0 : index
    %470 = vector.load %arg40[%c56_405, %c0_406] : memref<108x16xf32, #tpu.memory_space<vmem>>, vector<8x16xf32>
    tpu.vector_store %arg40[%c56_405, %c0_406], %469 {strides = array<i32>} : memref<108x16xf32, #tpu.memory_space<vmem>>, vector<8x16xf32>,
    %c0_407 = arith.constant 0 : index
    %c133_408 = arith.constant 133 : index
    %471 = vector.load %arg39[%c0_407, %c133_408] : memref<12x149xf32, #tpu.memory_space<vmem>>, vector<8x16xf32>
    %cst_409 = arith.constant 0.000000e+00 : f32
    %472 = vector.shape_cast %62 : vector<1x16xi1> to vector<1x16xi1>
    %473 = vector.broadcast %472 : vector<1x16xi1> to vector<8x16xi1>
    %474 = vector.broadcast %cst_409 : f32 to vector<8x16xf32>
    %475 = arith.select %473, %474, %471 : vector<8x16xi1>, vector<8x16xf32>
    %c64_410 = arith.constant 64 : index
    %c0_411 = arith.constant 0 : index
    %476 = vector.load %arg40[%c64_410, %c0_411] : memref<108x16xf32, #tpu.memory_space<vmem>>, vector<8x16xf32>
    tpu.vector_store %arg40[%c64_410, %c0_411], %475 {strides = array<i32>} : memref<108x16xf32, #tpu.memory_space<vmem>>, vector<8x16xf32>,
    %c0_412 = arith.constant 0 : index
    %c0_413 = arith.constant 0 : index
    %477 = vector.load %arg16[%c0_412, %c0_413] : memref<8x72xf32, #tpu.memory_space<vmem>>, vector<8x72xf32>
    %c0_414 = arith.constant 0 : index
    %c0_415 = arith.constant 0 : index
    %478 = vector.load %arg40[%c0_414, %c0_415] : memref<108x16xf32, #tpu.memory_space<vmem>>, vector<72x16xf32>
    %cst_416 = arith.constant dense<0.000000e+00> : vector<8x16xf32>
    %479 = tpu.matmul %477, %478, %cst_416 {dimension_numbers = #tpu.dot_dimension_numbers<[1], [0], [0], [1], [0, 0, 1, 1], [], []>} : vector<8x72xf32>, vector<72x16xf32>, vector<8x16xf32> -> vector<8x16xf32>
    %c0_417 = arith.constant 0 : index
    %c0_418 = arith.constant 0 : index
    %480 = vector.load %arg17[%c0_417, %c0_418] : memref<8x1xf32, #tpu.memory_space<vmem>>, vector<8x1xf32>
    %481 = vector.broadcast %480 : vector<8x1xf32> to vector<8x16xf32>
    %482 = arith.addf %479, %481 : vector<8x16xf32>
    %c0_419 = arith.constant 0 : index
    %c0_420 = arith.constant 0 : index
    %483 = vector.load %arg31[%c0_419, %c0_420] : memref<16x256xf32, #tpu.memory_space<vmem>>, vector<16x256xf32>
    %cst_421 = arith.constant dense<0.000000e+00> : vector<8x256xf32>
    %484 = tpu.matmul %482, %483, %cst_421 {dimension_numbers = #tpu.dot_dimension_numbers<[1], [0], [0], [1], [0, 0, 1, 1], [], []>} : vector<8x16xf32>, vector<16x256xf32>, vector<8x256xf32> -> vector<8x256xf32>
    %485 = vector.extract_strided_slice %484 {offsets = [0, 0], sizes = [1, 256], strides = [1, 1]} : vector<8x256xf32> to vector<1x256xf32>
    %c0_422 = arith.constant 0 : index
    %c0_423 = arith.constant 0 : index
    %486 = vector.load %arg32[%c0_422, %c0_423] : memref<16x64xf32, #tpu.memory_space<vmem>>, vector<16x64xf32>
    %cst_424 = arith.constant dense<0.000000e+00> : vector<8x64xf32>
    %487 = tpu.matmul %482, %486, %cst_424 {dimension_numbers = #tpu.dot_dimension_numbers<[1], [0], [0], [1], [0, 0, 1, 1], [], []>} : vector<8x16xf32>, vector<16x64xf32>, vector<8x64xf32> -> vector<8x64xf32>
    %cst_425 = arith.constant 0.000000e+00 : f32
    %488 = vector.broadcast %cst_425 : f32 to vector<16x201xf32>
    %c0_426 = arith.constant 0 : index
    %c0_427 = arith.constant 0 : index
    %489 = vector.load %arg37[%c0_426, %c0_427] : memref<16x201xf32, #tpu.memory_space<vmem>>, vector<16x201xf32>
    tpu.vector_store %arg37[%c0_426, %c0_427], %488 {strides = array<i32>} : memref<16x201xf32, #tpu.memory_space<vmem>>, vector<16x201xf32>,
    %c0_428 = arith.constant 0 : index
    %c128_429 = arith.constant 128 : index
    %490 = vector.load %arg37[%c0_428, %c128_429] : memref<16x201xf32, #tpu.memory_space<vmem>>, vector<8x64xf32>
    tpu.vector_store %arg37[%c0_428, %c128_429], %273 {strides = array<i32>} : memref<16x201xf32, #tpu.memory_space<vmem>>, vector<8x64xf32>,
    %c8_430 = arith.constant 8 : index
    %c128_431 = arith.constant 128 : index
    %491 = vector.load %arg37[%c8_430, %c128_431] : memref<16x201xf32, #tpu.memory_space<vmem>>, vector<8x64xf32>
    tpu.vector_store %arg37[%c8_430, %c128_431], %487 {strides = array<i32>} : memref<16x201xf32, #tpu.memory_space<vmem>>, vector<8x64xf32>,
    %c0_432 = arith.constant 0 : index
    %c119_433 = arith.constant 119 : index
    %492 = vector.load %arg37[%c0_432, %c119_433] : memref<16x201xf32, #tpu.memory_space<vmem>>, vector<16x64xf32>
    %cst_434 = arith.constant 0.000000e+00 : f32
    %493 = vector.shape_cast %39 : vector<1x64xi1> to vector<1x64xi1>
    %494 = vector.broadcast %493 : vector<1x64xi1> to vector<16x64xi1>
    %495 = vector.broadcast %cst_434 : f32 to vector<16x64xf32>
    %496 = arith.select %494, %495, %492 : vector<16x64xi1>, vector<16x64xf32>
    %c0_435 = arith.constant 0 : index
    %c0_436 = arith.constant 0 : index
    %497 = vector.load %arg38[%c0_435, %c0_436] : memref<144x64xf32, #tpu.memory_space<vmem>>, vector<16x64xf32>
    tpu.vector_store %arg38[%c0_435, %c0_436], %496 {strides = array<i32>} : memref<144x64xf32, #tpu.memory_space<vmem>>, vector<16x64xf32>,
    %c0_437 = arith.constant 0 : index
    %c120_438 = arith.constant 120 : index
    %498 = vector.load %arg37[%c0_437, %c120_438] : memref<16x201xf32, #tpu.memory_space<vmem>>, vector<16x64xf32>
    %c16_439 = arith.constant 16 : index
    %c0_440 = arith.constant 0 : index
    %499 = vector.load %arg38[%c16_439, %c0_440] : memref<144x64xf32, #tpu.memory_space<vmem>>, vector<16x64xf32>
    tpu.vector_store %arg38[%c16_439, %c0_440], %498 {strides = array<i32>} : memref<144x64xf32, #tpu.memory_space<vmem>>, vector<16x64xf32>,
    %c0_441 = arith.constant 0 : index
    %c121_442 = arith.constant 121 : index
    %500 = vector.load %arg37[%c0_441, %c121_442] : memref<16x201xf32, #tpu.memory_space<vmem>>, vector<16x64xf32>
    %cst_443 = arith.constant 0.000000e+00 : f32
    %501 = vector.shape_cast %41 : vector<1x64xi1> to vector<1x64xi1>
    %502 = vector.broadcast %501 : vector<1x64xi1> to vector<16x64xi1>
    %503 = vector.broadcast %cst_443 : f32 to vector<16x64xf32>
    %504 = arith.select %502, %503, %500 : vector<16x64xi1>, vector<16x64xf32>
    %c32_444 = arith.constant 32 : index
    %c0_445 = arith.constant 0 : index
    %505 = vector.load %arg38[%c32_444, %c0_445] : memref<144x64xf32, #tpu.memory_space<vmem>>, vector<16x64xf32>
    tpu.vector_store %arg38[%c32_444, %c0_445], %504 {strides = array<i32>} : memref<144x64xf32, #tpu.memory_space<vmem>>, vector<16x64xf32>,
    %c0_446 = arith.constant 0 : index
    %c127_447 = arith.constant 127 : index
    %506 = vector.load %arg37[%c0_446, %c127_447] : memref<16x201xf32, #tpu.memory_space<vmem>>, vector<16x64xf32>
    %cst_448 = arith.constant 0.000000e+00 : f32
    %507 = vector.shape_cast %39 : vector<1x64xi1> to vector<1x64xi1>
    %508 = vector.broadcast %507 : vector<1x64xi1> to vector<16x64xi1>
    %509 = vector.broadcast %cst_448 : f32 to vector<16x64xf32>
    %510 = arith.select %508, %509, %506 : vector<16x64xi1>, vector<16x64xf32>
    %c48_449 = arith.constant 48 : index
    %c0_450 = arith.constant 0 : index
    %511 = vector.load %arg38[%c48_449, %c0_450] : memref<144x64xf32, #tpu.memory_space<vmem>>, vector<16x64xf32>
    tpu.vector_store %arg38[%c48_449, %c0_450], %510 {strides = array<i32>} : memref<144x64xf32, #tpu.memory_space<vmem>>, vector<16x64xf32>,
    %c0_451 = arith.constant 0 : index
    %c128_452 = arith.constant 128 : index
    %512 = vector.load %arg37[%c0_451, %c128_452] : memref<16x201xf32, #tpu.memory_space<vmem>>, vector<16x64xf32>
    %c64_453 = arith.constant 64 : index
    %c0_454 = arith.constant 0 : index
    %513 = vector.load %arg38[%c64_453, %c0_454] : memref<144x64xf32, #tpu.memory_space<vmem>>, vector<16x64xf32>
    tpu.vector_store %arg38[%c64_453, %c0_454], %512 {strides = array<i32>} : memref<144x64xf32, #tpu.memory_space<vmem>>, vector<16x64xf32>,
    %c0_455 = arith.constant 0 : index
    %c129_456 = arith.constant 129 : index
    %514 = vector.load %arg37[%c0_455, %c129_456] : memref<16x201xf32, #tpu.memory_space<vmem>>, vector<16x64xf32>
    %cst_457 = arith.constant 0.000000e+00 : f32
    %515 = vector.shape_cast %41 : vector<1x64xi1> to vector<1x64xi1>
    %516 = vector.broadcast %515 : vector<1x64xi1> to vector<16x64xi1>
    %517 = vector.broadcast %cst_457 : f32 to vector<16x64xf32>
    %518 = arith.select %516, %517, %514 : vector<16x64xi1>, vector<16x64xf32>
    %c80 = arith.constant 80 : index
    %c0_458 = arith.constant 0 : index
    %519 = vector.load %arg38[%c80, %c0_458] : memref<144x64xf32, #tpu.memory_space<vmem>>, vector<16x64xf32>
    tpu.vector_store %arg38[%c80, %c0_458], %518 {strides = array<i32>} : memref<144x64xf32, #tpu.memory_space<vmem>>, vector<16x64xf32>,
    %c0_459 = arith.constant 0 : index
    %c135_460 = arith.constant 135 : index
    %520 = vector.load %arg37[%c0_459, %c135_460] : memref<16x201xf32, #tpu.memory_space<vmem>>, vector<16x64xf32>
    %cst_461 = arith.constant 0.000000e+00 : f32
    %521 = vector.shape_cast %39 : vector<1x64xi1> to vector<1x64xi1>
    %522 = vector.broadcast %521 : vector<1x64xi1> to vector<16x64xi1>
    %523 = vector.broadcast %cst_461 : f32 to vector<16x64xf32>
    %524 = arith.select %522, %523, %520 : vector<16x64xi1>, vector<16x64xf32>
    %c96_462 = arith.constant 96 : index
    %c0_463 = arith.constant 0 : index
    %525 = vector.load %arg38[%c96_462, %c0_463] : memref<144x64xf32, #tpu.memory_space<vmem>>, vector<16x64xf32>
    tpu.vector_store %arg38[%c96_462, %c0_463], %524 {strides = array<i32>} : memref<144x64xf32, #tpu.memory_space<vmem>>, vector<16x64xf32>,
    %c0_464 = arith.constant 0 : index
    %c136_465 = arith.constant 136 : index
    %526 = vector.load %arg37[%c0_464, %c136_465] : memref<16x201xf32, #tpu.memory_space<vmem>>, vector<16x64xf32>
    %c112_466 = arith.constant 112 : index
    %c0_467 = arith.constant 0 : index
    %527 = vector.load %arg38[%c112_466, %c0_467] : memref<144x64xf32, #tpu.memory_space<vmem>>, vector<16x64xf32>
    tpu.vector_store %arg38[%c112_466, %c0_467], %526 {strides = array<i32>} : memref<144x64xf32, #tpu.memory_space<vmem>>, vector<16x64xf32>,
    %c0_468 = arith.constant 0 : index
    %c137_469 = arith.constant 137 : index
    %528 = vector.load %arg37[%c0_468, %c137_469] : memref<16x201xf32, #tpu.memory_space<vmem>>, vector<16x64xf32>
    %cst_470 = arith.constant 0.000000e+00 : f32
    %529 = vector.shape_cast %41 : vector<1x64xi1> to vector<1x64xi1>
    %530 = vector.broadcast %529 : vector<1x64xi1> to vector<16x64xi1>
    %531 = vector.broadcast %cst_470 : f32 to vector<16x64xf32>
    %532 = arith.select %530, %531, %528 : vector<16x64xi1>, vector<16x64xf32>
    %c128_471 = arith.constant 128 : index
    %c0_472 = arith.constant 0 : index
    %533 = vector.load %arg38[%c128_471, %c0_472] : memref<144x64xf32, #tpu.memory_space<vmem>>, vector<16x64xf32>
    tpu.vector_store %arg38[%c128_471, %c0_472], %532 {strides = array<i32>} : memref<144x64xf32, #tpu.memory_space<vmem>>, vector<16x64xf32>,
    %c0_473 = arith.constant 0 : index
    %c0_474 = arith.constant 0 : index
    %534 = vector.load %arg18[%c0_473, %c0_474] : memref<8x144xf32, #tpu.memory_space<vmem>>, vector<8x144xf32>
    %c0_475 = arith.constant 0 : index
    %c0_476 = arith.constant 0 : index
    %535 = vector.load %arg38[%c0_475, %c0_476] : memref<144x64xf32, #tpu.memory_space<vmem>>, vector<144x64xf32>
    %cst_477 = arith.constant dense<0.000000e+00> : vector<8x64xf32>
    %536 = tpu.matmul %534, %535, %cst_477 {dimension_numbers = #tpu.dot_dimension_numbers<[1], [0], [0], [1], [0, 0, 1, 1], [], []>} : vector<8x144xf32>, vector<144x64xf32>, vector<8x64xf32> -> vector<8x64xf32>
    %c0_478 = arith.constant 0 : index
    %c0_479 = arith.constant 0 : index
    %537 = vector.load %arg19[%c0_478, %c0_479] : memref<8x1xf32, #tpu.memory_space<vmem>>, vector<8x1xf32>
    %538 = vector.broadcast %537 : vector<8x1xf32> to vector<8x64xf32>
    %539 = arith.addf %536, %538 : vector<8x64xf32>
    %cst_480 = arith.constant 0.000000e+00 : f32
    %540 = vector.broadcast %cst_480 : f32 to vector<8x64xf32>
    %541 = arith.maximumf %539, %540 : vector<8x64xf32>
    %c0_481 = arith.constant 0 : index
    %c128_482 = arith.constant 128 : index
    %542 = vector.load %arg37[%c0_481, %c128_482] : memref<16x201xf32, #tpu.memory_space<vmem>>, vector<8x64xf32>
    tpu.vector_store %arg37[%c0_481, %c128_482], %541 {strides = array<i32>} : memref<16x201xf32, #tpu.memory_space<vmem>>, vector<8x64xf32>,
    %c0_483 = arith.constant 0 : index
    %c119_484 = arith.constant 119 : index
    %543 = vector.load %arg37[%c0_483, %c119_484] : memref<16x201xf32, #tpu.memory_space<vmem>>, vector<8x64xf32>
    %cst_485 = arith.constant 0.000000e+00 : f32
    %544 = vector.shape_cast %39 : vector<1x64xi1> to vector<1x64xi1>
    %545 = vector.broadcast %544 : vector<1x64xi1> to vector<8x64xi1>
    %546 = vector.broadcast %cst_485 : f32 to vector<8x64xf32>
    %547 = arith.select %545, %546, %543 : vector<8x64xi1>, vector<8x64xf32>
    %c0_486 = arith.constant 0 : index
    %c0_487 = arith.constant 0 : index
    %548 = vector.load %arg38[%c0_486, %c0_487] : memref<144x64xf32, #tpu.memory_space<vmem>>, vector<8x64xf32>
    tpu.vector_store %arg38[%c0_486, %c0_487], %547 {strides = array<i32>} : memref<144x64xf32, #tpu.memory_space<vmem>>, vector<8x64xf32>,
    %c0_488 = arith.constant 0 : index
    %c120_489 = arith.constant 120 : index
    %549 = vector.load %arg37[%c0_488, %c120_489] : memref<16x201xf32, #tpu.memory_space<vmem>>, vector<8x64xf32>
    %c8_490 = arith.constant 8 : index
    %c0_491 = arith.constant 0 : index
    %550 = vector.load %arg38[%c8_490, %c0_491] : memref<144x64xf32, #tpu.memory_space<vmem>>, vector<8x64xf32>
    tpu.vector_store %arg38[%c8_490, %c0_491], %549 {strides = array<i32>} : memref<144x64xf32, #tpu.memory_space<vmem>>, vector<8x64xf32>,
    %c0_492 = arith.constant 0 : index
    %c121_493 = arith.constant 121 : index
    %551 = vector.load %arg37[%c0_492, %c121_493] : memref<16x201xf32, #tpu.memory_space<vmem>>, vector<8x64xf32>
    %cst_494 = arith.constant 0.000000e+00 : f32
    %552 = vector.shape_cast %41 : vector<1x64xi1> to vector<1x64xi1>
    %553 = vector.broadcast %552 : vector<1x64xi1> to vector<8x64xi1>
    %554 = vector.broadcast %cst_494 : f32 to vector<8x64xf32>
    %555 = arith.select %553, %554, %551 : vector<8x64xi1>, vector<8x64xf32>
    %c16_495 = arith.constant 16 : index
    %c0_496 = arith.constant 0 : index
    %556 = vector.load %arg38[%c16_495, %c0_496] : memref<144x64xf32, #tpu.memory_space<vmem>>, vector<8x64xf32>
    tpu.vector_store %arg38[%c16_495, %c0_496], %555 {strides = array<i32>} : memref<144x64xf32, #tpu.memory_space<vmem>>, vector<8x64xf32>,
    %c0_497 = arith.constant 0 : index
    %c127_498 = arith.constant 127 : index
    %557 = vector.load %arg37[%c0_497, %c127_498] : memref<16x201xf32, #tpu.memory_space<vmem>>, vector<8x64xf32>
    %cst_499 = arith.constant 0.000000e+00 : f32
    %558 = vector.shape_cast %39 : vector<1x64xi1> to vector<1x64xi1>
    %559 = vector.broadcast %558 : vector<1x64xi1> to vector<8x64xi1>
    %560 = vector.broadcast %cst_499 : f32 to vector<8x64xf32>
    %561 = arith.select %559, %560, %557 : vector<8x64xi1>, vector<8x64xf32>
    %c24_500 = arith.constant 24 : index
    %c0_501 = arith.constant 0 : index
    %562 = vector.load %arg38[%c24_500, %c0_501] : memref<144x64xf32, #tpu.memory_space<vmem>>, vector<8x64xf32>
    tpu.vector_store %arg38[%c24_500, %c0_501], %561 {strides = array<i32>} : memref<144x64xf32, #tpu.memory_space<vmem>>, vector<8x64xf32>,
    %c0_502 = arith.constant 0 : index
    %c128_503 = arith.constant 128 : index
    %563 = vector.load %arg37[%c0_502, %c128_503] : memref<16x201xf32, #tpu.memory_space<vmem>>, vector<8x64xf32>
    %c32_504 = arith.constant 32 : index
    %c0_505 = arith.constant 0 : index
    %564 = vector.load %arg38[%c32_504, %c0_505] : memref<144x64xf32, #tpu.memory_space<vmem>>, vector<8x64xf32>
    tpu.vector_store %arg38[%c32_504, %c0_505], %563 {strides = array<i32>} : memref<144x64xf32, #tpu.memory_space<vmem>>, vector<8x64xf32>,
    %c0_506 = arith.constant 0 : index
    %c129_507 = arith.constant 129 : index
    %565 = vector.load %arg37[%c0_506, %c129_507] : memref<16x201xf32, #tpu.memory_space<vmem>>, vector<8x64xf32>
    %cst_508 = arith.constant 0.000000e+00 : f32
    %566 = vector.shape_cast %41 : vector<1x64xi1> to vector<1x64xi1>
    %567 = vector.broadcast %566 : vector<1x64xi1> to vector<8x64xi1>
    %568 = vector.broadcast %cst_508 : f32 to vector<8x64xf32>
    %569 = arith.select %567, %568, %565 : vector<8x64xi1>, vector<8x64xf32>
    %c40_509 = arith.constant 40 : index
    %c0_510 = arith.constant 0 : index
    %570 = vector.load %arg38[%c40_509, %c0_510] : memref<144x64xf32, #tpu.memory_space<vmem>>, vector<8x64xf32>
    tpu.vector_store %arg38[%c40_509, %c0_510], %569 {strides = array<i32>} : memref<144x64xf32, #tpu.memory_space<vmem>>, vector<8x64xf32>,
    %c0_511 = arith.constant 0 : index
    %c135_512 = arith.constant 135 : index
    %571 = vector.load %arg37[%c0_511, %c135_512] : memref<16x201xf32, #tpu.memory_space<vmem>>, vector<8x64xf32>
    %cst_513 = arith.constant 0.000000e+00 : f32
    %572 = vector.shape_cast %39 : vector<1x64xi1> to vector<1x64xi1>
    %573 = vector.broadcast %572 : vector<1x64xi1> to vector<8x64xi1>
    %574 = vector.broadcast %cst_513 : f32 to vector<8x64xf32>
    %575 = arith.select %573, %574, %571 : vector<8x64xi1>, vector<8x64xf32>
    %c48_514 = arith.constant 48 : index
    %c0_515 = arith.constant 0 : index
    %576 = vector.load %arg38[%c48_514, %c0_515] : memref<144x64xf32, #tpu.memory_space<vmem>>, vector<8x64xf32>
    tpu.vector_store %arg38[%c48_514, %c0_515], %575 {strides = array<i32>} : memref<144x64xf32, #tpu.memory_space<vmem>>, vector<8x64xf32>,
    %c0_516 = arith.constant 0 : index
    %c136_517 = arith.constant 136 : index
    %577 = vector.load %arg37[%c0_516, %c136_517] : memref<16x201xf32, #tpu.memory_space<vmem>>, vector<8x64xf32>
    %c56_518 = arith.constant 56 : index
    %c0_519 = arith.constant 0 : index
    %578 = vector.load %arg38[%c56_518, %c0_519] : memref<144x64xf32, #tpu.memory_space<vmem>>, vector<8x64xf32>
    tpu.vector_store %arg38[%c56_518, %c0_519], %577 {strides = array<i32>} : memref<144x64xf32, #tpu.memory_space<vmem>>, vector<8x64xf32>,
    %c0_520 = arith.constant 0 : index
    %c137_521 = arith.constant 137 : index
    %579 = vector.load %arg37[%c0_520, %c137_521] : memref<16x201xf32, #tpu.memory_space<vmem>>, vector<8x64xf32>
    %cst_522 = arith.constant 0.000000e+00 : f32
    %580 = vector.shape_cast %41 : vector<1x64xi1> to vector<1x64xi1>
    %581 = vector.broadcast %580 : vector<1x64xi1> to vector<8x64xi1>
    %582 = vector.broadcast %cst_522 : f32 to vector<8x64xf32>
    %583 = arith.select %581, %582, %579 : vector<8x64xi1>, vector<8x64xf32>
    %c64_523 = arith.constant 64 : index
    %c0_524 = arith.constant 0 : index
    %584 = vector.load %arg38[%c64_523, %c0_524] : memref<144x64xf32, #tpu.memory_space<vmem>>, vector<8x64xf32>
    tpu.vector_store %arg38[%c64_523, %c0_524], %583 {strides = array<i32>} : memref<144x64xf32, #tpu.memory_space<vmem>>, vector<8x64xf32>,
    %c0_525 = arith.constant 0 : index
    %c0_526 = arith.constant 0 : index
    %585 = vector.load %arg20[%c0_525, %c0_526] : memref<8x72xf32, #tpu.memory_space<vmem>>, vector<8x72xf32>
    %c0_527 = arith.constant 0 : index
    %c0_528 = arith.constant 0 : index
    %586 = vector.load %arg38[%c0_527, %c0_528] : memref<144x64xf32, #tpu.memory_space<vmem>>, vector<72x64xf32>
    %cst_529 = arith.constant dense<0.000000e+00> : vector<8x64xf32>
    %587 = tpu.matmul %585, %586, %cst_529 {dimension_numbers = #tpu.dot_dimension_numbers<[1], [0], [0], [1], [0, 0, 1, 1], [], []>} : vector<8x72xf32>, vector<72x64xf32>, vector<8x64xf32> -> vector<8x64xf32>
    %c0_530 = arith.constant 0 : index
    %c0_531 = arith.constant 0 : index
    %588 = vector.load %arg21[%c0_530, %c0_531] : memref<8x1xf32, #tpu.memory_space<vmem>>, vector<8x1xf32>
    %589 = vector.broadcast %588 : vector<8x1xf32> to vector<8x64xf32>
    %590 = arith.addf %587, %589 : vector<8x64xf32>
    %c0_532 = arith.constant 0 : index
    %c0_533 = arith.constant 0 : index
    %591 = vector.load %arg33[%c0_532, %c0_533] : memref<64x256xf32, #tpu.memory_space<vmem>>, vector<64x256xf32>
    %cst_534 = arith.constant dense<0.000000e+00> : vector<8x256xf32>
    %592 = tpu.matmul %590, %591, %cst_534 {dimension_numbers = #tpu.dot_dimension_numbers<[1], [0], [0], [1], [0, 0, 1, 1], [], []>} : vector<8x64xf32>, vector<64x256xf32>, vector<8x256xf32> -> vector<8x256xf32>
    %593 = vector.extract_strided_slice %592 {offsets = [0, 0], sizes = [1, 256], strides = [1, 1]} : vector<8x256xf32> to vector<1x256xf32>
    %c0_535 = arith.constant 0 : index
    %c0_536 = arith.constant 0 : index
    %594 = vector.load %arg33[%c0_535, %c0_536] : memref<64x256xf32, #tpu.memory_space<vmem>>, vector<64x256xf32>
    %cst_537 = arith.constant dense<0.000000e+00> : vector<8x256xf32>
    %595 = tpu.matmul %590, %594, %cst_537 {dimension_numbers = #tpu.dot_dimension_numbers<[1], [0], [0], [1], [0, 0, 1, 1], [], []>} : vector<8x64xf32>, vector<64x256xf32>, vector<8x256xf32> -> vector<8x256xf32>
    %cst_538 = arith.constant 0.000000e+00 : f32
    %596 = vector.broadcast %cst_538 : f32 to vector<16x401xf32>
    %c0_539 = arith.constant 0 : index
    %c0_540 = arith.constant 0 : index
    %597 = vector.load %arg35[%c0_539, %c0_540] : memref<16x401xf32, #tpu.memory_space<vmem>>, vector<16x401xf32>
    tpu.vector_store %arg35[%c0_539, %c0_540], %596 {strides = array<i32>} : memref<16x401xf32, #tpu.memory_space<vmem>>, vector<16x401xf32>,
    %c0_541 = arith.constant 0 : index
    %c128_542 = arith.constant 128 : index
    %598 = vector.load %arg35[%c0_541, %c128_542] : memref<16x401xf32, #tpu.memory_space<vmem>>, vector<8x256xf32>
    tpu.vector_store %arg35[%c0_541, %c128_542], %166 {strides = array<i32>} : memref<16x401xf32, #tpu.memory_space<vmem>>, vector<8x256xf32>,
    %c8_543 = arith.constant 8 : index
    %c128_544 = arith.constant 128 : index
    %599 = vector.load %arg35[%c8_543, %c128_544] : memref<16x401xf32, #tpu.memory_space<vmem>>, vector<8x256xf32>
    tpu.vector_store %arg35[%c8_543, %c128_544], %595 {strides = array<i32>} : memref<16x401xf32, #tpu.memory_space<vmem>>, vector<8x256xf32>,
    %c0_545 = arith.constant 0 : index
    %c111_546 = arith.constant 111 : index
    %600 = vector.load %arg35[%c0_545, %c111_546] : memref<16x401xf32, #tpu.memory_space<vmem>>, vector<16x256xf32>
    %cst_547 = arith.constant 0.000000e+00 : f32
    %601 = vector.shape_cast %18 : vector<1x256xi1> to vector<1x256xi1>
    %602 = vector.broadcast %601 : vector<1x256xi1> to vector<16x256xi1>
    %603 = vector.broadcast %cst_547 : f32 to vector<16x256xf32>
    %604 = arith.select %602, %603, %600 : vector<16x256xi1>, vector<16x256xf32>
    %c0_548 = arith.constant 0 : index
    %c0_549 = arith.constant 0 : index
    %605 = vector.load %arg36[%c0_548, %c0_549] : memref<144x256xf32, #tpu.memory_space<vmem>>, vector<16x256xf32>
    tpu.vector_store %arg36[%c0_548, %c0_549], %604 {strides = array<i32>} : memref<144x256xf32, #tpu.memory_space<vmem>>, vector<16x256xf32>,
    %c0_550 = arith.constant 0 : index
    %c112_551 = arith.constant 112 : index
    %606 = vector.load %arg35[%c0_550, %c112_551] : memref<16x401xf32, #tpu.memory_space<vmem>>, vector<16x256xf32>
    %c16_552 = arith.constant 16 : index
    %c0_553 = arith.constant 0 : index
    %607 = vector.load %arg36[%c16_552, %c0_553] : memref<144x256xf32, #tpu.memory_space<vmem>>, vector<16x256xf32>
    tpu.vector_store %arg36[%c16_552, %c0_553], %606 {strides = array<i32>} : memref<144x256xf32, #tpu.memory_space<vmem>>, vector<16x256xf32>,
    %c0_554 = arith.constant 0 : index
    %c113_555 = arith.constant 113 : index
    %608 = vector.load %arg35[%c0_554, %c113_555] : memref<16x401xf32, #tpu.memory_space<vmem>>, vector<16x256xf32>
    %cst_556 = arith.constant 0.000000e+00 : f32
    %609 = vector.shape_cast %20 : vector<1x256xi1> to vector<1x256xi1>
    %610 = vector.broadcast %609 : vector<1x256xi1> to vector<16x256xi1>
    %611 = vector.broadcast %cst_556 : f32 to vector<16x256xf32>
    %612 = arith.select %610, %611, %608 : vector<16x256xi1>, vector<16x256xf32>
    %c32_557 = arith.constant 32 : index
    %c0_558 = arith.constant 0 : index
    %613 = vector.load %arg36[%c32_557, %c0_558] : memref<144x256xf32, #tpu.memory_space<vmem>>, vector<16x256xf32>
    tpu.vector_store %arg36[%c32_557, %c0_558], %612 {strides = array<i32>} : memref<144x256xf32, #tpu.memory_space<vmem>>, vector<16x256xf32>,
    %c0_559 = arith.constant 0 : index
    %c127_560 = arith.constant 127 : index
    %614 = vector.load %arg35[%c0_559, %c127_560] : memref<16x401xf32, #tpu.memory_space<vmem>>, vector<16x256xf32>
    %cst_561 = arith.constant 0.000000e+00 : f32
    %615 = vector.shape_cast %18 : vector<1x256xi1> to vector<1x256xi1>
    %616 = vector.broadcast %615 : vector<1x256xi1> to vector<16x256xi1>
    %617 = vector.broadcast %cst_561 : f32 to vector<16x256xf32>
    %618 = arith.select %616, %617, %614 : vector<16x256xi1>, vector<16x256xf32>
    %c48_562 = arith.constant 48 : index
    %c0_563 = arith.constant 0 : index
    %619 = vector.load %arg36[%c48_562, %c0_563] : memref<144x256xf32, #tpu.memory_space<vmem>>, vector<16x256xf32>
    tpu.vector_store %arg36[%c48_562, %c0_563], %618 {strides = array<i32>} : memref<144x256xf32, #tpu.memory_space<vmem>>, vector<16x256xf32>,
    %c0_564 = arith.constant 0 : index
    %c128_565 = arith.constant 128 : index
    %620 = vector.load %arg35[%c0_564, %c128_565] : memref<16x401xf32, #tpu.memory_space<vmem>>, vector<16x256xf32>
    %c64_566 = arith.constant 64 : index
    %c0_567 = arith.constant 0 : index
    %621 = vector.load %arg36[%c64_566, %c0_567] : memref<144x256xf32, #tpu.memory_space<vmem>>, vector<16x256xf32>
    tpu.vector_store %arg36[%c64_566, %c0_567], %620 {strides = array<i32>} : memref<144x256xf32, #tpu.memory_space<vmem>>, vector<16x256xf32>,
    %c0_568 = arith.constant 0 : index
    %c129_569 = arith.constant 129 : index
    %622 = vector.load %arg35[%c0_568, %c129_569] : memref<16x401xf32, #tpu.memory_space<vmem>>, vector<16x256xf32>
    %cst_570 = arith.constant 0.000000e+00 : f32
    %623 = vector.shape_cast %20 : vector<1x256xi1> to vector<1x256xi1>
    %624 = vector.broadcast %623 : vector<1x256xi1> to vector<16x256xi1>
    %625 = vector.broadcast %cst_570 : f32 to vector<16x256xf32>
    %626 = arith.select %624, %625, %622 : vector<16x256xi1>, vector<16x256xf32>
    %c80_571 = arith.constant 80 : index
    %c0_572 = arith.constant 0 : index
    %627 = vector.load %arg36[%c80_571, %c0_572] : memref<144x256xf32, #tpu.memory_space<vmem>>, vector<16x256xf32>
    tpu.vector_store %arg36[%c80_571, %c0_572], %626 {strides = array<i32>} : memref<144x256xf32, #tpu.memory_space<vmem>>, vector<16x256xf32>,
    %c0_573 = arith.constant 0 : index
    %c143_574 = arith.constant 143 : index
    %628 = vector.load %arg35[%c0_573, %c143_574] : memref<16x401xf32, #tpu.memory_space<vmem>>, vector<16x256xf32>
    %cst_575 = arith.constant 0.000000e+00 : f32
    %629 = vector.shape_cast %18 : vector<1x256xi1> to vector<1x256xi1>
    %630 = vector.broadcast %629 : vector<1x256xi1> to vector<16x256xi1>
    %631 = vector.broadcast %cst_575 : f32 to vector<16x256xf32>
    %632 = arith.select %630, %631, %628 : vector<16x256xi1>, vector<16x256xf32>
    %c96_576 = arith.constant 96 : index
    %c0_577 = arith.constant 0 : index
    %633 = vector.load %arg36[%c96_576, %c0_577] : memref<144x256xf32, #tpu.memory_space<vmem>>, vector<16x256xf32>
    tpu.vector_store %arg36[%c96_576, %c0_577], %632 {strides = array<i32>} : memref<144x256xf32, #tpu.memory_space<vmem>>, vector<16x256xf32>,
    %c0_578 = arith.constant 0 : index
    %c144_579 = arith.constant 144 : index
    %634 = vector.load %arg35[%c0_578, %c144_579] : memref<16x401xf32, #tpu.memory_space<vmem>>, vector<16x256xf32>
    %c112_580 = arith.constant 112 : index
    %c0_581 = arith.constant 0 : index
    %635 = vector.load %arg36[%c112_580, %c0_581] : memref<144x256xf32, #tpu.memory_space<vmem>>, vector<16x256xf32>
    tpu.vector_store %arg36[%c112_580, %c0_581], %634 {strides = array<i32>} : memref<144x256xf32, #tpu.memory_space<vmem>>, vector<16x256xf32>,
    %c0_582 = arith.constant 0 : index
    %c145_583 = arith.constant 145 : index
    %636 = vector.load %arg35[%c0_582, %c145_583] : memref<16x401xf32, #tpu.memory_space<vmem>>, vector<16x256xf32>
    %cst_584 = arith.constant 0.000000e+00 : f32
    %637 = vector.shape_cast %20 : vector<1x256xi1> to vector<1x256xi1>
    %638 = vector.broadcast %637 : vector<1x256xi1> to vector<16x256xi1>
    %639 = vector.broadcast %cst_584 : f32 to vector<16x256xf32>
    %640 = arith.select %638, %639, %636 : vector<16x256xi1>, vector<16x256xf32>
    %c128_585 = arith.constant 128 : index
    %c0_586 = arith.constant 0 : index
    %641 = vector.load %arg36[%c128_585, %c0_586] : memref<144x256xf32, #tpu.memory_space<vmem>>, vector<16x256xf32>
    tpu.vector_store %arg36[%c128_585, %c0_586], %640 {strides = array<i32>} : memref<144x256xf32, #tpu.memory_space<vmem>>, vector<16x256xf32>,
    %c0_587 = arith.constant 0 : index
    %c0_588 = arith.constant 0 : index
    %642 = vector.load %arg22[%c0_587, %c0_588] : memref<8x144xf32, #tpu.memory_space<vmem>>, vector<8x144xf32>
    %c0_589 = arith.constant 0 : index
    %c0_590 = arith.constant 0 : index
    %643 = vector.load %arg36[%c0_589, %c0_590] : memref<144x256xf32, #tpu.memory_space<vmem>>, vector<144x256xf32>
    %cst_591 = arith.constant dense<0.000000e+00> : vector<8x256xf32>
    %644 = tpu.matmul %642, %643, %cst_591 {dimension_numbers = #tpu.dot_dimension_numbers<[1], [0], [0], [1], [0, 0, 1, 1], [], []>} : vector<8x144xf32>, vector<144x256xf32>, vector<8x256xf32> -> vector<8x256xf32>
    %c0_592 = arith.constant 0 : index
    %c0_593 = arith.constant 0 : index
    %645 = vector.load %arg23[%c0_592, %c0_593] : memref<8x1xf32, #tpu.memory_space<vmem>>, vector<8x1xf32>
    %646 = vector.broadcast %645 : vector<8x1xf32> to vector<8x256xf32>
    %647 = arith.addf %644, %646 : vector<8x256xf32>
    %cst_594 = arith.constant 0.000000e+00 : f32
    %648 = vector.broadcast %cst_594 : f32 to vector<8x256xf32>
    %649 = arith.maximumf %647, %648 : vector<8x256xf32>
    %c0_595 = arith.constant 0 : index
    %c128_596 = arith.constant 128 : index
    %650 = vector.load %arg35[%c0_595, %c128_596] : memref<16x401xf32, #tpu.memory_space<vmem>>, vector<8x256xf32>
    tpu.vector_store %arg35[%c0_595, %c128_596], %649 {strides = array<i32>} : memref<16x401xf32, #tpu.memory_space<vmem>>, vector<8x256xf32>,
    %c0_597 = arith.constant 0 : index
    %c111_598 = arith.constant 111 : index
    %651 = vector.load %arg35[%c0_597, %c111_598] : memref<16x401xf32, #tpu.memory_space<vmem>>, vector<8x256xf32>
    %cst_599 = arith.constant 0.000000e+00 : f32
    %652 = vector.shape_cast %18 : vector<1x256xi1> to vector<1x256xi1>
    %653 = vector.broadcast %652 : vector<1x256xi1> to vector<8x256xi1>
    %654 = vector.broadcast %cst_599 : f32 to vector<8x256xf32>
    %655 = arith.select %653, %654, %651 : vector<8x256xi1>, vector<8x256xf32>
    %c0_600 = arith.constant 0 : index
    %c0_601 = arith.constant 0 : index
    %656 = vector.load %arg36[%c0_600, %c0_601] : memref<144x256xf32, #tpu.memory_space<vmem>>, vector<8x256xf32>
    tpu.vector_store %arg36[%c0_600, %c0_601], %655 {strides = array<i32>} : memref<144x256xf32, #tpu.memory_space<vmem>>, vector<8x256xf32>,
    %c0_602 = arith.constant 0 : index
    %c112_603 = arith.constant 112 : index
    %657 = vector.load %arg35[%c0_602, %c112_603] : memref<16x401xf32, #tpu.memory_space<vmem>>, vector<8x256xf32>
    %c8_604 = arith.constant 8 : index
    %c0_605 = arith.constant 0 : index
    %658 = vector.load %arg36[%c8_604, %c0_605] : memref<144x256xf32, #tpu.memory_space<vmem>>, vector<8x256xf32>
    tpu.vector_store %arg36[%c8_604, %c0_605], %657 {strides = array<i32>} : memref<144x256xf32, #tpu.memory_space<vmem>>, vector<8x256xf32>,
    %c0_606 = arith.constant 0 : index
    %c113_607 = arith.constant 113 : index
    %659 = vector.load %arg35[%c0_606, %c113_607] : memref<16x401xf32, #tpu.memory_space<vmem>>, vector<8x256xf32>
    %cst_608 = arith.constant 0.000000e+00 : f32
    %660 = vector.shape_cast %20 : vector<1x256xi1> to vector<1x256xi1>
    %661 = vector.broadcast %660 : vector<1x256xi1> to vector<8x256xi1>
    %662 = vector.broadcast %cst_608 : f32 to vector<8x256xf32>
    %663 = arith.select %661, %662, %659 : vector<8x256xi1>, vector<8x256xf32>
    %c16_609 = arith.constant 16 : index
    %c0_610 = arith.constant 0 : index
    %664 = vector.load %arg36[%c16_609, %c0_610] : memref<144x256xf32, #tpu.memory_space<vmem>>, vector<8x256xf32>
    tpu.vector_store %arg36[%c16_609, %c0_610], %663 {strides = array<i32>} : memref<144x256xf32, #tpu.memory_space<vmem>>, vector<8x256xf32>,
    %c0_611 = arith.constant 0 : index
    %c127_612 = arith.constant 127 : index
    %665 = vector.load %arg35[%c0_611, %c127_612] : memref<16x401xf32, #tpu.memory_space<vmem>>, vector<8x256xf32>
    %cst_613 = arith.constant 0.000000e+00 : f32
    %666 = vector.shape_cast %18 : vector<1x256xi1> to vector<1x256xi1>
    %667 = vector.broadcast %666 : vector<1x256xi1> to vector<8x256xi1>
    %668 = vector.broadcast %cst_613 : f32 to vector<8x256xf32>
    %669 = arith.select %667, %668, %665 : vector<8x256xi1>, vector<8x256xf32>
    %c24_614 = arith.constant 24 : index
    %c0_615 = arith.constant 0 : index
    %670 = vector.load %arg36[%c24_614, %c0_615] : memref<144x256xf32, #tpu.memory_space<vmem>>, vector<8x256xf32>
    tpu.vector_store %arg36[%c24_614, %c0_615], %669 {strides = array<i32>} : memref<144x256xf32, #tpu.memory_space<vmem>>, vector<8x256xf32>,
    %c0_616 = arith.constant 0 : index
    %c128_617 = arith.constant 128 : index
    %671 = vector.load %arg35[%c0_616, %c128_617] : memref<16x401xf32, #tpu.memory_space<vmem>>, vector<8x256xf32>
    %c32_618 = arith.constant 32 : index
    %c0_619 = arith.constant 0 : index
    %672 = vector.load %arg36[%c32_618, %c0_619] : memref<144x256xf32, #tpu.memory_space<vmem>>, vector<8x256xf32>
    tpu.vector_store %arg36[%c32_618, %c0_619], %671 {strides = array<i32>} : memref<144x256xf32, #tpu.memory_space<vmem>>, vector<8x256xf32>,
    %c0_620 = arith.constant 0 : index
    %c129_621 = arith.constant 129 : index
    %673 = vector.load %arg35[%c0_620, %c129_621] : memref<16x401xf32, #tpu.memory_space<vmem>>, vector<8x256xf32>
    %cst_622 = arith.constant 0.000000e+00 : f32
    %674 = vector.shape_cast %20 : vector<1x256xi1> to vector<1x256xi1>
    %675 = vector.broadcast %674 : vector<1x256xi1> to vector<8x256xi1>
    %676 = vector.broadcast %cst_622 : f32 to vector<8x256xf32>
    %677 = arith.select %675, %676, %673 : vector<8x256xi1>, vector<8x256xf32>
    %c40_623 = arith.constant 40 : index
    %c0_624 = arith.constant 0 : index
    %678 = vector.load %arg36[%c40_623, %c0_624] : memref<144x256xf32, #tpu.memory_space<vmem>>, vector<8x256xf32>
    tpu.vector_store %arg36[%c40_623, %c0_624], %677 {strides = array<i32>} : memref<144x256xf32, #tpu.memory_space<vmem>>, vector<8x256xf32>,
    %c0_625 = arith.constant 0 : index
    %c143_626 = arith.constant 143 : index
    %679 = vector.load %arg35[%c0_625, %c143_626] : memref<16x401xf32, #tpu.memory_space<vmem>>, vector<8x256xf32>
    %cst_627 = arith.constant 0.000000e+00 : f32
    %680 = vector.shape_cast %18 : vector<1x256xi1> to vector<1x256xi1>
    %681 = vector.broadcast %680 : vector<1x256xi1> to vector<8x256xi1>
    %682 = vector.broadcast %cst_627 : f32 to vector<8x256xf32>
    %683 = arith.select %681, %682, %679 : vector<8x256xi1>, vector<8x256xf32>
    %c48_628 = arith.constant 48 : index
    %c0_629 = arith.constant 0 : index
    %684 = vector.load %arg36[%c48_628, %c0_629] : memref<144x256xf32, #tpu.memory_space<vmem>>, vector<8x256xf32>
    tpu.vector_store %arg36[%c48_628, %c0_629], %683 {strides = array<i32>} : memref<144x256xf32, #tpu.memory_space<vmem>>, vector<8x256xf32>,
    %c0_630 = arith.constant 0 : index
    %c144_631 = arith.constant 144 : index
    %685 = vector.load %arg35[%c0_630, %c144_631] : memref<16x401xf32, #tpu.memory_space<vmem>>, vector<8x256xf32>
    %c56_632 = arith.constant 56 : index
    %c0_633 = arith.constant 0 : index
    %686 = vector.load %arg36[%c56_632, %c0_633] : memref<144x256xf32, #tpu.memory_space<vmem>>, vector<8x256xf32>
    tpu.vector_store %arg36[%c56_632, %c0_633], %685 {strides = array<i32>} : memref<144x256xf32, #tpu.memory_space<vmem>>, vector<8x256xf32>,
    %c0_634 = arith.constant 0 : index
    %c145_635 = arith.constant 145 : index
    %687 = vector.load %arg35[%c0_634, %c145_635] : memref<16x401xf32, #tpu.memory_space<vmem>>, vector<8x256xf32>
    %cst_636 = arith.constant 0.000000e+00 : f32
    %688 = vector.shape_cast %20 : vector<1x256xi1> to vector<1x256xi1>
    %689 = vector.broadcast %688 : vector<1x256xi1> to vector<8x256xi1>
    %690 = vector.broadcast %cst_636 : f32 to vector<8x256xf32>
    %691 = arith.select %689, %690, %687 : vector<8x256xi1>, vector<8x256xf32>
    %c64_637 = arith.constant 64 : index
    %c0_638 = arith.constant 0 : index
    %692 = vector.load %arg36[%c64_637, %c0_638] : memref<144x256xf32, #tpu.memory_space<vmem>>, vector<8x256xf32>
    tpu.vector_store %arg36[%c64_637, %c0_638], %691 {strides = array<i32>} : memref<144x256xf32, #tpu.memory_space<vmem>>, vector<8x256xf32>,
    %c0_639 = arith.constant 0 : index
    %c0_640 = arith.constant 0 : index
    %693 = vector.load %arg24[%c0_639, %c0_640] : memref<8x72xf32, #tpu.memory_space<vmem>>, vector<8x72xf32>
    %c0_641 = arith.constant 0 : index
    %c0_642 = arith.constant 0 : index
    %694 = vector.load %arg36[%c0_641, %c0_642] : memref<144x256xf32, #tpu.memory_space<vmem>>, vector<72x256xf32>
    %cst_643 = arith.constant dense<0.000000e+00> : vector<8x256xf32>
    %695 = tpu.matmul %693, %694, %cst_643 {dimension_numbers = #tpu.dot_dimension_numbers<[1], [0], [0], [1], [0, 0, 1, 1], [], []>} : vector<8x72xf32>, vector<72x256xf32>, vector<8x256xf32> -> vector<8x256xf32>
    %c0_644 = arith.constant 0 : index
    %c0_645 = arith.constant 0 : index
    %696 = vector.load %arg25[%c0_644, %c0_645] : memref<8x1xf32, #tpu.memory_space<vmem>>, vector<8x1xf32>
    %697 = vector.broadcast %696 : vector<8x1xf32> to vector<8x256xf32>
    %698 = arith.addf %695, %697 : vector<8x256xf32>
    %cst_646 = arith.constant 0.000000e+00 : f32
    %699 = vector.broadcast %cst_646 : f32 to vector<16x401xf32>
    %c0_647 = arith.constant 0 : index
    %c0_648 = arith.constant 0 : index
    %700 = vector.load %arg35[%c0_647, %c0_648] : memref<16x401xf32, #tpu.memory_space<vmem>>, vector<16x401xf32>
    tpu.vector_store %arg35[%c0_647, %c0_648], %699 {strides = array<i32>} : memref<16x401xf32, #tpu.memory_space<vmem>>, vector<16x401xf32>,
    %c0_649 = arith.constant 0 : index
    %c128_650 = arith.constant 128 : index
    %701 = vector.load %arg35[%c0_649, %c128_650] : memref<16x401xf32, #tpu.memory_space<vmem>>, vector<8x256xf32>
    tpu.vector_store %arg35[%c0_649, %c128_650], %698 {strides = array<i32>} : memref<16x401xf32, #tpu.memory_space<vmem>>, vector<8x256xf32>,
    %c0_651 = arith.constant 0 : index
    %c111_652 = arith.constant 111 : index
    %702 = vector.load %arg35[%c0_651, %c111_652] : memref<16x401xf32, #tpu.memory_space<vmem>>, vector<8x256xf32>
    %cst_653 = arith.constant 0.000000e+00 : f32
    %703 = vector.shape_cast %18 : vector<1x256xi1> to vector<1x256xi1>
    %704 = vector.broadcast %703 : vector<1x256xi1> to vector<8x256xi1>
    %705 = vector.broadcast %cst_653 : f32 to vector<8x256xf32>
    %706 = arith.select %704, %705, %702 : vector<8x256xi1>, vector<8x256xf32>
    %c0_654 = arith.constant 0 : index
    %c0_655 = arith.constant 0 : index
    %707 = vector.load %arg36[%c0_654, %c0_655] : memref<144x256xf32, #tpu.memory_space<vmem>>, vector<8x256xf32>
    tpu.vector_store %arg36[%c0_654, %c0_655], %706 {strides = array<i32>} : memref<144x256xf32, #tpu.memory_space<vmem>>, vector<8x256xf32>,
    %c0_656 = arith.constant 0 : index
    %c112_657 = arith.constant 112 : index
    %708 = vector.load %arg35[%c0_656, %c112_657] : memref<16x401xf32, #tpu.memory_space<vmem>>, vector<8x256xf32>
    %c8_658 = arith.constant 8 : index
    %c0_659 = arith.constant 0 : index
    %709 = vector.load %arg36[%c8_658, %c0_659] : memref<144x256xf32, #tpu.memory_space<vmem>>, vector<8x256xf32>
    tpu.vector_store %arg36[%c8_658, %c0_659], %708 {strides = array<i32>} : memref<144x256xf32, #tpu.memory_space<vmem>>, vector<8x256xf32>,
    %c0_660 = arith.constant 0 : index
    %c113_661 = arith.constant 113 : index
    %710 = vector.load %arg35[%c0_660, %c113_661] : memref<16x401xf32, #tpu.memory_space<vmem>>, vector<8x256xf32>
    %cst_662 = arith.constant 0.000000e+00 : f32
    %711 = vector.shape_cast %20 : vector<1x256xi1> to vector<1x256xi1>
    %712 = vector.broadcast %711 : vector<1x256xi1> to vector<8x256xi1>
    %713 = vector.broadcast %cst_662 : f32 to vector<8x256xf32>
    %714 = arith.select %712, %713, %710 : vector<8x256xi1>, vector<8x256xf32>
    %c16_663 = arith.constant 16 : index
    %c0_664 = arith.constant 0 : index
    %715 = vector.load %arg36[%c16_663, %c0_664] : memref<144x256xf32, #tpu.memory_space<vmem>>, vector<8x256xf32>
    tpu.vector_store %arg36[%c16_663, %c0_664], %714 {strides = array<i32>} : memref<144x256xf32, #tpu.memory_space<vmem>>, vector<8x256xf32>,
    %c0_665 = arith.constant 0 : index
    %c127_666 = arith.constant 127 : index
    %716 = vector.load %arg35[%c0_665, %c127_666] : memref<16x401xf32, #tpu.memory_space<vmem>>, vector<8x256xf32>
    %cst_667 = arith.constant 0.000000e+00 : f32
    %717 = vector.shape_cast %18 : vector<1x256xi1> to vector<1x256xi1>
    %718 = vector.broadcast %717 : vector<1x256xi1> to vector<8x256xi1>
    %719 = vector.broadcast %cst_667 : f32 to vector<8x256xf32>
    %720 = arith.select %718, %719, %716 : vector<8x256xi1>, vector<8x256xf32>
    %c24_668 = arith.constant 24 : index
    %c0_669 = arith.constant 0 : index
    %721 = vector.load %arg36[%c24_668, %c0_669] : memref<144x256xf32, #tpu.memory_space<vmem>>, vector<8x256xf32>
    tpu.vector_store %arg36[%c24_668, %c0_669], %720 {strides = array<i32>} : memref<144x256xf32, #tpu.memory_space<vmem>>, vector<8x256xf32>,
    %c0_670 = arith.constant 0 : index
    %c128_671 = arith.constant 128 : index
    %722 = vector.load %arg35[%c0_670, %c128_671] : memref<16x401xf32, #tpu.memory_space<vmem>>, vector<8x256xf32>
    %c32_672 = arith.constant 32 : index
    %c0_673 = arith.constant 0 : index
    %723 = vector.load %arg36[%c32_672, %c0_673] : memref<144x256xf32, #tpu.memory_space<vmem>>, vector<8x256xf32>
    tpu.vector_store %arg36[%c32_672, %c0_673], %722 {strides = array<i32>} : memref<144x256xf32, #tpu.memory_space<vmem>>, vector<8x256xf32>,
    %c0_674 = arith.constant 0 : index
    %c129_675 = arith.constant 129 : index
    %724 = vector.load %arg35[%c0_674, %c129_675] : memref<16x401xf32, #tpu.memory_space<vmem>>, vector<8x256xf32>
    %cst_676 = arith.constant 0.000000e+00 : f32
    %725 = vector.shape_cast %20 : vector<1x256xi1> to vector<1x256xi1>
    %726 = vector.broadcast %725 : vector<1x256xi1> to vector<8x256xi1>
    %727 = vector.broadcast %cst_676 : f32 to vector<8x256xf32>
    %728 = arith.select %726, %727, %724 : vector<8x256xi1>, vector<8x256xf32>
    %c40_677 = arith.constant 40 : index
    %c0_678 = arith.constant 0 : index
    %729 = vector.load %arg36[%c40_677, %c0_678] : memref<144x256xf32, #tpu.memory_space<vmem>>, vector<8x256xf32>
    tpu.vector_store %arg36[%c40_677, %c0_678], %728 {strides = array<i32>} : memref<144x256xf32, #tpu.memory_space<vmem>>, vector<8x256xf32>,
    %c0_679 = arith.constant 0 : index
    %c143_680 = arith.constant 143 : index
    %730 = vector.load %arg35[%c0_679, %c143_680] : memref<16x401xf32, #tpu.memory_space<vmem>>, vector<8x256xf32>
    %cst_681 = arith.constant 0.000000e+00 : f32
    %731 = vector.shape_cast %18 : vector<1x256xi1> to vector<1x256xi1>
    %732 = vector.broadcast %731 : vector<1x256xi1> to vector<8x256xi1>
    %733 = vector.broadcast %cst_681 : f32 to vector<8x256xf32>
    %734 = arith.select %732, %733, %730 : vector<8x256xi1>, vector<8x256xf32>
    %c48_682 = arith.constant 48 : index
    %c0_683 = arith.constant 0 : index
    %735 = vector.load %arg36[%c48_682, %c0_683] : memref<144x256xf32, #tpu.memory_space<vmem>>, vector<8x256xf32>
    tpu.vector_store %arg36[%c48_682, %c0_683], %734 {strides = array<i32>} : memref<144x256xf32, #tpu.memory_space<vmem>>, vector<8x256xf32>,
    %c0_684 = arith.constant 0 : index
    %c144_685 = arith.constant 144 : index
    %736 = vector.load %arg35[%c0_684, %c144_685] : memref<16x401xf32, #tpu.memory_space<vmem>>, vector<8x256xf32>
    %c56_686 = arith.constant 56 : index
    %c0_687 = arith.constant 0 : index
    %737 = vector.load %arg36[%c56_686, %c0_687] : memref<144x256xf32, #tpu.memory_space<vmem>>, vector<8x256xf32>
    tpu.vector_store %arg36[%c56_686, %c0_687], %736 {strides = array<i32>} : memref<144x256xf32, #tpu.memory_space<vmem>>, vector<8x256xf32>,
    %c0_688 = arith.constant 0 : index
    %c145_689 = arith.constant 145 : index
    %738 = vector.load %arg35[%c0_688, %c145_689] : memref<16x401xf32, #tpu.memory_space<vmem>>, vector<8x256xf32>
    %cst_690 = arith.constant 0.000000e+00 : f32
    %739 = vector.shape_cast %20 : vector<1x256xi1> to vector<1x256xi1>
    %740 = vector.broadcast %739 : vector<1x256xi1> to vector<8x256xi1>
    %741 = vector.broadcast %cst_690 : f32 to vector<8x256xf32>
    %742 = arith.select %740, %741, %738 : vector<8x256xi1>, vector<8x256xf32>
    %c64_691 = arith.constant 64 : index
    %c0_692 = arith.constant 0 : index
    %743 = vector.load %arg36[%c64_691, %c0_692] : memref<144x256xf32, #tpu.memory_space<vmem>>, vector<8x256xf32>
    tpu.vector_store %arg36[%c64_691, %c0_692], %742 {strides = array<i32>} : memref<144x256xf32, #tpu.memory_space<vmem>>, vector<8x256xf32>,
    %c0_693 = arith.constant 0 : index
    %c0_694 = arith.constant 0 : index
    %744 = vector.load %arg26[%c0_693, %c0_694] : memref<1x72xf32, #tpu.memory_space<vmem>>, vector<1x72xf32>
    %c0_695 = arith.constant 0 : index
    %c0_696 = arith.constant 0 : index
    %745 = vector.load %arg36[%c0_695, %c0_696] : memref<144x256xf32, #tpu.memory_space<vmem>>, vector<72x256xf32>
    %cst_697 = arith.constant dense<0.000000e+00> : vector<1x256xf32>
    %746 = tpu.matmul %744, %745, %cst_697 {dimension_numbers = #tpu.dot_dimension_numbers<[1], [0], [0], [1], [0, 0, 1, 1], [], []>} : vector<1x72xf32>, vector<72x256xf32>, vector<1x256xf32> -> vector<1x256xf32>
    %c0_698 = arith.constant 0 : index
    %c0_699 = arith.constant 0 : index
    %747 = vector.load %arg27[%c0_698, %c0_699] : memref<1x1xf32, #tpu.memory_space<vmem>>, vector<1x1xf32>
    %748 = vector.broadcast %747 : vector<1x1xf32> to vector<1x256xf32>
    %749 = arith.addf %746, %748 : vector<1x256xf32>
    %750 = arith.addf %749, %485 : vector<1x256xf32>
    %751 = arith.addf %750, %593 : vector<1x256xf32>
    %c0_700 = arith.constant 0 : index
    %c0_701 = arith.constant 0 : index
    %c0_702 = arith.constant 0 : index
    %752 = vector.load %arg34[%c0_700, %c0_701, %c0_702] : memref<1x1x256xf32, #tpu.memory_space<vmem>>, vector<1x1x256xf32>
    %753 = vector.shape_cast %752 : vector<1x1x256xf32> to vector<1x256xf32>
    %754 = vector.shape_cast %751 : vector<1x256xf32> to vector<1x1x256xf32>
    tpu.vector_store %arg34[%c0_700, %c0_701, %c0_702], %754 {strides = array<i32>} : memref<1x1x256xf32, #tpu.memory_space<vmem>>, vector<1x1x256xf32>,
    return
  }
  func.func @transform_0(%arg0: i32) -> (i32, i32, i32) {
    %c0_i32 = arith.constant 0 : i32
    %c0_i32_0 = arith.constant 0 : i32
    %c0_i32_1 = arith.constant 0 : i32
    return %arg0, %c0_i32, %c0_i32_0 : i32, i32, i32
  }
  func.func @transform_1(%arg0: i32) -> (i32, i32) {
    %c0_i32 = arith.constant 0 : i32
    %c0_i32_0 = arith.constant 0 : i32
    %c0_i32_1 = arith.constant 0 : i32
    return %c0_i32, %c0_i32_0 : i32, i32
  }
  func.func @transform_2(%arg0: i32) -> (i32, i32) {
    %c0_i32 = arith.constant 0 : i32
    %c0_i32_0 = arith.constant 0 : i32
    %c0_i32_1 = arith.constant 0 : i32
    return %c0_i32, %c0_i32_0 : i32, i32
  }
  func.func @transform_3(%arg0: i32) -> (i32, i32) {
    %c0_i32 = arith.constant 0 : i32
    %c0_i32_0 = arith.constant 0 : i32
    %c0_i32_1 = arith.constant 0 : i32
    return %c0_i32, %c0_i32_0 : i32, i32
  }
  func.func @transform_4(%arg0: i32) -> (i32, i32) {
    %c0_i32 = arith.constant 0 : i32
    %c0_i32_0 = arith.constant 0 : i32
    %c0_i32_1 = arith.constant 0 : i32
    return %c0_i32, %c0_i32_0 : i32, i32
  }
  func.func @transform_5(%arg0: i32) -> (i32, i32) {
    %c0_i32 = arith.constant 0 : i32
    %c0_i32_0 = arith.constant 0 : i32
    %c0_i32_1 = arith.constant 0 : i32
    return %c0_i32, %c0_i32_0 : i32, i32
  }
  func.func @transform_6(%arg0: i32) -> (i32, i32) {
    %c0_i32 = arith.constant 0 : i32
    %c0_i32_0 = arith.constant 0 : i32
    %c0_i32_1 = arith.constant 0 : i32
    return %c0_i32, %c0_i32_0 : i32, i32
  }
  func.func @transform_7(%arg0: i32) -> (i32, i32) {
    %c0_i32 = arith.constant 0 : i32
    %c0_i32_0 = arith.constant 0 : i32
    %c0_i32_1 = arith.constant 0 : i32
    return %c0_i32, %c0_i32_0 : i32, i32
  }
  func.func @transform_8(%arg0: i32) -> (i32, i32) {
    %c0_i32 = arith.constant 0 : i32
    %c0_i32_0 = arith.constant 0 : i32
    %c0_i32_1 = arith.constant 0 : i32
    return %c0_i32, %c0_i32_0 : i32, i32
  }
  func.func @transform_9(%arg0: i32) -> (i32, i32) {
    %c0_i32 = arith.constant 0 : i32
    %c0_i32_0 = arith.constant 0 : i32
    %c0_i32_1 = arith.constant 0 : i32
    return %c0_i32, %c0_i32_0 : i32, i32
  }
  func.func @transform_10(%arg0: i32) -> (i32, i32) {
    %c0_i32 = arith.constant 0 : i32
    %c0_i32_0 = arith.constant 0 : i32
    %c0_i32_1 = arith.constant 0 : i32
    return %c0_i32, %c0_i32_0 : i32, i32
  }
  func.func @transform_11(%arg0: i32) -> (i32, i32) {
    %c0_i32 = arith.constant 0 : i32
    %c0_i32_0 = arith.constant 0 : i32
    %c0_i32_1 = arith.constant 0 : i32
    return %c0_i32, %c0_i32_0 : i32, i32
  }
  func.func @transform_12(%arg0: i32) -> (i32, i32) {
    %c0_i32 = arith.constant 0 : i32
    %c0_i32_0 = arith.constant 0 : i32
    %c0_i32_1 = arith.constant 0 : i32
    return %c0_i32, %c0_i32_0 : i32, i32
  }
  func.func @transform_13(%arg0: i32) -> (i32, i32) {
    %c0_i32 = arith.constant 0 : i32
    %c0_i32_0 = arith.constant 0 : i32
    %c0_i32_1 = arith.constant 0 : i32
    return %c0_i32, %c0_i32_0 : i32, i32
  }
  func.func @transform_14(%arg0: i32) -> (i32, i32) {
    %c0_i32 = arith.constant 0 : i32
    %c0_i32_0 = arith.constant 0 : i32
    %c0_i32_1 = arith.constant 0 : i32
    return %c0_i32, %c0_i32_0 : i32, i32
  }
  func.func @transform_15(%arg0: i32) -> (i32, i32) {
    %c0_i32 = arith.constant 0 : i32
    %c0_i32_0 = arith.constant 0 : i32
    %c0_i32_1 = arith.constant 0 : i32
    return %c0_i32, %c0_i32_0 : i32, i32
  }
  func.func @transform_16(%arg0: i32) -> (i32, i32) {
    %c0_i32 = arith.constant 0 : i32
    %c0_i32_0 = arith.constant 0 : i32
    %c0_i32_1 = arith.constant 0 : i32
    return %c0_i32, %c0_i32_0 : i32, i32
  }
  func.func @transform_17(%arg0: i32) -> (i32, i32) {
    %c0_i32 = arith.constant 0 : i32
    %c0_i32_0 = arith.constant 0 : i32
    %c0_i32_1 = arith.constant 0 : i32
    return %c0_i32, %c0_i32_0 : i32, i32
  }
  func.func @transform_18(%arg0: i32) -> (i32, i32) {
    %c0_i32 = arith.constant 0 : i32
    %c0_i32_0 = arith.constant 0 : i32
    %c0_i32_1 = arith.constant 0 : i32
    return %c0_i32, %c0_i32_0 : i32, i32
  }
  func.func @transform_19(%arg0: i32) -> (i32, i32) {
    %c0_i32 = arith.constant 0 : i32
    %c0_i32_0 = arith.constant 0 : i32
    %c0_i32_1 = arith.constant 0 : i32
    return %c0_i32, %c0_i32_0 : i32, i32
  }
  func.func @transform_20(%arg0: i32) -> (i32, i32) {
    %c0_i32 = arith.constant 0 : i32
    %c0_i32_0 = arith.constant 0 : i32
    %c0_i32_1 = arith.constant 0 : i32
    return %c0_i32, %c0_i32_0 : i32, i32
  }
  func.func @transform_21(%arg0: i32) -> (i32, i32) {
    %c0_i32 = arith.constant 0 : i32
    %c0_i32_0 = arith.constant 0 : i32
    %c0_i32_1 = arith.constant 0 : i32
    return %c0_i32, %c0_i32_0 : i32, i32
  }
  func.func @transform_22(%arg0: i32) -> (i32, i32) {
    %c0_i32 = arith.constant 0 : i32
    %c0_i32_0 = arith.constant 0 : i32
    %c0_i32_1 = arith.constant 0 : i32
    return %c0_i32, %c0_i32_0 : i32, i32
  }
  func.func @transform_23(%arg0: i32) -> (i32, i32) {
    %c0_i32 = arith.constant 0 : i32
    %c0_i32_0 = arith.constant 0 : i32
    %c0_i32_1 = arith.constant 0 : i32
    return %c0_i32, %c0_i32_0 : i32, i32
  }
  func.func @transform_24(%arg0: i32) -> (i32, i32) {
    %c0_i32 = arith.constant 0 : i32
    %c0_i32_0 = arith.constant 0 : i32
    %c0_i32_1 = arith.constant 0 : i32
    return %c0_i32, %c0_i32_0 : i32, i32
  }
  func.func @transform_25(%arg0: i32) -> (i32, i32) {
    %c0_i32 = arith.constant 0 : i32
    %c0_i32_0 = arith.constant 0 : i32
    %c0_i32_1 = arith.constant 0 : i32
    return %c0_i32, %c0_i32_0 : i32, i32
  }
  func.func @transform_26(%arg0: i32) -> (i32, i32) {
    %c0_i32 = arith.constant 0 : i32
    %c0_i32_0 = arith.constant 0 : i32
    %c0_i32_1 = arith.constant 0 : i32
    return %c0_i32, %c0_i32_0 : i32, i32
  }
  func.func @transform_27(%arg0: i32) -> (i32, i32) {
    %c0_i32 = arith.constant 0 : i32
    %c0_i32_0 = arith.constant 0 : i32
    %c0_i32_1 = arith.constant 0 : i32
    return %c0_i32, %c0_i32_0 : i32, i32
  }
  func.func @transform_28(%arg0: i32) -> (i32, i32) {
    %c0_i32 = arith.constant 0 : i32
    %c0_i32_0 = arith.constant 0 : i32
    %c0_i32_1 = arith.constant 0 : i32
    return %c0_i32, %c0_i32_0 : i32, i32
  }
  func.func @transform_29(%arg0: i32) -> (i32, i32) {
    %c0_i32 = arith.constant 0 : i32
    %c0_i32_0 = arith.constant 0 : i32
    %c0_i32_1 = arith.constant 0 : i32
    return %c0_i32, %c0_i32_0 : i32, i32
  }
  func.func @transform_30(%arg0: i32) -> (i32, i32) {
    %c0_i32 = arith.constant 0 : i32
    %c0_i32_0 = arith.constant 0 : i32
    %c0_i32_1 = arith.constant 0 : i32
    return %c0_i32, %c0_i32_0 : i32, i32
  }
  func.func @transform_31(%arg0: i32) -> (i32, i32) {
    %c0_i32 = arith.constant 0 : i32
    %c0_i32_0 = arith.constant 0 : i32
    %c0_i32_1 = arith.constant 0 : i32
    return %c0_i32, %c0_i32_0 : i32, i32
  }
  func.func @transform_32(%arg0: i32) -> (i32, i32) {
    %c0_i32 = arith.constant 0 : i32
    %c0_i32_0 = arith.constant 0 : i32
    %c0_i32_1 = arith.constant 0 : i32
    return %c0_i32, %c0_i32_0 : i32, i32
  }
  func.func @transform_33(%arg0: i32) -> (i32, i32, i32) {
    %c0_i32 = arith.constant 0 : i32
    %c0_i32_0 = arith.constant 0 : i32
    %c0_i32_1 = arith.constant 0 : i32
    return %arg0, %c0_i32, %c0_i32_0 : i32, i32, i32
  }
}

</mosaic_0001>

<llo_original>
// kernel: flexinet_forward.1
$region0: #{flexinet_forward.1}
  #allocation0 [shape = 'u32[]', space=smem, size = 0x4, offset = 0x4, fixed_abs, tag = 'smem constant byte address 0x4 - core index']
  #allocation1 [shape = 'u32[144,128]{1,0:T(1,128)}', space=vmem, size = 0x12000, scoped, tag = 'internal scratch']
  #allocation2 [shape = 'f32[16,401]{1,0:T(8,128)}', space=vmem, size = 0x8000, scoped, tag = 'scratch operand']
  #allocation3 [shape = 'f32[144,256]{1,0:T(8,128)}', space=vmem, size = 0x24000, scoped, tag = 'scratch operand']
  #allocation4 [shape = 'f32[16,201]{1,0:T(8,128)}', space=vmem, size = 0x4000, scoped, tag = 'scratch operand']
  #allocation5 [shape = 'f32[144,64]{1,0:T(8,128)}', space=vmem, size = 0x12000, scoped, tag = 'scratch operand']
  #allocation6 [shape = 'f32[12,149]{1,0:T(8,128)}', space=vmem, size = 0x4000, scoped, tag = 'scratch operand']
  #allocation7 [shape = 'f32[108,16]{1,0:T(8,128)}', space=vmem, size = 0xe000, scoped, tag = 'scratch operand']
  #allocation8 [shape = 'f32[1,1]{1,0:T(1,128)S(1)}', space=vmem, size = 0x200, scoped, tag = 'scoped memory for flexinet_forward.1']
  %s0 = inlined_call_operand.smem [shape: u32[34], index: -1, kind: input, shape index: {}]
  %s1 = sld [smem:[%s0]]
  %s2 = scalar_lea.smem %s0, 1
  %s3 = sld [smem:[%s2]]
  %s4 = scalar_lea.smem %s0, 2
  %s5 = sld [smem:[%s4]]
  %s6 = scalar_lea.smem %s0, 3
  %s7 = sld [smem:[%s6]]
  %s8 = scalar_lea.smem %s0, 4
  %s9 = sld [smem:[%s8]]
  %s10 = scalar_lea.smem %s0, 5
  %s11 = sld [smem:[%s10]]
  %s12 = scalar_lea.smem %s0, 6
  %s13 = sld [smem:[%s12]]
  %s14 = scalar_lea.smem %s0, 7
  %s15 = sld [smem:[%s14]]
  %s16 = scalar_lea.smem %s0, 8
  %s17 = sld [smem:[%s16]]
  %s18 = scalar_lea.smem %s0, 9
  %s19 = sld [smem:[%s18]]
  %s20 = scalar_lea.smem %s0, 10
  %s21 = sld [smem:[%s20]]
  %s22 = scalar_lea.smem %s0, 11
  %s23 = sld [smem:[%s22]]
  %s24 = scalar_lea.smem %s0, 12
  %s25 = sld [smem:[%s24]]
  %s26 = scalar_lea.smem %s0, 13
  %s27 = sld [smem:[%s26]]
  %s28 = scalar_lea.smem %s0, 14
  %s29 = sld [smem:[%s28]]
  %s30 = scalar_lea.smem %s0, 15
  %s31 = sld [smem:[%s30]]
  %s32 = scalar_lea.smem %s0, 16
  %s33 = sld [smem:[%s32]]
  %s34 = scalar_lea.smem %s0, 17
  %s35 = sld [smem:[%s34]]
  %s36 = scalar_lea.smem %s0, 18
  %s37 = sld [smem:[%s36]]
  %s38 = scalar_lea.smem %s0, 19
  %s39 = sld [smem:[%s38]]
  %s40 = scalar_lea.smem %s0, 20
  %s41 = sld [smem:[%s40]]
  %s42 = scalar_lea.smem %s0, 21
  %s43 = sld [smem:[%s42]]
  %s44 = scalar_lea.smem %s0, 22
  %s45 = sld [smem:[%s44]]
  %s46 = scalar_lea.smem %s0, 23
  %s47 = sld [smem:[%s46]]
  %s48 = scalar_lea.smem %s0, 24
  %s49 = sld [smem:[%s48]]
  %s50 = scalar_lea.smem %s0, 25
  %s51 = sld [smem:[%s50]]
  %s52 = scalar_lea.smem %s0, 26
  %s53 = sld [smem:[%s52]]
  %s54 = scalar_lea.smem %s0, 27
  %s55 = sld [smem:[%s54]]
  %s56 = scalar_lea.smem %s0, 28
  %s57 = sld [smem:[%s56]]
  %s58 = scalar_lea.smem %s0, 29
  %s59 = sld [smem:[%s58]]
  %s60 = scalar_lea.smem %s0, 30
  %s61 = sld [smem:[%s60]]
  %s62 = scalar_lea.smem %s0, 31
  %s63 = sld [smem:[%s62]]
  %s64 = scalar_lea.smem %s0, 32
  %s65 = sld [smem:[%s64]]
  %s66 = scalar_lea.smem %s0, 33
  %s67 = sld [smem:[%s66]]
  %s68 = sld [smem:[#allocation0]]
  $region165: #{flexinet_forward.1} parent=0
    _
  %s70 = ssub.s32 1, %s68
  %s71 = scalar_select 0, %s70, %s68
  %v72 = vstv %s53
  %73 = vst [vmem:[#allocation8] sm:$0x1] %v72
  loop: start=0, step=1, limit=4
  $region2: #{flexinet_forward.1} parent=0 // loop_pre_header
    _
  $region3: #{flexinet_forward.1} parent=0 // loop_header
    %s75 = sphi 0, %s79
    %p76 = scmp.ge.s32.totalorder %s75, 4
    %s85 = sphi 0, %s87
    %s88 = sphi 0, %s85
    %s89 = sphi 0, %s88
    %s105 = sphi 0, %s89
    %s109 = sphi 0, %s109
    %s111 = sphi 0, %s109
    %s112 = sphi 0, %s111
    %s126 = sphi 0, %s112
    %s130 = sphi 0, %s130
    %s132 = sphi 0, %s130
    %s133 = sphi 0, %s132
    %s147 = sphi 0, %s133
    %s151 = sphi 0, %s151
    %s153 = sphi 0, %s151
    %s154 = sphi 0, %s153
    %s168 = sphi 0, %s154
    %s172 = sphi 0, %s172
    %s174 = sphi 0, %s172
    %s175 = sphi 0, %s174
    %s189 = sphi 0, %s175
    %s193 = sphi 0, %s193
    %s195 = sphi 0, %s193
    %s196 = sphi 0, %s195
    %s210 = sphi 0, %s196
    %s214 = sphi 0, %s214
    %s216 = sphi 0, %s214
    %s217 = sphi 0, %s216
    %s231 = sphi 0, %s217
    %s235 = sphi 0, %s235
    %s237 = sphi 0, %s235
    %s238 = sphi 0, %s237
    %s252 = sphi 0, %s238
    %s256 = sphi 0, %s256
    %s258 = sphi 0, %s256
    %s259 = sphi 0, %s258
    %s273 = sphi 0, %s259
    %s277 = sphi 0, %s277
    %s279 = sphi 0, %s277
    %s280 = sphi 0, %s279
    %s294 = sphi 0, %s280
    %s298 = sphi 0, %s298
    %s300 = sphi 0, %s298
    %s301 = sphi 0, %s300
    %s315 = sphi 0, %s301
    %s319 = sphi 0, %s319
    %s321 = sphi 0, %s319
    %s322 = sphi 0, %s321
    %s336 = sphi 0, %s322
    %s340 = sphi 0, %s340
    %s342 = sphi 0, %s340
    %s343 = sphi 0, %s342
    %s357 = sphi 0, %s343
    %s361 = sphi 0, %s361
    %s363 = sphi 0, %s361
    %s364 = sphi 0, %s363
    %s378 = sphi 0, %s364
    %s382 = sphi 0, %s382
    %s384 = sphi 0, %s382
    %s385 = sphi 0, %s384
    %s399 = sphi 0, %s385
    %s403 = sphi 0, %s403
    %s405 = sphi 0, %s403
    %s406 = sphi 0, %s405
    %s420 = sphi 0, %s406
    %s424 = sphi 0, %s424
    %s426 = sphi 0, %s424
    %s427 = sphi 0, %s426
    %s441 = sphi 0, %s427
    %s445 = sphi 0, %s445
    %s447 = sphi 0, %s445
    %s448 = sphi 0, %s447
    %s462 = sphi 0, %s448
    %s466 = sphi 0, %s466
    %s468 = sphi 0, %s466
    %s469 = sphi 0, %s468
    %s483 = sphi 0, %s469
    %s487 = sphi 0, %s487
    %s489 = sphi 0, %s487
    %s490 = sphi 0, %s489
    %s504 = sphi 0, %s490
    %s508 = sphi 0, %s508
    %s510 = sphi 0, %s508
    %s511 = sphi 0, %s510
    %s525 = sphi 0, %s511
    %s529 = sphi 0, %s529
    %s531 = sphi 0, %s529
    %s532 = sphi 0, %s531
    %s546 = sphi 0, %s532
    %s550 = sphi 0, %s550
    %s552 = sphi 0, %s550
    %s553 = sphi 0, %s552
    %s567 = sphi 0, %s553
    %s571 = sphi 0, %s571
    %s573 = sphi 0, %s571
    %s574 = sphi 0, %s573
    %s588 = sphi 0, %s574
    %s592 = sphi 0, %s592
    %s594 = sphi 0, %s592
    %s595 = sphi 0, %s594
    %s609 = sphi 0, %s595
    %s613 = sphi 0, %s613
    %s615 = sphi 0, %s613
    %s616 = sphi 0, %s615
    %s630 = sphi 0, %s616
    %s634 = sphi 0, %s634
    %s636 = sphi 0, %s634
    %s637 = sphi 0, %s636
    %s651 = sphi 0, %s637
    %s655 = sphi 0, %s655
    %s657 = sphi 0, %s655
    %s658 = sphi 0, %s657
    %s672 = sphi 0, %s658
    %s676 = sphi 0, %s676
    %s678 = sphi 0, %s676
    %s679 = sphi 0, %s678
    %s693 = sphi 0, %s679
    %s697 = sphi 0, %s697
    %s699 = sphi 0, %s697
    %s700 = sphi 0, %s699
    %s714 = sphi 0, %s700
    %s718 = sphi 0, %s718
    %s720 = sphi 0, %s718
    %s721 = sphi 0, %s720
    %s735 = sphi 0, %s721
    %s739 = sphi 0, %s739
    %s741 = sphi 0, %s739
    %s742 = sphi 0, %s741
    %s756 = sphi 0, %s742
    %s760 = sphi 0, %s760
    %s762 = sphi 0, %s760
    %s763 = sphi 0, %s762
    %s777 = sphi 0, %s763
    %s783 = sphi 0, %s785
    %s786 = sphi 0, %s783
    %s787 = sphi 0, %s786
    %s803 = sphi 0, %s787
  $region4: #{flexinet_forward.1} parent=0 // loop_header_branch
    %78 = sbr.rel (%p76) target = $region8
  $region5: #{flexinet_forward.1} parent=0 // loop_body
    %s80 = ssub.s32 %s75, 1
    %s81 = ssub.s32 %s75, 2
    %s82 = sadd.s32 %s75, 1
    %s83 = ssub.s32 %s75, %s82
    %p84 = scmp.eq.s32.totalorder %s83, 0
    %s86 = sadd.s32 %s85, 1
    %s87 = scalar_select %p84, %s85, %s86
    %p90 = pneg %p84
    %p91 = scmp.eq.s32.totalorder %s75, 1
    %p92 = por %p90, %p91
    %p93 = scmp.ne.s32.totalorder %s85, %s88
    %p94 = scmp.eq.s32.totalorder %s75, 0
    %p95 = por %p93, %p94
    %p96 = scmp.ne.s32.totalorder %s85, %s88
    %p97 = scmp.eq.s32.totalorder %s80, 1
    %p98 = por %p96, %p97
    %p99 = scmp.ne.s32.totalorder %s88, %s89
    %p100 = scmp.eq.s32.totalorder %s80, 0
    %p101 = por %p99, %p100
    %p102 = scmp.ne.s32.totalorder %s88, %s89
    %p103 = scmp.eq.s32.totalorder %s81, 1
    %p104 = por %p102, %p103
    %p106 = scmp.ne.s32.totalorder %s89, %s105
    %p107 = scmp.eq.s32.totalorder %s81, 0
    %p108 = por %p106, %p107
    %s110 = sadd.s32 %s109, 1
    %p113 = scmp.eq.s32.totalorder %s75, 1
    %p114 = scmp.ne.s32.totalorder %s109, %s111
    %p115 = scmp.eq.s32.totalorder %s75, 0
    %p116 = por %p114, %p115
    %p117 = scmp.ne.s32.totalorder %s109, %s111
    %p118 = scmp.eq.s32.totalorder %s80, 1
    %p119 = por %p117, %p118
    %p120 = scmp.ne.s32.totalorder %s111, %s112
    %p121 = scmp.eq.s32.totalorder %s80, 0
    %p122 = por %p120, %p121
    %p123 = scmp.ne.s32.totalorder %s111, %s112
    %p124 = scmp.eq.s32.totalorder %s81, 1
    %p125 = por %p123, %p124
    %p127 = scmp.ne.s32.totalorder %s112, %s126
    %p128 = scmp.eq.s32.totalorder %s81, 0
    %p129 = por %p127, %p128
    %s131 = sadd.s32 %s130, 1
    %p134 = scmp.eq.s32.totalorder %s75, 1
    %p135 = scmp.ne.s32.totalorder %s130, %s132
    %p136 = scmp.eq.s32.totalorder %s75, 0
    %p137 = por %p135, %p136
    %p138 = scmp.ne.s32.totalorder %s130, %s132
    %p139 = scmp.eq.s32.totalorder %s80, 1
    %p140 = por %p138, %p139
    %p141 = scmp.ne.s32.totalorder %s132, %s133
    %p142 = scmp.eq.s32.totalorder %s80, 0
    %p143 = por %p141, %p142
    %p144 = scmp.ne.s32.totalorder %s132, %s133
    %p145 = scmp.eq.s32.totalorder %s81, 1
    %p146 = por %p144, %p145
    %p148 = scmp.ne.s32.totalorder %s133, %s147
    %p149 = scmp.eq.s32.totalorder %s81, 0
    %p150 = por %p148, %p149
    %s152 = sadd.s32 %s151, 1
    %p155 = scmp.eq.s32.totalorder %s75, 1
    %p156 = scmp.ne.s32.totalorder %s151, %s153
    %p157 = scmp.eq.s32.totalorder %s75, 0
    %p158 = por %p156, %p157
    %p159 = scmp.ne.s32.totalorder %s151, %s153
    %p160 = scmp.eq.s32.totalorder %s80, 1
    %p161 = por %p159, %p160
    %p162 = scmp.ne.s32.totalorder %s153, %s154
    %p163 = scmp.eq.s32.totalorder %s80, 0
    %p164 = por %p162, %p163
    %p165 = scmp.ne.s32.totalorder %s153, %s154
    %p166 = scmp.eq.s32.totalorder %s81, 1
    %p167 = por %p165, %p166
    %p169 = scmp.ne.s32.totalorder %s154, %s168
    %p170 = scmp.eq.s32.totalorder %s81, 0
    %p171 = por %p169, %p170
    %s173 = sadd.s32 %s172, 1
    %p176 = scmp.eq.s32.totalorder %s75, 1
    %p177 = scmp.ne.s32.totalorder %s172, %s174
    %p178 = scmp.eq.s32.totalorder %s75, 0
    %p179 = por %p177, %p178
    %p180 = scmp.ne.s32.totalorder %s172, %s174
    %p181 = scmp.eq.s32.totalorder %s80, 1
    %p182 = por %p180, %p181
    %p183 = scmp.ne.s32.totalorder %s174, %s175
    %p184 = scmp.eq.s32.totalorder %s80, 0
    %p185 = por %p183, %p184
    %p186 = scmp.ne.s32.totalorder %s174, %s175
    %p187 = scmp.eq.s32.totalorder %s81, 1
    %p188 = por %p186, %p187
    %p190 = scmp.ne.s32.totalorder %s175, %s189
    %p191 = scmp.eq.s32.totalorder %s81, 0
    %p192 = por %p190, %p191
    %s194 = sadd.s32 %s193, 1
    %p197 = scmp.eq.s32.totalorder %s75, 1
    %p198 = scmp.ne.s32.totalorder %s193, %s195
    %p199 = scmp.eq.s32.totalorder %s75, 0
    %p200 = por %p198, %p199
    %p201 = scmp.ne.s32.totalorder %s193, %s195
    %p202 = scmp.eq.s32.totalorder %s80, 1
    %p203 = por %p201, %p202
    %p204 = scmp.ne.s32.totalorder %s195, %s196
    %p205 = scmp.eq.s32.totalorder %s80, 0
    %p206 = por %p204, %p205
    %p207 = scmp.ne.s32.totalorder %s195, %s196
    %p208 = scmp.eq.s32.totalorder %s81, 1
    %p209 = por %p207, %p208
    %p211 = scmp.ne.s32.totalorder %s196, %s210
    %p212 = scmp.eq.s32.totalorder %s81, 0
    %p213 = por %p211, %p212
    %s215 = sadd.s32 %s214, 1
    %p218 = scmp.eq.s32.totalorder %s75, 1
    %p219 = scmp.ne.s32.totalorder %s214, %s216
    %p220 = scmp.eq.s32.totalorder %s75, 0
    %p221 = por %p219, %p220
    %p222 = scmp.ne.s32.totalorder %s214, %s216
    %p223 = scmp.eq.s32.totalorder %s80, 1
    %p224 = por %p222, %p223
    %p225 = scmp.ne.s32.totalorder %s216, %s217
    %p226 = scmp.eq.s32.totalorder %s80, 0
    %p227 = por %p225, %p226
    %p228 = scmp.ne.s32.totalorder %s216, %s217
    %p229 = scmp.eq.s32.totalorder %s81, 1
    %p230 = por %p228, %p229
    %p232 = scmp.ne.s32.totalorder %s217, %s231
    %p233 = scmp.eq.s32.totalorder %s81, 0
    %p234 = por %p232, %p233
    %s236 = sadd.s32 %s235, 1
    %p239 = scmp.eq.s32.totalorder %s75, 1
    %p240 = scmp.ne.s32.totalorder %s235, %s237
    %p241 = scmp.eq.s32.totalorder %s75, 0
    %p242 = por %p240, %p241
    %p243 = scmp.ne.s32.totalorder %s235, %s237
    %p244 = scmp.eq.s32.totalorder %s80, 1
    %p245 = por %p243, %p244
    %p246 = scmp.ne.s32.totalorder %s237, %s238
    %p247 = scmp.eq.s32.totalorder %s80, 0
    %p248 = por %p246, %p247
    %p249 = scmp.ne.s32.totalorder %s237, %s238
    %p250 = scmp.eq.s32.totalorder %s81, 1
    %p251 = por %p249, %p250
    %p253 = scmp.ne.s32.totalorder %s238, %s252
    %p254 = scmp.eq.s32.totalorder %s81, 0
    %p255 = por %p253, %p254
    %s257 = sadd.s32 %s256, 1
    %p260 = scmp.eq.s32.totalorder %s75, 1
    %p261 = scmp.ne.s32.totalorder %s256, %s258
    %p262 = scmp.eq.s32.totalorder %s75, 0
    %p263 = por %p261, %p262
    %p264 = scmp.ne.s32.totalorder %s256, %s258
    %p265 = scmp.eq.s32.totalorder %s80, 1
    %p266 = por %p264, %p265
    %p267 = scmp.ne.s32.totalorder %s258, %s259
    %p268 = scmp.eq.s32.totalorder %s80, 0
    %p269 = por %p267, %p268
    %p270 = scmp.ne.s32.totalorder %s258, %s259
    %p271 = scmp.eq.s32.totalorder %s81, 1
    %p272 = por %p270, %p271
    %p274 = scmp.ne.s32.totalorder %s259, %s273
    %p275 = scmp.eq.s32.totalorder %s81, 0
    %p276 = por %p274, %p275
    %s278 = sadd.s32 %s277, 1
    %p281 = scmp.eq.s32.totalorder %s75, 1
    %p282 = scmp.ne.s32.totalorder %s277, %s279
    %p283 = scmp.eq.s32.totalorder %s75, 0
    %p284 = por %p282, %p283
    %p285 = scmp.ne.s32.totalorder %s277, %s279
    %p286 = scmp.eq.s32.totalorder %s80, 1
    %p287 = por %p285, %p286
    %p288 = scmp.ne.s32.totalorder %s279, %s280
    %p289 = scmp.eq.s32.totalorder %s80, 0
    %p290 = por %p288, %p289
    %p291 = scmp.ne.s32.totalorder %s279, %s280
    %p292 = scmp.eq.s32.totalorder %s81, 1
    %p293 = por %p291, %p292
    %p295 = scmp.ne.s32.totalorder %s280, %s294
    %p296 = scmp.eq.s32.totalorder %s81, 0
    %p297 = por %p295, %p296
    %s299 = sadd.s32 %s298, 1
    %p302 = scmp.eq.s32.totalorder %s75, 1
    %p303 = scmp.ne.s32.totalorder %s298, %s300
    %p304 = scmp.eq.s32.totalorder %s75, 0
    %p305 = por %p303, %p304
    %p306 = scmp.ne.s32.totalorder %s298, %s300
    %p307 = scmp.eq.s32.totalorder %s80, 1
    %p308 = por %p306, %p307
    %p309 = scmp.ne.s32.totalorder %s300, %s301
    %p310 = scmp.eq.s32.totalorder %s80, 0
    %p311 = por %p309, %p310
    %p312 = scmp.ne.s32.totalorder %s300, %s301
    %p313 = scmp.eq.s32.totalorder %s81, 1
    %p314 = por %p312, %p313
    %p316 = scmp.ne.s32.totalorder %s301, %s315
    %p317 = scmp.eq.s32.totalorder %s81, 0
    %p318 = por %p316, %p317
    %s320 = sadd.s32 %s319, 1
    %p323 = scmp.eq.s32.totalorder %s75, 1
    %p324 = scmp.ne.s32.totalorder %s319, %s321
    %p325 = scmp.eq.s32.totalorder %s75, 0
    %p326 = por %p324, %p325
    %p327 = scmp.ne.s32.totalorder %s319, %s321
    %p328 = scmp.eq.s32.totalorder %s80, 1
    %p329 = por %p327, %p328
    %p330 = scmp.ne.s32.totalorder %s321, %s322
    %p331 = scmp.eq.s32.totalorder %s80, 0
    %p332 = por %p330, %p331
    %p333 = scmp.ne.s32.totalorder %s321, %s322
    %p334 = scmp.eq.s32.totalorder %s81, 1
    %p335 = por %p333, %p334
    %p337 = scmp.ne.s32.totalorder %s322, %s336
    %p338 = scmp.eq.s32.totalorder %s81, 0
    %p339 = por %p337, %p338
    %s341 = sadd.s32 %s340, 1
    %p344 = scmp.eq.s32.totalorder %s75, 1
    %p345 = scmp.ne.s32.totalorder %s340, %s342
    %p346 = scmp.eq.s32.totalorder %s75, 0
    %p347 = por %p345, %p346
    %p348 = scmp.ne.s32.totalorder %s340, %s342
    %p349 = scmp.eq.s32.totalorder %s80, 1
    %p350 = por %p348, %p349
    %p351 = scmp.ne.s32.totalorder %s342, %s343
    %p352 = scmp.eq.s32.totalorder %s80, 0
    %p353 = por %p351, %p352
    %p354 = scmp.ne.s32.totalorder %s342, %s343
    %p355 = scmp.eq.s32.totalorder %s81, 1
    %p356 = por %p354, %p355
    %p358 = scmp.ne.s32.totalorder %s343, %s357
    %p359 = scmp.eq.s32.totalorder %s81, 0
    %p360 = por %p358, %p359
    %s362 = sadd.s32 %s361, 1
    %p365 = scmp.eq.s32.totalorder %s75, 1
    %p366 = scmp.ne.s32.totalorder %s361, %s363
    %p367 = scmp.eq.s32.totalorder %s75, 0
    %p368 = por %p366, %p367
    %p369 = scmp.ne.s32.totalorder %s361, %s363
    %p370 = scmp.eq.s32.totalorder %s80, 1
    %p371 = por %p369, %p370
    %p372 = scmp.ne.s32.totalorder %s363, %s364
    %p373 = scmp.eq.s32.totalorder %s80, 0
    %p374 = por %p372, %p373
    %p375 = scmp.ne.s32.totalorder %s363, %s364
    %p376 = scmp.eq.s32.totalorder %s81, 1
    %p377 = por %p375, %p376
    %p379 = scmp.ne.s32.totalorder %s364, %s378
    %p380 = scmp.eq.s32.totalorder %s81, 0
    %p381 = por %p379, %p380
    %s383 = sadd.s32 %s382, 1
    %p386 = scmp.eq.s32.totalorder %s75, 1
    %p387 = scmp.ne.s32.totalorder %s382, %s384
    %p388 = scmp.eq.s32.totalorder %s75, 0
    %p389 = por %p387, %p388
    %p390 = scmp.ne.s32.totalorder %s382, %s384
    %p391 = scmp.eq.s32.totalorder %s80, 1
    %p392 = por %p390, %p391
    %p393 = scmp.ne.s32.totalorder %s384, %s385
    %p394 = scmp.eq.s32.totalorder %s80, 0
    %p395 = por %p393, %p394
    %p396 = scmp.ne.s32.totalorder %s384, %s385
    %p397 = scmp.eq.s32.totalorder %s81, 1
    %p398 = por %p396, %p397
    %p400 = scmp.ne.s32.totalorder %s385, %s399
    %p401 = scmp.eq.s32.totalorder %s81, 0
    %p402 = por %p400, %p401
    %s404 = sadd.s32 %s403, 1
    %p407 = scmp.eq.s32.totalorder %s75, 1
    %p408 = scmp.ne.s32.totalorder %s403, %s405
    %p409 = scmp.eq.s32.totalorder %s75, 0
    %p410 = por %p408, %p409
    %p411 = scmp.ne.s32.totalorder %s403, %s405
    %p412 = scmp.eq.s32.totalorder %s80, 1
    %p413 = por %p411, %p412
    %p414 = scmp.ne.s32.totalorder %s405, %s406
    %p415 = scmp.eq.s32.totalorder %s80, 0
    %p416 = por %p414, %p415
    %p417 = scmp.ne.s32.totalorder %s405, %s406
    %p418 = scmp.eq.s32.totalorder %s81, 1
    %p419 = por %p417, %p418
    %p421 = scmp.ne.s32.totalorder %s406, %s420
    %p422 = scmp.eq.s32.totalorder %s81, 0
    %p423 = por %p421, %p422
    %s425 = sadd.s32 %s424, 1
    %p428 = scmp.eq.s32.totalorder %s75, 1
    %p429 = scmp.ne.s32.totalorder %s424, %s426
    %p430 = scmp.eq.s32.totalorder %s75, 0
    %p431 = por %p429, %p430
    %p432 = scmp.ne.s32.totalorder %s424, %s426
    %p433 = scmp.eq.s32.totalorder %s80, 1
    %p434 = por %p432, %p433
    %p435 = scmp.ne.s32.totalorder %s426, %s427
    %p436 = scmp.eq.s32.totalorder %s80, 0
    %p437 = por %p435, %p436
    %p438 = scmp.ne.s32.totalorder %s426, %s427
    %p439 = scmp.eq.s32.totalorder %s81, 1
    %p440 = por %p438, %p439
    %p442 = scmp.ne.s32.totalorder %s427, %s441
    %p443 = scmp.eq.s32.totalorder %s81, 0
    %p444 = por %p442, %p443
    %s446 = sadd.s32 %s445, 1
    %p449 = scmp.eq.s32.totalorder %s75, 1
    %p450 = scmp.ne.s32.totalorder %s445, %s447
    %p451 = scmp.eq.s32.totalorder %s75, 0
    %p452 = por %p450, %p451
    %p453 = scmp.ne.s32.totalorder %s445, %s447
    %p454 = scmp.eq.s32.totalorder %s80, 1
    %p455 = por %p453, %p454
    %p456 = scmp.ne.s32.totalorder %s447, %s448
    %p457 = scmp.eq.s32.totalorder %s80, 0
    %p458 = por %p456, %p457
    %p459 = scmp.ne.s32.totalorder %s447, %s448
    %p460 = scmp.eq.s32.totalorder %s81, 1
    %p461 = por %p459, %p460
    %p463 = scmp.ne.s32.totalorder %s448, %s462
    %p464 = scmp.eq.s32.totalorder %s81, 0
    %p465 = por %p463, %p464
    %s467 = sadd.s32 %s466, 1
    %p470 = scmp.eq.s32.totalorder %s75, 1
    %p471 = scmp.ne.s32.totalorder %s466, %s468
    %p472 = scmp.eq.s32.totalorder %s75, 0
    %p473 = por %p471, %p472
    %p474 = scmp.ne.s32.totalorder %s466, %s468
    %p475 = scmp.eq.s32.totalorder %s80, 1
    %p476 = por %p474, %p475
    %p477 = scmp.ne.s32.totalorder %s468, %s469
    %p478 = scmp.eq.s32.totalorder %s80, 0
    %p479 = por %p477, %p478
    %p480 = scmp.ne.s32.totalorder %s468, %s469
    %p481 = scmp.eq.s32.totalorder %s81, 1
    %p482 = por %p480, %p481
    %p484 = scmp.ne.s32.totalorder %s469, %s483
    %p485 = scmp.eq.s32.totalorder %s81, 0
    %p486 = por %p484, %p485
    %s488 = sadd.s32 %s487, 1
    %p491 = scmp.eq.s32.totalorder %s75, 1
    %p492 = scmp.ne.s32.totalorder %s487, %s489
    %p493 = scmp.eq.s32.totalorder %s75, 0
    %p494 = por %p492, %p493
    %p495 = scmp.ne.s32.totalorder %s487, %s489
    %p496 = scmp.eq.s32.totalorder %s80, 1
    %p497 = por %p495, %p496
    %p498 = scmp.ne.s32.totalorder %s489, %s490
    %p499 = scmp.eq.s32.totalorder %s80, 0
    %p500 = por %p498, %p499
    %p501 = scmp.ne.s32.totalorder %s489, %s490
    %p502 = scmp.eq.s32.totalorder %s81, 1
    %p503 = por %p501, %p502
    %p505 = scmp.ne.s32.totalorder %s490, %s504
    %p506 = scmp.eq.s32.totalorder %s81, 0
    %p507 = por %p505, %p506
    %s509 = sadd.s32 %s508, 1
    %p512 = scmp.eq.s32.totalorder %s75, 1
    %p513 = scmp.ne.s32.totalorder %s508, %s510
    %p514 = scmp.eq.s32.totalorder %s75, 0
    %p515 = por %p513, %p514
    %p516 = scmp.ne.s32.totalorder %s508, %s510
    %p517 = scmp.eq.s32.totalorder %s80, 1
    %p518 = por %p516, %p517
    %p519 = scmp.ne.s32.totalorder %s510, %s511
    %p520 = scmp.eq.s32.totalorder %s80, 0
    %p521 = por %p519, %p520
    %p522 = scmp.ne.s32.totalorder %s510, %s511
    %p523 = scmp.eq.s32.totalorder %s81, 1
    %p524 = por %p522, %p523
    %p526 = scmp.ne.s32.totalorder %s511, %s525
    %p527 = scmp.eq.s32.totalorder %s81, 0
    %p528 = por %p526, %p527
    %s530 = sadd.s32 %s529, 1
    %p533 = scmp.eq.s32.totalorder %s75, 1
    %p534 = scmp.ne.s32.totalorder %s529, %s531
    %p535 = scmp.eq.s32.totalorder %s75, 0
    %p536 = por %p534, %p535
    %p537 = scmp.ne.s32.totalorder %s529, %s531
    %p538 = scmp.eq.s32.totalorder %s80, 1
    %p539 = por %p537, %p538
    %p540 = scmp.ne.s32.totalorder %s531, %s532
    %p541 = scmp.eq.s32.totalorder %s80, 0
    %p542 = por %p540, %p541
    %p543 = scmp.ne.s32.totalorder %s531, %s532
    %p544 = scmp.eq.s32.totalorder %s81, 1
    %p545 = por %p543, %p544
    %p547 = scmp.ne.s32.totalorder %s532, %s546
    %p548 = scmp.eq.s32.totalorder %s81, 0
    %p549 = por %p547, %p548
    %s551 = sadd.s32 %s550, 1
    %p554 = scmp.eq.s32.totalorder %s75, 1
    %p555 = scmp.ne.s32.totalorder %s550, %s552
    %p556 = scmp.eq.s32.totalorder %s75, 0
    %p557 = por %p555, %p556
    %p558 = scmp.ne.s32.totalorder %s550, %s552
    %p559 = scmp.eq.s32.totalorder %s80, 1
    %p560 = por %p558, %p559
    %p561 = scmp.ne.s32.totalorder %s552, %s553
    %p562 = scmp.eq.s32.totalorder %s80, 0
    %p563 = por %p561, %p562
    %p564 = scmp.ne.s32.totalorder %s552, %s553
    %p565 = scmp.eq.s32.totalorder %s81, 1
    %p566 = por %p564, %p565
    %p568 = scmp.ne.s32.totalorder %s553, %s567
    %p569 = scmp.eq.s32.totalorder %s81, 0
    %p570 = por %p568, %p569
    %s572 = sadd.s32 %s571, 1
    %p575 = scmp.eq.s32.totalorder %s75, 1
    %p576 = scmp.ne.s32.totalorder %s571, %s573
    %p577 = scmp.eq.s32.totalorder %s75, 0
    %p578 = por %p576, %p577
    %p579 = scmp.ne.s32.totalorder %s571, %s573
    %p580 = scmp.eq.s32.totalorder %s80, 1
    %p581 = por %p579, %p580
    %p582 = scmp.ne.s32.totalorder %s573, %s574
    %p583 = scmp.eq.s32.totalorder %s80, 0
    %p584 = por %p582, %p583
    %p585 = scmp.ne.s32.totalorder %s573, %s574
    %p586 = scmp.eq.s32.totalorder %s81, 1
    %p587 = por %p585, %p586
    %p589 = scmp.ne.s32.totalorder %s574, %s588
    %p590 = scmp.eq.s32.totalorder %s81, 0
    %p591 = por %p589, %p590
    %s593 = sadd.s32 %s592, 1
    %p596 = scmp.eq.s32.totalorder %s75, 1
    %p597 = scmp.ne.s32.totalorder %s592, %s594
    %p598 = scmp.eq.s32.totalorder %s75, 0
    %p599 = por %p597, %p598
    %p600 = scmp.ne.s32.totalorder %s592, %s594
    %p601 = scmp.eq.s32.totalorder %s80, 1
    %p602 = por %p600, %p601
    %p603 = scmp.ne.s32.totalorder %s594, %s595
    %p604 = scmp.eq.s32.totalorder %s80, 0
    %p605 = por %p603, %p604
    %p606 = scmp.ne.s32.totalorder %s594, %s595
    %p607 = scmp.eq.s32.totalorder %s81, 1
    %p608 = por %p606, %p607
    %p610 = scmp.ne.s32.totalorder %s595, %s609
    %p611 = scmp.eq.s32.totalorder %s81, 0
    %p612 = por %p610, %p611
    %s614 = sadd.s32 %s613, 1
    %p617 = scmp.eq.s32.totalorder %s75, 1
    %p618 = scmp.ne.s32.totalorder %s613, %s615
    %p619 = scmp.eq.s32.totalorder %s75, 0
    %p620 = por %p618, %p619
    %p621 = scmp.ne.s32.totalorder %s613, %s615
    %p622 = scmp.eq.s32.totalorder %s80, 1
    %p623 = por %p621, %p622
    %p624 = scmp.ne.s32.totalorder %s615, %s616
    %p625 = scmp.eq.s32.totalorder %s80, 0
    %p626 = por %p624, %p625
    %p627 = scmp.ne.s32.totalorder %s615, %s616
    %p628 = scmp.eq.s32.totalorder %s81, 1
    %p629 = por %p627, %p628
    %p631 = scmp.ne.s32.totalorder %s616, %s630
    %p632 = scmp.eq.s32.totalorder %s81, 0
    %p633 = por %p631, %p632
    %s635 = sadd.s32 %s634, 1
    %p638 = scmp.eq.s32.totalorder %s75, 1
    %p639 = scmp.ne.s32.totalorder %s634, %s636
    %p640 = scmp.eq.s32.totalorder %s75, 0
    %p641 = por %p639, %p640
    %p642 = scmp.ne.s32.totalorder %s634, %s636
    %p643 = scmp.eq.s32.totalorder %s80, 1
    %p644 = por %p642, %p643
    %p645 = scmp.ne.s32.totalorder %s636, %s637
    %p646 = scmp.eq.s32.totalorder %s80, 0
    %p647 = por %p645, %p646
    %p648 = scmp.ne.s32.totalorder %s636, %s637
    %p649 = scmp.eq.s32.totalorder %s81, 1
    %p650 = por %p648, %p649
    %p652 = scmp.ne.s32.totalorder %s637, %s651
    %p653 = scmp.eq.s32.totalorder %s81, 0
    %p654 = por %p652, %p653
    %s656 = sadd.s32 %s655, 1
    %p659 = scmp.eq.s32.totalorder %s75, 1
    %p660 = scmp.ne.s32.totalorder %s655, %s657
    %p661 = scmp.eq.s32.totalorder %s75, 0
    %p662 = por %p660, %p661
    %p663 = scmp.ne.s32.totalorder %s655, %s657
    %p664 = scmp.eq.s32.totalorder %s80, 1
    %p665 = por %p663, %p664
    %p666 = scmp.ne.s32.totalorder %s657, %s658
    %p667 = scmp.eq.s32.totalorder %s80, 0
    %p668 = por %p666, %p667
    %p669 = scmp.ne.s32.totalorder %s657, %s658
    %p670 = scmp.eq.s32.totalorder %s81, 1
    %p671 = por %p669, %p670
    %p673 = scmp.ne.s32.totalorder %s658, %s672
    %p674 = scmp.eq.s32.totalorder %s81, 0
    %p675 = por %p673, %p674
    %s677 = sadd.s32 %s676, 1
    %p680 = scmp.eq.s32.totalorder %s75, 1
    %p681 = scmp.ne.s32.totalorder %s676, %s678
    %p682 = scmp.eq.s32.totalorder %s75, 0
    %p683 = por %p681, %p682
    %p684 = scmp.ne.s32.totalorder %s676, %s678
    %p685 = scmp.eq.s32.totalorder %s80, 1
    %p686 = por %p684, %p685
    %p687 = scmp.ne.s32.totalorder %s678, %s679
    %p688 = scmp.eq.s32.totalorder %s80, 0
    %p689 = por %p687, %p688
    %p690 = scmp.ne.s32.totalorder %s678, %s679
    %p691 = scmp.eq.s32.totalorder %s81, 1
    %p692 = por %p690, %p691
    %p694 = scmp.ne.s32.totalorder %s679, %s693
    %p695 = scmp.eq.s32.totalorder %s81, 0
    %p696 = por %p694, %p695
    %s698 = sadd.s32 %s697, 1
    %p701 = scmp.eq.s32.totalorder %s75, 1
    %p702 = scmp.ne.s32.totalorder %s697, %s699
    %p703 = scmp.eq.s32.totalorder %s75, 0
    %p704 = por %p702, %p703
    %p705 = scmp.ne.s32.totalorder %s697, %s699
    %p706 = scmp.eq.s32.totalorder %s80, 1
    %p707 = por %p705, %p706
    %p708 = scmp.ne.s32.totalorder %s699, %s700
    %p709 = scmp.eq.s32.totalorder %s80, 0
    %p710 = por %p708, %p709
    %p711 = scmp.ne.s32.totalorder %s699, %s700
    %p712 = scmp.eq.s32.totalorder %s81, 1
    %p713 = por %p711, %p712
    %p715 = scmp.ne.s32.totalorder %s700, %s714
    %p716 = scmp.eq.s32.totalorder %s81, 0
    %p717 = por %p715, %p716
    %s719 = sadd.s32 %s718, 1
    %p722 = scmp.eq.s32.totalorder %s75, 1
    %p723 = scmp.ne.s32.totalorder %s718, %s720
    %p724 = scmp.eq.s32.totalorder %s75, 0
    %p725 = por %p723, %p724
    %p726 = scmp.ne.s32.totalorder %s718, %s720
    %p727 = scmp.eq.s32.totalorder %s80, 1
    %p728 = por %p726, %p727
    %p729 = scmp.ne.s32.totalorder %s720, %s721
    %p730 = scmp.eq.s32.totalorder %s80, 0
    %p731 = por %p729, %p730
    %p732 = scmp.ne.s32.totalorder %s720, %s721
    %p733 = scmp.eq.s32.totalorder %s81, 1
    %p734 = por %p732, %p733
    %p736 = scmp.ne.s32.totalorder %s721, %s735
    %p737 = scmp.eq.s32.totalorder %s81, 0
    %p738 = por %p736, %p737
    %s740 = sadd.s32 %s739, 1
    %p743 = scmp.eq.s32.totalorder %s75, 1
    %p744 = scmp.ne.s32.totalorder %s739, %s741
    %p745 = scmp.eq.s32.totalorder %s75, 0
    %p746 = por %p744, %p745
    %p747 = scmp.ne.s32.totalorder %s739, %s741
    %p748 = scmp.eq.s32.totalorder %s80, 1
    %p749 = por %p747, %p748
    %p750 = scmp.ne.s32.totalorder %s741, %s742
    %p751 = scmp.eq.s32.totalorder %s80, 0
    %p752 = por %p750, %p751
    %p753 = scmp.ne.s32.totalorder %s741, %s742
    %p754 = scmp.eq.s32.totalorder %s81, 1
    %p755 = por %p753, %p754
    %p757 = scmp.ne.s32.totalorder %s742, %s756
    %p758 = scmp.eq.s32.totalorder %s81, 0
    %p759 = por %p757, %p758
    %s761 = sadd.s32 %s760, 1
    %p764 = scmp.eq.s32.totalorder %s75, 1
    %p765 = scmp.ne.s32.totalorder %s760, %s762
    %p766 = scmp.eq.s32.totalorder %s75, 0
    %p767 = por %p765, %p766
    %p768 = scmp.ne.s32.totalorder %s760, %s762
    %p769 = scmp.eq.s32.totalorder %s80, 1
    %p770 = por %p768, %p769
    %p771 = scmp.ne.s32.totalorder %s762, %s763
    %p772 = scmp.eq.s32.totalorder %s80, 0
    %p773 = por %p771, %p772
    %p774 = scmp.ne.s32.totalorder %s762, %s763
    %p775 = scmp.eq.s32.totalorder %s81, 1
    %p776 = por %p774, %p775
    %p778 = scmp.ne.s32.totalorder %s763, %s777
    %p779 = scmp.eq.s32.totalorder %s81, 0
    %p780 = por %p778, %p779
    %s781 = ssub.s32 %s75, %s82
    %p782 = scmp.eq.s32.totalorder %s781, 0
    %s784 = sadd.s32 %s783, 1
    %s785 = scalar_select %p782, %s783, %s784
    %p788 = pneg %p782
    %p789 = scmp.eq.s32.totalorder %s75, 1
    %p790 = por %p788, %p789
    %p791 = scmp.ne.s32.totalorder %s783, %s786
    %p792 = scmp.eq.s32.totalorder %s75, 0
    %p793 = por %p791, %p792
    %p794 = scmp.ne.s32.totalorder %s783, %s786
    %p795 = scmp.eq.s32.totalorder %s80, 1
    %p796 = por %p794, %p795
    %p797 = scmp.ne.s32.totalorder %s786, %s787
    %p798 = scmp.eq.s32.totalorder %s80, 0
    %p799 = por %p797, %p798
    %p800 = scmp.ne.s32.totalorder %s786, %s787
    %p801 = scmp.eq.s32.totalorder %s81, 1
    %p802 = por %p800, %p801
    %p804 = scmp.ne.s32.totalorder %s787, %s803
    %p805 = scmp.eq.s32.totalorder %s81, 0
    %p806 = por %p804, %p805
    %p807 = scmp.le.s32.totalorder 1, %s75
    %p808 = scmp.lt.s32.totalorder %s75, 3
    %p809 = pnand %p807, %p808
    %p810 = pneg %p809
    // Predicated region
    $region9: #{flexinet_forward.1} parent=5 // pred_check
      _
    $region10: #{flexinet_forward.1} parent=5 // pred_check_branch
      %812 = sbr.rel (%p809) target = $region12
    $region11: #{flexinet_forward.1} parent=5 // pred_region
      %s813 = ssub.s32 %s75, 1
      // Predicated region
      $region13: #{flexinet_forward.1} parent=11 // pred_check
        %p814 = pneg %p122
      $region14: #{flexinet_forward.1} parent=11 // pred_check_branch
        %816 = sbr.rel (%p814) target = $region16
      $region15: #{flexinet_forward.1} parent=11 // pred_region
        _
      $region16: #{flexinet_forward.1} parent=11 // pred_fallthru
        _
      // Predicated region
      $region17: #{flexinet_forward.1} parent=11 // pred_check
        %p817 = pneg %p143
      $region18: #{flexinet_forward.1} parent=11 // pred_check_branch
        %819 = sbr.rel (%p817) target = $region20
      $region19: #{flexinet_forward.1} parent=11 // pred_region
        _
      $region20: #{flexinet_forward.1} parent=11 // pred_fallthru
        _
      // Predicated region
      $region21: #{flexinet_forward.1} parent=11 // pred_check
        %p820 = pneg %p164
      $region22: #{flexinet_forward.1} parent=11 // pred_check_branch
        %822 = sbr.rel (%p820) target = $region24
      $region23: #{flexinet_forward.1} parent=11 // pred_region
        _
      $region24: #{flexinet_forward.1} parent=11 // pred_fallthru
        _
      // Predicated region
      $region25: #{flexinet_forward.1} parent=11 // pred_check
        %p823 = pneg %p185
      $region26: #{flexinet_forward.1} parent=11 // pred_check_branch
        %825 = sbr.rel (%p823) target = $region28
      $region27: #{flexinet_forward.1} parent=11 // pred_region
        _
      $region28: #{flexinet_forward.1} parent=11 // pred_fallthru
        _
      // Predicated region
      $region29: #{flexinet_forward.1} parent=11 // pred_check
        %p826 = pneg %p206
      $region30: #{flexinet_forward.1} parent=11 // pred_check_branch
        %828 = sbr.rel (%p826) target = $region32
      $region31: #{flexinet_forward.1} parent=11 // pred_region
        _
      $region32: #{flexinet_forward.1} parent=11 // pred_fallthru
        _
      // Predicated region
      $region33: #{flexinet_forward.1} parent=11 // pred_check
        %p829 = pneg %p227
      $region34: #{flexinet_forward.1} parent=11 // pred_check_branch
        %831 = sbr.rel (%p829) target = $region36
      $region35: #{flexinet_forward.1} parent=11 // pred_region
        _
      $region36: #{flexinet_forward.1} parent=11 // pred_fallthru
        _
      // Predicated region
      $region37: #{flexinet_forward.1} parent=11 // pred_check
        %p832 = pneg %p248
      $region38: #{flexinet_forward.1} parent=11 // pred_check_branch
        %834 = sbr.rel (%p832) target = $region40
      $region39: #{flexinet_forward.1} parent=11 // pred_region
        _
      $region40: #{flexinet_forward.1} parent=11 // pred_fallthru
        _
      // Predicated region
      $region41: #{flexinet_forward.1} parent=11 // pred_check
        %p835 = pneg %p269
      $region42: #{flexinet_forward.1} parent=11 // pred_check_branch
        %837 = sbr.rel (%p835) target = $region44
      $region43: #{flexinet_forward.1} parent=11 // pred_region
        _
      $region44: #{flexinet_forward.1} parent=11 // pred_fallthru
        _
      // Predicated region
      $region45: #{flexinet_forward.1} parent=11 // pred_check
        %p838 = pneg %p290
      $region46: #{flexinet_forward.1} parent=11 // pred_check_branch
        %840 = sbr.rel (%p838) target = $region48
      $region47: #{flexinet_forward.1} parent=11 // pred_region
        _
      $region48: #{flexinet_forward.1} parent=11 // pred_fallthru
        _
      // Predicated region
      $region49: #{flexinet_forward.1} parent=11 // pred_check
        %p841 = pneg %p311
      $region50: #{flexinet_forward.1} parent=11 // pred_check_branch
        %843 = sbr.rel (%p841) target = $region52
      $region51: #{flexinet_forward.1} parent=11 // pred_region
        _
      $region52: #{flexinet_forward.1} parent=11 // pred_fallthru
        _
      // Predicated region
      $region53: #{flexinet_forward.1} parent=11 // pred_check
        %p844 = pneg %p332
      $region54: #{flexinet_forward.1} parent=11 // pred_check_branch
        %846 = sbr.rel (%p844) target = $region56
      $region55: #{flexinet_forward.1} parent=11 // pred_region
        _
      $region56: #{flexinet_forward.1} parent=11 // pred_fallthru
        _
      // Predicated region
      $region57: #{flexinet_forward.1} parent=11 // pred_check
        %p847 = pneg %p353
      $region58: #{flexinet_forward.1} parent=11 // pred_check_branch
        %849 = sbr.rel (%p847) target = $region60
      $region59: #{flexinet_forward.1} parent=11 // pred_region
        _
      $region60: #{flexinet_forward.1} parent=11 // pred_fallthru
        _
      // Predicated region
      $region61: #{flexinet_forward.1} parent=11 // pred_check
        %p850 = pneg %p374
      $region62: #{flexinet_forward.1} parent=11 // pred_check_branch
        %852 = sbr.rel (%p850) target = $region64
      $region63: #{flexinet_forward.1} parent=11 // pred_region
        _
      $region64: #{flexinet_forward.1} parent=11 // pred_fallthru
        _
      // Predicated region
      $region65: #{flexinet_forward.1} parent=11 // pred_check
        %p853 = pneg %p395
      $region66: #{flexinet_forward.1} parent=11 // pred_check_branch
        %855 = sbr.rel (%p853) target = $region68
      $region67: #{flexinet_forward.1} parent=11 // pred_region
        _
      $region68: #{flexinet_forward.1} parent=11 // pred_fallthru
        _
      // Predicated region
      $region69: #{flexinet_forward.1} parent=11 // pred_check
        %p856 = pneg %p416
      $region70: #{flexinet_forward.1} parent=11 // pred_check_branch
        %858 = sbr.rel (%p856) target = $region72
      $region71: #{flexinet_forward.1} parent=11 // pred_region
        _
      $region72: #{flexinet_forward.1} parent=11 // pred_fallthru
        _
      // Predicated region
      $region73: #{flexinet_forward.1} parent=11 // pred_check
        %p859 = pneg %p437
      $region74: #{flexinet_forward.1} parent=11 // pred_check_branch
        %861 = sbr.rel (%p859) target = $region76
      $region75: #{flexinet_forward.1} parent=11 // pred_region
        _
      $region76: #{flexinet_forward.1} parent=11 // pred_fallthru
        _
      // Predicated region
      $region77: #{flexinet_forward.1} parent=11 // pred_check
        %p862 = pneg %p458
      $region78: #{flexinet_forward.1} parent=11 // pred_check_branch
        %864 = sbr.rel (%p862) target = $region80
      $region79: #{flexinet_forward.1} parent=11 // pred_region
        _
      $region80: #{flexinet_forward.1} parent=11 // pred_fallthru
        _
      // Predicated region
      $region81: #{flexinet_forward.1} parent=11 // pred_check
        %p865 = pneg %p479
      $region82: #{flexinet_forward.1} parent=11 // pred_check_branch
        %867 = sbr.rel (%p865) target = $region84
      $region83: #{flexinet_forward.1} parent=11 // pred_region
        _
      $region84: #{flexinet_forward.1} parent=11 // pred_fallthru
        _
      // Predicated region
      $region85: #{flexinet_forward.1} parent=11 // pred_check
        %p868 = pneg %p500
      $region86: #{flexinet_forward.1} parent=11 // pred_check_branch
        %870 = sbr.rel (%p868) target = $region88
      $region87: #{flexinet_forward.1} parent=11 // pred_region
        _
      $region88: #{flexinet_forward.1} parent=11 // pred_fallthru
        _
      // Predicated region
      $region89: #{flexinet_forward.1} parent=11 // pred_check
        %p871 = pneg %p521
      $region90: #{flexinet_forward.1} parent=11 // pred_check_branch
        %873 = sbr.rel (%p871) target = $region92
      $region91: #{flexinet_forward.1} parent=11 // pred_region
        _
      $region92: #{flexinet_forward.1} parent=11 // pred_fallthru
        _
      // Predicated region
      $region93: #{flexinet_forward.1} parent=11 // pred_check
        %p874 = pneg %p542
      $region94: #{flexinet_forward.1} parent=11 // pred_check_branch
        %876 = sbr.rel (%p874) target = $region96
      $region95: #{flexinet_forward.1} parent=11 // pred_region
        _
      $region96: #{flexinet_forward.1} parent=11 // pred_fallthru
        _
      // Predicated region
      $region97: #{flexinet_forward.1} parent=11 // pred_check
        %p877 = pneg %p563
      $region98: #{flexinet_forward.1} parent=11 // pred_check_branch
        %879 = sbr.rel (%p877) target = $region100
      $region99: #{flexinet_forward.1} parent=11 // pred_region
        _
      $region100: #{flexinet_forward.1} parent=11 // pred_fallthru
        _
      // Predicated region
      $region101: #{flexinet_forward.1} parent=11 // pred_check
        %p880 = pneg %p584
      $region102: #{flexinet_forward.1} parent=11 // pred_check_branch
        %882 = sbr.rel (%p880) target = $region104
      $region103: #{flexinet_forward.1} parent=11 // pred_region
        _
      $region104: #{flexinet_forward.1} parent=11 // pred_fallthru
        _
      // Predicated region
      $region105: #{flexinet_forward.1} parent=11 // pred_check
        %p883 = pneg %p605
      $region106: #{flexinet_forward.1} parent=11 // pred_check_branch
        %885 = sbr.rel (%p883) target = $region108
      $region107: #{flexinet_forward.1} parent=11 // pred_region
        _
      $region108: #{flexinet_forward.1} parent=11 // pred_fallthru
        _
      // Predicated region
      $region109: #{flexinet_forward.1} parent=11 // pred_check
        %p886 = pneg %p626
      $region110: #{flexinet_forward.1} parent=11 // pred_check_branch
        %888 = sbr.rel (%p886) target = $region112
      $region111: #{flexinet_forward.1} parent=11 // pred_region
        _
      $region112: #{flexinet_forward.1} parent=11 // pred_fallthru
        _
      // Predicated region
      $region113: #{flexinet_forward.1} parent=11 // pred_check
        %p889 = pneg %p647
      $region114: #{flexinet_forward.1} parent=11 // pred_check_branch
        %891 = sbr.rel (%p889) target = $region116
      $region115: #{flexinet_forward.1} parent=11 // pred_region
        _
      $region116: #{flexinet_forward.1} parent=11 // pred_fallthru
        _
      // Predicated region
      $region117: #{flexinet_forward.1} parent=11 // pred_check
        %p892 = pneg %p668
      $region118: #{flexinet_forward.1} parent=11 // pred_check_branch
        %894 = sbr.rel (%p892) target = $region120
      $region119: #{flexinet_forward.1} parent=11 // pred_region
        _
      $region120: #{flexinet_forward.1} parent=11 // pred_fallthru
        _
      // Predicated region
      $region121: #{flexinet_forward.1} parent=11 // pred_check
        %p895 = pneg %p689
      $region122: #{flexinet_forward.1} parent=11 // pred_check_branch
        %897 = sbr.rel (%p895) target = $region124
      $region123: #{flexinet_forward.1} parent=11 // pred_region
        _
      $region124: #{flexinet_forward.1} parent=11 // pred_fallthru
        _
      // Predicated region
      $region125: #{flexinet_forward.1} parent=11 // pred_check
        %p898 = pneg %p710
      $region126: #{flexinet_forward.1} parent=11 // pred_check_branch
        %900 = sbr.rel (%p898) target = $region128
      $region127: #{flexinet_forward.1} parent=11 // pred_region
        _
      $region128: #{flexinet_forward.1} parent=11 // pred_fallthru
        _
      // Predicated region
      $region129: #{flexinet_forward.1} parent=11 // pred_check
        %p901 = pneg %p731
      $region130: #{flexinet_forward.1} parent=11 // pred_check_branch
        %903 = sbr.rel (%p901) target = $region132
      $region131: #{flexinet_forward.1} parent=11 // pred_region
        _
      $region132: #{flexinet_forward.1} parent=11 // pred_fallthru
        _
      // Predicated region
      $region133: #{flexinet_forward.1} parent=11 // pred_check
        %p904 = pneg %p752
      $region134: #{flexinet_forward.1} parent=11 // pred_check_branch
        %906 = sbr.rel (%p904) target = $region136
      $region135: #{flexinet_forward.1} parent=11 // pred_region
        _
      $region136: #{flexinet_forward.1} parent=11 // pred_fallthru
        _
      // Predicated region
      $region137: #{flexinet_forward.1} parent=11 // pred_check
        %p907 = pneg %p773
      $region138: #{flexinet_forward.1} parent=11 // pred_check_branch
        %909 = sbr.rel (%p907) target = $region140
      $region139: #{flexinet_forward.1} parent=11 // pred_region
        _
      $region140: #{flexinet_forward.1} parent=11 // pred_fallthru
        _
    $region12: #{flexinet_forward.1} parent=5 // pred_fallthru
      _
    %p910 = scmp.lt.s32.totalorder %s75, 2
    // Predicated region
    $region141: #{flexinet_forward.1} parent=5 // pred_check
      %p911 = pneg %p910
    $region142: #{flexinet_forward.1} parent=5 // pred_check_branch
      %913 = sbr.rel (%p911) target = $region144
    $region143: #{flexinet_forward.1} parent=5 // pred_region
      // Predicated region
      $region145: #{flexinet_forward.1} parent=143 // pred_check
        %p914 = pneg %p95
      $region146: #{flexinet_forward.1} parent=143 // pred_check_branch
        %916 = sbr.rel (%p914) target = $region148
      $region147: #{flexinet_forward.1} parent=143 // pred_region
        %p917 = scmp.lt.s32.totalorder %s75, 1
        %s918 = scalar_select %p917, %s75, 1
        %s919 = smul.addr %s918, 2
        %s920 = smul.addr %s919, 4
        %s921 = scalar_lea.vmem %s1, %s920
      $region148: #{flexinet_forward.1} parent=143 // pred_fallthru
        _
    $region144: #{flexinet_forward.1} parent=5 // pred_fallthru
      _
    %p922 = scmp.le.s32.totalorder 1, %s75
    %p923 = scmp.lt.s32.totalorder %s75, 3
    %p924 = pnand %p922, %p923
    %p925 = pneg %p924
    // Predicated region
    $region149: #{flexinet_forward.1} parent=5 // pred_check
      _
    $region150: #{flexinet_forward.1} parent=5 // pred_check_branch
      %927 = sbr.rel (%p924) target = $region152
    $region151: #{flexinet_forward.1} parent=5 // pred_region
      %s928 = ssub.s32 %s75, 1
      %p929 = scmp.lt.s32.totalorder %s80, 1
      %s930 = scalar_select %p929, %s80, 1
      %s931 = smul.addr %s930, 2
      %s932 = smul.addr %s931, 4
      %s933 = scalar_lea.vmem %s1, %s932
      %p934 = pneg %p101
      %p935 = pneg %p98
      %p936 = pneg %p122
      %p937 = pneg %p119
      %p938 = pneg %p143
      %p939 = pneg %p140
      %p940 = pneg %p164
      %p941 = pneg %p161
      %p942 = pneg %p185
      %p943 = pneg %p182
      %p944 = pneg %p206
      %p945 = pneg %p203
      %p946 = pneg %p227
      %p947 = pneg %p224
      %p948 = pneg %p248
      %p949 = pneg %p245
      %p950 = pneg %p269
      %p951 = pneg %p266
      %p952 = pneg %p290
      %p953 = pneg %p287
      %p954 = pneg %p311
      %p955 = pneg %p308
      %p956 = pneg %p332
      %p957 = pneg %p329
      %p958 = pneg %p353
      %p959 = pneg %p350
      %p960 = pneg %p374
      %p961 = pneg %p371
      %p962 = pneg %p395
      %p963 = pneg %p392
      %p964 = pneg %p416
      %p965 = pneg %p413
      %p966 = pneg %p437
      %p967 = pneg %p434
      %p968 = pneg %p458
      %p969 = pneg %p455
      %p970 = pneg %p479
      %p971 = pneg %p476
      %p972 = pneg %p500
      %p973 = pneg %p497
      %p974 = pneg %p521
      %p975 = pneg %p518
      %p976 = pneg %p542
      %p977 = pneg %p539
      %p978 = pneg %p563
      %p979 = pneg %p560
      %p980 = pneg %p584
      %p981 = pneg %p581
      %p982 = pneg %p605
      %p983 = pneg %p602
      %p984 = pneg %p626
      %p985 = pneg %p623
      %p986 = pneg %p647
      %p987 = pneg %p644
      %p988 = pneg %p668
      %p989 = pneg %p665
      %p990 = pneg %p689
      %p991 = pneg %p686
      %p992 = pneg %p710
      %p993 = pneg %p707
      %p994 = pneg %p731
      %p995 = pneg %p728
      %p996 = pneg %p752
      %p997 = pneg %p749
      %p998 = pneg %p773
      %p999 = pneg %p770
      %p1000 = pneg %p799
      %p1001 = pneg %p796
      %p1002 = scmp.lt.s32.totalorder %s80, 1
      %s1003 = scalar_select %p1002, %s80, 1
      %s1004 = smul.addr %s1003, 2
      %s1005 = scalar_lea.vmem %s67, %s1004
      %p1006 = scmp.lt.s32.totalorder %s80, 1
      %s1007 = scalar_select %p1006, %s80, 1
      %s1008 = smul.addr %s1007, 2
      %s1009 = smul.addr %s1008, 4
      %s1010 = scalar_lea.vmem %s1, %s1009
      %p1011 = scmp.lt.s32.totalorder %s80, 1
      %s1012 = scalar_select %p1011, %s80, 1
      %s1013 = smul.addr %s1012, 2
      %s1014 = scalar_lea.vmem %s67, %s1013
      %v1015 = vlaneseq
      %v1016 = vand.u32 %v1015, 127
      %v1017 = vadd.s32 %v1016, 128
      %vm1018 = vcmp.lt.s32.totalorder %v1016, 0
      %v1019 = vsub.s32 0, %v1016
      %v1020 = vsel %vm1018, %v1019, %v1016
      %v1021 = vshrl.u32 %v1020, 4
      %v1022 = vand.u32 %v1020, 15
      %v1023 = vsub.s32 0, %v1022
      %v1024 = vsel %vm1018, %v1023, %v1022
      %vm1025 = vcmp.lt.s32.totalorder %v1017, 0
      %v1026 = vsub.s32 0, %v1017
      %v1027 = vsel %vm1025, %v1026, %v1017
      %v1028 = vshrl.u32 %v1027, 4
      %v1029 = vand.u32 %v1027, 15
      %v1030 = vsub.s32 0, %v1029
      %v1031 = vsel %vm1025, %v1030, %v1029
      %vm1032 = vcmp.ne.s32.totalorder %v1024, 0
      %vm1033 = vcmp.ne.s32.totalorder %v1031, 0
      %vm1034 = vcmp.lt.s32.totalorder %v1024, 0
      %vm1035 = vcmp.lt.s32.totalorder %v1031, 0
      %vm1036 = vmand %vm1034, %vm1032
      %vm1037 = vmand %vm1035, %vm1033
      %v1038 = vadd.s32 %v1024, 16
      %v1039 = vadd.s32 %v1031, 16
      %v1040 = vsel %vm1036, %v1038, %v1024
      %v1041 = vsel %vm1037, %v1039, %v1031
      %vm1042 = vcmp.eq.s32.totalorder %v1040, 0
      %vm1043 = vcmp.eq.s32.totalorder %v1041, 0
      %vm1044 = vcmp.eq.s32.totalorder %v1040, 15
      %vm1045 = vcmp.eq.s32.totalorder %v1041, 15
      %vm1046 = vcmp.lt.s32.totalorder %v1016, 0
      %v1047 = vsub.s32 0, %v1016
      %v1048 = vsel %vm1046, %v1047, %v1016
      %v1049 = vshrl.u32 %v1048, 3
      %v1050 = vand.u32 %v1048, 7
      %v1051 = vsub.s32 0, %v1050
      %v1052 = vsel %vm1046, %v1051, %v1050
      %vm1053 = vcmp.ne.s32.totalorder %v1052, 0
      %vm1054 = vcmp.lt.s32.totalorder %v1052, 0
      %vm1055 = vmand %vm1054, %vm1053
      %v1056 = vadd.s32 %v1052, 8
      %v1057 = vsel %vm1055, %v1056, %v1052
      %vm1058 = vcmp.eq.s32.totalorder %v1057, 0
      %vm1059 = vcmp.eq.s32.totalorder %v1057, 7
      %vm1060 = vcmp.lt.s32.totalorder %v1016, 0
      %v1061 = vsub.s32 0, %v1016
      %v1062 = vsel %vm1060, %v1061, %v1016
      %v1063 = vshrl.u32 %v1062, 2
      %v1064 = vand.u32 %v1062, 3
      %v1065 = vsub.s32 0, %v1064
      %v1066 = vsel %vm1060, %v1065, %v1064
      %vm1067 = vcmp.ne.s32.totalorder %v1066, 0
      %vm1068 = vcmp.lt.s32.totalorder %v1066, 0
      %vm1069 = vmand %vm1068, %vm1067
      %v1070 = vadd.s32 %v1066, 4
      %v1071 = vsel %vm1069, %v1070, %v1066
      %vm1072 = vcmp.eq.s32.totalorder %v1071, 0
      %vm1073 = vcmp.eq.s32.totalorder %v1071, 3
      %v1074 = vld [vmem:[%s1010] sm:$0xff]
      %1075 = vst [vmem:[#allocation2] sm:$0xff] 0.0
      %1076 = vst [vmem:[#allocation2 + $0x8] sm:$0xff] 0.0
      %1077 = vst [vmem:[#allocation2 + $0x10] sm:$0xff] 0.0
      %vm1078 = vcmask 138240
      %1079 = vst.msk [vmem:[#allocation2 + $0x18] sm:$0xff] %vm1078, 0.0
      %1080 = vst [vmem:[#allocation2 + $0x20] sm:$0xff] 0.0
      %1081 = vst [vmem:[#allocation2 + $0x28] sm:$0xff] 0.0
      %1082 = vst [vmem:[#allocation2 + $0x30] sm:$0xff] 0.0
      %1083 = vst.msk [vmem:[#allocation2 + $0x38] sm:$0xff] %vm1078, 0.0
      %v1085 = vcombine.high %v1074, %v1074
      %1087 = vst [vmem:[#allocation2 + $0x8] sm:$0xf] %v1074
      %1088 = vst [vmem:[#allocation2 + $0x10] sm:$0xf] %v1085
      %v1089 = vld [vmem:[#allocation2] sm:$0xf]
      %v1090 = vld [vmem:[#allocation2 + $0x8] sm:$0xf]
      %v1091 = vld [vmem:[#allocation2 + $0x10] sm:$0xf]
      %v1092 = vsel %vm1042, 1, 0
      %v1093 = vsel %vm1043, 1, 0
      %vm1094 = vcmp.eq.s32.totalorder %v1092, 1
      %vm1095 = vcmp.eq.s32.totalorder %v1093, 1
      %1099 = vrot.lane.b32.xlu0 %v1089, 17
      %v1100 = vpop.permute.xlu0 %1099
      %1101 = vrot.lane.b32.xlu0 %v1090, 17
      %v1102 = vpop.permute.xlu0 %1101
      %1103 = vrot.lane.b32.xlu0 %v1091, 17
      %v1104 = vpop.permute.xlu0 %1103
      %v1105 = vsel %vm1078, %v1100, %v1102
      %v1106 = vsel %vm1078, %v1102, %v1104
      %v1109 = vsel %vm1094, 0.0, %v1105
      %v1110 = vsel %vm1095, 0.0, %v1106
      %1111 = vst [vmem:[#allocation3] sm:$0xf] %v1109
      %1112 = vst [vmem:[#allocation3 + $0x8] sm:$0xf] %v1110
      %v1113 = vld [vmem:[#allocation2] sm:$0xf]
      %v1114 = vld [vmem:[#allocation2 + $0x8] sm:$0xf]
      %v1115 = vld [vmem:[#allocation2 + $0x10] sm:$0xf]
      %v1119 = vrot.slane %v1113, 4
      %v1120 = vrot.slane %v1114, 4
      %v1121 = vrot.slane %v1115, 4
      %1122 = vrot.lane.b32.xlu0 %v1119, 16
      %v1123 = vpop.permute.xlu0 %1122
      %1124 = vrot.lane.b32.xlu0 %v1120, 16
      %v1125 = vpop.permute.xlu0 %1124
      %1126 = vrot.lane.b32.xlu0 %v1121, 16
      %v1127 = vpop.permute.xlu0 %1126
      %vm1128 = vcmask 130048
      %v1129 = vsel %vm1128, %v1123, %v1125
      %v1130 = vsel %vm1128, %v1125, %v1127
      %1133 = vst [vmem:[#allocation3] sm:$0xf0] %v1129
      %1134 = vst [vmem:[#allocation3 + $0x8] sm:$0xf0] %v1130
      %v1135 = vld [vmem:[#allocation2] sm:$0xf]
      %v1136 = vld [vmem:[#allocation2 + $0x8] sm:$0xf]
      %v1137 = vld [vmem:[#allocation2 + $0x10] sm:$0xf]
      %v1138 = vsel %vm1044, 1, 0
      %v1139 = vsel %vm1045, 1, 0
      %vm1140 = vcmp.eq.s32.totalorder %v1138, 1
      %vm1141 = vcmp.eq.s32.totalorder %v1139, 1
      %1145 = vrot.lane.b32.xlu0 %v1135, 15
      %v1146 = vpop.permute.xlu0 %1145
      %1147 = vrot.lane.b32.xlu0 %v1136, 15
      %v1148 = vpop.permute.xlu0 %1147
      %1149 = vrot.lane.b32.xlu0 %v1137, 15
      %v1150 = vpop.permute.xlu0 %1149
      %vm1151 = vcmask 121856
      %v1152 = vsel %vm1151, %v1146, %v1148
      %v1153 = vsel %vm1151, %v1148, %v1150
      %v1156 = vsel %vm1140, 0.0, %v1152
      %v1157 = vsel %vm1141, 0.0, %v1153
      %1158 = vst [vmem:[#allocation3 + $0x10] sm:$0xf] %v1156
      %1159 = vst [vmem:[#allocation3 + $0x18] sm:$0xf] %v1157
      %v1160 = vld [vmem:[#allocation2] sm:$0xf]
      %v1161 = vld [vmem:[#allocation2 + $0x8] sm:$0xf]
      %v1162 = vld [vmem:[#allocation2 + $0x10] sm:$0xf]
      %1166 = vrot.lane.b32.xlu0 %v1160, 1
      %v1167 = vpop.permute.xlu0 %1166
      %1168 = vrot.lane.b32.xlu0 %v1161, 1
      %v1169 = vpop.permute.xlu0 %1168
      %1170 = vrot.lane.b32.xlu0 %v1162, 1
      %v1171 = vpop.permute.xlu0 %1170
      %vm1172 = vcmask 7168
      %v1173 = vsel %vm1172, %v1167, %v1169
      %v1174 = vsel %vm1172, %v1169, %v1171
      %v1177 = vsel %vm1094, 0.0, %v1173
      %v1178 = vsel %vm1095, 0.0, %v1174
      %v1181 = vrot.slane %v1177, 4
      %v1182 = vrot.slane %v1178, 4
      %1185 = vst [vmem:[#allocation3 + $0x10] sm:$0xf0] %v1181
      %1186 = vst [vmem:[#allocation3 + $0x18] sm:$0xf0] %v1182
      %v1187 = vld [vmem:[#allocation2 + $0x8] sm:$0xf]
      %v1188 = vld [vmem:[#allocation2 + $0x10] sm:$0xf]
      %1189 = vst [vmem:[#allocation3 + $0x20] sm:$0xf] %v1187
      %1190 = vst [vmem:[#allocation3 + $0x28] sm:$0xf] %v1188
      %v1191 = vld [vmem:[#allocation2 + $0x8] sm:$0xf]
      %v1192 = vld [vmem:[#allocation2 + $0x10] sm:$0xf]
      %v1193 = vld [vmem:[#allocation2 + $0x18] sm:$0xf]
      %1197 = vrot.lane.b32.xlu0 %v1191, 127
      %v1198 = vpop.permute.xlu0 %1197
      %1199 = vrot.lane.b32.xlu0 %v1192, 127
      %v1200 = vpop.permute.xlu0 %1199
      %1201 = vrot.lane.b32.xlu0 %v1193, 127
      %v1202 = vpop.permute.xlu0 %1201
      %vm1203 = vcmask 1039360
      %v1204 = vsel %vm1203, %v1198, %v1200
      %v1205 = vsel %vm1203, %v1200, %v1202
      %v1208 = vsel %vm1140, 0.0, %v1204
      %v1209 = vsel %vm1141, 0.0, %v1205
      %v1212 = vrot.slane %v1208, 4
      %v1213 = vrot.slane %v1209, 4
      %1216 = vst [vmem:[#allocation3 + $0x20] sm:$0xf0] %v1212
      %1217 = vst [vmem:[#allocation3 + $0x28] sm:$0xf0] %v1213
      %v1218 = vld [vmem:[#allocation2 + $0x8] sm:$0xf]
      %v1219 = vld [vmem:[#allocation2 + $0x10] sm:$0xf]
      %v1220 = vld [vmem:[#allocation2 + $0x18] sm:$0xf]
      %1224 = vrot.lane.b32.xlu0 %v1218, 113
      %v1225 = vpop.permute.xlu0 %1224
      %1226 = vrot.lane.b32.xlu0 %v1219, 113
      %v1227 = vpop.permute.xlu0 %1226
      %1228 = vrot.lane.b32.xlu0 %v1220, 113
      %v1229 = vpop.permute.xlu0 %1228
      %vm1230 = vcmask 924672
      %v1231 = vsel %vm1230, %v1225, %v1227
      %v1232 = vsel %vm1230, %v1227, %v1229
      %v1235 = vsel %vm1094, 0.0, %v1231
      %v1236 = vsel %vm1095, 0.0, %v1232
      %1237 = vst [vmem:[#allocation3 + $0x30] sm:$0xf] %v1235
      %1238 = vst [vmem:[#allocation3 + $0x38] sm:$0xf] %v1236
      %v1239 = vld [vmem:[#allocation2 + $0x8] sm:$0xf]
      %v1240 = vld [vmem:[#allocation2 + $0x10] sm:$0xf]
      %v1241 = vld [vmem:[#allocation2 + $0x18] sm:$0xf]
      %v1245 = vrot.slane %v1239, 4
      %v1246 = vrot.slane %v1240, 4
      %v1247 = vrot.slane %v1241, 4
      %1248 = vrot.lane.b32.xlu0 %v1245, 112
      %v1249 = vpop.permute.xlu0 %1248
      %1250 = vrot.lane.b32.xlu0 %v1246, 112
      %v1251 = vpop.permute.xlu0 %1250
      %1252 = vrot.lane.b32.xlu0 %v1247, 112
      %v1253 = vpop.permute.xlu0 %1252
      %vm1254 = vcmask 916480
      %v1255 = vsel %vm1254, %v1249, %v1251
      %v1256 = vsel %vm1254, %v1251, %v1253
      %1259 = vst [vmem:[#allocation3 + $0x30] sm:$0xf0] %v1255
      %1260 = vst [vmem:[#allocation3 + $0x38] sm:$0xf0] %v1256
      %v1261 = vld [vmem:[#allocation2 + $0x8] sm:$0xf]
      %v1262 = vld [vmem:[#allocation2 + $0x10] sm:$0xf]
      %v1263 = vld [vmem:[#allocation2 + $0x18] sm:$0xf]
      %1267 = vrot.lane.b32.xlu0 %v1261, 111
      %v1268 = vpop.permute.xlu0 %1267
      %1269 = vrot.lane.b32.xlu0 %v1262, 111
      %v1270 = vpop.permute.xlu0 %1269
      %1271 = vrot.lane.b32.xlu0 %v1263, 111
      %v1272 = vpop.permute.xlu0 %1271
      %vm1273 = vcmask 908288
      %v1274 = vsel %vm1273, %v1268, %v1270
      %v1275 = vsel %vm1273, %v1270, %v1272
      %v1278 = vsel %vm1140, 0.0, %v1274
      %v1279 = vsel %vm1141, 0.0, %v1275
      %1280 = vst [vmem:[#allocation3 + $0x40] sm:$0xf] %v1278
      %1281 = vst [vmem:[#allocation3 + $0x48] sm:$0xf] %v1279
      %v1282 = vld [vmem:[%s3] sm:$0xff]
      %v1283 = vld [vmem:[#allocation3] sm:$0xff]
      %v1284 = vld [vmem:[#allocation3 + $0x8] sm:$0xff]
      %v1285 = vld [vmem:[#allocation3 + $0x10] sm:$0xff]
      %v1286 = vld [vmem:[#allocation3 + $0x18] sm:$0xff]
      %v1287 = vld [vmem:[#allocation3 + $0x20] sm:$0xff]
      %v1288 = vld [vmem:[#allocation3 + $0x28] sm:$0xff]
      %v1289 = vld [vmem:[#allocation3 + $0x30] sm:$0xff]
      %v1290 = vld [vmem:[#allocation3 + $0x38] sm:$0xff]
      %v1291 = vld [vmem:[#allocation3 + $0x40] sm:$0xf]
      %v1292 = vld [vmem:[#allocation3 + $0x48] sm:$0xf]
      %v1293 = vld [vmem:[%s5] sm:$0xff]
      %1295 = vset.pattern.permute.xlu0 0
      %1296 = vperm.xlu0 %1295, %v1293
      %v1297 = vpop.permute.xlu0 %1296
      %vm1299 = vcmask 293888
      %v1301 = vsel %vm1299, %v1282, 0
      %vm1303 = vcmask 1043456
      %v1305 = vsel %vm1303, %v1291, 0
      %v1308 = vsel %vm1303, %v1292, 0
      %1310 = vmatprep.subr.mxu0 %v1284
      %1311 = vmatpush1.msra.mxu0 %v1283
      %1312 = vmatprep.subr.mxu0 %v1286
      %1313 = vmatpush1.msra.mxu0 %v1285
      %1314 = vmatprep.subr.mxu0 %v1288
      %1315 = vmatpush1.msra.mxu0 %v1287
      %1316 = vmatprep.subr.mxu0 %v1290
      %1317 = vmatpush1.msra.mxu0 %v1289
      %1318 = vmatprep.subr.mxu0 %v1308
      %1319 = vmatpush1.msra.mxu0 %v1305
      %1320 = vmatprep.subr.mxu0 0.0
      %1321 = vmatpush1.msra.mxu0 0.0
      %1322 = vmatprep.subr.mxu0 0.0
      %1323 = vmatpush1.msra.mxu0 0.0
      %1324 = vmatprep.subr.mxu0 0.0
      %1325 = vmatpush1.msra.mxu0 0.0
      %1326 = vmatprep.subr.mxu0 0.0
      %1327 = vmatpush1.msra.mxu0 0.0
      %1328 = vmatprep.subr.mxu0 0.0
      %1329 = vmatpush1.msra.mxu0 0.0
      %1330 = vmatprep.subr.mxu0 0.0
      %1331 = vmatpush1.msra.mxu0 0.0
      %1332 = vmatprep.subr.mxu0 0.0
      %1333 = vmatpush1.msra.mxu0 0.0
      %1334 = vmatprep.subr.mxu0 0.0
      %1335 = vmatpush1.msra.mxu0 0.0
      %1336 = vmatprep.subr.mxu0 0.0
      %1337 = vmatpush1.msra.mxu0 0.0
      %1338 = vmatprep.subr.mxu0 0.0
      %1339 = vmatpush1.msra.mxu0 0.0
      %1340 = vmatprep.subr.mxu0 0.0
      %1341 = vmatpush1.msra.mxu0 0.0
      %1342 = vmatprep.subr.mxu0 0.0
      %1343 = vmatpush1.msra.mxu0 0.0
      %1344 = vmatprep.subr.mxu0 0.0
      %1345 = vmatpush1.msra.mxu0 0.0
      %1346 = vmatprep.subr.mxu0 0.0
      %1347 = vmatpush1.msra.mxu0 0.0
      %1348 = vmatprep.subr.mxu0 0.0
      %1349 = vmatpush1.msra.mxu0 0.0
      %1350 = vmatprep.subr.mxu0 0.0
      %1351 = vmatpush1.msra.mxu0 0.0
      %1352 = vmatprep.subr.mxu0 0.0
      %1353 = vmatpush1.msra.mxu0 0.0
      %1354 = vmatprep.subr.mxu0 0.0
      %1355 = vmatpush1.msra.mxu0 0.0
      %1356 = vmatprep.subr.mxu0 0.0
      %1357 = vmatpush1.msra.mxu0 0.0
      %1358 = vmatprep.subr.mxu0 0.0
      %1359 = vmatpush1.msra.mxu0 0.0
      %1360 = vmatprep.subr.mxu0 0.0
      %1361 = vmatpush1.msra.mxu0 0.0
      %1362 = vmatprep.subr.mxu0 0.0
      %1363 = vmatpush1.msra.mxu0 0.0
      %1364 = vmatprep.subr.mxu0 0.0
      %1365 = vmatpush1.msra.mxu0 0.0
      %1366 = vmatprep.subr.mxu0 0.0
      %1367 = vmatpush1.msra.mxu0 0.0
      %1368 = vmatprep.subr.mxu0 0.0
      %1369 = vmatpush1.msra.mxu0 0.0
      %1370 = vmatprep.subr.mxu0 0.0
      %1371 = vmatpush1.msra.mxu0 0.0
      %1372 = vmatprep.subr.mxu0 0.0
      %1373 = vmatpush1.msra.mxu0 0.0
      %1374 = vmatprep.mubr.f32.mxu0 0.0
      %1375 = vmatmul.mubr.f32.gmra.mrb[0].mxu0 %v1301
      %v1376 = vpop.f32.mrb[0].mxu0
      %v1377 = vadd.f32 %v1297, %v1376
      %v1378 = vpop.f32.mrb[0].mxu0
      %v1379 = vadd.f32 %v1297, %v1378
      %1380 = vdwg.mxu0
      %v1381 = vmax.f32 %v1377, 0.0
      %v1382 = vmax.f32 %v1379, 0.0
      %1383 = vst [vmem:[#allocation2 + $0x8] sm:$0xff] %v1381
      %1384 = vst [vmem:[#allocation2 + $0x10] sm:$0xff] %v1382
      %v1385 = vld [vmem:[#allocation2] sm:$0xff]
      %v1386 = vld [vmem:[#allocation2 + $0x8] sm:$0xff]
      %v1387 = vld [vmem:[#allocation2 + $0x10] sm:$0xff]
      %1391 = vrot.lane.b32.xlu0 %v1385, 17
      %v1392 = vpop.permute.xlu0 %1391
      %1393 = vrot.lane.b32.xlu0 %v1386, 17
      %v1394 = vpop.permute.xlu0 %1393
      %1395 = vrot.lane.b32.xlu0 %v1387, 17
      %v1396 = vpop.permute.xlu0 %1395
      %v1397 = vsel %vm1078, %v1392, %v1394
      %v1398 = vsel %vm1078, %v1394, %v1396
      %v1401 = vsel %vm1094, 0.0, %v1397
      %v1402 = vsel %vm1095, 0.0, %v1398
      %1403 = vst [vmem:[#allocation3] sm:$0xff] %v1401
      %1404 = vst [vmem:[#allocation3 + $0x8] sm:$0xff] %v1402
      %v1405 = vld [vmem:[#allocation2] sm:$0xff]
      %v1406 = vld [vmem:[#allocation2 + $0x8] sm:$0xff]
      %v1407 = vld [vmem:[#allocation2 + $0x10] sm:$0xff]
      %1411 = vrot.lane.b32.xlu0 %v1405, 16
      %v1412 = vpop.permute.xlu0 %1411
      %1413 = vrot.lane.b32.xlu0 %v1406, 16
      %v1414 = vpop.permute.xlu0 %1413
      %1415 = vrot.lane.b32.xlu0 %v1407, 16
      %v1416 = vpop.permute.xlu0 %1415
      %v1417 = vsel %vm1128, %v1412, %v1414
      %v1418 = vsel %vm1128, %v1414, %v1416
      %1421 = vst [vmem:[#allocation3 + $0x10] sm:$0xff] %v1417
      %1422 = vst [vmem:[#allocation3 + $0x18] sm:$0xff] %v1418
      %v1423 = vld [vmem:[#allocation2] sm:$0xff]
      %v1424 = vld [vmem:[#allocation2 + $0x8] sm:$0xff]
      %v1425 = vld [vmem:[#allocation2 + $0x10] sm:$0xff]
      %1429 = vrot.lane.b32.xlu0 %v1423, 15
      %v1430 = vpop.permute.xlu0 %1429
      %1431 = vrot.lane.b32.xlu0 %v1424, 15
      %v1432 = vpop.permute.xlu0 %1431
      %1433 = vrot.lane.b32.xlu0 %v1425, 15
      %v1434 = vpop.permute.xlu0 %1433
      %v1435 = vsel %vm1151, %v1430, %v1432
      %v1436 = vsel %vm1151, %v1432, %v1434
      %v1439 = vsel %vm1140, 0.0, %v1435
      %v1440 = vsel %vm1141, 0.0, %v1436
      %1441 = vst [vmem:[#allocation3 + $0x20] sm:$0xff] %v1439
      %1442 = vst [vmem:[#allocation3 + $0x28] sm:$0xff] %v1440
      %v1443 = vld [vmem:[#allocation2] sm:$0xff]
      %v1444 = vld [vmem:[#allocation2 + $0x8] sm:$0xff]
      %v1445 = vld [vmem:[#allocation2 + $0x10] sm:$0xff]
      %1449 = vrot.lane.b32.xlu0 %v1443, 1
      %v1450 = vpop.permute.xlu0 %1449
      %1451 = vrot.lane.b32.xlu0 %v1444, 1
      %v1452 = vpop.permute.xlu0 %1451
      %1453 = vrot.lane.b32.xlu0 %v1445, 1
      %v1454 = vpop.permute.xlu0 %1453
      %v1455 = vsel %vm1172, %v1450, %v1452
      %v1456 = vsel %vm1172, %v1452, %v1454
      %v1459 = vsel %vm1094, 0.0, %v1455
      %v1460 = vsel %vm1095, 0.0, %v1456
      %1461 = vst [vmem:[#allocation3 + $0x30] sm:$0xff] %v1459
      %1462 = vst [vmem:[#allocation3 + $0x38] sm:$0xff] %v1460
      %v1463 = vld [vmem:[#allocation2 + $0x8] sm:$0xff]
      %v1464 = vld [vmem:[#allocation2 + $0x10] sm:$0xff]
      %1465 = vst [vmem:[#allocation3 + $0x40] sm:$0xff] %v1463
      %1466 = vst [vmem:[#allocation3 + $0x48] sm:$0xff] %v1464
      %v1467 = vld [vmem:[#allocation2 + $0x8] sm:$0xff]
      %v1468 = vld [vmem:[#allocation2 + $0x10] sm:$0xff]
      %v1469 = vld [vmem:[#allocation2 + $0x18] sm:$0xff]
      %1473 = vrot.lane.b32.xlu0 %v1467, 127
      %v1474 = vpop.permute.xlu0 %1473
      %1475 = vrot.lane.b32.xlu0 %v1468, 127
      %v1476 = vpop.permute.xlu0 %1475
      %1477 = vrot.lane.b32.xlu0 %v1469, 127
      %v1478 = vpop.permute.xlu0 %1477
      %v1479 = vsel %vm1203, %v1474, %v1476
      %v1480 = vsel %vm1203, %v1476, %v1478
      %v1483 = vsel %vm1140, 0.0, %v1479
      %v1484 = vsel %vm1141, 0.0, %v1480
      %1485 = vst [vmem:[#allocation3 + $0x50] sm:$0xff] %v1483
      %1486 = vst [vmem:[#allocation3 + $0x58] sm:$0xff] %v1484
      %v1487 = vld [vmem:[#allocation2 + $0x8] sm:$0xff]
      %v1488 = vld [vmem:[#allocation2 + $0x10] sm:$0xff]
      %v1489 = vld [vmem:[#allocation2 + $0x18] sm:$0xff]
      %1493 = vrot.lane.b32.xlu0 %v1487, 113
      %v1494 = vpop.permute.xlu0 %1493
      %1495 = vrot.lane.b32.xlu0 %v1488, 113
      %v1496 = vpop.permute.xlu0 %1495
      %1497 = vrot.lane.b32.xlu0 %v1489, 113
      %v1498 = vpop.permute.xlu0 %1497
      %v1499 = vsel %vm1230, %v1494, %v1496
      %v1500 = vsel %vm1230, %v1496, %v1498
      %v1503 = vsel %vm1094, 0.0, %v1499
      %v1504 = vsel %vm1095, 0.0, %v1500
      %1505 = vst [vmem:[#allocation3 + $0x60] sm:$0xff] %v1503
      %1506 = vst [vmem:[#allocation3 + $0x68] sm:$0xff] %v1504
      %v1507 = vld [vmem:[#allocation2 + $0x8] sm:$0xff]
      %v1508 = vld [vmem:[#allocation2 + $0x10] sm:$0xff]
      %v1509 = vld [vmem:[#allocation2 + $0x18] sm:$0xff]
      %1513 = vrot.lane.b32.xlu0 %v1507, 112
      %v1514 = vpop.permute.xlu0 %1513
      %1515 = vrot.lane.b32.xlu0 %v1508, 112
      %v1516 = vpop.permute.xlu0 %1515
      %1517 = vrot.lane.b32.xlu0 %v1509, 112
      %v1518 = vpop.permute.xlu0 %1517
      %v1519 = vsel %vm1254, %v1514, %v1516
      %v1520 = vsel %vm1254, %v1516, %v1518
      %1523 = vst [vmem:[#allocation3 + $0x70] sm:$0xff] %v1519
      %1524 = vst [vmem:[#allocation3 + $0x78] sm:$0xff] %v1520
      %v1525 = vld [vmem:[#allocation2 + $0x8] sm:$0xff]
      %v1526 = vld [vmem:[#allocation2 + $0x10] sm:$0xff]
      %v1527 = vld [vmem:[#allocation2 + $0x18] sm:$0xff]
      %1531 = vrot.lane.b32.xlu0 %v1525, 111
      %v1532 = vpop.permute.xlu0 %1531
      %1533 = vrot.lane.b32.xlu0 %v1526, 111
      %v1534 = vpop.permute.xlu0 %1533
      %1535 = vrot.lane.b32.xlu0 %v1527, 111
      %v1536 = vpop.permute.xlu0 %1535
      %v1537 = vsel %vm1273, %v1532, %v1534
      %v1538 = vsel %vm1273, %v1534, %v1536
      %v1541 = vsel %vm1140, 0.0, %v1537
      %v1542 = vsel %vm1141, 0.0, %v1538
      %1543 = vst [vmem:[#allocation3 + $0x80] sm:$0xff] %v1541
      %1544 = vst [vmem:[#allocation3 + $0x88] sm:$0xff] %v1542
      %v1545 = vld [vmem:[%s7] sm:$0xff]
      %v1546 = vld [vmem:[#allocation3] sm:$0xff]
      %v1547 = vld [vmem:[#allocation3 + $0x8] sm:$0xff]
      %v1548 = vld [vmem:[#allocation3 + $0x10] sm:$0xff]
      %v1549 = vld [vmem:[#allocation3 + $0x18] sm:$0xff]
      %v1550 = vld [vmem:[#allocation3 + $0x20] sm:$0xff]
      %v1551 = vld [vmem:[#allocation3 + $0x28] sm:$0xff]
      %v1552 = vld [vmem:[#allocation3 + $0x30] sm:$0xff]
      %v1553 = vld [vmem:[#allocation3 + $0x38] sm:$0xff]
      %v1554 = vld [vmem:[#allocation3 + $0x40] sm:$0xff]
      %v1555 = vld [vmem:[#allocation3 + $0x48] sm:$0xff]
      %v1556 = vld [vmem:[#allocation3 + $0x50] sm:$0xff]
      %v1557 = vld [vmem:[#allocation3 + $0x58] sm:$0xff]
      %v1558 = vld [vmem:[#allocation3 + $0x60] sm:$0xff]
      %v1559 = vld [vmem:[#allocation3 + $0x68] sm:$0xff]
      %v1560 = vld [vmem:[#allocation3 + $0x70] sm:$0xff]
      %v1561 = vld [vmem:[#allocation3 + $0x78] sm:$0xff]
      %v1562 = vld [vmem:[#allocation3 + $0x80] sm:$0xff]
      %v1563 = vld [vmem:[#allocation3 + $0x88] sm:$0xff]
      %v1564 = vld [vmem:[%s9] sm:$0xff]
      %1566 = vset.pattern.permute.xlu0 0
      %1567 = vperm.xlu0 %1566, %v1564
      %v1568 = vpop.permute.xlu0 %1567
      %vm1570 = vcmask 588800
      %v1572 = vsel %vm1570, %v1545, 0
      %1574 = vmatprep.subr.mxu0 %v1547
      %1575 = vmatpush1.msra.mxu0 %v1546
      %1576 = vmatprep.subr.mxu0 %v1549
      %1577 = vmatpush1.msra.mxu0 %v1548
      %1578 = vmatprep.subr.mxu0 %v1551
      %1579 = vmatpush1.msra.mxu0 %v1550
      %1580 = vmatprep.subr.mxu0 %v1553
      %1581 = vmatpush1.msra.mxu0 %v1552
      %1582 = vmatprep.subr.mxu0 %v1555
      %1583 = vmatpush1.msra.mxu0 %v1554
      %1584 = vmatprep.subr.mxu0 %v1557
      %1585 = vmatpush1.msra.mxu0 %v1556
      %1586 = vmatprep.subr.mxu0 %v1559
      %1587 = vmatpush1.msra.mxu0 %v1558
      %1588 = vmatprep.subr.mxu0 %v1561
      %1589 = vmatpush1.msra.mxu0 %v1560
      %1590 = vmatprep.subr.mxu0 %v1563
      %1591 = vmatpush1.msra.mxu0 %v1562
      %1592 = vmatprep.subr.mxu0 0.0
      %1593 = vmatpush1.msra.mxu0 0.0
      %1594 = vmatprep.subr.mxu0 0.0
      %1595 = vmatpush1.msra.mxu0 0.0
      %1596 = vmatprep.subr.mxu0 0.0
      %1597 = vmatpush1.msra.mxu0 0.0
      %1598 = vmatprep.subr.mxu0 0.0
      %1599 = vmatpush1.msra.mxu0 0.0
      %1600 = vmatprep.subr.mxu0 0.0
      %1601 = vmatpush1.msra.mxu0 0.0
      %1602 = vmatprep.subr.mxu0 0.0
      %1603 = vmatpush1.msra.mxu0 0.0
      %1604 = vmatprep.subr.mxu0 0.0
      %1605 = vmatpush1.msra.mxu0 0.0
      %1606 = vmatprep.subr.mxu0 0.0
      %1607 = vmatpush1.msra.mxu0 0.0
      %1608 = vmatprep.subr.mxu0 0.0
      %1609 = vmatpush1.msra.mxu0 0.0
      %1610 = vmatprep.subr.mxu0 0.0
      %1611 = vmatpush1.msra.mxu0 0.0
      %1612 = vmatprep.subr.mxu0 0.0
      %1613 = vmatpush1.msra.mxu0 0.0
      %1614 = vmatprep.subr.mxu0 0.0
      %1615 = vmatpush1.msra.mxu0 0.0
      %1616 = vmatprep.subr.mxu0 0.0
      %1617 = vmatpush1.msra.mxu0 0.0
      %1618 = vmatprep.subr.mxu0 0.0
      %1619 = vmatpush1.msra.mxu0 0.0
      %1620 = vmatprep.subr.mxu0 0.0
      %1621 = vmatpush1.msra.mxu0 0.0
      %1622 = vmatprep.subr.mxu0 0.0
      %1623 = vmatpush1.msra.mxu0 0.0
      %1624 = vmatprep.subr.mxu0 0.0
      %1625 = vmatpush1.msra.mxu0 0.0
      %1626 = vmatprep.subr.mxu0 0.0
      %1627 = vmatpush1.msra.mxu0 0.0
      %1628 = vmatprep.subr.mxu0 0.0
      %1629 = vmatpush1.msra.mxu0 0.0
      %1630 = vmatprep.subr.mxu0 0.0
      %1631 = vmatpush1.msra.mxu0 0.0
      %1632 = vmatprep.subr.mxu0 0.0
      %1633 = vmatpush1.msra.mxu0 0.0
      %1634 = vmatprep.subr.mxu0 0.0
      %1635 = vmatpush1.msra.mxu0 0.0
      %1636 = vmatprep.subr.mxu0 0.0
      %1637 = vmatpush1.msra.mxu0 0.0
      %1638 = vmatprep.mubr.f32.mxu0 0.0
      %1639 = vmatmul.mubr.f32.gmra.mrb[0].mxu0 %v1572
      %v1640 = vpop.f32.mrb[0].mxu0
      %v1641 = vadd.f32 %v1568, %v1640
      %v1642 = vpop.f32.mrb[0].mxu0
      %v1643 = vadd.f32 %v1568, %v1642
      %1644 = vdwg.mxu0
      %v1645 = vld [vmem:[%s55] sm:$0xff]
      %v1646 = vld [vmem:[%s55 + $0x8] sm:$0xff]
      %v1647 = vld [vmem:[%s55 + $0x10] sm:$0xff]
      %v1648 = vld [vmem:[%s55 + $0x18] sm:$0xff]
      %v1649 = vld [vmem:[%s55 + $0x20] sm:$0xff]
      %v1650 = vld [vmem:[%s55 + $0x28] sm:$0xff]
      %v1651 = vld [vmem:[%s55 + $0x30] sm:$0xff]
      %v1652 = vld [vmem:[%s55 + $0x38] sm:$0xff]
      %v1653 = vld [vmem:[%s55 + $0x40] sm:$0xff]
      %v1654 = vld [vmem:[%s55 + $0x48] sm:$0xff]
      %v1655 = vld [vmem:[%s55 + $0x50] sm:$0xff]
      %v1656 = vld [vmem:[%s55 + $0x58] sm:$0xff]
      %v1657 = vld [vmem:[%s55 + $0x60] sm:$0xff]
      %v1658 = vld [vmem:[%s55 + $0x68] sm:$0xff]
      %v1659 = vld [vmem:[%s55 + $0x70] sm:$0xff]
      %v1660 = vld [vmem:[%s55 + $0x78] sm:$0xff]
      %v1661 = vld [vmem:[%s55 + $0x80] sm:$0xff]
      %v1662 = vld [vmem:[%s55 + $0x88] sm:$0xff]
      %v1663 = vld [vmem:[%s55 + $0x90] sm:$0xff]
      %v1664 = vld [vmem:[%s55 + $0x98] sm:$0xff]
      %v1665 = vld [vmem:[%s55 + $0xa0] sm:$0xff]
      %v1666 = vld [vmem:[%s55 + $0xa8] sm:$0xff]
      %v1667 = vld [vmem:[%s55 + $0xb0] sm:$0xff]
      %v1668 = vld [vmem:[%s55 + $0xb8] sm:$0xff]
      %v1669 = vld [vmem:[%s55 + $0xc0] sm:$0xff]
      %v1670 = vld [vmem:[%s55 + $0xc8] sm:$0xff]
      %v1671 = vld [vmem:[%s55 + $0xd0] sm:$0xff]
      %v1672 = vld [vmem:[%s55 + $0xd8] sm:$0xff]
      %v1673 = vld [vmem:[%s55 + $0xe0] sm:$0xff]
      %v1674 = vld [vmem:[%s55 + $0xe8] sm:$0xff]
      %v1675 = vld [vmem:[%s55 + $0xf0] sm:$0xff]
      %v1676 = vld [vmem:[%s55 + $0xf8] sm:$0xff]
      %1677 = vmatprep.subr.mxu0 0.0
      %1678 = vmatpush1.msra.mxu0 %v1645
      %1679 = vmatprep.subr.mxu0 0.0
      %1680 = vmatpush1.msra.mxu0 %v1646
      %1681 = vmatprep.subr.mxu0 0.0
      %1682 = vmatpush1.msra.mxu0 %v1647
      %1683 = vmatprep.subr.mxu0 0.0
      %1684 = vmatpush1.msra.mxu0 %v1648
      %1685 = vmatprep.subr.mxu0 0.0
      %1686 = vmatpush1.msra.mxu0 %v1649
      %1687 = vmatprep.subr.mxu0 0.0
      %1688 = vmatpush1.msra.mxu0 %v1650
      %1689 = vmatprep.subr.mxu0 0.0
      %1690 = vmatpush1.msra.mxu0 %v1651
      %1691 = vmatprep.subr.mxu0 0.0
      %1692 = vmatpush1.msra.mxu0 %v1652
      %1693 = vmatprep.subr.mxu0 0.0
      %1694 = vmatpush1.msra.mxu0 %v1653
      %1695 = vmatprep.subr.mxu0 0.0
      %1696 = vmatpush1.msra.mxu0 %v1654
      %1697 = vmatprep.subr.mxu0 0.0
      %1698 = vmatpush1.msra.mxu0 %v1655
      %1699 = vmatprep.subr.mxu0 0.0
      %1700 = vmatpush1.msra.mxu0 %v1656
      %1701 = vmatprep.subr.mxu0 0.0
      %1702 = vmatpush1.msra.mxu0 %v1657
      %1703 = vmatprep.subr.mxu0 0.0
      %1704 = vmatpush1.msra.mxu0 %v1658
      %1705 = vmatprep.subr.mxu0 0.0
      %1706 = vmatpush1.msra.mxu0 %v1659
      %1707 = vmatprep.subr.mxu0 0.0
      %1708 = vmatpush1.msra.mxu0 %v1660
      %1709 = vmatprep.subr.mxu0 0.0
      %1710 = vmatpush1.msra.mxu0 %v1661
      %1711 = vmatprep.subr.mxu0 0.0
      %1712 = vmatpush1.msra.mxu0 %v1662
      %1713 = vmatprep.subr.mxu0 0.0
      %1714 = vmatpush1.msra.mxu0 %v1663
      %1715 = vmatprep.subr.mxu0 0.0
      %1716 = vmatpush1.msra.mxu0 %v1664
      %1717 = vmatprep.subr.mxu0 0.0
      %1718 = vmatpush1.msra.mxu0 %v1665
      %1719 = vmatprep.subr.mxu0 0.0
      %1720 = vmatpush1.msra.mxu0 %v1666
      %1721 = vmatprep.subr.mxu0 0.0
      %1722 = vmatpush1.msra.mxu0 %v1667
      %1723 = vmatprep.subr.mxu0 0.0
      %1724 = vmatpush1.msra.mxu0 %v1668
      %1725 = vmatprep.subr.mxu0 0.0
      %1726 = vmatpush1.msra.mxu0 %v1669
      %1727 = vmatprep.subr.mxu0 0.0
      %1728 = vmatpush1.msra.mxu0 %v1670
      %1729 = vmatprep.subr.mxu0 0.0
      %1730 = vmatpush1.msra.mxu0 %v1671
      %1731 = vmatprep.subr.mxu0 0.0
      %1732 = vmatpush1.msra.mxu0 %v1672
      %1733 = vmatprep.subr.mxu0 0.0
      %1734 = vmatpush1.msra.mxu0 %v1673
      %1735 = vmatprep.subr.mxu0 0.0
      %1736 = vmatpush1.msra.mxu0 %v1674
      %1737 = vmatprep.subr.mxu0 0.0
      %1738 = vmatpush1.msra.mxu0 %v1675
      %1739 = vmatprep.subr.mxu0 0.0
      %1740 = vmatpush1.msra.mxu0 %v1676
      %1741 = vmatprep.mubr.f32.mxu0 %v1085
      %1742 = vmatmul.mubr.f32.gmra.mrb[0].mxu0 %v1074
      %v1743 = vpop.f32.mrb[0].mxu0
      %v1744 = vadd.f32 0.0, %v1743
      %v1745 = vpop.f32.mrb[0].mxu0
      %1746 = vdwg.mxu0
      %1747 = vmatprep.subr.mxu0 0.0
      %1748 = vmatpush1.msra.mxu0 %v1645
      %1749 = vmatprep.subr.mxu0 0.0
      %1750 = vmatpush1.msra.mxu0 %v1646
      %1751 = vmatprep.subr.mxu0 0.0
      %1752 = vmatpush1.msra.mxu0 %v1647
      %1753 = vmatprep.subr.mxu0 0.0
      %1754 = vmatpush1.msra.mxu0 %v1648
      %1755 = vmatprep.subr.mxu0 0.0
      %1756 = vmatpush1.msra.mxu0 %v1649
      %1757 = vmatprep.subr.mxu0 0.0
      %1758 = vmatpush1.msra.mxu0 %v1650
      %1759 = vmatprep.subr.mxu0 0.0
      %1760 = vmatpush1.msra.mxu0 %v1651
      %1761 = vmatprep.subr.mxu0 0.0
      %1762 = vmatpush1.msra.mxu0 %v1652
      %1763 = vmatprep.subr.mxu0 0.0
      %1764 = vmatpush1.msra.mxu0 %v1653
      %1765 = vmatprep.subr.mxu0 0.0
      %1766 = vmatpush1.msra.mxu0 %v1654
      %1767 = vmatprep.subr.mxu0 0.0
      %1768 = vmatpush1.msra.mxu0 %v1655
      %1769 = vmatprep.subr.mxu0 0.0
      %1770 = vmatpush1.msra.mxu0 %v1656
      %1771 = vmatprep.subr.mxu0 0.0
      %1772 = vmatpush1.msra.mxu0 %v1657
      %1773 = vmatprep.subr.mxu0 0.0
      %1774 = vmatpush1.msra.mxu0 %v1658
      %1775 = vmatprep.subr.mxu0 0.0
      %1776 = vmatpush1.msra.mxu0 %v1659
      %1777 = vmatprep.subr.mxu0 0.0
      %1778 = vmatpush1.msra.mxu0 %v1660
      %1779 = vmatprep.subr.mxu0 0.0
      %1780 = vmatpush1.msra.mxu0 %v1661
      %1781 = vmatprep.subr.mxu0 0.0
      %1782 = vmatpush1.msra.mxu0 %v1662
      %1783 = vmatprep.subr.mxu0 0.0
      %1784 = vmatpush1.msra.mxu0 %v1663
      %1785 = vmatprep.subr.mxu0 0.0
      %1786 = vmatpush1.msra.mxu0 %v1664
      %1787 = vmatprep.subr.mxu0 0.0
      %1788 = vmatpush1.msra.mxu0 %v1665
      %1789 = vmatprep.subr.mxu0 0.0
      %1790 = vmatpush1.msra.mxu0 %v1666
      %1791 = vmatprep.subr.mxu0 0.0
      %1792 = vmatpush1.msra.mxu0 %v1667
      %1793 = vmatprep.subr.mxu0 0.0
      %1794 = vmatpush1.msra.mxu0 %v1668
      %1795 = vmatprep.subr.mxu0 0.0
      %1796 = vmatpush1.msra.mxu0 %v1669
      %1797 = vmatprep.subr.mxu0 0.0
      %1798 = vmatpush1.msra.mxu0 %v1670
      %1799 = vmatprep.subr.mxu0 0.0
      %1800 = vmatpush1.msra.mxu0 %v1671
      %1801 = vmatprep.subr.mxu0 0.0
      %1802 = vmatpush1.msra.mxu0 %v1672
      %1803 = vmatprep.subr.mxu0 0.0
      %1804 = vmatpush1.msra.mxu0 %v1673
      %1805 = vmatprep.subr.mxu0 0.0
      %1806 = vmatpush1.msra.mxu0 %v1674
      %1807 = vmatprep.subr.mxu0 0.0
      %1808 = vmatpush1.msra.mxu0 %v1675
      %1809 = vmatprep.subr.mxu0 0.0
      %1810 = vmatpush1.msra.mxu0 %v1676
      %1811 = vmatprep.mubr.f32.mxu0 %v1643
      %1812 = vmatmul.mubr.f32.gmra.mrb[0].mxu0 %v1641
      %v1813 = vpop.f32.mrb[0].mxu0
      %v1814 = vadd.f32 0.0, %v1813
      %v1815 = vpop.f32.mrb[0].mxu0
      %1816 = vdwg.mxu0
      %1817 = vst [vmem:[#allocation4] sm:$0xff] 0.0
      %vm1818 = vcmask 596992
      %1819 = vst.msk [vmem:[#allocation4 + $0x8] sm:$0xff] %vm1818, 0.0
      %1820 = vst [vmem:[#allocation4 + $0x10] sm:$0xff] 0.0
      %1821 = vst.msk [vmem:[#allocation4 + $0x18] sm:$0xff] %vm1818, 0.0
      %vm1822 = vcmask 519168
      %1823 = vst.msk [vmem:[#allocation4 + $0x8] sm:$0xf] %vm1822, %v1744
      %v1825 = vrot.slane %v1814, 4
      %vm1827 = vcmask 523268
      %1828 = vst.msk [vmem:[#allocation4 + $0x8] sm:$0xf0] %vm1827, %v1825
      %1829 = vst.msk [vmem:[#allocation4 + $0x18] sm:$0xf] %vm1822, %v1825
      %v1830 = vld [vmem:[#allocation4] sm:$0xff]
      %v1831 = vld [vmem:[#allocation4 + $0x8] sm:$0xff]
      %v1832 = vld [vmem:[#allocation4 + $0x10] sm:$0xf]
      %v1833 = vld [vmem:[#allocation4 + $0x18] sm:$0xf]
      %v1834 = vsel %vm1058, 1, 0
      %vm1835 = vcmp.eq.s32.totalorder %v1834, 1
      %1840 = vrot.lane.b32.xlu0 %v1830, 9
      %v1841 = vpop.permute.xlu0 %1840
      %1842 = vrot.lane.b32.xlu0 %v1831, 9
      %v1843 = vpop.permute.xlu0 %1842
      %1844 = vrot.lane.b32.xlu0 %v1832, 9
      %v1845 = vpop.permute.xlu0 %1844
      %1846 = vrot.lane.b32.xlu0 %v1833, 9
      %v1847 = vpop.permute.xlu0 %1846
      %vm1848 = vcmask 72704
      %v1849 = vsel %vm1848, %v1841, %v1843
      %v1850 = vsel %vm1848, %v1845, %v1847
      %v1853 = vsel %vm1835, 0.0, %v1849
      %v1854 = vsel %vm1835, 0.0, %v1850
      %vm1855 = vcmask 523264
      %1856 = vst.msk [vmem:[#allocation5] sm:$0xff] %vm1855, %v1853
      %1857 = vst.msk [vmem:[#allocation5 + $0x8] sm:$0xf] %vm1822, %v1854
      %v1858 = vld [vmem:[#allocation4] sm:$0xff]
      %v1859 = vld [vmem:[#allocation4 + $0x8] sm:$0xff]
      %v1860 = vld [vmem:[#allocation4 + $0x10] sm:$0xf]
      %v1861 = vld [vmem:[#allocation4 + $0x18] sm:$0xf]
      %1866 = vrot.lane.b32.xlu0 %v1858, 8
      %v1867 = vpop.permute.xlu0 %1866
      %1868 = vrot.lane.b32.xlu0 %v1859, 8
      %v1869 = vpop.permute.xlu0 %1868
      %1870 = vrot.lane.b32.xlu0 %v1860, 8
      %v1871 = vpop.permute.xlu0 %1870
      %1872 = vrot.lane.b32.xlu0 %v1861, 8
      %v1873 = vpop.permute.xlu0 %1872
      %vm1874 = vcmask 64512
      %v1875 = vsel %vm1874, %v1867, %v1869
      %v1876 = vsel %vm1874, %v1871, %v1873
      %1879 = vst.msk [vmem:[#allocation5 + $0xc] sm:$0xff] %vm1855, %v1875
      %1880 = vst.msk [vmem:[#allocation5 + $0x14] sm:$0xf] %vm1822, %v1876
      %v1881 = vld [vmem:[#allocation4] sm:$0xff]
      %v1882 = vld [vmem:[#allocation4 + $0x8] sm:$0xff]
      %v1883 = vld [vmem:[#allocation4 + $0x10] sm:$0xf]
      %v1884 = vld [vmem:[#allocation4 + $0x18] sm:$0xf]
      %v1885 = vsel %vm1059, 1, 0
      %vm1886 = vcmp.eq.s32.totalorder %v1885, 1
      %1891 = vrot.lane.b32.xlu0 %v1881, 7
      %v1892 = vpop.permute.xlu0 %1891
      %1893 = vrot.lane.b32.xlu0 %v1882, 7
      %v1894 = vpop.permute.xlu0 %1893
      %1895 = vrot.lane.b32.xlu0 %v1883, 7
      %v1896 = vpop.permute.xlu0 %1895
      %1897 = vrot.lane.b32.xlu0 %v1884, 7
      %v1898 = vpop.permute.xlu0 %1897
      %vm1899 = vcmask 56320
      %v1900 = vsel %vm1899, %v1892, %v1894
      %v1901 = vsel %vm1899, %v1896, %v1898
      %v1904 = vsel %vm1886, 0.0, %v1900
      %v1905 = vsel %vm1886, 0.0, %v1901
      %1906 = vst.msk [vmem:[#allocation5 + $0x18] sm:$0xff] %vm1855, %v1904
      %1907 = vst.msk [vmem:[#allocation5 + $0x20] sm:$0xf] %vm1822, %v1905
      %v1908 = vld [vmem:[#allocation4] sm:$0xff]
      %v1909 = vld [vmem:[#allocation4 + $0x8] sm:$0xff]
      %v1910 = vld [vmem:[#allocation4 + $0x10] sm:$0xf]
      %v1911 = vld [vmem:[#allocation4 + $0x18] sm:$0xf]
      %1916 = vrot.lane.b32.xlu0 %v1908, 1
      %v1917 = vpop.permute.xlu0 %1916
      %1918 = vrot.lane.b32.xlu0 %v1909, 1
      %v1919 = vpop.permute.xlu0 %1918
      %1920 = vrot.lane.b32.xlu0 %v1910, 1
      %v1921 = vpop.permute.xlu0 %1920
      %1922 = vrot.lane.b32.xlu0 %v1911, 1
      %v1923 = vpop.permute.xlu0 %1922
      %v1924 = vsel %vm1172, %v1917, %v1919
      %v1925 = vsel %vm1172, %v1921, %v1923
      %v1928 = vsel %vm1835, 0.0, %v1924
      %v1929 = vsel %vm1835, 0.0, %v1925
      %1930 = vst.msk [vmem:[#allocation5 + $0x24] sm:$0xff] %vm1855, %v1928
      %1931 = vst.msk [vmem:[#allocation5 + $0x2c] sm:$0xf] %vm1822, %v1929
      %v1932 = vld [vmem:[#allocation4 + $0x8] sm:$0xff]
      %v1933 = vld [vmem:[#allocation4 + $0x18] sm:$0xf]
      %1934 = vst.msk [vmem:[#allocation5 + $0x30] sm:$0xff] %vm1855, %v1932
      %1935 = vst.msk [vmem:[#allocation5 + $0x38] sm:$0xf] %vm1822, %v1933
      %v1936 = vld [vmem:[#allocation4 + $0x8] sm:$0xff]
      %v1937 = vld [vmem:[#allocation4 + $0x18] sm:$0xf]
      %1940 = vrot.lane.b32.xlu0 %v1936, 127
      %v1941 = vpop.permute.xlu0 %1940
      %1942 = vrot.lane.b32.xlu0 %v1937, 127
      %v1943 = vpop.permute.xlu0 %1942
      %v1946 = vsel %vm1886, 0.0, %v1941
      %v1947 = vsel %vm1886, 0.0, %v1943
      %1948 = vst.msk [vmem:[#allocation5 + $0x3c] sm:$0xff] %vm1855, %v1946
      %1949 = vst.msk [vmem:[#allocation5 + $0x44] sm:$0xf] %vm1822, %v1947
      %v1950 = vld [vmem:[#allocation4 + $0x8] sm:$0xff]
      %v1951 = vld [vmem:[#allocation4 + $0x18] sm:$0xf]
      %1954 = vrot.lane.b32.xlu0 %v1950, 121
      %v1955 = vpop.permute.xlu0 %1954
      %1956 = vrot.lane.b32.xlu0 %v1951, 121
      %v1957 = vpop.permute.xlu0 %1956
      %v1960 = vsel %vm1835, 0.0, %v1955
      %v1961 = vsel %vm1835, 0.0, %v1957
      %1962 = vst.msk [vmem:[#allocation5 + $0x48] sm:$0xff] %vm1855, %v1960
      %1963 = vst.msk [vmem:[#allocation5 + $0x50] sm:$0xf] %vm1822, %v1961
      %v1964 = vld [vmem:[#allocation4 + $0x8] sm:$0xff]
      %v1965 = vld [vmem:[#allocation4 + $0x18] sm:$0xf]
      %1968 = vrot.lane.b32.xlu0 %v1964, 120
      %v1969 = vpop.permute.xlu0 %1968
      %1970 = vrot.lane.b32.xlu0 %v1965, 120
      %v1971 = vpop.permute.xlu0 %1970
      %1974 = vst.msk [vmem:[#allocation5 + $0x54] sm:$0xff] %vm1855, %v1969
      %1975 = vst.msk [vmem:[#allocation5 + $0x5c] sm:$0xf] %vm1822, %v1971
      %v1976 = vld [vmem:[#allocation4 + $0x8] sm:$0xff]
      %v1977 = vld [vmem:[#allocation4 + $0x18] sm:$0xf]
      %1980 = vrot.lane.b32.xlu0 %v1976, 119
      %v1981 = vpop.permute.xlu0 %1980
      %1982 = vrot.lane.b32.xlu0 %v1977, 119
      %v1983 = vpop.permute.xlu0 %1982
      %v1986 = vsel %vm1886, 0.0, %v1981
      %v1987 = vsel %vm1886, 0.0, %v1983
      %1988 = vst.msk [vmem:[#allocation5 + $0x60] sm:$0xff] %vm1855, %v1986
      %1989 = vst.msk [vmem:[#allocation5 + $0x68] sm:$0xf] %vm1822, %v1987
      %v1990 = vld [vmem:[%s11] sm:$0xff]
      %v1991 = vld [vmem:[#allocation5] sm:$0xff]
      %v1992 = vld [vmem:[#allocation5 + $0x8] sm:$0xff]
      %v1993 = vld [vmem:[#allocation5 + $0x10] sm:$0xff]
      %v1994 = vld [vmem:[#allocation5 + $0x18] sm:$0xff]
      %v1995 = vld [vmem:[#allocation5 + $0x20] sm:$0xff]
      %v1996 = vld [vmem:[#allocation5 + $0x28] sm:$0xff]
      %v1997 = vld [vmem:[#allocation5 + $0x30] sm:$0xff]
      %v1998 = vld [vmem:[#allocation5 + $0x38] sm:$0xff]
      %v1999 = vld [vmem:[#allocation5 + $0x40] sm:$0xff]
      %v2000 = vld [vmem:[#allocation5 + $0x48] sm:$0xff]
      %v2001 = vld [vmem:[#allocation5 + $0x50] sm:$0xff]
      %v2002 = vld [vmem:[#allocation5 + $0x58] sm:$0xff]
      %v2003 = vld [vmem:[#allocation5 + $0x60] sm:$0xff]
      %v2004 = vld [vmem:[#allocation5 + $0x68] sm:$0xf]
      %v2005 = vld [vmem:[%s13] sm:$0xff]
      %2007 = vset.pattern.permute.xlu0 0
      %2008 = vperm.xlu0 %2007, %v2005
      %v2009 = vpop.permute.xlu0 %2008
      %vm2011 = vcmask 883712
      %v2013 = vsel %vm2011, %v1990, 0
      %v2016 = vsel %vm1303, %v2004, 0
      %2018 = vmatprep.subr.mxu0 0.0
      %2019 = vmatpush1.msra.mxu0 %v1991
      %2020 = vmatprep.subr.mxu0 0.0
      %2021 = vmatpush1.msra.mxu0 %v1992
      %2022 = vmatprep.subr.mxu0 0.0
      %2023 = vmatpush1.msra.mxu0 %v1993
      %2024 = vmatprep.subr.mxu0 0.0
      %2025 = vmatpush1.msra.mxu0 %v1994
      %2026 = vmatprep.subr.mxu0 0.0
      %2027 = vmatpush1.msra.mxu0 %v1995
      %2028 = vmatprep.subr.mxu0 0.0
      %2029 = vmatpush1.msra.mxu0 %v1996
      %2030 = vmatprep.subr.mxu0 0.0
      %2031 = vmatpush1.msra.mxu0 %v1997
      %2032 = vmatprep.subr.mxu0 0.0
      %2033 = vmatpush1.msra.mxu0 %v1998
      %2034 = vmatprep.subr.mxu0 0.0
      %2035 = vmatpush1.msra.mxu0 %v1999
      %2036 = vmatprep.subr.mxu0 0.0
      %2037 = vmatpush1.msra.mxu0 %v2000
      %2038 = vmatprep.subr.mxu0 0.0
      %2039 = vmatpush1.msra.mxu0 %v2001
      %2040 = vmatprep.subr.mxu0 0.0
      %2041 = vmatpush1.msra.mxu0 %v2002
      %2042 = vmatprep.subr.mxu0 0.0
      %2043 = vmatpush1.msra.mxu0 %v2003
      %2044 = vmatprep.subr.mxu0 0.0
      %2045 = vmatpush1.msra.mxu0 %v2016
      %2046 = vmatprep.subr.mxu0 0.0
      %2047 = vmatpush1.msra.mxu0 0.0
      %2048 = vmatprep.subr.mxu0 0.0
      %2049 = vmatpush1.msra.mxu0 0.0
      %2050 = vmatprep.subr.mxu0 0.0
      %2051 = vmatpush1.msra.mxu0 0.0
      %2052 = vmatprep.subr.mxu0 0.0
      %2053 = vmatpush1.msra.mxu0 0.0
      %2054 = vmatprep.subr.mxu0 0.0
      %2055 = vmatpush1.msra.mxu0 0.0
      %2056 = vmatprep.subr.mxu0 0.0
      %2057 = vmatpush1.msra.mxu0 0.0
      %2058 = vmatprep.subr.mxu0 0.0
      %2059 = vmatpush1.msra.mxu0 0.0
      %2060 = vmatprep.subr.mxu0 0.0
      %2061 = vmatpush1.msra.mxu0 0.0
      %2062 = vmatprep.subr.mxu0 0.0
      %2063 = vmatpush1.msra.mxu0 0.0
      %2064 = vmatprep.subr.mxu0 0.0
      %2065 = vmatpush1.msra.mxu0 0.0
      %2066 = vmatprep.subr.mxu0 0.0
      %2067 = vmatpush1.msra.mxu0 0.0
      %2068 = vmatprep.subr.mxu0 0.0
      %2069 = vmatpush1.msra.mxu0 0.0
      %2070 = vmatprep.subr.mxu0 0.0
      %2071 = vmatpush1.msra.mxu0 0.0
      %2072 = vmatprep.subr.mxu0 0.0
      %2073 = vmatpush1.msra.mxu0 0.0
      %2074 = vmatprep.subr.mxu0 0.0
      %2075 = vmatpush1.msra.mxu0 0.0
      %2076 = vmatprep.subr.mxu0 0.0
      %2077 = vmatpush1.msra.mxu0 0.0
      %2078 = vmatprep.subr.mxu0 0.0
      %2079 = vmatpush1.msra.mxu0 0.0
      %2080 = vmatprep.subr.mxu0 0.0
      %2081 = vmatpush1.msra.mxu0 0.0
      %2082 = vmatprep.mubr.f32.mxu0 0.0
      %2083 = vmatmul.mubr.f32.gmra.mrb[0].mxu0 %v2013
      %v2084 = vpop.f32.mrb[0].mxu0
      %v2085 = vadd.f32 %v2009, %v2084
      %v2086 = vpop.f32.mrb[0].mxu0
      %2087 = vdwg.mxu0
      %v2088 = vmax.f32 %v2085, 0.0
      %2089 = vst.msk [vmem:[#allocation4 + $0x8] sm:$0xff] %vm1855, %v2088
      %v2090 = vld [vmem:[#allocation4] sm:$0xff]
      %v2091 = vld [vmem:[#allocation4 + $0x8] sm:$0xff]
      %2094 = vrot.lane.b32.xlu0 %v2090, 9
      %v2095 = vpop.permute.xlu0 %2094
      %2096 = vrot.lane.b32.xlu0 %v2091, 9
      %v2097 = vpop.permute.xlu0 %2096
      %v2098 = vsel %vm1848, %v2095, %v2097
      %v2100 = vsel %vm1835, 0.0, %v2098
      %2101 = vst.msk [vmem:[#allocation5] sm:$0xff] %vm1855, %v2100
      %v2102 = vld [vmem:[#allocation4] sm:$0xff]
      %v2103 = vld [vmem:[#allocation4 + $0x8] sm:$0xff]
      %2106 = vrot.lane.b32.xlu0 %v2102, 8
      %v2107 = vpop.permute.xlu0 %2106
      %2108 = vrot.lane.b32.xlu0 %v2103, 8
      %v2109 = vpop.permute.xlu0 %2108
      %v2110 = vsel %vm1874, %v2107, %v2109
      %2112 = vst.msk [vmem:[#allocation5 + $0x8] sm:$0xff] %vm1855, %v2110
      %v2113 = vld [vmem:[#allocation4] sm:$0xff]
      %v2114 = vld [vmem:[#allocation4 + $0x8] sm:$0xff]
      %2117 = vrot.lane.b32.xlu0 %v2113, 7
      %v2118 = vpop.permute.xlu0 %2117
      %2119 = vrot.lane.b32.xlu0 %v2114, 7
      %v2120 = vpop.permute.xlu0 %2119
      %v2121 = vsel %vm1899, %v2118, %v2120
      %v2123 = vsel %vm1886, 0.0, %v2121
      %2124 = vst.msk [vmem:[#allocation5 + $0x10] sm:$0xff] %vm1855, %v2123
      %v2125 = vld [vmem:[#allocation4] sm:$0xff]
      %v2126 = vld [vmem:[#allocation4 + $0x8] sm:$0xff]
      %2129 = vrot.lane.b32.xlu0 %v2125, 1
      %v2130 = vpop.permute.xlu0 %2129
      %2131 = vrot.lane.b32.xlu0 %v2126, 1
      %v2132 = vpop.permute.xlu0 %2131
      %v2133 = vsel %vm1172, %v2130, %v2132
      %v2135 = vsel %vm1835, 0.0, %v2133
      %2136 = vst.msk [vmem:[#allocation5 + $0x18] sm:$0xff] %vm1855, %v2135
      %v2137 = vld [vmem:[#allocation4 + $0x8] sm:$0xff]
      %2138 = vst.msk [vmem:[#allocation5 + $0x20] sm:$0xff] %vm1855, %v2137
      %v2139 = vld [vmem:[#allocation4 + $0x8] sm:$0xff]
      %2141 = vrot.lane.b32.xlu0 %v2139, 127
      %v2142 = vpop.permute.xlu0 %2141
      %v2144 = vsel %vm1886, 0.0, %v2142
      %2145 = vst.msk [vmem:[#allocation5 + $0x28] sm:$0xff] %vm1855, %v2144
      %v2146 = vld [vmem:[#allocation4 + $0x8] sm:$0xff]
      %2148 = vrot.lane.b32.xlu0 %v2146, 121
      %v2149 = vpop.permute.xlu0 %2148
      %v2151 = vsel %vm1835, 0.0, %v2149
      %2152 = vst.msk [vmem:[#allocation5 + $0x30] sm:$0xff] %vm1855, %v2151
      %v2153 = vld [vmem:[#allocation4 + $0x8] sm:$0xff]
      %2155 = vrot.lane.b32.xlu0 %v2153, 120
      %v2156 = vpop.permute.xlu0 %2155
      %2158 = vst.msk [vmem:[#allocation5 + $0x38] sm:$0xff] %vm1855, %v2156
      %v2159 = vld [vmem:[#allocation4 + $0x8] sm:$0xff]
      %2161 = vrot.lane.b32.xlu0 %v2159, 119
      %v2162 = vpop.permute.xlu0 %2161
      %v2164 = vsel %vm1886, 0.0, %v2162
      %2165 = vst.msk [vmem:[#allocation5 + $0x40] sm:$0xff] %vm1855, %v2164
      %v2166 = vld [vmem:[%s15] sm:$0xff]
      %v2167 = vld [vmem:[#allocation5] sm:$0xff]
      %v2168 = vld [vmem:[#allocation5 + $0x8] sm:$0xff]
      %v2169 = vld [vmem:[#allocation5 + $0x10] sm:$0xff]
      %v2170 = vld [vmem:[#allocation5 + $0x18] sm:$0xff]
      %v2171 = vld [vmem:[#allocation5 + $0x20] sm:$0xff]
      %v2172 = vld [vmem:[#allocation5 + $0x28] sm:$0xff]
      %v2173 = vld [vmem:[#allocation5 + $0x30] sm:$0xff]
      %v2174 = vld [vmem:[#allocation5 + $0x38] sm:$0xff]
      %v2175 = vld [vmem:[#allocation5 + $0x40] sm:$0xff]
      %v2176 = vld [vmem:[%s17] sm:$0xff]
      %2178 = vset.pattern.permute.xlu0 0
      %2179 = vperm.xlu0 %2178, %v2176
      %v2180 = vpop.permute.xlu0 %2179
      %v2183 = vsel %vm1570, %v2166, 0
      %2185 = vmatprep.subr.mxu0 0.0
      %2186 = vmatpush1.msra.mxu0 %v2167
      %2187 = vmatprep.subr.mxu0 0.0
      %2188 = vmatpush1.msra.mxu0 %v2168
      %2189 = vmatprep.subr.mxu0 0.0
      %2190 = vmatpush1.msra.mxu0 %v2169
      %2191 = vmatprep.subr.mxu0 0.0
      %2192 = vmatpush1.msra.mxu0 %v2170
      %2193 = vmatprep.subr.mxu0 0.0
      %2194 = vmatpush1.msra.mxu0 %v2171
      %2195 = vmatprep.subr.mxu0 0.0
      %2196 = vmatpush1.msra.mxu0 %v2172
      %2197 = vmatprep.subr.mxu0 0.0
      %2198 = vmatpush1.msra.mxu0 %v2173
      %2199 = vmatprep.subr.mxu0 0.0
      %2200 = vmatpush1.msra.mxu0 %v2174
      %2201 = vmatprep.subr.mxu0 0.0
      %2202 = vmatpush1.msra.mxu0 %v2175
      %2203 = vmatprep.subr.mxu0 0.0
      %2204 = vmatpush1.msra.mxu0 0.0
      %2205 = vmatprep.subr.mxu0 0.0
      %2206 = vmatpush1.msra.mxu0 0.0
      %2207 = vmatprep.subr.mxu0 0.0
      %2208 = vmatpush1.msra.mxu0 0.0
      %2209 = vmatprep.subr.mxu0 0.0
      %2210 = vmatpush1.msra.mxu0 0.0
      %2211 = vmatprep.subr.mxu0 0.0
      %2212 = vmatpush1.msra.mxu0 0.0
      %2213 = vmatprep.subr.mxu0 0.0
      %2214 = vmatpush1.msra.mxu0 0.0
      %2215 = vmatprep.subr.mxu0 0.0
      %2216 = vmatpush1.msra.mxu0 0.0
      %2217 = vmatprep.subr.mxu0 0.0
      %2218 = vmatpush1.msra.mxu0 0.0
      %2219 = vmatprep.subr.mxu0 0.0
      %2220 = vmatpush1.msra.mxu0 0.0
      %2221 = vmatprep.subr.mxu0 0.0
      %2222 = vmatpush1.msra.mxu0 0.0
      %2223 = vmatprep.subr.mxu0 0.0
      %2224 = vmatpush1.msra.mxu0 0.0
      %2225 = vmatprep.subr.mxu0 0.0
      %2226 = vmatpush1.msra.mxu0 0.0
      %2227 = vmatprep.subr.mxu0 0.0
      %2228 = vmatpush1.msra.mxu0 0.0
      %2229 = vmatprep.subr.mxu0 0.0
      %2230 = vmatpush1.msra.mxu0 0.0
      %2231 = vmatprep.subr.mxu0 0.0
      %2232 = vmatpush1.msra.mxu0 0.0
      %2233 = vmatprep.subr.mxu0 0.0
      %2234 = vmatpush1.msra.mxu0 0.0
      %2235 = vmatprep.subr.mxu0 0.0
      %2236 = vmatpush1.msra.mxu0 0.0
      %2237 = vmatprep.subr.mxu0 0.0
      %2238 = vmatpush1.msra.mxu0 0.0
      %2239 = vmatprep.subr.mxu0 0.0
      %2240 = vmatpush1.msra.mxu0 0.0
      %2241 = vmatprep.subr.mxu0 0.0
      %2242 = vmatpush1.msra.mxu0 0.0
      %2243 = vmatprep.subr.mxu0 0.0
      %2244 = vmatpush1.msra.mxu0 0.0
      %2245 = vmatprep.subr.mxu0 0.0
      %2246 = vmatpush1.msra.mxu0 0.0
      %2247 = vmatprep.subr.mxu0 0.0
      %2248 = vmatpush1.msra.mxu0 0.0
      %2249 = vmatprep.mubr.f32.mxu0 0.0
      %2250 = vmatmul.mubr.f32.gmra.mrb[0].mxu0 %v2183
      %v2251 = vpop.f32.mrb[0].mxu0
      %v2252 = vadd.f32 %v2180, %v2251
      %v2253 = vpop.f32.mrb[0].mxu0
      %2254 = vdwg.mxu0
      %v2255 = vld [vmem:[%s57] sm:$0xff]
      %v2256 = vld [vmem:[%s57 + $0x8] sm:$0xff]
      %v2257 = vld [vmem:[%s57 + $0x10] sm:$0xff]
      %v2258 = vld [vmem:[%s57 + $0x18] sm:$0xff]
      %v2259 = vld [vmem:[%s57 + $0x20] sm:$0xff]
      %v2260 = vld [vmem:[%s57 + $0x28] sm:$0xff]
      %v2261 = vld [vmem:[%s57 + $0x30] sm:$0xff]
      %v2262 = vld [vmem:[%s57 + $0x38] sm:$0xff]
      %v2263 = vld [vmem:[%s57 + $0x40] sm:$0xff]
      %v2264 = vld [vmem:[%s57 + $0x48] sm:$0xff]
      %v2265 = vld [vmem:[%s57 + $0x50] sm:$0xff]
      %v2266 = vld [vmem:[%s57 + $0x58] sm:$0xff]
      %v2267 = vld [vmem:[%s57 + $0x60] sm:$0xff]
      %v2268 = vld [vmem:[%s57 + $0x68] sm:$0xff]
      %v2269 = vld [vmem:[%s57 + $0x70] sm:$0xff]
      %v2270 = vld [vmem:[%s57 + $0x78] sm:$0xff]
      %v2271 = vld [vmem:[%s57 + $0x80] sm:$0xff]
      %v2272 = vld [vmem:[%s57 + $0x88] sm:$0xff]
      %v2273 = vld [vmem:[%s57 + $0x90] sm:$0xff]
      %v2274 = vld [vmem:[%s57 + $0x98] sm:$0xff]
      %v2275 = vld [vmem:[%s57 + $0xa0] sm:$0xff]
      %v2276 = vld [vmem:[%s57 + $0xa8] sm:$0xff]
      %v2277 = vld [vmem:[%s57 + $0xb0] sm:$0xff]
      %v2278 = vld [vmem:[%s57 + $0xb8] sm:$0xff]
      %v2279 = vld [vmem:[%s57 + $0xc0] sm:$0xff]
      %v2280 = vld [vmem:[%s57 + $0xc8] sm:$0xff]
      %v2281 = vld [vmem:[%s57 + $0xd0] sm:$0xff]
      %v2282 = vld [vmem:[%s57 + $0xd8] sm:$0xff]
      %v2283 = vld [vmem:[%s57 + $0xe0] sm:$0xff]
      %v2284 = vld [vmem:[%s57 + $0xe8] sm:$0xff]
      %v2285 = vld [vmem:[%s57 + $0xf0] sm:$0xff]
      %v2286 = vld [vmem:[%s57 + $0xf8] sm:$0xff]
      %2287 = vmatprep.subr.mxu0 0.0
      %2288 = vmatpush1.msra.mxu0 %v2255
      %2289 = vmatprep.subr.mxu0 0.0
      %2290 = vmatpush1.msra.mxu0 %v2256
      %2291 = vmatprep.subr.mxu0 0.0
      %2292 = vmatpush1.msra.mxu0 %v2257
      %2293 = vmatprep.subr.mxu0 0.0
      %2294 = vmatpush1.msra.mxu0 %v2258
      %2295 = vmatprep.subr.mxu0 0.0
      %2296 = vmatpush1.msra.mxu0 %v2259
      %2297 = vmatprep.subr.mxu0 0.0
      %2298 = vmatpush1.msra.mxu0 %v2260
      %2299 = vmatprep.subr.mxu0 0.0
      %2300 = vmatpush1.msra.mxu0 %v2261
      %2301 = vmatprep.subr.mxu0 0.0
      %2302 = vmatpush1.msra.mxu0 %v2262
      %2303 = vmatprep.subr.mxu0 0.0
      %2304 = vmatpush1.msra.mxu0 %v2263
      %2305 = vmatprep.subr.mxu0 0.0
      %2306 = vmatpush1.msra.mxu0 %v2264
      %2307 = vmatprep.subr.mxu0 0.0
      %2308 = vmatpush1.msra.mxu0 %v2265
      %2309 = vmatprep.subr.mxu0 0.0
      %2310 = vmatpush1.msra.mxu0 %v2266
      %2311 = vmatprep.subr.mxu0 0.0
      %2312 = vmatpush1.msra.mxu0 %v2267
      %2313 = vmatprep.subr.mxu0 0.0
      %2314 = vmatpush1.msra.mxu0 %v2268
      %2315 = vmatprep.subr.mxu0 0.0
      %2316 = vmatpush1.msra.mxu0 %v2269
      %2317 = vmatprep.subr.mxu0 0.0
      %2318 = vmatpush1.msra.mxu0 %v2270
      %2319 = vmatprep.subr.mxu0 0.0
      %2320 = vmatpush1.msra.mxu0 %v2271
      %2321 = vmatprep.subr.mxu0 0.0
      %2322 = vmatpush1.msra.mxu0 %v2272
      %2323 = vmatprep.subr.mxu0 0.0
      %2324 = vmatpush1.msra.mxu0 %v2273
      %2325 = vmatprep.subr.mxu0 0.0
      %2326 = vmatpush1.msra.mxu0 %v2274
      %2327 = vmatprep.subr.mxu0 0.0
      %2328 = vmatpush1.msra.mxu0 %v2275
      %2329 = vmatprep.subr.mxu0 0.0
      %2330 = vmatpush1.msra.mxu0 %v2276
      %2331 = vmatprep.subr.mxu0 0.0
      %2332 = vmatpush1.msra.mxu0 %v2277
      %2333 = vmatprep.subr.mxu0 0.0
      %2334 = vmatpush1.msra.mxu0 %v2278
      %2335 = vmatprep.subr.mxu0 0.0
      %2336 = vmatpush1.msra.mxu0 %v2279
      %2337 = vmatprep.subr.mxu0 0.0
      %2338 = vmatpush1.msra.mxu0 %v2280
      %2339 = vmatprep.subr.mxu0 0.0
      %2340 = vmatpush1.msra.mxu0 %v2281
      %2341 = vmatprep.subr.mxu0 0.0
      %2342 = vmatpush1.msra.mxu0 %v2282
      %2343 = vmatprep.subr.mxu0 0.0
      %2344 = vmatpush1.msra.mxu0 %v2283
      %2345 = vmatprep.subr.mxu0 0.0
      %2346 = vmatpush1.msra.mxu0 %v2284
      %2347 = vmatprep.subr.mxu0 0.0
      %2348 = vmatpush1.msra.mxu0 %v2285
      %2349 = vmatprep.subr.mxu0 0.0
      %2350 = vmatpush1.msra.mxu0 %v2286
      %2351 = vmatprep.mubr.f32.mxu0 %v1085
      %2352 = vmatmul.mubr.f32.gmra.mrb[0].mxu0 %v1074
      %v2353 = vpop.f32.mrb[0].mxu0
      %v2354 = vadd.f32 0.0, %v2353
      %v2355 = vpop.f32.mrb[0].mxu0
      %2356 = vdwg.mxu0
      %v2357 = vld [vmem:[%s59] sm:$0xff]
      %v2358 = vld [vmem:[%s59 + $0x8] sm:$0xff]
      %v2359 = vld [vmem:[%s59 + $0x10] sm:$0xff]
      %v2360 = vld [vmem:[%s59 + $0x18] sm:$0xff]
      %v2361 = vld [vmem:[%s59 + $0x20] sm:$0xff]
      %v2362 = vld [vmem:[%s59 + $0x28] sm:$0xff]
      %v2363 = vld [vmem:[%s59 + $0x30] sm:$0xff]
      %v2364 = vld [vmem:[%s59 + $0x38] sm:$0xff]
      %v2366 = vsel %vm1855, %v2252, 0
      %2368 = vmatprep.subr.mxu0 0.0
      %2369 = vmatpush1.msra.mxu0 %v2357
      %2370 = vmatprep.subr.mxu0 0.0
      %2371 = vmatpush1.msra.mxu0 %v2358
      %2372 = vmatprep.subr.mxu0 0.0
      %2373 = vmatpush1.msra.mxu0 %v2359
      %2374 = vmatprep.subr.mxu0 0.0
      %2375 = vmatpush1.msra.mxu0 %v2360
      %2376 = vmatprep.subr.mxu0 0.0
      %2377 = vmatpush1.msra.mxu0 %v2361
      %2378 = vmatprep.subr.mxu0 0.0
      %2379 = vmatpush1.msra.mxu0 %v2362
      %2380 = vmatprep.subr.mxu0 0.0
      %2381 = vmatpush1.msra.mxu0 %v2363
      %2382 = vmatprep.subr.mxu0 0.0
      %2383 = vmatpush1.msra.mxu0 %v2364
      %2384 = vmatprep.subr.mxu0 0.0
      %2385 = vmatpush1.msra.mxu0 0.0
      %2386 = vmatprep.subr.mxu0 0.0
      %2387 = vmatpush1.msra.mxu0 0.0
      %2388 = vmatprep.subr.mxu0 0.0
      %2389 = vmatpush1.msra.mxu0 0.0
      %2390 = vmatprep.subr.mxu0 0.0
      %2391 = vmatpush1.msra.mxu0 0.0
      %2392 = vmatprep.subr.mxu0 0.0
      %2393 = vmatpush1.msra.mxu0 0.0
      %2394 = vmatprep.subr.mxu0 0.0
      %2395 = vmatpush1.msra.mxu0 0.0
      %2396 = vmatprep.subr.mxu0 0.0
      %2397 = vmatpush1.msra.mxu0 0.0
      %2398 = vmatprep.subr.mxu0 0.0
      %2399 = vmatpush1.msra.mxu0 0.0
      %2400 = vmatprep.subr.mxu0 0.0
      %2401 = vmatpush1.msra.mxu0 0.0
      %2402 = vmatprep.subr.mxu0 0.0
      %2403 = vmatpush1.msra.mxu0 0.0
      %2404 = vmatprep.subr.mxu0 0.0
      %2405 = vmatpush1.msra.mxu0 0.0
      %2406 = vmatprep.subr.mxu0 0.0
      %2407 = vmatpush1.msra.mxu0 0.0
      %2408 = vmatprep.subr.mxu0 0.0
      %2409 = vmatpush1.msra.mxu0 0.0
      %2410 = vmatprep.subr.mxu0 0.0
      %2411 = vmatpush1.msra.mxu0 0.0
      %2412 = vmatprep.subr.mxu0 0.0
      %2413 = vmatpush1.msra.mxu0 0.0
      %2414 = vmatprep.subr.mxu0 0.0
      %2415 = vmatpush1.msra.mxu0 0.0
      %2416 = vmatprep.subr.mxu0 0.0
      %2417 = vmatpush1.msra.mxu0 0.0
      %2418 = vmatprep.subr.mxu0 0.0
      %2419 = vmatpush1.msra.mxu0 0.0
      %2420 = vmatprep.subr.mxu0 0.0
      %2421 = vmatpush1.msra.mxu0 0.0
      %2422 = vmatprep.subr.mxu0 0.0
      %2423 = vmatpush1.msra.mxu0 0.0
      %2424 = vmatprep.subr.mxu0 0.0
      %2425 = vmatpush1.msra.mxu0 0.0
      %2426 = vmatprep.subr.mxu0 0.0
      %2427 = vmatpush1.msra.mxu0 0.0
      %2428 = vmatprep.subr.mxu0 0.0
      %2429 = vmatpush1.msra.mxu0 0.0
      %2430 = vmatprep.subr.mxu0 0.0
      %2431 = vmatpush1.msra.mxu0 0.0
      %2432 = vmatprep.mubr.f32.mxu0 0.0
      %2433 = vmatmul.mubr.f32.gmra.mrb[0].mxu0 %v2366
      %v2434 = vpop.f32.mrb[0].mxu0
      %v2435 = vadd.f32 0.0, %v2434
      %v2436 = vpop.f32.mrb[0].mxu0
      %2437 = vdwg.mxu0
      %2438 = vst [vmem:[#allocation6] sm:$0xff] 0.0
      %vm2439 = vcmask 171008
      %2440 = vst.msk [vmem:[#allocation6 + $0x8] sm:$0xff] %vm2439, 0.0
      %2441 = vst [vmem:[#allocation6 + $0x10] sm:$0xf] 0.0
      %vm2442 = vcmask 166912
      %2443 = vst.msk [vmem:[#allocation6 + $0x18] sm:$0xf] %vm2442, 0.0
      %vm2444 = vcmask 125952
      %2445 = vst.msk [vmem:[#allocation6 + $0x8] sm:$0xf] %vm2444, %v2354
      %v2447 = vrot.slane %v2435, 4
      %vm2449 = vcmask 130052
      %2450 = vst.msk [vmem:[#allocation6 + $0x8] sm:$0xf0] %vm2449, %v2447
      %2451 = vst.msk [vmem:[#allocation6 + $0x18] sm:$0xf] %vm2444, %v2447
      %v2452 = vld [vmem:[#allocation6] sm:$0xff]
      %v2453 = vld [vmem:[#allocation6 + $0x8] sm:$0xff]
      %v2454 = vld [vmem:[#allocation6 + $0x10] sm:$0xf]
      %v2455 = vld [vmem:[#allocation6 + $0x18] sm:$0xf]
      %v2456 = vsel %vm1072, 1, 0
      %vm2457 = vcmp.eq.s32.totalorder %v2456, 1
      %2462 = vrot.lane.b32.xlu0 %v2452, 5
      %v2463 = vpop.permute.xlu0 %2462
      %2464 = vrot.lane.b32.xlu0 %v2453, 5
      %v2465 = vpop.permute.xlu0 %2464
      %2466 = vrot.lane.b32.xlu0 %v2454, 5
      %v2467 = vpop.permute.xlu0 %2466
      %2468 = vrot.lane.b32.xlu0 %v2455, 5
      %v2469 = vpop.permute.xlu0 %2468
      %vm2470 = vcmask 39936
      %v2471 = vsel %vm2470, %v2463, %v2465
      %v2472 = vsel %vm2470, %v2467, %v2469
      %v2475 = vsel %vm2457, 0.0, %v2471
      %v2476 = vsel %vm2457, 0.0, %v2472
      %2477 = vst.msk [vmem:[#allocation7] sm:$0xff] %vm1128, %v2475
      %2478 = vst.msk [vmem:[#allocation7 + $0x8] sm:$0xf] %vm2444, %v2476
      %v2479 = vld [vmem:[#allocation6] sm:$0xff]
      %v2480 = vld [vmem:[#allocation6 + $0x8] sm:$0xff]
      %v2481 = vld [vmem:[#allocation6 + $0x10] sm:$0xf]
      %v2482 = vld [vmem:[#allocation6 + $0x18] sm:$0xf]
      %2487 = vrot.lane.b32.xlu0 %v2479, 4
      %v2488 = vpop.permute.xlu0 %2487
      %2489 = vrot.lane.b32.xlu0 %v2480, 4
      %v2490 = vpop.permute.xlu0 %2489
      %2491 = vrot.lane.b32.xlu0 %v2481, 4
      %v2492 = vpop.permute.xlu0 %2491
      %2493 = vrot.lane.b32.xlu0 %v2482, 4
      %v2494 = vpop.permute.xlu0 %2493
      %vm2495 = vcmask 31744
      %v2496 = vsel %vm2495, %v2488, %v2490
      %v2497 = vsel %vm2495, %v2492, %v2494
      %2500 = vst.msk [vmem:[#allocation7 + $0xc] sm:$0xff] %vm1128, %v2496
      %2501 = vst.msk [vmem:[#allocation7 + $0x14] sm:$0xf] %vm2444, %v2497
      %v2502 = vld [vmem:[#allocation6] sm:$0xff]
      %v2503 = vld [vmem:[#allocation6 + $0x8] sm:$0xff]
      %v2504 = vld [vmem:[#allocation6 + $0x10] sm:$0xf]
      %v2505 = vld [vmem:[#allocation6 + $0x18] sm:$0xf]
      %v2506 = vsel %vm1073, 1, 0
      %vm2507 = vcmp.eq.s32.totalorder %v2506, 1
      %2512 = vrot.lane.b32.xlu0 %v2502, 3
      %v2513 = vpop.permute.xlu0 %2512
      %2514 = vrot.lane.b32.xlu0 %v2503, 3
      %v2515 = vpop.permute.xlu0 %2514
      %2516 = vrot.lane.b32.xlu0 %v2504, 3
      %v2517 = vpop.permute.xlu0 %2516
      %2518 = vrot.lane.b32.xlu0 %v2505, 3
      %v2519 = vpop.permute.xlu0 %2518
      %vm2520 = vcmask 23552
      %v2521 = vsel %vm2520, %v2513, %v2515
      %v2522 = vsel %vm2520, %v2517, %v2519
      %v2525 = vsel %vm2507, 0.0, %v2521
      %v2526 = vsel %vm2507, 0.0, %v2522
      %2527 = vst.msk [vmem:[#allocation7 + $0x18] sm:$0xff] %vm1128, %v2525
      %2528 = vst.msk [vmem:[#allocation7 + $0x20] sm:$0xf] %vm2444, %v2526
      %v2529 = vld [vmem:[#allocation6] sm:$0xff]
      %v2530 = vld [vmem:[#allocation6 + $0x8] sm:$0xff]
      %v2531 = vld [vmem:[#allocation6 + $0x10] sm:$0xf]
      %v2532 = vld [vmem:[#allocation6 + $0x18] sm:$0xf]
      %2537 = vrot.lane.b32.xlu0 %v2529, 1
      %v2538 = vpop.permute.xlu0 %2537
      %2539 = vrot.lane.b32.xlu0 %v2530, 1
      %v2540 = vpop.permute.xlu0 %2539
      %2541 = vrot.lane.b32.xlu0 %v2531, 1
      %v2542 = vpop.permute.xlu0 %2541
      %2543 = vrot.lane.b32.xlu0 %v2532, 1
      %v2544 = vpop.permute.xlu0 %2543
      %v2545 = vsel %vm1172, %v2538, %v2540
      %v2546 = vsel %vm1172, %v2542, %v2544
      %v2549 = vsel %vm2457, 0.0, %v2545
      %v2550 = vsel %vm2457, 0.0, %v2546
      %2551 = vst.msk [vmem:[#allocation7 + $0x24] sm:$0xff] %vm1128, %v2549
      %2552 = vst.msk [vmem:[#allocation7 + $0x2c] sm:$0xf] %vm2444, %v2550
      %v2553 = vld [vmem:[#allocation6 + $0x8] sm:$0xff]
      %v2554 = vld [vmem:[#allocation6 + $0x18] sm:$0xf]
      %2555 = vst.msk [vmem:[#allocation7 + $0x30] sm:$0xff] %vm1128, %v2553
      %2556 = vst.msk [vmem:[#allocation7 + $0x38] sm:$0xf] %vm2444, %v2554
      %v2557 = vld [vmem:[#allocation6 + $0x8] sm:$0xff]
      %v2558 = vld [vmem:[#allocation6 + $0x18] sm:$0xf]
      %2561 = vrot.lane.b32.xlu0 %v2557, 127
      %v2562 = vpop.permute.xlu0 %2561
      %2563 = vrot.lane.b32.xlu0 %v2558, 127
      %v2564 = vpop.permute.xlu0 %2563
      %v2567 = vsel %vm2507, 0.0, %v2562
      %v2568 = vsel %vm2507, 0.0, %v2564
      %2569 = vst.msk [vmem:[#allocation7 + $0x3c] sm:$0xff] %vm1128, %v2567
      %2570 = vst.msk [vmem:[#allocation7 + $0x44] sm:$0xf] %vm2444, %v2568
      %v2571 = vld [vmem:[#allocation6 + $0x8] sm:$0xff]
      %v2572 = vld [vmem:[#allocation6 + $0x18] sm:$0xf]
      %2575 = vrot.lane.b32.xlu0 %v2571, 125
      %v2576 = vpop.permute.xlu0 %2575
      %2577 = vrot.lane.b32.xlu0 %v2572, 125
      %v2578 = vpop.permute.xlu0 %2577
      %v2581 = vsel %vm2457, 0.0, %v2576
      %v2582 = vsel %vm2457, 0.0, %v2578
      %2583 = vst.msk [vmem:[#allocation7 + $0x48] sm:$0xff] %vm1128, %v2581
      %2584 = vst.msk [vmem:[#allocation7 + $0x50] sm:$0xf] %vm2444, %v2582
      %v2585 = vld [vmem:[#allocation6 + $0x8] sm:$0xff]
      %v2586 = vld [vmem:[#allocation6 + $0x18] sm:$0xf]
      %2589 = vrot.lane.b32.xlu0 %v2585, 124
      %v2590 = vpop.permute.xlu0 %2589
      %2591 = vrot.lane.b32.xlu0 %v2586, 124
      %v2592 = vpop.permute.xlu0 %2591
      %2595 = vst.msk [vmem:[#allocation7 + $0x54] sm:$0xff] %vm1128, %v2590
      %2596 = vst.msk [vmem:[#allocation7 + $0x5c] sm:$0xf] %vm2444, %v2592
      %v2597 = vld [vmem:[#allocation6 + $0x8] sm:$0xff]
      %v2598 = vld [vmem:[#allocation6 + $0x18] sm:$0xf]
      %2601 = vrot.lane.b32.xlu0 %v2597, 123
      %v2602 = vpop.permute.xlu0 %2601
      %2603 = vrot.lane.b32.xlu0 %v2598, 123
      %v2604 = vpop.permute.xlu0 %2603
      %v2607 = vsel %vm2507, 0.0, %v2602
      %v2608 = vsel %vm2507, 0.0, %v2604
      %2609 = vst.msk [vmem:[#allocation7 + $0x60] sm:$0xff] %vm1128, %v2607
      %2610 = vst.msk [vmem:[#allocation7 + $0x68] sm:$0xf] %vm2444, %v2608
      %v2611 = vld [vmem:[%s19] sm:$0xff]
      %v2612 = vld [vmem:[#allocation7] sm:$0xff]
      %v2613 = vld [vmem:[#allocation7 + $0x8] sm:$0xff]
      %v2614 = vld [vmem:[#allocation7 + $0x10] sm:$0xff]
      %v2615 = vld [vmem:[#allocation7 + $0x18] sm:$0xff]
      %v2616 = vld [vmem:[#allocation7 + $0x20] sm:$0xff]
      %v2617 = vld [vmem:[#allocation7 + $0x28] sm:$0xff]
      %v2618 = vld [vmem:[#allocation7 + $0x30] sm:$0xff]
      %v2619 = vld [vmem:[#allocation7 + $0x38] sm:$0xff]
      %v2620 = vld [vmem:[#allocation7 + $0x40] sm:$0xff]
      %v2621 = vld [vmem:[#allocation7 + $0x48] sm:$0xff]
      %v2622 = vld [vmem:[#allocation7 + $0x50] sm:$0xff]
      %v2623 = vld [vmem:[#allocation7 + $0x58] sm:$0xff]
      %v2624 = vld [vmem:[#allocation7 + $0x60] sm:$0xff]
      %v2625 = vld [vmem:[#allocation7 + $0x68] sm:$0xf]
      %v2626 = vld [vmem:[%s21] sm:$0xff]
      %2628 = vset.pattern.permute.xlu0 0
      %2629 = vperm.xlu0 %2628, %v2626
      %v2630 = vpop.permute.xlu0 %2629
      %v2633 = vsel %vm2011, %v2611, 0
      %v2636 = vsel %vm1303, %v2625, 0
      %2638 = vmatprep.subr.mxu0 0.0
      %2639 = vmatpush1.msra.mxu0 %v2612
      %2640 = vmatprep.subr.mxu0 0.0
      %2641 = vmatpush1.msra.mxu0 %v2613
      %2642 = vmatprep.subr.mxu0 0.0
      %2643 = vmatpush1.msra.mxu0 %v2614
      %2644 = vmatprep.subr.mxu0 0.0
      %2645 = vmatpush1.msra.mxu0 %v2615
      %2646 = vmatprep.subr.mxu0 0.0
      %2647 = vmatpush1.msra.mxu0 %v2616
      %2648 = vmatprep.subr.mxu0 0.0
      %2649 = vmatpush1.msra.mxu0 %v2617
      %2650 = vmatprep.subr.mxu0 0.0
      %2651 = vmatpush1.msra.mxu0 %v2618
      %2652 = vmatprep.subr.mxu0 0.0
      %2653 = vmatpush1.msra.mxu0 %v2619
      %2654 = vmatprep.subr.mxu0 0.0
      %2655 = vmatpush1.msra.mxu0 %v2620
      %2656 = vmatprep.subr.mxu0 0.0
      %2657 = vmatpush1.msra.mxu0 %v2621
      %2658 = vmatprep.subr.mxu0 0.0
      %2659 = vmatpush1.msra.mxu0 %v2622
      %2660 = vmatprep.subr.mxu0 0.0
      %2661 = vmatpush1.msra.mxu0 %v2623
      %2662 = vmatprep.subr.mxu0 0.0
      %2663 = vmatpush1.msra.mxu0 %v2624
      %2664 = vmatprep.subr.mxu0 0.0
      %2665 = vmatpush1.msra.mxu0 %v2636
      %2666 = vmatprep.subr.mxu0 0.0
      %2667 = vmatpush1.msra.mxu0 0.0
      %2668 = vmatprep.subr.mxu0 0.0
      %2669 = vmatpush1.msra.mxu0 0.0
      %2670 = vmatprep.subr.mxu0 0.0
      %2671 = vmatpush1.msra.mxu0 0.0
      %2672 = vmatprep.subr.mxu0 0.0
      %2673 = vmatpush1.msra.mxu0 0.0
      %2674 = vmatprep.subr.mxu0 0.0
      %2675 = vmatpush1.msra.mxu0 0.0
      %2676 = vmatprep.subr.mxu0 0.0
      %2677 = vmatpush1.msra.mxu0 0.0
      %2678 = vmatprep.subr.mxu0 0.0
      %2679 = vmatpush1.msra.mxu0 0.0
      %2680 = vmatprep.subr.mxu0 0.0
      %2681 = vmatpush1.msra.mxu0 0.0
      %2682 = vmatprep.subr.mxu0 0.0
      %2683 = vmatpush1.msra.mxu0 0.0
      %2684 = vmatprep.subr.mxu0 0.0
      %2685 = vmatpush1.msra.mxu0 0.0
      %2686 = vmatprep.subr.mxu0 0.0
      %2687 = vmatpush1.msra.mxu0 0.0
      %2688 = vmatprep.subr.mxu0 0.0
      %2689 = vmatpush1.msra.mxu0 0.0
      %2690 = vmatprep.subr.mxu0 0.0
      %2691 = vmatpush1.msra.mxu0 0.0
      %2692 = vmatprep.subr.mxu0 0.0
      %2693 = vmatpush1.msra.mxu0 0.0
      %2694 = vmatprep.subr.mxu0 0.0
      %2695 = vmatpush1.msra.mxu0 0.0
      %2696 = vmatprep.subr.mxu0 0.0
      %2697 = vmatpush1.msra.mxu0 0.0
      %2698 = vmatprep.subr.mxu0 0.0
      %2699 = vmatpush1.msra.mxu0 0.0
      %2700 = vmatprep.subr.mxu0 0.0
      %2701 = vmatpush1.msra.mxu0 0.0
      %2702 = vmatprep.mubr.f32.mxu0 0.0
      %2703 = vmatmul.mubr.f32.gmra.mrb[0].mxu0 %v2633
      %v2704 = vpop.f32.mrb[0].mxu0
      %v2705 = vadd.f32 %v2630, %v2704
      %v2706 = vpop.f32.mrb[0].mxu0
      %2707 = vdwg.mxu0
      %v2708 = vmax.f32 %v2705, 0.0
      %2709 = vst.msk [vmem:[#allocation6 + $0x8] sm:$0xff] %vm1128, %v2708
      %v2710 = vld [vmem:[#allocation6] sm:$0xff]
      %v2711 = vld [vmem:[#allocation6 + $0x8] sm:$0xff]
      %2714 = vrot.lane.b32.xlu0 %v2710, 5
      %v2715 = vpop.permute.xlu0 %2714
      %2716 = vrot.lane.b32.xlu0 %v2711, 5
      %v2717 = vpop.permute.xlu0 %2716
      %v2718 = vsel %vm2470, %v2715, %v2717
      %v2720 = vsel %vm2457, 0.0, %v2718
      %2721 = vst.msk [vmem:[#allocation7] sm:$0xff] %vm1128, %v2720
      %v2722 = vld [vmem:[#allocation6] sm:$0xff]
      %v2723 = vld [vmem:[#allocation6 + $0x8] sm:$0xff]
      %2726 = vrot.lane.b32.xlu0 %v2722, 4
      %v2727 = vpop.permute.xlu0 %2726
      %2728 = vrot.lane.b32.xlu0 %v2723, 4
      %v2729 = vpop.permute.xlu0 %2728
      %v2730 = vsel %vm2495, %v2727, %v2729
      %2732 = vst.msk [vmem:[#allocation7 + $0x8] sm:$0xff] %vm1128, %v2730
      %v2733 = vld [vmem:[#allocation6] sm:$0xff]
      %v2734 = vld [vmem:[#allocation6 + $0x8] sm:$0xff]
      %2737 = vrot.lane.b32.xlu0 %v2733, 3
      %v2738 = vpop.permute.xlu0 %2737
      %2739 = vrot.lane.b32.xlu0 %v2734, 3
      %v2740 = vpop.permute.xlu0 %2739
      %v2741 = vsel %vm2520, %v2738, %v2740
      %v2743 = vsel %vm2507, 0.0, %v2741
      %2744 = vst.msk [vmem:[#allocation7 + $0x10] sm:$0xff] %vm1128, %v2743
      %v2745 = vld [vmem:[#allocation6] sm:$0xff]
      %v2746 = vld [vmem:[#allocation6 + $0x8] sm:$0xff]
      %2749 = vrot.lane.b32.xlu0 %v2745, 1
      %v2750 = vpop.permute.xlu0 %2749
      %2751 = vrot.lane.b32.xlu0 %v2746, 1
      %v2752 = vpop.permute.xlu0 %2751
      %v2753 = vsel %vm1172, %v2750, %v2752
      %v2755 = vsel %vm2457, 0.0, %v2753
      %2756 = vst.msk [vmem:[#allocation7 + $0x18] sm:$0xff] %vm1128, %v2755
      %v2757 = vld [vmem:[#allocation6 + $0x8] sm:$0xff]
      %2758 = vst.msk [vmem:[#allocation7 + $0x20] sm:$0xff] %vm1128, %v2757
      %v2759 = vld [vmem:[#allocation6 + $0x8] sm:$0xff]
      %2761 = vrot.lane.b32.xlu0 %v2759, 127
      %v2762 = vpop.permute.xlu0 %2761
      %v2764 = vsel %vm2507, 0.0, %v2762
      %2765 = vst.msk [vmem:[#allocation7 + $0x28] sm:$0xff] %vm1128, %v2764
      %v2766 = vld [vmem:[#allocation6 + $0x8] sm:$0xff]
      %2768 = vrot.lane.b32.xlu0 %v2766, 125
      %v2769 = vpop.permute.xlu0 %2768
      %v2771 = vsel %vm2457, 0.0, %v2769
      %2772 = vst.msk [vmem:[#allocation7 + $0x30] sm:$0xff] %vm1128, %v2771
      %v2773 = vld [vmem:[#allocation6 + $0x8] sm:$0xff]
      %2775 = vrot.lane.b32.xlu0 %v2773, 124
      %v2776 = vpop.permute.xlu0 %2775
      %2778 = vst.msk [vmem:[#allocation7 + $0x38] sm:$0xff] %vm1128, %v2776
      %v2779 = vld [vmem:[#allocation6 + $0x8] sm:$0xff]
      %2781 = vrot.lane.b32.xlu0 %v2779, 123
      %v2782 = vpop.permute.xlu0 %2781
      %v2784 = vsel %vm2507, 0.0, %v2782
      %2785 = vst.msk [vmem:[#allocation7 + $0x40] sm:$0xff] %vm1128, %v2784
      %v2786 = vld [vmem:[%s23] sm:$0xff]
      %v2787 = vld [vmem:[#allocation7] sm:$0xff]
      %v2788 = vld [vmem:[#allocation7 + $0x8] sm:$0xff]
      %v2789 = vld [vmem:[#allocation7 + $0x10] sm:$0xff]
      %v2790 = vld [vmem:[#allocation7 + $0x18] sm:$0xff]
      %v2791 = vld [vmem:[#allocation7 + $0x20] sm:$0xff]
      %v2792 = vld [vmem:[#allocation7 + $0x28] sm:$0xff]
      %v2793 = vld [vmem:[#allocation7 + $0x30] sm:$0xff]
      %v2794 = vld [vmem:[#allocation7 + $0x38] sm:$0xff]
      %v2795 = vld [vmem:[#allocation7 + $0x40] sm:$0xff]
      %v2796 = vld [vmem:[%s25] sm:$0xff]
      %2798 = vset.pattern.permute.xlu0 0
      %2799 = vperm.xlu0 %2798, %v2796
      %v2800 = vpop.permute.xlu0 %2799
      %v2803 = vsel %vm1570, %v2786, 0
      %2805 = vmatprep.subr.mxu0 0.0
      %2806 = vmatpush1.msra.mxu0 %v2787
      %2807 = vmatprep.subr.mxu0 0.0
      %2808 = vmatpush1.msra.mxu0 %v2788
      %2809 = vmatprep.subr.mxu0 0.0
      %2810 = vmatpush1.msra.mxu0 %v2789
      %2811 = vmatprep.subr.mxu0 0.0
      %2812 = vmatpush1.msra.mxu0 %v2790
      %2813 = vmatprep.subr.mxu0 0.0
      %2814 = vmatpush1.msra.mxu0 %v2791
      %2815 = vmatprep.subr.mxu0 0.0
      %2816 = vmatpush1.msra.mxu0 %v2792
      %2817 = vmatprep.subr.mxu0 0.0
      %2818 = vmatpush1.msra.mxu0 %v2793
      %2819 = vmatprep.subr.mxu0 0.0
      %2820 = vmatpush1.msra.mxu0 %v2794
      %2821 = vmatprep.subr.mxu0 0.0
      %2822 = vmatpush1.msra.mxu0 %v2795
      %2823 = vmatprep.subr.mxu0 0.0
      %2824 = vmatpush1.msra.mxu0 0.0
      %2825 = vmatprep.subr.mxu0 0.0
      %2826 = vmatpush1.msra.mxu0 0.0
      %2827 = vmatprep.subr.mxu0 0.0
      %2828 = vmatpush1.msra.mxu0 0.0
      %2829 = vmatprep.subr.mxu0 0.0
      %2830 = vmatpush1.msra.mxu0 0.0
      %2831 = vmatprep.subr.mxu0 0.0
      %2832 = vmatpush1.msra.mxu0 0.0
      %2833 = vmatprep.subr.mxu0 0.0
      %2834 = vmatpush1.msra.mxu0 0.0
      %2835 = vmatprep.subr.mxu0 0.0
      %2836 = vmatpush1.msra.mxu0 0.0
      %2837 = vmatprep.subr.mxu0 0.0
      %2838 = vmatpush1.msra.mxu0 0.0
      %2839 = vmatprep.subr.mxu0 0.0
      %2840 = vmatpush1.msra.mxu0 0.0
      %2841 = vmatprep.subr.mxu0 0.0
      %2842 = vmatpush1.msra.mxu0 0.0
      %2843 = vmatprep.subr.mxu0 0.0
      %2844 = vmatpush1.msra.mxu0 0.0
      %2845 = vmatprep.subr.mxu0 0.0
      %2846 = vmatpush1.msra.mxu0 0.0
      %2847 = vmatprep.subr.mxu0 0.0
      %2848 = vmatpush1.msra.mxu0 0.0
      %2849 = vmatprep.subr.mxu0 0.0
      %2850 = vmatpush1.msra.mxu0 0.0
      %2851 = vmatprep.subr.mxu0 0.0
      %2852 = vmatpush1.msra.mxu0 0.0
      %2853 = vmatprep.subr.mxu0 0.0
      %2854 = vmatpush1.msra.mxu0 0.0
      %2855 = vmatprep.subr.mxu0 0.0
      %2856 = vmatpush1.msra.mxu0 0.0
      %2857 = vmatprep.subr.mxu0 0.0
      %2858 = vmatpush1.msra.mxu0 0.0
      %2859 = vmatprep.subr.mxu0 0.0
      %2860 = vmatpush1.msra.mxu0 0.0
      %2861 = vmatprep.subr.mxu0 0.0
      %2862 = vmatpush1.msra.mxu0 0.0
      %2863 = vmatprep.subr.mxu0 0.0
      %2864 = vmatpush1.msra.mxu0 0.0
      %2865 = vmatprep.subr.mxu0 0.0
      %2866 = vmatpush1.msra.mxu0 0.0
      %2867 = vmatprep.subr.mxu0 0.0
      %2868 = vmatpush1.msra.mxu0 0.0
      %2869 = vmatprep.mubr.f32.mxu0 0.0
      %2870 = vmatmul.mubr.f32.gmra.mrb[0].mxu0 %v2803
      %v2871 = vpop.f32.mrb[0].mxu0
      %v2872 = vadd.f32 %v2800, %v2871
      %v2873 = vpop.f32.mrb[0].mxu0
      %2874 = vdwg.mxu0
      %2875 = vst [vmem:[#allocation6] sm:$0xff] 0.0
      %2876 = vst.msk [vmem:[#allocation6 + $0x8] sm:$0xff] %vm2439, 0.0
      %2877 = vst [vmem:[#allocation6 + $0x10] sm:$0xf] 0.0
      %2878 = vst.msk [vmem:[#allocation6 + $0x18] sm:$0xf] %vm2442, 0.0
      %2879 = vst.msk [vmem:[#allocation6 + $0x8] sm:$0xff] %vm1128, %v2872
      %v2880 = vld [vmem:[#allocation6] sm:$0xff]
      %v2881 = vld [vmem:[#allocation6 + $0x8] sm:$0xff]
      %2884 = vrot.lane.b32.xlu0 %v2880, 5
      %v2885 = vpop.permute.xlu0 %2884
      %2886 = vrot.lane.b32.xlu0 %v2881, 5
      %v2887 = vpop.permute.xlu0 %2886
      %v2888 = vsel %vm2470, %v2885, %v2887
      %v2890 = vsel %vm2457, 0.0, %v2888
      %2891 = vst.msk [vmem:[#allocation7] sm:$0xff] %vm1128, %v2890
      %v2892 = vld [vmem:[#allocation6] sm:$0xff]
      %v2893 = vld [vmem:[#allocation6 + $0x8] sm:$0xff]
      %2896 = vrot.lane.b32.xlu0 %v2892, 4
      %v2897 = vpop.permute.xlu0 %2896
      %2898 = vrot.lane.b32.xlu0 %v2893, 4
      %v2899 = vpop.permute.xlu0 %2898
      %v2900 = vsel %vm2495, %v2897, %v2899
      %2902 = vst.msk [vmem:[#allocation7 + $0x8] sm:$0xff] %vm1128, %v2900
      %v2903 = vld [vmem:[#allocation6] sm:$0xff]
      %v2904 = vld [vmem:[#allocation6 + $0x8] sm:$0xff]
      %2907 = vrot.lane.b32.xlu0 %v2903, 3
      %v2908 = vpop.permute.xlu0 %2907
      %2909 = vrot.lane.b32.xlu0 %v2904, 3
      %v2910 = vpop.permute.xlu0 %2909
      %v2911 = vsel %vm2520, %v2908, %v2910
      %v2913 = vsel %vm2507, 0.0, %v2911
      %2914 = vst.msk [vmem:[#allocation7 + $0x10] sm:$0xff] %vm1128, %v2913
      %v2915 = vld [vmem:[#allocation6] sm:$0xff]
      %v2916 = vld [vmem:[#allocation6 + $0x8] sm:$0xff]
      %2919 = vrot.lane.b32.xlu0 %v2915, 1
      %v2920 = vpop.permute.xlu0 %2919
      %2921 = vrot.lane.b32.xlu0 %v2916, 1
      %v2922 = vpop.permute.xlu0 %2921
      %v2923 = vsel %vm1172, %v2920, %v2922
      %v2925 = vsel %vm2457, 0.0, %v2923
      %2926 = vst.msk [vmem:[#allocation7 + $0x18] sm:$0xff] %vm1128, %v2925
      %v2927 = vld [vmem:[#allocation6 + $0x8] sm:$0xff]
      %2928 = vst.msk [vmem:[#allocation7 + $0x20] sm:$0xff] %vm1128, %v2927
      %v2929 = vld [vmem:[#allocation6 + $0x8] sm:$0xff]
      %2931 = vrot.lane.b32.xlu0 %v2929, 127
      %v2932 = vpop.permute.xlu0 %2931
      %v2934 = vsel %vm2507, 0.0, %v2932
      %2935 = vst.msk [vmem:[#allocation7 + $0x28] sm:$0xff] %vm1128, %v2934
      %v2936 = vld [vmem:[#allocation6 + $0x8] sm:$0xff]
      %2938 = vrot.lane.b32.xlu0 %v2936, 125
      %v2939 = vpop.permute.xlu0 %2938
      %v2941 = vsel %vm2457, 0.0, %v2939
      %2942 = vst.msk [vmem:[#allocation7 + $0x30] sm:$0xff] %vm1128, %v2941
      %v2943 = vld [vmem:[#allocation6 + $0x8] sm:$0xff]
      %2945 = vrot.lane.b32.xlu0 %v2943, 124
      %v2946 = vpop.permute.xlu0 %2945
      %2948 = vst.msk [vmem:[#allocation7 + $0x38] sm:$0xff] %vm1128, %v2946
      %v2949 = vld [vmem:[#allocation6 + $0x8] sm:$0xff]
      %2951 = vrot.lane.b32.xlu0 %v2949, 123
      %v2952 = vpop.permute.xlu0 %2951
      %v2954 = vsel %vm2507, 0.0, %v2952
      %2955 = vst.msk [vmem:[#allocation7 + $0x40] sm:$0xff] %vm1128, %v2954
      %v2956 = vld [vmem:[%s27] sm:$0xff]
      %v2957 = vld [vmem:[#allocation7] sm:$0xff]
      %v2958 = vld [vmem:[#allocation7 + $0x8] sm:$0xff]
      %v2959 = vld [vmem:[#allocation7 + $0x10] sm:$0xff]
      %v2960 = vld [vmem:[#allocation7 + $0x18] sm:$0xff]
      %v2961 = vld [vmem:[#allocation7 + $0x20] sm:$0xff]
      %v2962 = vld [vmem:[#allocation7 + $0x28] sm:$0xff]
      %v2963 = vld [vmem:[#allocation7 + $0x30] sm:$0xff]
      %v2964 = vld [vmem:[#allocation7 + $0x38] sm:$0xff]
      %v2965 = vld [vmem:[#allocation7 + $0x40] sm:$0xff]
      %v2966 = vld [vmem:[%s29] sm:$0xff]
      %2968 = vset.pattern.permute.xlu0 0
      %2969 = vperm.xlu0 %2968, %v2966
      %v2970 = vpop.permute.xlu0 %2969
      %v2973 = vsel %vm1570, %v2956, 0
      %2975 = vmatprep.subr.mxu0 0.0
      %2976 = vmatpush1.msra.mxu0 %v2957
      %2977 = vmatprep.subr.mxu0 0.0
      %2978 = vmatpush1.msra.mxu0 %v2958
      %2979 = vmatprep.subr.mxu0 0.0
      %2980 = vmatpush1.msra.mxu0 %v2959
      %2981 = vmatprep.subr.mxu0 0.0
      %2982 = vmatpush1.msra.mxu0 %v2960
      %2983 = vmatprep.subr.mxu0 0.0
      %2984 = vmatpush1.msra.mxu0 %v2961
      %2985 = vmatprep.subr.mxu0 0.0
      %2986 = vmatpush1.msra.mxu0 %v2962
      %2987 = vmatprep.subr.mxu0 0.0
      %2988 = vmatpush1.msra.mxu0 %v2963
      %2989 = vmatprep.subr.mxu0 0.0
      %2990 = vmatpush1.msra.mxu0 %v2964
      %2991 = vmatprep.subr.mxu0 0.0
      %2992 = vmatpush1.msra.mxu0 %v2965
      %2993 = vmatprep.subr.mxu0 0.0
      %2994 = vmatpush1.msra.mxu0 0.0
      %2995 = vmatprep.subr.mxu0 0.0
      %2996 = vmatpush1.msra.mxu0 0.0
      %2997 = vmatprep.subr.mxu0 0.0
      %2998 = vmatpush1.msra.mxu0 0.0
      %2999 = vmatprep.subr.mxu0 0.0
      %3000 = vmatpush1.msra.mxu0 0.0
      %3001 = vmatprep.subr.mxu0 0.0
      %3002 = vmatpush1.msra.mxu0 0.0
      %3003 = vmatprep.subr.mxu0 0.0
      %3004 = vmatpush1.msra.mxu0 0.0
      %3005 = vmatprep.subr.mxu0 0.0
      %3006 = vmatpush1.msra.mxu0 0.0
      %3007 = vmatprep.subr.mxu0 0.0
      %3008 = vmatpush1.msra.mxu0 0.0
      %3009 = vmatprep.subr.mxu0 0.0
      %3010 = vmatpush1.msra.mxu0 0.0
      %3011 = vmatprep.subr.mxu0 0.0
      %3012 = vmatpush1.msra.mxu0 0.0
      %3013 = vmatprep.subr.mxu0 0.0
      %3014 = vmatpush1.msra.mxu0 0.0
      %3015 = vmatprep.subr.mxu0 0.0
      %3016 = vmatpush1.msra.mxu0 0.0
      %3017 = vmatprep.subr.mxu0 0.0
      %3018 = vmatpush1.msra.mxu0 0.0
      %3019 = vmatprep.subr.mxu0 0.0
      %3020 = vmatpush1.msra.mxu0 0.0
      %3021 = vmatprep.subr.mxu0 0.0
      %3022 = vmatpush1.msra.mxu0 0.0
      %3023 = vmatprep.subr.mxu0 0.0
      %3024 = vmatpush1.msra.mxu0 0.0
      %3025 = vmatprep.subr.mxu0 0.0
      %3026 = vmatpush1.msra.mxu0 0.0
      %3027 = vmatprep.subr.mxu0 0.0
      %3028 = vmatpush1.msra.mxu0 0.0
      %3029 = vmatprep.subr.mxu0 0.0
      %3030 = vmatpush1.msra.mxu0 0.0
      %3031 = vmatprep.subr.mxu0 0.0
      %3032 = vmatpush1.msra.mxu0 0.0
      %3033 = vmatprep.subr.mxu0 0.0
      %3034 = vmatpush1.msra.mxu0 0.0
      %3035 = vmatprep.subr.mxu0 0.0
      %3036 = vmatpush1.msra.mxu0 0.0
      %3037 = vmatprep.subr.mxu0 0.0
      %3038 = vmatpush1.msra.mxu0 0.0
      %3039 = vmatprep.mubr.f32.mxu0 0.0
      %3040 = vmatmul.mubr.f32.gmra.mrb[0].mxu0 %v2973
      %v3041 = vpop.f32.mrb[0].mxu0
      %v3042 = vadd.f32 %v2970, %v3041
      %v3043 = vpop.f32.mrb[0].mxu0
      %3044 = vdwg.mxu0
      %v3045 = vmax.f32 %v3042, 0.0
      %3046 = vst.msk [vmem:[#allocation6 + $0x8] sm:$0xff] %vm1128, %v3045
      %v3047 = vld [vmem:[#allocation6] sm:$0xff]
      %v3048 = vld [vmem:[#allocation6 + $0x8] sm:$0xff]
      %3051 = vrot.lane.b32.xlu0 %v3047, 5
      %v3052 = vpop.permute.xlu0 %3051
      %3053 = vrot.lane.b32.xlu0 %v3048, 5
      %v3054 = vpop.permute.xlu0 %3053
      %v3055 = vsel %vm2470, %v3052, %v3054
      %v3057 = vsel %vm2457, 0.0, %v3055
      %3058 = vst.msk [vmem:[#allocation7] sm:$0xff] %vm1128, %v3057
      %v3059 = vld [vmem:[#allocation6] sm:$0xff]
      %v3060 = vld [vmem:[#allocation6 + $0x8] sm:$0xff]
      %3063 = vrot.lane.b32.xlu0 %v3059, 4
      %v3064 = vpop.permute.xlu0 %3063
      %3065 = vrot.lane.b32.xlu0 %v3060, 4
      %v3066 = vpop.permute.xlu0 %3065
      %v3067 = vsel %vm2495, %v3064, %v3066
      %3069 = vst.msk [vmem:[#allocation7 + $0x8] sm:$0xff] %vm1128, %v3067
      %v3070 = vld [vmem:[#allocation6] sm:$0xff]
      %v3071 = vld [vmem:[#allocation6 + $0x8] sm:$0xff]
      %3074 = vrot.lane.b32.xlu0 %v3070, 3
      %v3075 = vpop.permute.xlu0 %3074
      %3076 = vrot.lane.b32.xlu0 %v3071, 3
      %v3077 = vpop.permute.xlu0 %3076
      %v3078 = vsel %vm2520, %v3075, %v3077
      %v3080 = vsel %vm2507, 0.0, %v3078
      %3081 = vst.msk [vmem:[#allocation7 + $0x10] sm:$0xff] %vm1128, %v3080
      %v3082 = vld [vmem:[#allocation6] sm:$0xff]
      %v3083 = vld [vmem:[#allocation6 + $0x8] sm:$0xff]
      %3086 = vrot.lane.b32.xlu0 %v3082, 1
      %v3087 = vpop.permute.xlu0 %3086
      %3088 = vrot.lane.b32.xlu0 %v3083, 1
      %v3089 = vpop.permute.xlu0 %3088
      %v3090 = vsel %vm1172, %v3087, %v3089
      %v3092 = vsel %vm2457, 0.0, %v3090
      %3093 = vst.msk [vmem:[#allocation7 + $0x18] sm:$0xff] %vm1128, %v3092
      %v3094 = vld [vmem:[#allocation6 + $0x8] sm:$0xff]
      %3095 = vst.msk [vmem:[#allocation7 + $0x20] sm:$0xff] %vm1128, %v3094
      %v3096 = vld [vmem:[#allocation6 + $0x8] sm:$0xff]
      %3098 = vrot.lane.b32.xlu0 %v3096, 127
      %v3099 = vpop.permute.xlu0 %3098
      %v3101 = vsel %vm2507, 0.0, %v3099
      %3102 = vst.msk [vmem:[#allocation7 + $0x28] sm:$0xff] %vm1128, %v3101
      %v3103 = vld [vmem:[#allocation6 + $0x8] sm:$0xff]
      %3105 = vrot.lane.b32.xlu0 %v3103, 125
      %v3106 = vpop.permute.xlu0 %3105
      %v3108 = vsel %vm2457, 0.0, %v3106
      %3109 = vst.msk [vmem:[#allocation7 + $0x30] sm:$0xff] %vm1128, %v3108
      %v3110 = vld [vmem:[#allocation6 + $0x8] sm:$0xff]
      %3112 = vrot.lane.b32.xlu0 %v3110, 124
      %v3113 = vpop.permute.xlu0 %3112
      %3115 = vst.msk [vmem:[#allocation7 + $0x38] sm:$0xff] %vm1128, %v3113
      %v3116 = vld [vmem:[#allocation6 + $0x8] sm:$0xff]
      %3118 = vrot.lane.b32.xlu0 %v3116, 123
      %v3119 = vpop.permute.xlu0 %3118
      %v3121 = vsel %vm2507, 0.0, %v3119
      %3122 = vst.msk [vmem:[#allocation7 + $0x40] sm:$0xff] %vm1128, %v3121
      %v3123 = vld [vmem:[%s31] sm:$0xff]
      %v3124 = vld [vmem:[#allocation7] sm:$0xff]
      %v3125 = vld [vmem:[#allocation7 + $0x8] sm:$0xff]
      %v3126 = vld [vmem:[#allocation7 + $0x10] sm:$0xff]
      %v3127 = vld [vmem:[#allocation7 + $0x18] sm:$0xff]
      %v3128 = vld [vmem:[#allocation7 + $0x20] sm:$0xff]
      %v3129 = vld [vmem:[#allocation7 + $0x28] sm:$0xff]
      %v3130 = vld [vmem:[#allocation7 + $0x30] sm:$0xff]
      %v3131 = vld [vmem:[#allocation7 + $0x38] sm:$0xff]
      %v3132 = vld [vmem:[#allocation7 + $0x40] sm:$0xff]
      %v3133 = vld [vmem:[%s33] sm:$0xff]
      %3135 = vset.pattern.permute.xlu0 0
      %3136 = vperm.xlu0 %3135, %v3133
      %v3137 = vpop.permute.xlu0 %3136
      %v3140 = vsel %vm1570, %v3123, 0
      %3142 = vmatprep.subr.mxu0 0.0
      %3143 = vmatpush1.msra.mxu0 %v3124
      %3144 = vmatprep.subr.mxu0 0.0
      %3145 = vmatpush1.msra.mxu0 %v3125
      %3146 = vmatprep.subr.mxu0 0.0
      %3147 = vmatpush1.msra.mxu0 %v3126
      %3148 = vmatprep.subr.mxu0 0.0
      %3149 = vmatpush1.msra.mxu0 %v3127
      %3150 = vmatprep.subr.mxu0 0.0
      %3151 = vmatpush1.msra.mxu0 %v3128
      %3152 = vmatprep.subr.mxu0 0.0
      %3153 = vmatpush1.msra.mxu0 %v3129
      %3154 = vmatprep.subr.mxu0 0.0
      %3155 = vmatpush1.msra.mxu0 %v3130
      %3156 = vmatprep.subr.mxu0 0.0
      %3157 = vmatpush1.msra.mxu0 %v3131
      %3158 = vmatprep.subr.mxu0 0.0
      %3159 = vmatpush1.msra.mxu0 %v3132
      %3160 = vmatprep.subr.mxu0 0.0
      %3161 = vmatpush1.msra.mxu0 0.0
      %3162 = vmatprep.subr.mxu0 0.0
      %3163 = vmatpush1.msra.mxu0 0.0
      %3164 = vmatprep.subr.mxu0 0.0
      %3165 = vmatpush1.msra.mxu0 0.0
      %3166 = vmatprep.subr.mxu0 0.0
      %3167 = vmatpush1.msra.mxu0 0.0
      %3168 = vmatprep.subr.mxu0 0.0
      %3169 = vmatpush1.msra.mxu0 0.0
      %3170 = vmatprep.subr.mxu0 0.0
      %3171 = vmatpush1.msra.mxu0 0.0
      %3172 = vmatprep.subr.mxu0 0.0
      %3173 = vmatpush1.msra.mxu0 0.0
      %3174 = vmatprep.subr.mxu0 0.0
      %3175 = vmatpush1.msra.mxu0 0.0
      %3176 = vmatprep.subr.mxu0 0.0
      %3177 = vmatpush1.msra.mxu0 0.0
      %3178 = vmatprep.subr.mxu0 0.0
      %3179 = vmatpush1.msra.mxu0 0.0
      %3180 = vmatprep.subr.mxu0 0.0
      %3181 = vmatpush1.msra.mxu0 0.0
      %3182 = vmatprep.subr.mxu0 0.0
      %3183 = vmatpush1.msra.mxu0 0.0
      %3184 = vmatprep.subr.mxu0 0.0
      %3185 = vmatpush1.msra.mxu0 0.0
      %3186 = vmatprep.subr.mxu0 0.0
      %3187 = vmatpush1.msra.mxu0 0.0
      %3188 = vmatprep.subr.mxu0 0.0
      %3189 = vmatpush1.msra.mxu0 0.0
      %3190 = vmatprep.subr.mxu0 0.0
      %3191 = vmatpush1.msra.mxu0 0.0
      %3192 = vmatprep.subr.mxu0 0.0
      %3193 = vmatpush1.msra.mxu0 0.0
      %3194 = vmatprep.subr.mxu0 0.0
      %3195 = vmatpush1.msra.mxu0 0.0
      %3196 = vmatprep.subr.mxu0 0.0
      %3197 = vmatpush1.msra.mxu0 0.0
      %3198 = vmatprep.subr.mxu0 0.0
      %3199 = vmatpush1.msra.mxu0 0.0
      %3200 = vmatprep.subr.mxu0 0.0
      %3201 = vmatpush1.msra.mxu0 0.0
      %3202 = vmatprep.subr.mxu0 0.0
      %3203 = vmatpush1.msra.mxu0 0.0
      %3204 = vmatprep.subr.mxu0 0.0
      %3205 = vmatpush1.msra.mxu0 0.0
      %3206 = vmatprep.mubr.f32.mxu0 0.0
      %3207 = vmatmul.mubr.f32.gmra.mrb[0].mxu0 %v3140
      %v3208 = vpop.f32.mrb[0].mxu0
      %v3209 = vadd.f32 %v3137, %v3208
      %v3210 = vpop.f32.mrb[0].mxu0
      %3211 = vdwg.mxu0
      %v3212 = vld [vmem:[%s61] sm:$0xff]
      %v3213 = vld [vmem:[%s61 + $0x8] sm:$0xff]
      %v3214 = vld [vmem:[%s61 + $0x10] sm:$0xff]
      %v3215 = vld [vmem:[%s61 + $0x18] sm:$0xff]
      %v3217 = vsel %vm1128, %v3209, 0
      %3219 = vmatprep.subr.mxu0 %v3213
      %3220 = vmatpush1.msra.mxu0 %v3212
      %3221 = vmatprep.subr.mxu0 %v3215
      %3222 = vmatpush1.msra.mxu0 %v3214
      %3223 = vmatprep.subr.mxu0 0.0
      %3224 = vmatpush1.msra.mxu0 0.0
      %3225 = vmatprep.subr.mxu0 0.0
      %3226 = vmatpush1.msra.mxu0 0.0
      %3227 = vmatprep.subr.mxu0 0.0
      %3228 = vmatpush1.msra.mxu0 0.0
      %3229 = vmatprep.subr.mxu0 0.0
      %3230 = vmatpush1.msra.mxu0 0.0
      %3231 = vmatprep.subr.mxu0 0.0
      %3232 = vmatpush1.msra.mxu0 0.0
      %3233 = vmatprep.subr.mxu0 0.0
      %3234 = vmatpush1.msra.mxu0 0.0
      %3235 = vmatprep.subr.mxu0 0.0
      %3236 = vmatpush1.msra.mxu0 0.0
      %3237 = vmatprep.subr.mxu0 0.0
      %3238 = vmatpush1.msra.mxu0 0.0
      %3239 = vmatprep.subr.mxu0 0.0
      %3240 = vmatpush1.msra.mxu0 0.0
      %3241 = vmatprep.subr.mxu0 0.0
      %3242 = vmatpush1.msra.mxu0 0.0
      %3243 = vmatprep.subr.mxu0 0.0
      %3244 = vmatpush1.msra.mxu0 0.0
      %3245 = vmatprep.subr.mxu0 0.0
      %3246 = vmatpush1.msra.mxu0 0.0
      %3247 = vmatprep.subr.mxu0 0.0
      %3248 = vmatpush1.msra.mxu0 0.0
      %3249 = vmatprep.subr.mxu0 0.0
      %3250 = vmatpush1.msra.mxu0 0.0
      %3251 = vmatprep.subr.mxu0 0.0
      %3252 = vmatpush1.msra.mxu0 0.0
      %3253 = vmatprep.subr.mxu0 0.0
      %3254 = vmatpush1.msra.mxu0 0.0
      %3255 = vmatprep.subr.mxu0 0.0
      %3256 = vmatpush1.msra.mxu0 0.0
      %3257 = vmatprep.subr.mxu0 0.0
      %3258 = vmatpush1.msra.mxu0 0.0
      %3259 = vmatprep.subr.mxu0 0.0
      %3260 = vmatpush1.msra.mxu0 0.0
      %3261 = vmatprep.subr.mxu0 0.0
      %3262 = vmatpush1.msra.mxu0 0.0
      %3263 = vmatprep.subr.mxu0 0.0
      %3264 = vmatpush1.msra.mxu0 0.0
      %3265 = vmatprep.subr.mxu0 0.0
      %3266 = vmatpush1.msra.mxu0 0.0
      %3267 = vmatprep.subr.mxu0 0.0
      %3268 = vmatpush1.msra.mxu0 0.0
      %3269 = vmatprep.subr.mxu0 0.0
      %3270 = vmatpush1.msra.mxu0 0.0
      %3271 = vmatprep.subr.mxu0 0.0
      %3272 = vmatpush1.msra.mxu0 0.0
      %3273 = vmatprep.subr.mxu0 0.0
      %3274 = vmatpush1.msra.mxu0 0.0
      %3275 = vmatprep.subr.mxu0 0.0
      %3276 = vmatpush1.msra.mxu0 0.0
      %3277 = vmatprep.subr.mxu0 0.0
      %3278 = vmatpush1.msra.mxu0 0.0
      %3279 = vmatprep.subr.mxu0 0.0
      %3280 = vmatpush1.msra.mxu0 0.0
      %3281 = vmatprep.subr.mxu0 0.0
      %3282 = vmatpush1.msra.mxu0 0.0
      %3283 = vmatprep.mubr.f32.mxu0 0.0
      %3284 = vmatmul.mubr.f32.gmra.mrb[0].mxu0 %v3217
      %v3285 = vpop.f32.mrb[0].mxu0
      %v3286 = vadd.f32 0.0, %v3285
      %v3287 = vpop.f32.mrb[0].mxu0
      %v3288 = vadd.f32 0.0, %v3287
      %3289 = vdwg.mxu0
      %v3290 = vld [vmem:[%s63] sm:$0xff]
      %v3291 = vld [vmem:[%s63 + $0x8] sm:$0xff]
      %3292 = vmatprep.subr.mxu0 0.0
      %3293 = vmatpush1.msra.mxu0 %v3290
      %3294 = vmatprep.subr.mxu0 0.0
      %3295 = vmatpush1.msra.mxu0 %v3291
      %3296 = vmatprep.subr.mxu0 0.0
      %3297 = vmatpush1.msra.mxu0 0.0
      %3298 = vmatprep.subr.mxu0 0.0
      %3299 = vmatpush1.msra.mxu0 0.0
      %3300 = vmatprep.subr.mxu0 0.0
      %3301 = vmatpush1.msra.mxu0 0.0
      %3302 = vmatprep.subr.mxu0 0.0
      %3303 = vmatpush1.msra.mxu0 0.0
      %3304 = vmatprep.subr.mxu0 0.0
      %3305 = vmatpush1.msra.mxu0 0.0
      %3306 = vmatprep.subr.mxu0 0.0
      %3307 = vmatpush1.msra.mxu0 0.0
      %3308 = vmatprep.subr.mxu0 0.0
      %3309 = vmatpush1.msra.mxu0 0.0
      %3310 = vmatprep.subr.mxu0 0.0
      %3311 = vmatpush1.msra.mxu0 0.0
      %3312 = vmatprep.subr.mxu0 0.0
      %3313 = vmatpush1.msra.mxu0 0.0
      %3314 = vmatprep.subr.mxu0 0.0
      %3315 = vmatpush1.msra.mxu0 0.0
      %3316 = vmatprep.subr.mxu0 0.0
      %3317 = vmatpush1.msra.mxu0 0.0
      %3318 = vmatprep.subr.mxu0 0.0
      %3319 = vmatpush1.msra.mxu0 0.0
      %3320 = vmatprep.subr.mxu0 0.0
      %3321 = vmatpush1.msra.mxu0 0.0
      %3322 = vmatprep.subr.mxu0 0.0
      %3323 = vmatpush1.msra.mxu0 0.0
      %3324 = vmatprep.subr.mxu0 0.0
      %3325 = vmatpush1.msra.mxu0 0.0
      %3326 = vmatprep.subr.mxu0 0.0
      %3327 = vmatpush1.msra.mxu0 0.0
      %3328 = vmatprep.subr.mxu0 0.0
      %3329 = vmatpush1.msra.mxu0 0.0
      %3330 = vmatprep.subr.mxu0 0.0
      %3331 = vmatpush1.msra.mxu0 0.0
      %3332 = vmatprep.subr.mxu0 0.0
      %3333 = vmatpush1.msra.mxu0 0.0
      %3334 = vmatprep.subr.mxu0 0.0
      %3335 = vmatpush1.msra.mxu0 0.0
      %3336 = vmatprep.subr.mxu0 0.0
      %3337 = vmatpush1.msra.mxu0 0.0
      %3338 = vmatprep.subr.mxu0 0.0
      %3339 = vmatpush1.msra.mxu0 0.0
      %3340 = vmatprep.subr.mxu0 0.0
      %3341 = vmatpush1.msra.mxu0 0.0
      %3342 = vmatprep.subr.mxu0 0.0
      %3343 = vmatpush1.msra.mxu0 0.0
      %3344 = vmatprep.subr.mxu0 0.0
      %3345 = vmatpush1.msra.mxu0 0.0
      %3346 = vmatprep.subr.mxu0 0.0
      %3347 = vmatpush1.msra.mxu0 0.0
      %3348 = vmatprep.subr.mxu0 0.0
      %3349 = vmatpush1.msra.mxu0 0.0
      %3350 = vmatprep.subr.mxu0 0.0
      %3351 = vmatpush1.msra.mxu0 0.0
      %3352 = vmatprep.subr.mxu0 0.0
      %3353 = vmatpush1.msra.mxu0 0.0
      %3354 = vmatprep.subr.mxu0 0.0
      %3355 = vmatpush1.msra.mxu0 0.0
      %3356 = vmatprep.mubr.f32.mxu0 0.0
      %3357 = vmatmul.mubr.f32.gmra.mrb[0].mxu0 %v3217
      %v3358 = vpop.f32.mrb[0].mxu0
      %v3359 = vadd.f32 0.0, %v3358
      %v3360 = vpop.f32.mrb[0].mxu0
      %3361 = vdwg.mxu0
      %3362 = vst [vmem:[#allocation4] sm:$0xff] 0.0
      %3363 = vst.msk [vmem:[#allocation4 + $0x8] sm:$0xff] %vm1818, 0.0
      %3364 = vst [vmem:[#allocation4 + $0x10] sm:$0xff] 0.0
      %3365 = vst.msk [vmem:[#allocation4 + $0x18] sm:$0xff] %vm1818, 0.0
      %3366 = vst.msk [vmem:[#allocation4 + $0x8] sm:$0xff] %vm1855, %v2252
      %3367 = vst.msk [vmem:[#allocation4 + $0x18] sm:$0xff] %vm1855, %v3359
      %v3368 = vld [vmem:[#allocation4] sm:$0xff]
      %v3369 = vld [vmem:[#allocation4 + $0x8] sm:$0xff]
      %v3370 = vld [vmem:[#allocation4 + $0x10] sm:$0xff]
      %v3371 = vld [vmem:[#allocation4 + $0x18] sm:$0xff]
      %3376 = vrot.lane.b32.xlu0 %v3368, 9
      %v3377 = vpop.permute.xlu0 %3376
      %3378 = vrot.lane.b32.xlu0 %v3369, 9
      %v3379 = vpop.permute.xlu0 %3378
      %3380 = vrot.lane.b32.xlu0 %v3370, 9
      %v3381 = vpop.permute.xlu0 %3380
      %3382 = vrot.lane.b32.xlu0 %v3371, 9
      %v3383 = vpop.permute.xlu0 %3382
      %v3384 = vsel %vm1848, %v3377, %v3379
      %v3385 = vsel %vm1848, %v3381, %v3383
      %v3388 = vsel %vm1835, 0.0, %v3384
      %v3389 = vsel %vm1835, 0.0, %v3385
      %3390 = vst.msk [vmem:[#allocation5] sm:$0xff] %vm1855, %v3388
      %3391 = vst.msk [vmem:[#allocation5 + $0x8] sm:$0xff] %vm1855, %v3389
      %v3392 = vld [vmem:[#allocation4] sm:$0xff]
      %v3393 = vld [vmem:[#allocation4 + $0x8] sm:$0xff]
      %v3394 = vld [vmem:[#allocation4 + $0x10] sm:$0xff]
      %v3395 = vld [vmem:[#allocation4 + $0x18] sm:$0xff]
      %3400 = vrot.lane.b32.xlu0 %v3392, 8
      %v3401 = vpop.permute.xlu0 %3400
      %3402 = vrot.lane.b32.xlu0 %v3393, 8
      %v3403 = vpop.permute.xlu0 %3402
      %3404 = vrot.lane.b32.xlu0 %v3394, 8
      %v3405 = vpop.permute.xlu0 %3404
      %3406 = vrot.lane.b32.xlu0 %v3395, 8
      %v3407 = vpop.permute.xlu0 %3406
      %v3408 = vsel %vm1874, %v3401, %v3403
      %v3409 = vsel %vm1874, %v3405, %v3407
      %3412 = vst.msk [vmem:[#allocation5 + $0x10] sm:$0xff] %vm1855, %v3408
      %3413 = vst.msk [vmem:[#allocation5 + $0x18] sm:$0xff] %vm1855, %v3409
      %v3414 = vld [vmem:[#allocation4] sm:$0xff]
      %v3415 = vld [vmem:[#allocation4 + $0x8] sm:$0xff]
      %v3416 = vld [vmem:[#allocation4 + $0x10] sm:$0xff]
      %v3417 = vld [vmem:[#allocation4 + $0x18] sm:$0xff]
      %3422 = vrot.lane.b32.xlu0 %v3414, 7
      %v3423 = vpop.permute.xlu0 %3422
      %3424 = vrot.lane.b32.xlu0 %v3415, 7
      %v3425 = vpop.permute.xlu0 %3424
      %3426 = vrot.lane.b32.xlu0 %v3416, 7
      %v3427 = vpop.permute.xlu0 %3426
      %3428 = vrot.lane.b32.xlu0 %v3417, 7
      %v3429 = vpop.permute.xlu0 %3428
      %v3430 = vsel %vm1899, %v3423, %v3425
      %v3431 = vsel %vm1899, %v3427, %v3429
      %v3434 = vsel %vm1886, 0.0, %v3430
      %v3435 = vsel %vm1886, 0.0, %v3431
      %3436 = vst.msk [vmem:[#allocation5 + $0x20] sm:$0xff] %vm1855, %v3434
      %3437 = vst.msk [vmem:[#allocation5 + $0x28] sm:$0xff] %vm1855, %v3435
      %v3438 = vld [vmem:[#allocation4] sm:$0xff]
      %v3439 = vld [vmem:[#allocation4 + $0x8] sm:$0xff]
      %v3440 = vld [vmem:[#allocation4 + $0x10] sm:$0xff]
      %v3441 = vld [vmem:[#allocation4 + $0x18] sm:$0xff]
      %3446 = vrot.lane.b32.xlu0 %v3438, 1
      %v3447 = vpop.permute.xlu0 %3446
      %3448 = vrot.lane.b32.xlu0 %v3439, 1
      %v3449 = vpop.permute.xlu0 %3448
      %3450 = vrot.lane.b32.xlu0 %v3440, 1
      %v3451 = vpop.permute.xlu0 %3450
      %3452 = vrot.lane.b32.xlu0 %v3441, 1
      %v3453 = vpop.permute.xlu0 %3452
      %v3454 = vsel %vm1172, %v3447, %v3449
      %v3455 = vsel %vm1172, %v3451, %v3453
      %v3458 = vsel %vm1835, 0.0, %v3454
      %v3459 = vsel %vm1835, 0.0, %v3455
      %3460 = vst.msk [vmem:[#allocation5 + $0x30] sm:$0xff] %vm1855, %v3458
      %3461 = vst.msk [vmem:[#allocation5 + $0x38] sm:$0xff] %vm1855, %v3459
      %v3462 = vld [vmem:[#allocation4 + $0x8] sm:$0xff]
      %v3463 = vld [vmem:[#allocation4 + $0x18] sm:$0xff]
      %3464 = vst.msk [vmem:[#allocation5 + $0x40] sm:$0xff] %vm1855, %v3462
      %3465 = vst.msk [vmem:[#allocation5 + $0x48] sm:$0xff] %vm1855, %v3463
      %v3466 = vld [vmem:[#allocation4 + $0x8] sm:$0xff]
      %v3467 = vld [vmem:[#allocation4 + $0x18] sm:$0xff]
      %3470 = vrot.lane.b32.xlu0 %v3466, 127
      %v3471 = vpop.permute.xlu0 %3470
      %3472 = vrot.lane.b32.xlu0 %v3467, 127
      %v3473 = vpop.permute.xlu0 %3472
      %v3476 = vsel %vm1886, 0.0, %v3471
      %v3477 = vsel %vm1886, 0.0, %v3473
      %3478 = vst.msk [vmem:[#allocation5 + $0x50] sm:$0xff] %vm1855, %v3476
      %3479 = vst.msk [vmem:[#allocation5 + $0x58] sm:$0xff] %vm1855, %v3477
      %v3480 = vld [vmem:[#allocation4 + $0x8] sm:$0xff]
      %v3481 = vld [vmem:[#allocation4 + $0x18] sm:$0xff]
      %3484 = vrot.lane.b32.xlu0 %v3480, 121
      %v3485 = vpop.permute.xlu0 %3484
      %3486 = vrot.lane.b32.xlu0 %v3481, 121
      %v3487 = vpop.permute.xlu0 %3486
      %v3490 = vsel %vm1835, 0.0, %v3485
      %v3491 = vsel %vm1835, 0.0, %v3487
      %3492 = vst.msk [vmem:[#allocation5 + $0x60] sm:$0xff] %vm1855, %v3490
      %3493 = vst.msk [vmem:[#allocation5 + $0x68] sm:$0xff] %vm1855, %v3491
      %v3494 = vld [vmem:[#allocation4 + $0x8] sm:$0xff]
      %v3495 = vld [vmem:[#allocation4 + $0x18] sm:$0xff]
      %3498 = vrot.lane.b32.xlu0 %v3494, 120
      %v3499 = vpop.permute.xlu0 %3498
      %3500 = vrot.lane.b32.xlu0 %v3495, 120
      %v3501 = vpop.permute.xlu0 %3500
      %3504 = vst.msk [vmem:[#allocation5 + $0x70] sm:$0xff] %vm1855, %v3499
      %3505 = vst.msk [vmem:[#allocation5 + $0x78] sm:$0xff] %vm1855, %v3501
      %v3506 = vld [vmem:[#allocation4 + $0x8] sm:$0xff]
      %v3507 = vld [vmem:[#allocation4 + $0x18] sm:$0xff]
      %3510 = vrot.lane.b32.xlu0 %v3506, 119
      %v3511 = vpop.permute.xlu0 %3510
      %3512 = vrot.lane.b32.xlu0 %v3507, 119
      %v3513 = vpop.permute.xlu0 %3512
      %v3516 = vsel %vm1886, 0.0, %v3511
      %v3517 = vsel %vm1886, 0.0, %v3513
      %3518 = vst.msk [vmem:[#allocation5 + $0x80] sm:$0xff] %vm1855, %v3516
      %3519 = vst.msk [vmem:[#allocation5 + $0x88] sm:$0xff] %vm1855, %v3517
      %v3520 = vld [vmem:[%s35] sm:$0xff]
      %v3521 = vld [vmem:[%s35 + $0x8] sm:$0xff]
      %v3522 = vld [vmem:[#allocation5] sm:$0xff]
      %v3523 = vld [vmem:[#allocation5 + $0x8] sm:$0xff]
      %v3524 = vld [vmem:[#allocation5 + $0x10] sm:$0xff]
      %v3525 = vld [vmem:[#allocation5 + $0x18] sm:$0xff]
      %v3526 = vld [vmem:[#allocation5 + $0x20] sm:$0xff]
      %v3527 = vld [vmem:[#allocation5 + $0x28] sm:$0xff]
      %v3528 = vld [vmem:[#allocation5 + $0x30] sm:$0xff]
      %v3529 = vld [vmem:[#allocation5 + $0x38] sm:$0xff]
      %v3530 = vld [vmem:[#allocation5 + $0x40] sm:$0xff]
      %v3531 = vld [vmem:[#allocation5 + $0x48] sm:$0xff]
      %v3532 = vld [vmem:[#allocation5 + $0x50] sm:$0xff]
      %v3533 = vld [vmem:[#allocation5 + $0x58] sm:$0xff]
      %v3534 = vld [vmem:[#allocation5 + $0x60] sm:$0xff]
      %v3535 = vld [vmem:[#allocation5 + $0x68] sm:$0xff]
      %v3536 = vld [vmem:[#allocation5 + $0x70] sm:$0xff]
      %v3537 = vld [vmem:[#allocation5 + $0x78] sm:$0xff]
      %v3538 = vld [vmem:[#allocation5 + $0x80] sm:$0xff]
      %v3539 = vld [vmem:[#allocation5 + $0x88] sm:$0xff]
      %v3540 = vld [vmem:[%s37] sm:$0xff]
      %3542 = vset.pattern.permute.xlu0 0
      %3543 = vperm.xlu0 %3542, %v3540
      %v3544 = vpop.permute.xlu0 %3543
      %v3547 = vsel %vm1128, %v3521, 0
      %3549 = vmatprep.subr.mxu0 0.0
      %3550 = vmatpush1.msra.mxu0 %v3522
      %3551 = vmatprep.subr.mxu0 0.0
      %3552 = vmatpush1.msra.mxu0 %v3523
      %3553 = vmatprep.subr.mxu0 0.0
      %3554 = vmatpush1.msra.mxu0 %v3524
      %3555 = vmatprep.subr.mxu0 0.0
      %3556 = vmatpush1.msra.mxu0 %v3525
      %3557 = vmatprep.subr.mxu0 0.0
      %3558 = vmatpush1.msra.mxu0 %v3526
      %3559 = vmatprep.subr.mxu0 0.0
      %3560 = vmatpush1.msra.mxu0 %v3527
      %3561 = vmatprep.subr.mxu0 0.0
      %3562 = vmatpush1.msra.mxu0 %v3528
      %3563 = vmatprep.subr.mxu0 0.0
      %3564 = vmatpush1.msra.mxu0 %v3529
      %3565 = vmatprep.subr.mxu0 0.0
      %3566 = vmatpush1.msra.mxu0 %v3530
      %3567 = vmatprep.subr.mxu0 0.0
      %3568 = vmatpush1.msra.mxu0 %v3531
      %3569 = vmatprep.subr.mxu0 0.0
      %3570 = vmatpush1.msra.mxu0 %v3532
      %3571 = vmatprep.subr.mxu0 0.0
      %3572 = vmatpush1.msra.mxu0 %v3533
      %3573 = vmatprep.subr.mxu0 0.0
      %3574 = vmatpush1.msra.mxu0 %v3534
      %3575 = vmatprep.subr.mxu0 0.0
      %3576 = vmatpush1.msra.mxu0 %v3535
      %3577 = vmatprep.subr.mxu0 0.0
      %3578 = vmatpush1.msra.mxu0 %v3536
      %3579 = vmatprep.subr.mxu0 0.0
      %3580 = vmatpush1.msra.mxu0 %v3537
      %3581 = vmatprep.subr.mxu0 0.0
      %3582 = vmatpush1.msra.mxu0 %v3538
      %3583 = vmatprep.subr.mxu0 0.0
      %3584 = vmatpush1.msra.mxu0 %v3539
      %3585 = vmatprep.subr.mxu0 0.0
      %3586 = vmatpush1.msra.mxu0 0.0
      %3587 = vmatprep.subr.mxu0 0.0
      %3588 = vmatpush1.msra.mxu0 0.0
      %3589 = vmatprep.subr.mxu0 0.0
      %3590 = vmatpush1.msra.mxu0 0.0
      %3591 = vmatprep.subr.mxu0 0.0
      %3592 = vmatpush1.msra.mxu0 0.0
      %3593 = vmatprep.subr.mxu0 0.0
      %3594 = vmatpush1.msra.mxu0 0.0
      %3595 = vmatprep.subr.mxu0 0.0
      %3596 = vmatpush1.msra.mxu0 0.0
      %3597 = vmatprep.subr.mxu0 0.0
      %3598 = vmatpush1.msra.mxu0 0.0
      %3599 = vmatprep.subr.mxu0 0.0
      %3600 = vmatpush1.msra.mxu0 0.0
      %3601 = vmatprep.subr.mxu0 0.0
      %3602 = vmatpush1.msra.mxu0 0.0
      %3603 = vmatprep.subr.mxu0 0.0
      %3604 = vmatpush1.msra.mxu0 0.0
      %3605 = vmatprep.subr.mxu0 0.0
      %3606 = vmatpush1.msra.mxu0 0.0
      %3607 = vmatprep.subr.mxu0 0.0
      %3608 = vmatpush1.msra.mxu0 0.0
      %3609 = vmatprep.subr.mxu0 0.0
      %3610 = vmatpush1.msra.mxu0 0.0
      %3611 = vmatprep.subr.mxu0 0.0
      %3612 = vmatpush1.msra.mxu0 0.0
      %3613 = vmatprep.mubr.f32.mxu0 %v3547
      %3614 = vmatmul.mubr.f32.gmra.mrb[0].mxu0 %v3520
      %v3615 = vpop.f32.mrb[0].mxu0
      %v3616 = vadd.f32 %v3544, %v3615
      %v3617 = vpop.f32.mrb[0].mxu0
      %3618 = vdwg.mxu0
      %v3619 = vmax.f32 %v3616, 0.0
      %3620 = vst.msk [vmem:[#allocation4 + $0x8] sm:$0xff] %vm1855, %v3619
      %v3621 = vld [vmem:[#allocation4] sm:$0xff]
      %v3622 = vld [vmem:[#allocation4 + $0x8] sm:$0xff]
      %3625 = vrot.lane.b32.xlu0 %v3621, 9
      %v3626 = vpop.permute.xlu0 %3625
      %3627 = vrot.lane.b32.xlu0 %v3622, 9
      %v3628 = vpop.permute.xlu0 %3627
      %v3629 = vsel %vm1848, %v3626, %v3628
      %v3631 = vsel %vm1835, 0.0, %v3629
      %3632 = vst.msk [vmem:[#allocation5] sm:$0xff] %vm1855, %v3631
      %v3633 = vld [vmem:[#allocation4] sm:$0xff]
      %v3634 = vld [vmem:[#allocation4 + $0x8] sm:$0xff]
      %3637 = vrot.lane.b32.xlu0 %v3633, 8
      %v3638 = vpop.permute.xlu0 %3637
      %3639 = vrot.lane.b32.xlu0 %v3634, 8
      %v3640 = vpop.permute.xlu0 %3639
      %v3641 = vsel %vm1874, %v3638, %v3640
      %3643 = vst.msk [vmem:[#allocation5 + $0x8] sm:$0xff] %vm1855, %v3641
      %v3644 = vld [vmem:[#allocation4] sm:$0xff]
      %v3645 = vld [vmem:[#allocation4 + $0x8] sm:$0xff]
      %3648 = vrot.lane.b32.xlu0 %v3644, 7
      %v3649 = vpop.permute.xlu0 %3648
      %3650 = vrot.lane.b32.xlu0 %v3645, 7
      %v3651 = vpop.permute.xlu0 %3650
      %v3652 = vsel %vm1899, %v3649, %v3651
      %v3654 = vsel %vm1886, 0.0, %v3652
      %3655 = vst.msk [vmem:[#allocation5 + $0x10] sm:$0xff] %vm1855, %v3654
      %v3656 = vld [vmem:[#allocation4] sm:$0xff]
      %v3657 = vld [vmem:[#allocation4 + $0x8] sm:$0xff]
      %3660 = vrot.lane.b32.xlu0 %v3656, 1
      %v3661 = vpop.permute.xlu0 %3660
      %3662 = vrot.lane.b32.xlu0 %v3657, 1
      %v3663 = vpop.permute.xlu0 %3662
      %v3664 = vsel %vm1172, %v3661, %v3663
      %v3666 = vsel %vm1835, 0.0, %v3664
      %3667 = vst.msk [vmem:[#allocation5 + $0x18] sm:$0xff] %vm1855, %v3666
      %v3668 = vld [vmem:[#allocation4 + $0x8] sm:$0xff]
      %3669 = vst.msk [vmem:[#allocation5 + $0x20] sm:$0xff] %vm1855, %v3668
      %v3670 = vld [vmem:[#allocation4 + $0x8] sm:$0xff]
      %3672 = vrot.lane.b32.xlu0 %v3670, 127
      %v3673 = vpop.permute.xlu0 %3672
      %v3675 = vsel %vm1886, 0.0, %v3673
      %3676 = vst.msk [vmem:[#allocation5 + $0x28] sm:$0xff] %vm1855, %v3675
      %v3677 = vld [vmem:[#allocation4 + $0x8] sm:$0xff]
      %3679 = vrot.lane.b32.xlu0 %v3677, 121
      %v3680 = vpop.permute.xlu0 %3679
      %v3682 = vsel %vm1835, 0.0, %v3680
      %3683 = vst.msk [vmem:[#allocation5 + $0x30] sm:$0xff] %vm1855, %v3682
      %v3684 = vld [vmem:[#allocation4 + $0x8] sm:$0xff]
      %3686 = vrot.lane.b32.xlu0 %v3684, 120
      %v3687 = vpop.permute.xlu0 %3686
      %3689 = vst.msk [vmem:[#allocation5 + $0x38] sm:$0xff] %vm1855, %v3687
      %v3690 = vld [vmem:[#allocation4 + $0x8] sm:$0xff]
      %3692 = vrot.lane.b32.xlu0 %v3690, 119
      %v3693 = vpop.permute.xlu0 %3692
      %v3695 = vsel %vm1886, 0.0, %v3693
      %3696 = vst.msk [vmem:[#allocation5 + $0x40] sm:$0xff] %vm1855, %v3695
      %v3697 = vld [vmem:[%s39] sm:$0xff]
      %v3698 = vld [vmem:[#allocation5] sm:$0xff]
      %v3699 = vld [vmem:[#allocation5 + $0x8] sm:$0xff]
      %v3700 = vld [vmem:[#allocation5 + $0x10] sm:$0xff]
      %v3701 = vld [vmem:[#allocation5 + $0x18] sm:$0xff]
      %v3702 = vld [vmem:[#allocation5 + $0x20] sm:$0xff]
      %v3703 = vld [vmem:[#allocation5 + $0x28] sm:$0xff]
      %v3704 = vld [vmem:[#allocation5 + $0x30] sm:$0xff]
      %v3705 = vld [vmem:[#allocation5 + $0x38] sm:$0xff]
      %v3706 = vld [vmem:[#allocation5 + $0x40] sm:$0xff]
      %v3707 = vld [vmem:[%s41] sm:$0xff]
      %3709 = vset.pattern.permute.xlu0 0
      %3710 = vperm.xlu0 %3709, %v3707
      %v3711 = vpop.permute.xlu0 %3710
      %v3714 = vsel %vm1570, %v3697, 0
      %3716 = vmatprep.subr.mxu0 0.0
      %3717 = vmatpush1.msra.mxu0 %v3698
      %3718 = vmatprep.subr.mxu0 0.0
      %3719 = vmatpush1.msra.mxu0 %v3699
      %3720 = vmatprep.subr.mxu0 0.0
      %3721 = vmatpush1.msra.mxu0 %v3700
      %3722 = vmatprep.subr.mxu0 0.0
      %3723 = vmatpush1.msra.mxu0 %v3701
      %3724 = vmatprep.subr.mxu0 0.0
      %3725 = vmatpush1.msra.mxu0 %v3702
      %3726 = vmatprep.subr.mxu0 0.0
      %3727 = vmatpush1.msra.mxu0 %v3703
      %3728 = vmatprep.subr.mxu0 0.0
      %3729 = vmatpush1.msra.mxu0 %v3704
      %3730 = vmatprep.subr.mxu0 0.0
      %3731 = vmatpush1.msra.mxu0 %v3705
      %3732 = vmatprep.subr.mxu0 0.0
      %3733 = vmatpush1.msra.mxu0 %v3706
      %3734 = vmatprep.subr.mxu0 0.0
      %3735 = vmatpush1.msra.mxu0 0.0
      %3736 = vmatprep.subr.mxu0 0.0
      %3737 = vmatpush1.msra.mxu0 0.0
      %3738 = vmatprep.subr.mxu0 0.0
      %3739 = vmatpush1.msra.mxu0 0.0
      %3740 = vmatprep.subr.mxu0 0.0
      %3741 = vmatpush1.msra.mxu0 0.0
      %3742 = vmatprep.subr.mxu0 0.0
      %3743 = vmatpush1.msra.mxu0 0.0
      %3744 = vmatprep.subr.mxu0 0.0
      %3745 = vmatpush1.msra.mxu0 0.0
      %3746 = vmatprep.subr.mxu0 0.0
      %3747 = vmatpush1.msra.mxu0 0.0
      %3748 = vmatprep.subr.mxu0 0.0
      %3749 = vmatpush1.msra.mxu0 0.0
      %3750 = vmatprep.subr.mxu0 0.0
      %3751 = vmatpush1.msra.mxu0 0.0
      %3752 = vmatprep.subr.mxu0 0.0
      %3753 = vmatpush1.msra.mxu0 0.0
      %3754 = vmatprep.subr.mxu0 0.0
      %3755 = vmatpush1.msra.mxu0 0.0
      %3756 = vmatprep.subr.mxu0 0.0
      %3757 = vmatpush1.msra.mxu0 0.0
      %3758 = vmatprep.subr.mxu0 0.0
      %3759 = vmatpush1.msra.mxu0 0.0
      %3760 = vmatprep.subr.mxu0 0.0
      %3761 = vmatpush1.msra.mxu0 0.0
      %3762 = vmatprep.subr.mxu0 0.0
      %3763 = vmatpush1.msra.mxu0 0.0
      %3764 = vmatprep.subr.mxu0 0.0
      %3765 = vmatpush1.msra.mxu0 0.0
      %3766 = vmatprep.subr.mxu0 0.0
      %3767 = vmatpush1.msra.mxu0 0.0
      %3768 = vmatprep.subr.mxu0 0.0
      %3769 = vmatpush1.msra.mxu0 0.0
      %3770 = vmatprep.subr.mxu0 0.0
      %3771 = vmatpush1.msra.mxu0 0.0
      %3772 = vmatprep.subr.mxu0 0.0
      %3773 = vmatpush1.msra.mxu0 0.0
      %3774 = vmatprep.subr.mxu0 0.0
      %3775 = vmatpush1.msra.mxu0 0.0
      %3776 = vmatprep.subr.mxu0 0.0
      %3777 = vmatpush1.msra.mxu0 0.0
      %3778 = vmatprep.subr.mxu0 0.0
      %3779 = vmatpush1.msra.mxu0 0.0
      %3780 = vmatprep.mubr.f32.mxu0 0.0
      %3781 = vmatmul.mubr.f32.gmra.mrb[0].mxu0 %v3714
      %v3782 = vpop.f32.mrb[0].mxu0
      %v3783 = vadd.f32 %v3711, %v3782
      %v3784 = vpop.f32.mrb[0].mxu0
      %3785 = vdwg.mxu0
      %v3786 = vld [vmem:[%s65] sm:$0xff]
      %v3787 = vld [vmem:[%s65 + $0x8] sm:$0xff]
      %v3788 = vld [vmem:[%s65 + $0x10] sm:$0xff]
      %v3789 = vld [vmem:[%s65 + $0x18] sm:$0xff]
      %v3790 = vld [vmem:[%s65 + $0x20] sm:$0xff]
      %v3791 = vld [vmem:[%s65 + $0x28] sm:$0xff]
      %v3792 = vld [vmem:[%s65 + $0x30] sm:$0xff]
      %v3793 = vld [vmem:[%s65 + $0x38] sm:$0xff]
      %v3794 = vld [vmem:[%s65 + $0x40] sm:$0xff]
      %v3795 = vld [vmem:[%s65 + $0x48] sm:$0xff]
      %v3796 = vld [vmem:[%s65 + $0x50] sm:$0xff]
      %v3797 = vld [vmem:[%s65 + $0x58] sm:$0xff]
      %v3798 = vld [vmem:[%s65 + $0x60] sm:$0xff]
      %v3799 = vld [vmem:[%s65 + $0x68] sm:$0xff]
      %v3800 = vld [vmem:[%s65 + $0x70] sm:$0xff]
      %v3801 = vld [vmem:[%s65 + $0x78] sm:$0xff]
      %v3803 = vsel %vm1855, %v3783, 0
      %3805 = vmatprep.subr.mxu0 %v3787
      %3806 = vmatpush1.msra.mxu0 %v3786
      %3807 = vmatprep.subr.mxu0 %v3789
      %3808 = vmatpush1.msra.mxu0 %v3788
      %3809 = vmatprep.subr.mxu0 %v3791
      %3810 = vmatpush1.msra.mxu0 %v3790
      %3811 = vmatprep.subr.mxu0 %v3793
      %3812 = vmatpush1.msra.mxu0 %v3792
      %3813 = vmatprep.subr.mxu0 %v3795
      %3814 = vmatpush1.msra.mxu0 %v3794
      %3815 = vmatprep.subr.mxu0 %v3797
      %3816 = vmatpush1.msra.mxu0 %v3796
      %3817 = vmatprep.subr.mxu0 %v3799
      %3818 = vmatpush1.msra.mxu0 %v3798
      %3819 = vmatprep.subr.mxu0 %v3801
      %3820 = vmatpush1.msra.mxu0 %v3800
      %3821 = vmatprep.subr.mxu0 0.0
      %3822 = vmatpush1.msra.mxu0 0.0
      %3823 = vmatprep.subr.mxu0 0.0
      %3824 = vmatpush1.msra.mxu0 0.0
      %3825 = vmatprep.subr.mxu0 0.0
      %3826 = vmatpush1.msra.mxu0 0.0
      %3827 = vmatprep.subr.mxu0 0.0
      %3828 = vmatpush1.msra.mxu0 0.0
      %3829 = vmatprep.subr.mxu0 0.0
      %3830 = vmatpush1.msra.mxu0 0.0
      %3831 = vmatprep.subr.mxu0 0.0
      %3832 = vmatpush1.msra.mxu0 0.0
      %3833 = vmatprep.subr.mxu0 0.0
      %3834 = vmatpush1.msra.mxu0 0.0
      %3835 = vmatprep.subr.mxu0 0.0
      %3836 = vmatpush1.msra.mxu0 0.0
      %3837 = vmatprep.subr.mxu0 0.0
      %3838 = vmatpush1.msra.mxu0 0.0
      %3839 = vmatprep.subr.mxu0 0.0
      %3840 = vmatpush1.msra.mxu0 0.0
      %3841 = vmatprep.subr.mxu0 0.0
      %3842 = vmatpush1.msra.mxu0 0.0
      %3843 = vmatprep.subr.mxu0 0.0
      %3844 = vmatpush1.msra.mxu0 0.0
      %3845 = vmatprep.subr.mxu0 0.0
      %3846 = vmatpush1.msra.mxu0 0.0
      %3847 = vmatprep.subr.mxu0 0.0
      %3848 = vmatpush1.msra.mxu0 0.0
      %3849 = vmatprep.subr.mxu0 0.0
      %3850 = vmatpush1.msra.mxu0 0.0
      %3851 = vmatprep.subr.mxu0 0.0
      %3852 = vmatpush1.msra.mxu0 0.0
      %3853 = vmatprep.subr.mxu0 0.0
      %3854 = vmatpush1.msra.mxu0 0.0
      %3855 = vmatprep.subr.mxu0 0.0
      %3856 = vmatpush1.msra.mxu0 0.0
      %3857 = vmatprep.subr.mxu0 0.0
      %3858 = vmatpush1.msra.mxu0 0.0
      %3859 = vmatprep.subr.mxu0 0.0
      %3860 = vmatpush1.msra.mxu0 0.0
      %3861 = vmatprep.subr.mxu0 0.0
      %3862 = vmatpush1.msra.mxu0 0.0
      %3863 = vmatprep.subr.mxu0 0.0
      %3864 = vmatpush1.msra.mxu0 0.0
      %3865 = vmatprep.subr.mxu0 0.0
      %3866 = vmatpush1.msra.mxu0 0.0
      %3867 = vmatprep.subr.mxu0 0.0
      %3868 = vmatpush1.msra.mxu0 0.0
      %3869 = vmatprep.mubr.f32.mxu0 0.0
      %3870 = vmatmul.mubr.f32.gmra.mrb[0].mxu0 %v3803
      %v3871 = vpop.f32.mrb[0].mxu0
      %v3872 = vadd.f32 0.0, %v3871
      %v3873 = vpop.f32.mrb[0].mxu0
      %v3874 = vadd.f32 0.0, %v3873
      %3875 = vdwg.mxu0
      %3876 = vst [vmem:[#allocation2] sm:$0xff] 0.0
      %3877 = vst [vmem:[#allocation2 + $0x8] sm:$0xff] 0.0
      %3878 = vst [vmem:[#allocation2 + $0x10] sm:$0xff] 0.0
      %3879 = vst.msk [vmem:[#allocation2 + $0x18] sm:$0xff] %vm1078, 0.0
      %3880 = vst [vmem:[#allocation2 + $0x20] sm:$0xff] 0.0
      %3881 = vst [vmem:[#allocation2 + $0x28] sm:$0xff] 0.0
      %3882 = vst [vmem:[#allocation2 + $0x30] sm:$0xff] 0.0
      %3883 = vst.msk [vmem:[#allocation2 + $0x38] sm:$0xff] %vm1078, 0.0
      %3884 = vst [vmem:[#allocation2 + $0x8] sm:$0xff] %v1641
      %3885 = vst [vmem:[#allocation2 + $0x10] sm:$0xff] %v1643
      %3886 = vst [vmem:[#allocation2 + $0x28] sm:$0xff] %v3872
      %3887 = vst [vmem:[#allocation2 + $0x30] sm:$0xff] %v3874
      %v3888 = vld [vmem:[#allocation2] sm:$0xff]
      %v3889 = vld [vmem:[#allocation2 + $0x8] sm:$0xff]
      %v3890 = vld [vmem:[#allocation2 + $0x10] sm:$0xff]
      %v3891 = vld [vmem:[#allocation2 + $0x20] sm:$0xff]
      %v3892 = vld [vmem:[#allocation2 + $0x28] sm:$0xff]
      %v3893 = vld [vmem:[#allocation2 + $0x30] sm:$0xff]
      %3900 = vrot.lane.b32.xlu0 %v3888, 17
      %v3901 = vpop.permute.xlu0 %3900
      %3902 = vrot.lane.b32.xlu0 %v3889, 17
      %v3903 = vpop.permute.xlu0 %3902
      %3904 = vrot.lane.b32.xlu0 %v3890, 17
      %v3905 = vpop.permute.xlu0 %3904
      %3906 = vrot.lane.b32.xlu0 %v3891, 17
      %v3907 = vpop.permute.xlu0 %3906
      %3908 = vrot.lane.b32.xlu0 %v3892, 17
      %v3909 = vpop.permute.xlu0 %3908
      %3910 = vrot.lane.b32.xlu0 %v3893, 17
      %v3911 = vpop.permute.xlu0 %3910
      %v3912 = vsel %vm1078, %v3901, %v3903
      %v3913 = vsel %vm1078, %v3903, %v3905
      %v3914 = vsel %vm1078, %v3907, %v3909
      %v3915 = vsel %vm1078, %v3909, %v3911
      %v3920 = vsel %vm1094, 0.0, %v3912
      %v3921 = vsel %vm1095, 0.0, %v3913
      %v3922 = vsel %vm1094, 0.0, %v3914
      %v3923 = vsel %vm1095, 0.0, %v3915
      %3924 = vst [vmem:[#allocation3] sm:$0xff] %v3920
      %3925 = vst [vmem:[#allocation3 + $0x8] sm:$0xff] %v3921
      %3926 = vst [vmem:[#allocation3 + $0x10] sm:$0xff] %v3922
      %3927 = vst [vmem:[#allocation3 + $0x18] sm:$0xff] %v3923
      %v3928 = vld [vmem:[#allocation2] sm:$0xff]
      %v3929 = vld [vmem:[#allocation2 + $0x8] sm:$0xff]
      %v3930 = vld [vmem:[#allocation2 + $0x10] sm:$0xff]
      %v3931 = vld [vmem:[#allocation2 + $0x20] sm:$0xff]
      %v3932 = vld [vmem:[#allocation2 + $0x28] sm:$0xff]
      %v3933 = vld [vmem:[#allocation2 + $0x30] sm:$0xff]
      %3940 = vrot.lane.b32.xlu0 %v3928, 16
      %v3941 = vpop.permute.xlu0 %3940
      %3942 = vrot.lane.b32.xlu0 %v3929, 16
      %v3943 = vpop.permute.xlu0 %3942
      %3944 = vrot.lane.b32.xlu0 %v3930, 16
      %v3945 = vpop.permute.xlu0 %3944
      %3946 = vrot.lane.b32.xlu0 %v3931, 16
      %v3947 = vpop.permute.xlu0 %3946
      %3948 = vrot.lane.b32.xlu0 %v3932, 16
      %v3949 = vpop.permute.xlu0 %3948
      %3950 = vrot.lane.b32.xlu0 %v3933, 16
      %v3951 = vpop.permute.xlu0 %3950
      %v3952 = vsel %vm1128, %v3941, %v3943
      %v3953 = vsel %vm1128, %v3943, %v3945
      %v3954 = vsel %vm1128, %v3947, %v3949
      %v3955 = vsel %vm1128, %v3949, %v3951
      %3960 = vst [vmem:[#allocation3 + $0x20] sm:$0xff] %v3952
      %3961 = vst [vmem:[#allocation3 + $0x28] sm:$0xff] %v3953
      %3962 = vst [vmem:[#allocation3 + $0x30] sm:$0xff] %v3954
      %3963 = vst [vmem:[#allocation3 + $0x38] sm:$0xff] %v3955
      %v3964 = vld [vmem:[#allocation2] sm:$0xff]
      %v3965 = vld [vmem:[#allocation2 + $0x8] sm:$0xff]
      %v3966 = vld [vmem:[#allocation2 + $0x10] sm:$0xff]
      %v3967 = vld [vmem:[#allocation2 + $0x20] sm:$0xff]
      %v3968 = vld [vmem:[#allocation2 + $0x28] sm:$0xff]
      %v3969 = vld [vmem:[#allocation2 + $0x30] sm:$0xff]
      %3976 = vrot.lane.b32.xlu0 %v3964, 15
      %v3977 = vpop.permute.xlu0 %3976
      %3978 = vrot.lane.b32.xlu0 %v3965, 15
      %v3979 = vpop.permute.xlu0 %3978
      %3980 = vrot.lane.b32.xlu0 %v3966, 15
      %v3981 = vpop.permute.xlu0 %3980
      %3982 = vrot.lane.b32.xlu0 %v3967, 15
      %v3983 = vpop.permute.xlu0 %3982
      %3984 = vrot.lane.b32.xlu0 %v3968, 15
      %v3985 = vpop.permute.xlu0 %3984
      %3986 = vrot.lane.b32.xlu0 %v3969, 15
      %v3987 = vpop.permute.xlu0 %3986
      %v3988 = vsel %vm1151, %v3977, %v3979
      %v3989 = vsel %vm1151, %v3979, %v3981
      %v3990 = vsel %vm1151, %v3983, %v3985
      %v3991 = vsel %vm1151, %v3985, %v3987
      %v3996 = vsel %vm1140, 0.0, %v3988
      %v3997 = vsel %vm1141, 0.0, %v3989
      %v3998 = vsel %vm1140, 0.0, %v3990
      %v3999 = vsel %vm1141, 0.0, %v3991
      %4000 = vst [vmem:[#allocation3 + $0x40] sm:$0xff] %v3996
      %4001 = vst [vmem:[#allocation3 + $0x48] sm:$0xff] %v3997
      %4002 = vst [vmem:[#allocation3 + $0x50] sm:$0xff] %v3998
      %4003 = vst [vmem:[#allocation3 + $0x58] sm:$0xff] %v3999
      %v4004 = vld [vmem:[#allocation2] sm:$0xff]
      %v4005 = vld [vmem:[#allocation2 + $0x8] sm:$0xff]
      %v4006 = vld [vmem:[#allocation2 + $0x10] sm:$0xff]
      %v4007 = vld [vmem:[#allocation2 + $0x20] sm:$0xff]
      %v4008 = vld [vmem:[#allocation2 + $0x28] sm:$0xff]
      %v4009 = vld [vmem:[#allocation2 + $0x30] sm:$0xff]
      %4016 = vrot.lane.b32.xlu0 %v4004, 1
      %v4017 = vpop.permute.xlu0 %4016
      %4018 = vrot.lane.b32.xlu0 %v4005, 1
      %v4019 = vpop.permute.xlu0 %4018
      %4020 = vrot.lane.b32.xlu0 %v4006, 1
      %v4021 = vpop.permute.xlu0 %4020
      %4022 = vrot.lane.b32.xlu0 %v4007, 1
      %v4023 = vpop.permute.xlu0 %4022
      %4024 = vrot.lane.b32.xlu0 %v4008, 1
      %v4025 = vpop.permute.xlu0 %4024
      %4026 = vrot.lane.b32.xlu0 %v4009, 1
      %v4027 = vpop.permute.xlu0 %4026
      %v4028 = vsel %vm1172, %v4017, %v4019
      %v4029 = vsel %vm1172, %v4019, %v4021
      %v4030 = vsel %vm1172, %v4023, %v4025
      %v4031 = vsel %vm1172, %v4025, %v4027
      %v4036 = vsel %vm1094, 0.0, %v4028
      %v4037 = vsel %vm1095, 0.0, %v4029
      %v4038 = vsel %vm1094, 0.0, %v4030
      %v4039 = vsel %vm1095, 0.0, %v4031
      %4040 = vst [vmem:[#allocation3 + $0x60] sm:$0xff] %v4036
      %4041 = vst [vmem:[#allocation3 + $0x68] sm:$0xff] %v4037
      %4042 = vst [vmem:[#allocation3 + $0x70] sm:$0xff] %v4038
      %4043 = vst [vmem:[#allocation3 + $0x78] sm:$0xff] %v4039
      %v4044 = vld [vmem:[#allocation2 + $0x8] sm:$0xff]
      %v4045 = vld [vmem:[#allocation2 + $0x10] sm:$0xff]
      %v4046 = vld [vmem:[#allocation2 + $0x28] sm:$0xff]
      %v4047 = vld [vmem:[#allocation2 + $0x30] sm:$0xff]
      %4048 = vst [vmem:[#allocation3 + $0x80] sm:$0xff] %v4044
      %4049 = vst [vmem:[#allocation3 + $0x88] sm:$0xff] %v4045
      %4050 = vst [vmem:[#allocation3 + $0x90] sm:$0xff] %v4046
      %4051 = vst [vmem:[#allocation3 + $0x98] sm:$0xff] %v4047
      %v4052 = vld [vmem:[#allocation2 + $0x8] sm:$0xff]
      %v4053 = vld [vmem:[#allocation2 + $0x10] sm:$0xff]
      %v4054 = vld [vmem:[#allocation2 + $0x18] sm:$0xff]
      %v4055 = vld [vmem:[#allocation2 + $0x28] sm:$0xff]
      %v4056 = vld [vmem:[#allocation2 + $0x30] sm:$0xff]
      %v4057 = vld [vmem:[#allocation2 + $0x38] sm:$0xff]
      %4064 = vrot.lane.b32.xlu0 %v4052, 127
      %v4065 = vpop.permute.xlu0 %4064
      %4066 = vrot.lane.b32.xlu0 %v4053, 127
      %v4067 = vpop.permute.xlu0 %4066
      %4068 = vrot.lane.b32.xlu0 %v4054, 127
      %v4069 = vpop.permute.xlu0 %4068
      %4070 = vrot.lane.b32.xlu0 %v4055, 127
      %v4071 = vpop.permute.xlu0 %4070
      %4072 = vrot.lane.b32.xlu0 %v4056, 127
      %v4073 = vpop.permute.xlu0 %4072
      %4074 = vrot.lane.b32.xlu0 %v4057, 127
      %v4075 = vpop.permute.xlu0 %4074
      %v4076 = vsel %vm1203, %v4065, %v4067
      %v4077 = vsel %vm1203, %v4067, %v4069
      %v4078 = vsel %vm1203, %v4071, %v4073
      %v4079 = vsel %vm1203, %v4073, %v4075
      %v4084 = vsel %vm1140, 0.0, %v4076
      %v4085 = vsel %vm1141, 0.0, %v4077
      %v4086 = vsel %vm1140, 0.0, %v4078
      %v4087 = vsel %vm1141, 0.0, %v4079
      %4088 = vst [vmem:[#allocation3 + $0xa0] sm:$0xff] %v4084
      %4089 = vst [vmem:[#allocation3 + $0xa8] sm:$0xff] %v4085
      %4090 = vst [vmem:[#allocation3 + $0xb0] sm:$0xff] %v4086
      %4091 = vst [vmem:[#allocation3 + $0xb8] sm:$0xff] %v4087
      %v4092 = vld [vmem:[#allocation2 + $0x8] sm:$0xff]
      %v4093 = vld [vmem:[#allocation2 + $0x10] sm:$0xff]
      %v4094 = vld [vmem:[#allocation2 + $0x18] sm:$0xff]
      %v4095 = vld [vmem:[#allocation2 + $0x28] sm:$0xff]
      %v4096 = vld [vmem:[#allocation2 + $0x30] sm:$0xff]
      %v4097 = vld [vmem:[#allocation2 + $0x38] sm:$0xff]
      %4104 = vrot.lane.b32.xlu0 %v4092, 113
      %v4105 = vpop.permute.xlu0 %4104
      %4106 = vrot.lane.b32.xlu0 %v4093, 113
      %v4107 = vpop.permute.xlu0 %4106
      %4108 = vrot.lane.b32.xlu0 %v4094, 113
      %v4109 = vpop.permute.xlu0 %4108
      %4110 = vrot.lane.b32.xlu0 %v4095, 113
      %v4111 = vpop.permute.xlu0 %4110
      %4112 = vrot.lane.b32.xlu0 %v4096, 113
      %v4113 = vpop.permute.xlu0 %4112
      %4114 = vrot.lane.b32.xlu0 %v4097, 113
      %v4115 = vpop.permute.xlu0 %4114
      %v4116 = vsel %vm1230, %v4105, %v4107
      %v4117 = vsel %vm1230, %v4107, %v4109
      %v4118 = vsel %vm1230, %v4111, %v4113
      %v4119 = vsel %vm1230, %v4113, %v4115
      %v4124 = vsel %vm1094, 0.0, %v4116
      %v4125 = vsel %vm1095, 0.0, %v4117
      %v4126 = vsel %vm1094, 0.0, %v4118
      %v4127 = vsel %vm1095, 0.0, %v4119
      %4128 = vst [vmem:[#allocation3 + $0xc0] sm:$0xff] %v4124
      %4129 = vst [vmem:[#allocation3 + $0xc8] sm:$0xff] %v4125
      %4130 = vst [vmem:[#allocation3 + $0xd0] sm:$0xff] %v4126
      %4131 = vst [vmem:[#allocation3 + $0xd8] sm:$0xff] %v4127
      %v4132 = vld [vmem:[#allocation2 + $0x8] sm:$0xff]
      %v4133 = vld [vmem:[#allocation2 + $0x10] sm:$0xff]
      %v4134 = vld [vmem:[#allocation2 + $0x18] sm:$0xff]
      %v4135 = vld [vmem:[#allocation2 + $0x28] sm:$0xff]
      %v4136 = vld [vmem:[#allocation2 + $0x30] sm:$0xff]
      %v4137 = vld [vmem:[#allocation2 + $0x38] sm:$0xff]
      %4144 = vrot.lane.b32.xlu0 %v4132, 112
      %v4145 = vpop.permute.xlu0 %4144
      %4146 = vrot.lane.b32.xlu0 %v4133, 112
      %v4147 = vpop.permute.xlu0 %4146
      %4148 = vrot.lane.b32.xlu0 %v4134, 112
      %v4149 = vpop.permute.xlu0 %4148
      %4150 = vrot.lane.b32.xlu0 %v4135, 112
      %v4151 = vpop.permute.xlu0 %4150
      %4152 = vrot.lane.b32.xlu0 %v4136, 112
      %v4153 = vpop.permute.xlu0 %4152
      %4154 = vrot.lane.b32.xlu0 %v4137, 112
      %v4155 = vpop.permute.xlu0 %4154
      %v4156 = vsel %vm1254, %v4145, %v4147
      %v4157 = vsel %vm1254, %v4147, %v4149
      %v4158 = vsel %vm1254, %v4151, %v4153
      %v4159 = vsel %vm1254, %v4153, %v4155
      %4164 = vst [vmem:[#allocation3 + $0xe0] sm:$0xff] %v4156
      %4165 = vst [vmem:[#allocation3 + $0xe8] sm:$0xff] %v4157
      %4166 = vst [vmem:[#allocation3 + $0xf0] sm:$0xff] %v4158
      %4167 = vst [vmem:[#allocation3 + $0xf8] sm:$0xff] %v4159
      %v4168 = vld [vmem:[#allocation2 + $0x8] sm:$0xff]
      %v4169 = vld [vmem:[#allocation2 + $0x10] sm:$0xff]
      %v4170 = vld [vmem:[#allocation2 + $0x18] sm:$0xff]
      %v4171 = vld [vmem:[#allocation2 + $0x28] sm:$0xff]
      %v4172 = vld [vmem:[#allocation2 + $0x30] sm:$0xff]
      %v4173 = vld [vmem:[#allocation2 + $0x38] sm:$0xff]
      %4180 = vrot.lane.b32.xlu0 %v4168, 111
      %v4181 = vpop.permute.xlu0 %4180
      %4182 = vrot.lane.b32.xlu0 %v4169, 111
      %v4183 = vpop.permute.xlu0 %4182
      %4184 = vrot.lane.b32.xlu0 %v4170, 111
      %v4185 = vpop.permute.xlu0 %4184
      %4186 = vrot.lane.b32.xlu0 %v4171, 111
      %v4187 = vpop.permute.xlu0 %4186
      %4188 = vrot.lane.b32.xlu0 %v4172, 111
      %v4189 = vpop.permute.xlu0 %4188
      %4190 = vrot.lane.b32.xlu0 %v4173, 111
      %v4191 = vpop.permute.xlu0 %4190
      %v4192 = vsel %vm1273, %v4181, %v4183
      %v4193 = vsel %vm1273, %v4183, %v4185
      %v4194 = vsel %vm1273, %v4187, %v4189
      %v4195 = vsel %vm1273, %v4189, %v4191
      %v4200 = vsel %vm1140, 0.0, %v4192
      %v4201 = vsel %vm1141, 0.0, %v4193
      %v4202 = vsel %vm1140, 0.0, %v4194
      %v4203 = vsel %vm1141, 0.0, %v4195
      %4204 = vst [vmem:[#allocation3 + $0x100] sm:$0xff] %v4200
      %4205 = vst [vmem:[#allocation3 + $0x108] sm:$0xff] %v4201
      %4206 = vst [vmem:[#allocation3 + $0x110] sm:$0xff] %v4202
      %4207 = vst [vmem:[#allocation3 + $0x118] sm:$0xff] %v4203
      %v4208 = vld [vmem:[%s43] sm:$0xff]
      %v4209 = vld [vmem:[%s43 + $0x8] sm:$0xff]
      %v4210 = vld [vmem:[#allocation3] sm:$0xff]
      %v4211 = vld [vmem:[#allocation3 + $0x8] sm:$0xff]
      %v4212 = vld [vmem:[#allocation3 + $0x10] sm:$0xff]
      %v4213 = vld [vmem:[#allocation3 + $0x18] sm:$0xff]
      %v4214 = vld [vmem:[#allocation3 + $0x20] sm:$0xff]
      %v4215 = vld [vmem:[#allocation3 + $0x28] sm:$0xff]
      %v4216 = vld [vmem:[#allocation3 + $0x30] sm:$0xff]
      %v4217 = vld [vmem:[#allocation3 + $0x38] sm:$0xff]
      %v4218 = vld [vmem:[#allocation3 + $0x40] sm:$0xff]
      %v4219 = vld [vmem:[#allocation3 + $0x48] sm:$0xff]
      %v4220 = vld [vmem:[#allocation3 + $0x50] sm:$0xff]
      %v4221 = vld [vmem:[#allocation3 + $0x58] sm:$0xff]
      %v4222 = vld [vmem:[#allocation3 + $0x60] sm:$0xff]
      %v4223 = vld [vmem:[#allocation3 + $0x68] sm:$0xff]
      %v4224 = vld [vmem:[#allocation3 + $0x70] sm:$0xff]
      %v4225 = vld [vmem:[#allocation3 + $0x78] sm:$0xff]
      %v4226 = vld [vmem:[#allocation3 + $0x80] sm:$0xff]
      %v4227 = vld [vmem:[#allocation3 + $0x88] sm:$0xff]
      %v4228 = vld [vmem:[#allocation3 + $0x90] sm:$0xff]
      %v4229 = vld [vmem:[#allocation3 + $0x98] sm:$0xff]
      %v4230 = vld [vmem:[#allocation3 + $0xa0] sm:$0xff]
      %v4231 = vld [vmem:[#allocation3 + $0xa8] sm:$0xff]
      %v4232 = vld [vmem:[#allocation3 + $0xb0] sm:$0xff]
      %v4233 = vld [vmem:[#allocation3 + $0xb8] sm:$0xff]
      %v4234 = vld [vmem:[#allocation3 + $0xc0] sm:$0xff]
      %v4235 = vld [vmem:[#allocation3 + $0xc8] sm:$0xff]
      %v4236 = vld [vmem:[#allocation3 + $0xd0] sm:$0xff]
      %v4237 = vld [vmem:[#allocation3 + $0xd8] sm:$0xff]
      %v4238 = vld [vmem:[#allocation3 + $0xe0] sm:$0xff]
      %v4239 = vld [vmem:[#allocation3 + $0xe8] sm:$0xff]
      %v4240 = vld [vmem:[#allocation3 + $0xf0] sm:$0xff]
      %v4241 = vld [vmem:[#allocation3 + $0xf8] sm:$0xff]
      %v4242 = vld [vmem:[#allocation3 + $0x100] sm:$0xff]
      %v4243 = vld [vmem:[#allocation3 + $0x108] sm:$0xff]
      %v4244 = vld [vmem:[#allocation3 + $0x110] sm:$0xff]
      %v4245 = vld [vmem:[#allocation3 + $0x118] sm:$0xff]
      %v4246 = vld [vmem:[%s45] sm:$0xff]
      %4248 = vset.pattern.permute.xlu0 0
      %4249 = vperm.xlu0 %4248, %v4246
      %v4250 = vpop.permute.xlu0 %4249
      %v4253 = vsel %vm1128, %v4209, 0
      %4255 = vmatprep.subr.mxu0 %v4211
      %4256 = vmatpush1.msra.mxu0 %v4210
      %4257 = vmatprep.subr.mxu0 %v4213
      %4258 = vmatpush1.msra.mxu0 %v4212
      %4259 = vmatprep.subr.mxu0 %v4215
      %4260 = vmatpush1.msra.mxu0 %v4214
      %4261 = vmatprep.subr.mxu0 %v4217
      %4262 = vmatpush1.msra.mxu0 %v4216
      %4263 = vmatprep.subr.mxu0 %v4219
      %4264 = vmatpush1.msra.mxu0 %v4218
      %4265 = vmatprep.subr.mxu0 %v4221
      %4266 = vmatpush1.msra.mxu0 %v4220
      %4267 = vmatprep.subr.mxu0 %v4223
      %4268 = vmatpush1.msra.mxu0 %v4222
      %4269 = vmatprep.subr.mxu0 %v4225
      %4270 = vmatpush1.msra.mxu0 %v4224
      %4271 = vmatprep.subr.mxu0 %v4227
      %4272 = vmatpush1.msra.mxu0 %v4226
      %4273 = vmatprep.subr.mxu0 %v4229
      %4274 = vmatpush1.msra.mxu0 %v4228
      %4275 = vmatprep.subr.mxu0 %v4231
      %4276 = vmatpush1.msra.mxu0 %v4230
      %4277 = vmatprep.subr.mxu0 %v4233
      %4278 = vmatpush1.msra.mxu0 %v4232
      %4279 = vmatprep.subr.mxu0 %v4235
      %4280 = vmatpush1.msra.mxu0 %v4234
      %4281 = vmatprep.subr.mxu0 %v4237
      %4282 = vmatpush1.msra.mxu0 %v4236
      %4283 = vmatprep.subr.mxu0 %v4239
      %4284 = vmatpush1.msra.mxu0 %v4238
      %4285 = vmatprep.subr.mxu0 %v4241
      %4286 = vmatpush1.msra.mxu0 %v4240
      %4287 = vmatprep.subr.mxu0 %v4243
      %4288 = vmatpush1.msra.mxu0 %v4242
      %4289 = vmatprep.subr.mxu0 %v4245
      %4290 = vmatpush1.msra.mxu0 %v4244
      %4291 = vmatprep.subr.mxu0 0.0
      %4292 = vmatpush1.msra.mxu0 0.0
      %4293 = vmatprep.subr.mxu0 0.0
      %4294 = vmatpush1.msra.mxu0 0.0
      %4295 = vmatprep.subr.mxu0 0.0
      %4296 = vmatpush1.msra.mxu0 0.0
      %4297 = vmatprep.subr.mxu0 0.0
      %4298 = vmatpush1.msra.mxu0 0.0
      %4299 = vmatprep.subr.mxu0 0.0
      %4300 = vmatpush1.msra.mxu0 0.0
      %4301 = vmatprep.subr.mxu0 0.0
      %4302 = vmatpush1.msra.mxu0 0.0
      %4303 = vmatprep.subr.mxu0 0.0
      %4304 = vmatpush1.msra.mxu0 0.0
      %4305 = vmatprep.subr.mxu0 0.0
      %4306 = vmatpush1.msra.mxu0 0.0
      %4307 = vmatprep.subr.mxu0 0.0
      %4308 = vmatpush1.msra.mxu0 0.0
      %4309 = vmatprep.subr.mxu0 0.0
      %4310 = vmatpush1.msra.mxu0 0.0
      %4311 = vmatprep.subr.mxu0 0.0
      %4312 = vmatpush1.msra.mxu0 0.0
      %4313 = vmatprep.subr.mxu0 0.0
      %4314 = vmatpush1.msra.mxu0 0.0
      %4315 = vmatprep.subr.mxu0 0.0
      %4316 = vmatpush1.msra.mxu0 0.0
      %4317 = vmatprep.subr.mxu0 0.0
      %4318 = vmatpush1.msra.mxu0 0.0
      %4319 = vmatprep.mubr.f32.mxu0 %v4253
      %4320 = vmatmul.mubr.f32.gmra.mrb[0].mxu0 %v4208
      %v4321 = vpop.f32.mrb[0].mxu0
      %v4322 = vadd.f32 %v4250, %v4321
      %v4323 = vpop.f32.mrb[0].mxu0
      %v4324 = vadd.f32 %v4250, %v4323
      %4325 = vdwg.mxu0
      %v4326 = vmax.f32 %v4322, 0.0
      %v4327 = vmax.f32 %v4324, 0.0
      %4328 = vst [vmem:[#allocation2 + $0x8] sm:$0xff] %v4326
      %4329 = vst [vmem:[#allocation2 + $0x10] sm:$0xff] %v4327
      %v4330 = vld [vmem:[#allocation2] sm:$0xff]
      %v4331 = vld [vmem:[#allocation2 + $0x8] sm:$0xff]
      %v4332 = vld [vmem:[#allocation2 + $0x10] sm:$0xff]
      %4336 = vrot.lane.b32.xlu0 %v4330, 17
      %v4337 = vpop.permute.xlu0 %4336
      %4338 = vrot.lane.b32.xlu0 %v4331, 17
      %v4339 = vpop.permute.xlu0 %4338
      %4340 = vrot.lane.b32.xlu0 %v4332, 17
      %v4341 = vpop.permute.xlu0 %4340
      %v4342 = vsel %vm1078, %v4337, %v4339
      %v4343 = vsel %vm1078, %v4339, %v4341
      %v4346 = vsel %vm1094, 0.0, %v4342
      %v4347 = vsel %vm1095, 0.0, %v4343
      %4348 = vst [vmem:[#allocation3] sm:$0xff] %v4346
      %4349 = vst [vmem:[#allocation3 + $0x8] sm:$0xff] %v4347
      %v4350 = vld [vmem:[#allocation2] sm:$0xff]
      %v4351 = vld [vmem:[#allocation2 + $0x8] sm:$0xff]
      %v4352 = vld [vmem:[#allocation2 + $0x10] sm:$0xff]
      %4356 = vrot.lane.b32.xlu0 %v4350, 16
      %v4357 = vpop.permute.xlu0 %4356
      %4358 = vrot.lane.b32.xlu0 %v4351, 16
      %v4359 = vpop.permute.xlu0 %4358
      %4360 = vrot.lane.b32.xlu0 %v4352, 16
      %v4361 = vpop.permute.xlu0 %4360
      %v4362 = vsel %vm1128, %v4357, %v4359
      %v4363 = vsel %vm1128, %v4359, %v4361
      %4366 = vst [vmem:[#allocation3 + $0x10] sm:$0xff] %v4362
      %4367 = vst [vmem:[#allocation3 + $0x18] sm:$0xff] %v4363
      %v4368 = vld [vmem:[#allocation2] sm:$0xff]
      %v4369 = vld [vmem:[#allocation2 + $0x8] sm:$0xff]
      %v4370 = vld [vmem:[#allocation2 + $0x10] sm:$0xff]
      %4374 = vrot.lane.b32.xlu0 %v4368, 15
      %v4375 = vpop.permute.xlu0 %4374
      %4376 = vrot.lane.b32.xlu0 %v4369, 15
      %v4377 = vpop.permute.xlu0 %4376
      %4378 = vrot.lane.b32.xlu0 %v4370, 15
      %v4379 = vpop.permute.xlu0 %4378
      %v4380 = vsel %vm1151, %v4375, %v4377
      %v4381 = vsel %vm1151, %v4377, %v4379
      %v4384 = vsel %vm1140, 0.0, %v4380
      %v4385 = vsel %vm1141, 0.0, %v4381
      %4386 = vst [vmem:[#allocation3 + $0x20] sm:$0xff] %v4384
      %4387 = vst [vmem:[#allocation3 + $0x28] sm:$0xff] %v4385
      %v4388 = vld [vmem:[#allocation2] sm:$0xff]
      %v4389 = vld [vmem:[#allocation2 + $0x8] sm:$0xff]
      %v4390 = vld [vmem:[#allocation2 + $0x10] sm:$0xff]
      %4394 = vrot.lane.b32.xlu0 %v4388, 1
      %v4395 = vpop.permute.xlu0 %4394
      %4396 = vrot.lane.b32.xlu0 %v4389, 1
      %v4397 = vpop.permute.xlu0 %4396
      %4398 = vrot.lane.b32.xlu0 %v4390, 1
      %v4399 = vpop.permute.xlu0 %4398
      %v4400 = vsel %vm1172, %v4395, %v4397
      %v4401 = vsel %vm1172, %v4397, %v4399
      %v4404 = vsel %vm1094, 0.0, %v4400
      %v4405 = vsel %vm1095, 0.0, %v4401
      %4406 = vst [vmem:[#allocation3 + $0x30] sm:$0xff] %v4404
      %4407 = vst [vmem:[#allocation3 + $0x38] sm:$0xff] %v4405
      %v4408 = vld [vmem:[#allocation2 + $0x8] sm:$0xff]
      %v4409 = vld [vmem:[#allocation2 + $0x10] sm:$0xff]
      %4410 = vst [vmem:[#allocation3 + $0x40] sm:$0xff] %v4408
      %4411 = vst [vmem:[#allocation3 + $0x48] sm:$0xff] %v4409
      %v4412 = vld [vmem:[#allocation2 + $0x8] sm:$0xff]
      %v4413 = vld [vmem:[#allocation2 + $0x10] sm:$0xff]
      %v4414 = vld [vmem:[#allocation2 + $0x18] sm:$0xff]
      %4418 = vrot.lane.b32.xlu0 %v4412, 127
      %v4419 = vpop.permute.xlu0 %4418
      %4420 = vrot.lane.b32.xlu0 %v4413, 127
      %v4421 = vpop.permute.xlu0 %4420
      %4422 = vrot.lane.b32.xlu0 %v4414, 127
      %v4423 = vpop.permute.xlu0 %4422
      %v4424 = vsel %vm1203, %v4419, %v4421
      %v4425 = vsel %vm1203, %v4421, %v4423
      %v4428 = vsel %vm1140, 0.0, %v4424
      %v4429 = vsel %vm1141, 0.0, %v4425
      %4430 = vst [vmem:[#allocation3 + $0x50] sm:$0xff] %v4428
      %4431 = vst [vmem:[#allocation3 + $0x58] sm:$0xff] %v4429
      %v4432 = vld [vmem:[#allocation2 + $0x8] sm:$0xff]
      %v4433 = vld [vmem:[#allocation2 + $0x10] sm:$0xff]
      %v4434 = vld [vmem:[#allocation2 + $0x18] sm:$0xff]
      %4438 = vrot.lane.b32.xlu0 %v4432, 113
      %v4439 = vpop.permute.xlu0 %4438
      %4440 = vrot.lane.b32.xlu0 %v4433, 113
      %v4441 = vpop.permute.xlu0 %4440
      %4442 = vrot.lane.b32.xlu0 %v4434, 113
      %v4443 = vpop.permute.xlu0 %4442
      %v4444 = vsel %vm1230, %v4439, %v4441
      %v4445 = vsel %vm1230, %v4441, %v4443
      %v4448 = vsel %vm1094, 0.0, %v4444
      %v4449 = vsel %vm1095, 0.0, %v4445
      %4450 = vst [vmem:[#allocation3 + $0x60] sm:$0xff] %v4448
      %4451 = vst [vmem:[#allocation3 + $0x68] sm:$0xff] %v4449
      %v4452 = vld [vmem:[#allocation2 + $0x8] sm:$0xff]
      %v4453 = vld [vmem:[#allocation2 + $0x10] sm:$0xff]
      %v4454 = vld [vmem:[#allocation2 + $0x18] sm:$0xff]
      %4458 = vrot.lane.b32.xlu0 %v4452, 112
      %v4459 = vpop.permute.xlu0 %4458
      %4460 = vrot.lane.b32.xlu0 %v4453, 112
      %v4461 = vpop.permute.xlu0 %4460
      %4462 = vrot.lane.b32.xlu0 %v4454, 112
      %v4463 = vpop.permute.xlu0 %4462
      %v4464 = vsel %vm1254, %v4459, %v4461
      %v4465 = vsel %vm1254, %v4461, %v4463
      %4468 = vst [vmem:[#allocation3 + $0x70] sm:$0xff] %v4464
      %4469 = vst [vmem:[#allocation3 + $0x78] sm:$0xff] %v4465
      %v4470 = vld [vmem:[#allocation2 + $0x8] sm:$0xff]
      %v4471 = vld [vmem:[#allocation2 + $0x10] sm:$0xff]
      %v4472 = vld [vmem:[#allocation2 + $0x18] sm:$0xff]
      %4476 = vrot.lane.b32.xlu0 %v4470, 111
      %v4477 = vpop.permute.xlu0 %4476
      %4478 = vrot.lane.b32.xlu0 %v4471, 111
      %v4479 = vpop.permute.xlu0 %4478
      %4480 = vrot.lane.b32.xlu0 %v4472, 111
      %v4481 = vpop.permute.xlu0 %4480
      %v4482 = vsel %vm1273, %v4477, %v4479
      %v4483 = vsel %vm1273, %v4479, %v4481
      %v4486 = vsel %vm1140, 0.0, %v4482
      %v4487 = vsel %vm1141, 0.0, %v4483
      %4488 = vst [vmem:[#allocation3 + $0x80] sm:$0xff] %v4486
      %4489 = vst [vmem:[#allocation3 + $0x88] sm:$0xff] %v4487
      %v4490 = vld [vmem:[%s47] sm:$0xff]
      %v4491 = vld [vmem:[#allocation3] sm:$0xff]
      %v4492 = vld [vmem:[#allocation3 + $0x8] sm:$0xff]
      %v4493 = vld [vmem:[#allocation3 + $0x10] sm:$0xff]
      %v4494 = vld [vmem:[#allocation3 + $0x18] sm:$0xff]
      %v4495 = vld [vmem:[#allocation3 + $0x20] sm:$0xff]
      %v4496 = vld [vmem:[#allocation3 + $0x28] sm:$0xff]
      %v4497 = vld [vmem:[#allocation3 + $0x30] sm:$0xff]
      %v4498 = vld [vmem:[#allocation3 + $0x38] sm:$0xff]
      %v4499 = vld [vmem:[#allocation3 + $0x40] sm:$0xff]
      %v4500 = vld [vmem:[#allocation3 + $0x48] sm:$0xff]
      %v4501 = vld [vmem:[#allocation3 + $0x50] sm:$0xff]
      %v4502 = vld [vmem:[#allocation3 + $0x58] sm:$0xff]
      %v4503 = vld [vmem:[#allocation3 + $0x60] sm:$0xff]
      %v4504 = vld [vmem:[#allocation3 + $0x68] sm:$0xff]
      %v4505 = vld [vmem:[#allocation3 + $0x70] sm:$0xff]
      %v4506 = vld [vmem:[#allocation3 + $0x78] sm:$0xff]
      %v4507 = vld [vmem:[#allocation3 + $0x80] sm:$0xff]
      %v4508 = vld [vmem:[#allocation3 + $0x88] sm:$0xff]
      %v4509 = vld [vmem:[%s49] sm:$0xff]
      %4511 = vset.pattern.permute.xlu0 0
      %4512 = vperm.xlu0 %4511, %v4509
      %v4513 = vpop.permute.xlu0 %4512
      %v4516 = vsel %vm1570, %v4490, 0
      %4518 = vmatprep.subr.mxu0 %v4492
      %4519 = vmatpush1.msra.mxu0 %v4491
      %4520 = vmatprep.subr.mxu0 %v4494
      %4521 = vmatpush1.msra.mxu0 %v4493
      %4522 = vmatprep.subr.mxu0 %v4496
      %4523 = vmatpush1.msra.mxu0 %v4495
      %4524 = vmatprep.subr.mxu0 %v4498
      %4525 = vmatpush1.msra.mxu0 %v4497
      %4526 = vmatprep.subr.mxu0 %v4500
      %4527 = vmatpush1.msra.mxu0 %v4499
      %4528 = vmatprep.subr.mxu0 %v4502
      %4529 = vmatpush1.msra.mxu0 %v4501
      %4530 = vmatprep.subr.mxu0 %v4504
      %4531 = vmatpush1.msra.mxu0 %v4503
      %4532 = vmatprep.subr.mxu0 %v4506
      %4533 = vmatpush1.msra.mxu0 %v4505
      %4534 = vmatprep.subr.mxu0 %v4508
      %4535 = vmatpush1.msra.mxu0 %v4507
      %4536 = vmatprep.subr.mxu0 0.0
      %4537 = vmatpush1.msra.mxu0 0.0
      %4538 = vmatprep.subr.mxu0 0.0
      %4539 = vmatpush1.msra.mxu0 0.0
      %4540 = vmatprep.subr.mxu0 0.0
      %4541 = vmatpush1.msra.mxu0 0.0
      %4542 = vmatprep.subr.mxu0 0.0
      %4543 = vmatpush1.msra.mxu0 0.0
      %4544 = vmatprep.subr.mxu0 0.0
      %4545 = vmatpush1.msra.mxu0 0.0
      %4546 = vmatprep.subr.mxu0 0.0
      %4547 = vmatpush1.msra.mxu0 0.0
      %4548 = vmatprep.subr.mxu0 0.0
      %4549 = vmatpush1.msra.mxu0 0.0
      %4550 = vmatprep.subr.mxu0 0.0
      %4551 = vmatpush1.msra.mxu0 0.0
      %4552 = vmatprep.subr.mxu0 0.0
      %4553 = vmatpush1.msra.mxu0 0.0
      %4554 = vmatprep.subr.mxu0 0.0
      %4555 = vmatpush1.msra.mxu0 0.0
      %4556 = vmatprep.subr.mxu0 0.0
      %4557 = vmatpush1.msra.mxu0 0.0
      %4558 = vmatprep.subr.mxu0 0.0
      %4559 = vmatpush1.msra.mxu0 0.0
      %4560 = vmatprep.subr.mxu0 0.0
      %4561 = vmatpush1.msra.mxu0 0.0
      %4562 = vmatprep.subr.mxu0 0.0
      %4563 = vmatpush1.msra.mxu0 0.0
      %4564 = vmatprep.subr.mxu0 0.0
      %4565 = vmatpush1.msra.mxu0 0.0
      %4566 = vmatprep.subr.mxu0 0.0
      %4567 = vmatpush1.msra.mxu0 0.0
      %4568 = vmatprep.subr.mxu0 0.0
      %4569 = vmatpush1.msra.mxu0 0.0
      %4570 = vmatprep.subr.mxu0 0.0
      %4571 = vmatpush1.msra.mxu0 0.0
      %4572 = vmatprep.subr.mxu0 0.0
      %4573 = vmatpush1.msra.mxu0 0.0
      %4574 = vmatprep.subr.mxu0 0.0
      %4575 = vmatpush1.msra.mxu0 0.0
      %4576 = vmatprep.subr.mxu0 0.0
      %4577 = vmatpush1.msra.mxu0 0.0
      %4578 = vmatprep.subr.mxu0 0.0
      %4579 = vmatpush1.msra.mxu0 0.0
      %4580 = vmatprep.subr.mxu0 0.0
      %4581 = vmatpush1.msra.mxu0 0.0
      %4582 = vmatprep.mubr.f32.mxu0 0.0
      %4583 = vmatmul.mubr.f32.gmra.mrb[0].mxu0 %v4516
      %v4584 = vpop.f32.mrb[0].mxu0
      %v4585 = vadd.f32 %v4513, %v4584
      %v4586 = vpop.f32.mrb[0].mxu0
      %v4587 = vadd.f32 %v4513, %v4586
      %4588 = vdwg.mxu0
      %4589 = vst [vmem:[#allocation2] sm:$0xff] 0.0
      %4590 = vst [vmem:[#allocation2 + $0x8] sm:$0xff] 0.0
      %4591 = vst [vmem:[#allocation2 + $0x10] sm:$0xff] 0.0
      %4592 = vst.msk [vmem:[#allocation2 + $0x18] sm:$0xff] %vm1078, 0.0
      %4593 = vst [vmem:[#allocation2 + $0x20] sm:$0xff] 0.0
      %4594 = vst [vmem:[#allocation2 + $0x28] sm:$0xff] 0.0
      %4595 = vst [vmem:[#allocation2 + $0x30] sm:$0xff] 0.0
      %4596 = vst.msk [vmem:[#allocation2 + $0x38] sm:$0xff] %vm1078, 0.0
      %4597 = vst [vmem:[#allocation2 + $0x8] sm:$0xff] %v4585
      %4598 = vst [vmem:[#allocation2 + $0x10] sm:$0xff] %v4587
      %v4599 = vld [vmem:[#allocation2] sm:$0xff]
      %v4600 = vld [vmem:[#allocation2 + $0x8] sm:$0xff]
      %v4601 = vld [vmem:[#allocation2 + $0x10] sm:$0xff]
      %4605 = vrot.lane.b32.xlu0 %v4599, 17
      %v4606 = vpop.permute.xlu0 %4605
      %4607 = vrot.lane.b32.xlu0 %v4600, 17
      %v4608 = vpop.permute.xlu0 %4607
      %4609 = vrot.lane.b32.xlu0 %v4601, 17
      %v4610 = vpop.permute.xlu0 %4609
      %v4611 = vsel %vm1078, %v4606, %v4608
      %v4612 = vsel %vm1078, %v4608, %v4610
      %v4615 = vsel %vm1094, 0.0, %v4611
      %v4616 = vsel %vm1095, 0.0, %v4612
      %4617 = vst [vmem:[#allocation3] sm:$0xff] %v4615
      %4618 = vst [vmem:[#allocation3 + $0x8] sm:$0xff] %v4616
      %v4619 = vld [vmem:[#allocation2] sm:$0xff]
      %v4620 = vld [vmem:[#allocation2 + $0x8] sm:$0xff]
      %v4621 = vld [vmem:[#allocation2 + $0x10] sm:$0xff]
      %4625 = vrot.lane.b32.xlu0 %v4619, 16
      %v4626 = vpop.permute.xlu0 %4625
      %4627 = vrot.lane.b32.xlu0 %v4620, 16
      %v4628 = vpop.permute.xlu0 %4627
      %4629 = vrot.lane.b32.xlu0 %v4621, 16
      %v4630 = vpop.permute.xlu0 %4629
      %v4631 = vsel %vm1128, %v4626, %v4628
      %v4632 = vsel %vm1128, %v4628, %v4630
      %4635 = vst [vmem:[#allocation3 + $0x10] sm:$0xff] %v4631
      %4636 = vst [vmem:[#allocation3 + $0x18] sm:$0xff] %v4632
      %v4637 = vld [vmem:[#allocation2] sm:$0xff]
      %v4638 = vld [vmem:[#allocation2 + $0x8] sm:$0xff]
      %v4639 = vld [vmem:[#allocation2 + $0x10] sm:$0xff]
      %4643 = vrot.lane.b32.xlu0 %v4637, 15
      %v4644 = vpop.permute.xlu0 %4643
      %4645 = vrot.lane.b32.xlu0 %v4638, 15
      %v4646 = vpop.permute.xlu0 %4645
      %4647 = vrot.lane.b32.xlu0 %v4639, 15
      %v4648 = vpop.permute.xlu0 %4647
      %v4649 = vsel %vm1151, %v4644, %v4646
      %v4650 = vsel %vm1151, %v4646, %v4648
      %v4653 = vsel %vm1140, 0.0, %v4649
      %v4654 = vsel %vm1141, 0.0, %v4650
      %4655 = vst [vmem:[#allocation3 + $0x20] sm:$0xff] %v4653
      %4656 = vst [vmem:[#allocation3 + $0x28] sm:$0xff] %v4654
      %v4657 = vld [vmem:[#allocation2] sm:$0xff]
      %v4658 = vld [vmem:[#allocation2 + $0x8] sm:$0xff]
      %v4659 = vld [vmem:[#allocation2 + $0x10] sm:$0xff]
      %4663 = vrot.lane.b32.xlu0 %v4657, 1
      %v4664 = vpop.permute.xlu0 %4663
      %4665 = vrot.lane.b32.xlu0 %v4658, 1
      %v4666 = vpop.permute.xlu0 %4665
      %4667 = vrot.lane.b32.xlu0 %v4659, 1
      %v4668 = vpop.permute.xlu0 %4667
      %v4669 = vsel %vm1172, %v4664, %v4666
      %v4670 = vsel %vm1172, %v4666, %v4668
      %v4673 = vsel %vm1094, 0.0, %v4669
      %v4674 = vsel %vm1095, 0.0, %v4670
      %4675 = vst [vmem:[#allocation3 + $0x30] sm:$0xff] %v4673
      %4676 = vst [vmem:[#allocation3 + $0x38] sm:$0xff] %v4674
      %v4677 = vld [vmem:[#allocation2 + $0x8] sm:$0xff]
      %v4678 = vld [vmem:[#allocation2 + $0x10] sm:$0xff]
      %4679 = vst [vmem:[#allocation3 + $0x40] sm:$0xff] %v4677
      %4680 = vst [vmem:[#allocation3 + $0x48] sm:$0xff] %v4678
      %v4681 = vld [vmem:[#allocation2 + $0x8] sm:$0xff]
      %v4682 = vld [vmem:[#allocation2 + $0x10] sm:$0xff]
      %v4683 = vld [vmem:[#allocation2 + $0x18] sm:$0xff]
      %4687 = vrot.lane.b32.xlu0 %v4681, 127
      %v4688 = vpop.permute.xlu0 %4687
      %4689 = vrot.lane.b32.xlu0 %v4682, 127
      %v4690 = vpop.permute.xlu0 %4689
      %4691 = vrot.lane.b32.xlu0 %v4683, 127
      %v4692 = vpop.permute.xlu0 %4691
      %v4693 = vsel %vm1203, %v4688, %v4690
      %v4694 = vsel %vm1203, %v4690, %v4692
      %v4697 = vsel %vm1140, 0.0, %v4693
      %v4698 = vsel %vm1141, 0.0, %v4694
      %4699 = vst [vmem:[#allocation3 + $0x50] sm:$0xff] %v4697
      %4700 = vst [vmem:[#allocation3 + $0x58] sm:$0xff] %v4698
      %v4701 = vld [vmem:[#allocation2 + $0x8] sm:$0xff]
      %v4702 = vld [vmem:[#allocation2 + $0x10] sm:$0xff]
      %v4703 = vld [vmem:[#allocation2 + $0x18] sm:$0xff]
      %4707 = vrot.lane.b32.xlu0 %v4701, 113
      %v4708 = vpop.permute.xlu0 %4707
      %4709 = vrot.lane.b32.xlu0 %v4702, 113
      %v4710 = vpop.permute.xlu0 %4709
      %4711 = vrot.lane.b32.xlu0 %v4703, 113
      %v4712 = vpop.permute.xlu0 %4711
      %v4713 = vsel %vm1230, %v4708, %v4710
      %v4714 = vsel %vm1230, %v4710, %v4712
      %v4717 = vsel %vm1094, 0.0, %v4713
      %v4718 = vsel %vm1095, 0.0, %v4714
      %4719 = vst [vmem:[#allocation3 + $0x60] sm:$0xff] %v4717
      %4720 = vst [vmem:[#allocation3 + $0x68] sm:$0xff] %v4718
      %v4721 = vld [vmem:[#allocation2 + $0x8] sm:$0xff]
      %v4722 = vld [vmem:[#allocation2 + $0x10] sm:$0xff]
      %v4723 = vld [vmem:[#allocation2 + $0x18] sm:$0xff]
      %4727 = vrot.lane.b32.xlu0 %v4721, 112
      %v4728 = vpop.permute.xlu0 %4727
      %4729 = vrot.lane.b32.xlu0 %v4722, 112
      %v4730 = vpop.permute.xlu0 %4729
      %4731 = vrot.lane.b32.xlu0 %v4723, 112
      %v4732 = vpop.permute.xlu0 %4731
      %v4733 = vsel %vm1254, %v4728, %v4730
      %v4734 = vsel %vm1254, %v4730, %v4732
      %4737 = vst [vmem:[#allocation3 + $0x70] sm:$0xff] %v4733
      %4738 = vst [vmem:[#allocation3 + $0x78] sm:$0xff] %v4734
      %v4739 = vld [vmem:[#allocation2 + $0x8] sm:$0xff]
      %v4740 = vld [vmem:[#allocation2 + $0x10] sm:$0xff]
      %v4741 = vld [vmem:[#allocation2 + $0x18] sm:$0xff]
      %4745 = vrot.lane.b32.xlu0 %v4739, 111
      %v4746 = vpop.permute.xlu0 %4745
      %4747 = vrot.lane.b32.xlu0 %v4740, 111
      %v4748 = vpop.permute.xlu0 %4747
      %4749 = vrot.lane.b32.xlu0 %v4741, 111
      %v4750 = vpop.permute.xlu0 %4749
      %v4751 = vsel %vm1273, %v4746, %v4748
      %v4752 = vsel %vm1273, %v4748, %v4750
      %v4755 = vsel %vm1140, 0.0, %v4751
      %v4756 = vsel %vm1141, 0.0, %v4752
      %4757 = vst [vmem:[#allocation3 + $0x80] sm:$0xff] %v4755
      %4758 = vst [vmem:[#allocation3 + $0x88] sm:$0xff] %v4756
      %v4759 = vld [vmem:[%s51] sm:$0x1]
      %v4760 = vld [vmem:[#allocation3] sm:$0xff]
      %v4761 = vld [vmem:[#allocation3 + $0x8] sm:$0xff]
      %v4762 = vld [vmem:[#allocation3 + $0x10] sm:$0xff]
      %v4763 = vld [vmem:[#allocation3 + $0x18] sm:$0xff]
      %v4764 = vld [vmem:[#allocation3 + $0x20] sm:$0xff]
      %v4765 = vld [vmem:[#allocation3 + $0x28] sm:$0xff]
      %v4766 = vld [vmem:[#allocation3 + $0x30] sm:$0xff]
      %v4767 = vld [vmem:[#allocation3 + $0x38] sm:$0xff]
      %v4768 = vld [vmem:[#allocation3 + $0x40] sm:$0xff]
      %v4769 = vld [vmem:[#allocation3 + $0x48] sm:$0xff]
      %v4770 = vld [vmem:[#allocation3 + $0x50] sm:$0xff]
      %v4771 = vld [vmem:[#allocation3 + $0x58] sm:$0xff]
      %v4772 = vld [vmem:[#allocation3 + $0x60] sm:$0xff]
      %v4773 = vld [vmem:[#allocation3 + $0x68] sm:$0xff]
      %v4774 = vld [vmem:[#allocation3 + $0x70] sm:$0xff]
      %v4775 = vld [vmem:[#allocation3 + $0x78] sm:$0xff]
      %v4776 = vld [vmem:[#allocation3 + $0x80] sm:$0xff]
      %v4777 = vld [vmem:[#allocation3 + $0x88] sm:$0xff]
      %v4778 = vld [vmem:[#allocation8] sm:$0x1]
      %4780 = vset.pattern.permute.xlu0 0
      %4781 = vperm.xlu0 %4780, %v4778
      %v4782 = vpop.permute.xlu0 %4781
      %v4784 = vlaneseq
      %v4785 = vshrl.u32 %v4784, 7
      %v4786 = vsub.s32 0, %v4785
      %v4787 = vrot.slane %v4782, %v4786
      %v4789 = vsel %vm1570, %v4759, 0
      %4791 = vmatprep.subr.mxu0 %v4761
      %4792 = vmatpush1.msra.mxu0 %v4760
      %4793 = vmatprep.subr.mxu0 %v4763
      %4794 = vmatpush1.msra.mxu0 %v4762
      %4795 = vmatprep.subr.mxu0 %v4765
      %4796 = vmatpush1.msra.mxu0 %v4764
      %4797 = vmatprep.subr.mxu0 %v4767
      %4798 = vmatpush1.msra.mxu0 %v4766
      %4799 = vmatprep.subr.mxu0 %v4769
      %4800 = vmatpush1.msra.mxu0 %v4768
      %4801 = vmatprep.subr.mxu0 %v4771
      %4802 = vmatpush1.msra.mxu0 %v4770
      %4803 = vmatprep.subr.mxu0 %v4773
      %4804 = vmatpush1.msra.mxu0 %v4772
      %4805 = vmatprep.subr.mxu0 %v4775
      %4806 = vmatpush1.msra.mxu0 %v4774
      %4807 = vmatprep.subr.mxu0 %v4777
      %4808 = vmatpush1.msra.mxu0 %v4776
      %4809 = vmatprep.subr.mxu0 0.0
      %4810 = vmatpush1.msra.mxu0 0.0
      %4811 = vmatprep.subr.mxu0 0.0
      %4812 = vmatpush1.msra.mxu0 0.0
      %4813 = vmatprep.subr.mxu0 0.0
      %4814 = vmatpush1.msra.mxu0 0.0
      %4815 = vmatprep.subr.mxu0 0.0
      %4816 = vmatpush1.msra.mxu0 0.0
      %4817 = vmatprep.subr.mxu0 0.0
      %4818 = vmatpush1.msra.mxu0 0.0
      %4819 = vmatprep.subr.mxu0 0.0
      %4820 = vmatpush1.msra.mxu0 0.0
      %4821 = vmatprep.subr.mxu0 0.0
      %4822 = vmatpush1.msra.mxu0 0.0
      %4823 = vmatprep.subr.mxu0 0.0
      %4824 = vmatpush1.msra.mxu0 0.0
      %4825 = vmatprep.subr.mxu0 0.0
      %4826 = vmatpush1.msra.mxu0 0.0
      %4827 = vmatprep.subr.mxu0 0.0
      %4828 = vmatpush1.msra.mxu0 0.0
      %4829 = vmatprep.subr.mxu0 0.0
      %4830 = vmatpush1.msra.mxu0 0.0
      %4831 = vmatprep.subr.mxu0 0.0
      %4832 = vmatpush1.msra.mxu0 0.0
      %4833 = vmatprep.subr.mxu0 0.0
      %4834 = vmatpush1.msra.mxu0 0.0
      %4835 = vmatprep.subr.mxu0 0.0
      %4836 = vmatpush1.msra.mxu0 0.0
      %4837 = vmatprep.subr.mxu0 0.0
      %4838 = vmatpush1.msra.mxu0 0.0
      %4839 = vmatprep.subr.mxu0 0.0
      %4840 = vmatpush1.msra.mxu0 0.0
      %4841 = vmatprep.subr.mxu0 0.0
      %4842 = vmatpush1.msra.mxu0 0.0
      %4843 = vmatprep.subr.mxu0 0.0
      %4844 = vmatpush1.msra.mxu0 0.0
      %4845 = vmatprep.subr.mxu0 0.0
      %4846 = vmatpush1.msra.mxu0 0.0
      %4847 = vmatprep.subr.mxu0 0.0
      %4848 = vmatpush1.msra.mxu0 0.0
      %4849 = vmatprep.subr.mxu0 0.0
      %4850 = vmatpush1.msra.mxu0 0.0
      %4851 = vmatprep.subr.mxu0 0.0
      %4852 = vmatpush1.msra.mxu0 0.0
      %4853 = vmatprep.subr.mxu0 0.0
      %4854 = vmatpush1.msra.mxu0 0.0
      %4855 = vmatprep.mubr.f32.mxu0 0.0
      %4856 = vmatmul.mubr.f32.gmra.mrb[0].mxu0 %v4789
      %v4857 = vpop.f32.mrb[0].mxu0
      %v4858 = vadd.f32 %v4787, %v4857
      %v4859 = vpop.f32.mrb[0].mxu0
      %v4860 = vadd.f32 %v4787, %v4859
      %4861 = vdwg.mxu0
      %v4862 = vadd.f32 %v4858, %v3286
      %v4863 = vadd.f32 %v4860, %v3288
      %v4864 = vadd.f32 %v4862, %v3872
      %v4865 = vadd.f32 %v4863, %v3874
      %v4868 = vcombine.low %v4864, %v4865
      %v4870 = vunpack.c.l.s4 1966171168
      %v4871 = vunpack.c.0.s8 %v4870
      %v4872 = vlaneseq
      %v4873 = vshrl.u32 %v4872, 7
      %v4874 = vsub.s32 %v4871, %v4873
      %v4875 = vrot.slane %v4868, %v4874
      %v4877 = vunpack.c.l.s4 1966171168
      %v4878 = vunpack.c.0.s8 %v4877
      %v4879 = vlaneseq
      %v4880 = vshrl.u32 %v4879, 7
      %v4881 = vsub.s32 %v4878, %v4880
      %v4882 = vrot.slane %v4875, %v4881
      %v4884 = vlaneseq
      %vm4885 = vcmp.ge.s32.totalorder %v4884, 0
      %vm4886 = vcmp.lt.s32.totalorder %v4884, 256
      %vm4887 = vmand %vm4885, %vm4886
      %4888 = vst.msk [vmem:[%s1014] sm:$0x3] %vm4887, %v4882
      %p4889 = scmp.lt.s32.totalorder %s80, 1
      %s4890 = scalar_select %p4889, %s80, 1
      %s4891 = smul.addr %s4890, 2
      %s4892 = scalar_lea.vmem %s67, %s4891
      // Predicated region
      $region153: #{flexinet_forward.1} parent=151 // pred_check
        %p4893 = pneg %p796
      $region154: #{flexinet_forward.1} parent=151 // pred_check_branch
        %4895 = sbr.rel (%p4893) target = $region156
      $region155: #{flexinet_forward.1} parent=151 // pred_region
        _
      $region156: #{flexinet_forward.1} parent=151 // pred_fallthru
        _
    $region152: #{flexinet_forward.1} parent=5 // pred_fallthru
      _
    %p4896 = scmp.le.s32.totalorder 2, %s75
    // Predicated region
    $region157: #{flexinet_forward.1} parent=5 // pred_check
      %p4897 = pneg %p4896
    $region158: #{flexinet_forward.1} parent=5 // pred_check_branch
      %4899 = sbr.rel (%p4897) target = $region160
    $region159: #{flexinet_forward.1} parent=5 // pred_region
      %s4900 = ssub.s32 %s75, 2
      // Predicated region
      $region161: #{flexinet_forward.1} parent=159 // pred_check
        %p4901 = pneg %p802
      $region162: #{flexinet_forward.1} parent=159 // pred_check_branch
        %4903 = sbr.rel (%p4901) target = $region164
      $region163: #{flexinet_forward.1} parent=159 // pred_region
        %p4904 = scmp.lt.s32.totalorder %s81, 1
        %s4905 = scalar_select %p4904, %s81, 1
        %s4906 = smul.addr %s4905, 2
        %s4907 = scalar_lea.vmem %s67, %s4906
      $region164: #{flexinet_forward.1} parent=159 // pred_fallthru
        _
    $region160: #{flexinet_forward.1} parent=5 // pred_fallthru
      _
  $region6: #{flexinet_forward.1} parent=0 // loop_footer
    %s79 = sadd.s32 1, %s75
  $region7: #{flexinet_forward.1} parent=0 // loop_footer_branch
    %74 = sbr.rel target = $region3
  $region8: #{flexinet_forward.1} parent=0 // loop_exit
    _

</llo_original>
